<compile_context>
chip_gen: v6e
topology: v6e:2x2x1
jax: 0.10.0
libtpu: 0.0.40
codegen_flags: <defaults>
</compile_context>

<pallas_src>
import math

import numpy as np
import jax
import jax.numpy as jnp
from jax import lax
from jax.experimental import pallas as pl
from jax.experimental.pallas import tpu as pltpu


# ---------------------------- VMEM budgeting ---------------------------------

def _detect_vmem_limit():
    """Generation-aware scoped-VMEM budget: ~96 MiB on v5e/v6e (128 MiB
    physical), ~48 MiB on v7x (64 MiB physical)."""
    cap = None
    try:
        info = pltpu.get_tpu_info()
        for name in ("vmem_capacity_bytes", "vmem_size_bytes", "vmem_bytes"):
            cap = getattr(info, name, None)
            if cap:
                break
    except Exception:
        cap = None
    if not cap:
        cap = 64 * 1024 * 1024          # conservative (v7x-sized) fallback
    return int(min(cap * 3 // 4, 96 * 1024 * 1024))


_VMEM_LIMIT = _detect_vmem_limit()
_TILE_TARGET_BYTES = 2 * 1024 * 1024    # ~2 MiB of activation rows per grid step


# ------------------------------- helpers ------------------------------------

def _row_tile(m, row_bytes):
    """Row tile: a multiple-of-8 divisor of m targeting ~2 MiB of row data per
    grid step, and at least two grid steps (v7x megacore) when m allows."""
    if m <= 16:
        return m
    cap = min(m // 2, max(8, _TILE_TARGET_BYTES // max(row_bytes, 1)))
    cap -= cap % 8
    if cap < 8:
        return m
    t = cap
    while t >= 8 and m % t:
        t -= 8
    return t if t >= 8 else m


def _rowwise_call(kernel, row_inputs, shared_inputs, n_out, out_dtype):
    """Run `kernel` on row tiles of `row_inputs` (each (M, .)).  The
    `shared_inputs` (weights / biases / LN params) have a constant block index,
    so the auto-pipeline only DMAs them once for the whole grid.
    TODO(synk): mark shared specs pipeline_mode=pl.Buffered(1) once that is
    plumbed through pallas_call to halve their resident VMEM footprint."""
    M = row_inputs[0].shape[0]
    row_bytes = sum(a.shape[1] * a.dtype.itemsize for a in row_inputs)
    row_bytes += n_out * jnp.dtype(out_dtype).itemsize
    tm = _row_tile(M, row_bytes)
    in_specs = [pl.BlockSpec((tm, a.shape[1]), lambda i: (i, 0))
                for a in row_inputs]
    in_specs += [pl.BlockSpec(a.shape, lambda i, nd=a.ndim: (0,) * nd)
                 for a in shared_inputs]
    return pl.pallas_call(
        kernel,
        out_shape=jax.ShapeDtypeStruct((M, n_out), out_dtype),
        grid=(M // tm,),
        in_specs=in_specs,
        out_specs=pl.BlockSpec((tm, n_out), lambda i: (i, 0)),
        compiler_params=pltpu.CompilerParams(
            dimension_semantics=("parallel",),
            vmem_limit_bytes=_VMEM_LIMIT),
    )(*row_inputs, *shared_inputs)


def _ln(x, g, b, eps=1e-5):
    mean = jnp.mean(x, axis=-1, keepdims=True)
    var = jnp.mean(jnp.square(x - mean), axis=-1, keepdims=True)
    return (x - mean) * lax.rsqrt(var + eps) * g + b


_INV_SQRT2 = 0.7071067811865476


def _erf_f32(x):
    # Abramowitz & Stegun 7.1.26 rational approximation, |err| < 1.5e-7
    # (f32-exact).  Only exp / mul / add -> always lowers in Mosaic, so the
    # exact-GELU MLP can be fused inside a single kernel.
    a1, a2, a3, a4, a5 = (0.254829592, -0.284496736, 1.421413741,
                          -1.453152027, 1.061405429)
    p = 0.3275911
    ax = jnp.abs(x)
    t = 1.0 / (1.0 + p * ax)
    poly = ((((a5 * t + a4) * t + a3) * t + a2) * t + a1) * t
    y = 1.0 - poly * jnp.exp(-ax * ax)
    return jnp.where(x >= 0, y, -y)


def _gelu_exact(x):
    return 0.5 * x * (1.0 + _erf_f32(x * _INV_SQRT2))


# ----------------------------- Pallas kernels -------------------------------

def _linear_kernel(x_ref, w_ref, bias_ref, o_ref):
    acc = jnp.dot(x_ref[...].astype(jnp.bfloat16), w_ref[...],
                  preferred_element_type=jnp.float32)
    o_ref[...] = (acc + bias_ref[...]).astype(o_ref.dtype)


def _linear_ln_kernel(x_ref, w_ref, bias_ref, g_ref, b_ref, o_ref):
    # patch embedding: projection followed by LayerNorm, fused.
    y = jnp.dot(x_ref[...].astype(jnp.bfloat16), w_ref[...],
                preferred_element_type=jnp.float32) + bias_ref[...]
    o_ref[...] = _ln(y, g_ref[...], b_ref[...]).astype(o_ref.dtype)


def _ln_linear_kernel(x_ref, g_ref, b_ref, w_ref, bias_ref, o_ref):
    # pre-norm + projection (LN1+qkv and patch-merging norm+reduce).
    y = _ln(x_ref[...].astype(jnp.float32), g_ref[...], b_ref[...])
    acc = jnp.dot(y.astype(jnp.bfloat16), w_ref[...],
                  preferred_element_type=jnp.float32)
    o_ref[...] = (acc + bias_ref[...]).astype(o_ref.dtype)


def _linear_residual_kernel(x_ref, res_ref, w_ref, bias_ref, o_ref):
    # attention output projection with the residual add fused in its epilogue.
    acc = jnp.dot(x_ref[...].astype(jnp.bfloat16), w_ref[...],
                  preferred_element_type=jnp.float32) + bias_ref[...]
    o_ref[...] = (res_ref[...].astype(jnp.float32) + acc).astype(o_ref.dtype)


def _mlp_block_kernel(x_ref, g_ref, b_ref, w1_ref, b1_ref, w2_ref, b2_ref,
                      o_ref):
    # fully fused sublayer 2: x + W2(GELU(W1(LN(x)))); the 4C-wide hidden
    # activation never leaves VMEM.
    # TODO(synk): for very large variants (e.g. Swin-B stage 4 on v7x) add a
    # hidden-dim reduction grid axis (f32 accumulator + pl.when) instead of
    # keeping both full weights VMEM-resident.
    x = x_ref[...].astype(jnp.float32)
    y = _ln(x, g_ref[...], b_ref[...])
    h = jnp.dot(y.astype(jnp.bfloat16), w1_ref[...],
                preferred_element_type=jnp.float32) + b1_ref[...]
    h = _gelu_exact(h)                              # exact GELU, f32
    out = jnp.dot(h.astype(jnp.bfloat16), w2_ref[...],
                  preferred_element_type=jnp.float32) + b2_ref[...]
    o_ref[...] = (x + out).astype(o_ref.dtype)


def _layernorm_kernel(x_ref, g_ref, b_ref, o_ref):
    o_ref[...] = _ln(x_ref[...].astype(jnp.float32),
                     g_ref[...], b_ref[...]).astype(o_ref.dtype)


def _wattn_kernel(q_ref, k_ref, v_ref, bias_ref, o_ref):
    # One grid step = one batch element, all windows*heads folded into the
    # batched matmul dim G.  q/k/v/o: (G, L, hd); bias (rel-pos + mask,
    # pre-combined): (G, L, L).  q is pre-scaled by 1/sqrt(hd) at build time.
    q = q_ref[...]                                   # bf16
    k = k_ref[...]
    v = v_ref[...]
    logits = lax.dot_general(q, k, (((2,), (2,)), ((0,), (0,))),
                             preferred_element_type=jnp.float32)
    logits = logits + bias_ref[...]                  # (G, L, L), no reshapes
    m = jnp.max(logits, axis=-1, keepdims=True)
    p = jnp.exp(logits - m)
    probs = p * pl.reciprocal(jnp.sum(p, axis=-1, keepdims=True), approx=True)
    out = lax.dot_general(probs.astype(q.dtype), v,
                          (((2,), (1,)), ((0,), (0,))),
                          preferred_element_type=jnp.float32)
    o_ref[...] = out.astype(o_ref.dtype)             # single whole-block store


# ------------------------------ op wrappers ----------------------------------

def pallas_linear(x2d, w_kn, bias):
    N = w_kn.shape[1]
    return _rowwise_call(_linear_kernel, [x2d],
                         [w_kn, bias.reshape(1, N)], N, jnp.float32)


def pallas_linear_ln(x2d, w_kn, bias, gamma, beta):
    N = w_kn.shape[1]
    return _rowwise_call(_linear_ln_kernel, [x2d],
                         [w_kn, bias.reshape(1, N),
                          gamma.reshape(1, N), beta.reshape(1, N)],
                         N, jnp.float32)


def pallas_ln_linear(x2d, gamma, beta, w_kn, bias, out_dtype=jnp.float32):
    K = x2d.shape[1]
    N = w_kn.shape[1]
    return _rowwise_call(_ln_linear_kernel, [x2d],
                         [gamma.reshape(1, K), beta.reshape(1, K),
                          w_kn, bias.reshape(1, N)], N, out_dtype)


def pallas_linear_residual(x2d, res2d, w_kn, bias):
    N = w_kn.shape[1]
    return _rowwise_call(_linear_residual_kernel, [x2d, res2d],
                         [w_kn, bias.reshape(1, N)], N, res2d.dtype)


def pallas_mlp_block(x2d, gamma, beta, w1, b1, w2, b2):
    C = x2d.shape[1]
    Dh = w1.shape[1]
    return _rowwise_call(_mlp_block_kernel, [x2d],
                         [gamma.reshape(1, C), beta.reshape(1, C),
                          w1, b1.reshape(1, Dh), w2, b2.reshape(1, C)],
                         C, x2d.dtype)


def pallas_layernorm(x2d, gamma, beta):
    C = x2d.shape[1]
    return _rowwise_call(_layernorm_kernel, [x2d],
                         [gamma.reshape(1, C), beta.reshape(1, C)],
                         C, x2d.dtype)


def pallas_window_attention(qkv, bias_full, num_heads, window):
    """qkv: (B, H, W, 3C) bf16 (q-columns pre-scaled by 1/sqrt(hd));
    bias_full: (G, L, L) f32 with G = (H//w)*(W//w)*heads (rel-pos bias +
    shifted-window mask, pre-combined).  Returns (B, H, W, C) bf16."""
    B, H, W, C3 = qkv.shape
    C = C3 // 3
    hd = C // num_heads
    s = window
    wh, ww = H // s, W // s
    L = s * s
    G = wh * ww * num_heads

    # Wrapper-side layout plumbing (XLA): window-partition + head split, so the
    # kernel sees contiguous (G, L, hd) blocks -> no in-kernel gather/relayout.
    x = qkv.reshape(B, wh, s, ww, s, 3, num_heads, hd)
    x = x.transpose(5, 0, 1, 3, 6, 2, 4, 7)         # (3, B, wh, ww, h, s, s, hd)
    x = x.reshape(3, B, G, L, hd)
    q, k, v = x[0], x[1], x[2]

    out = pl.pallas_call(
        _wattn_kernel,
        out_shape=jax.ShapeDtypeStruct((B, G, L, hd), jnp.bfloat16),
        grid=(B,),
        in_specs=[
            pl.BlockSpec((None, G, L, hd), lambda b: (b, 0, 0, 0)),
            pl.BlockSpec((None, G, L, hd), lambda b: (b, 0, 0, 0)),
            pl.BlockSpec((None, G, L, hd), lambda b: (b, 0, 0, 0)),
            pl.BlockSpec((G, L, L), lambda b: (0, 0, 0)),   # constant index ->
        ],                                                   # fetched only once
        out_specs=pl.BlockSpec((None, G, L, hd), lambda b: (b, 0, 0, 0)),
        compiler_params=pltpu.CompilerParams(
            dimension_semantics=("parallel",),
            vmem_limit_bytes=_VMEM_LIMIT),
    )(q, k, v, bias_full)

    out = out.reshape(B, wh, ww, num_heads, s, s, hd)
    out = out.transpose(0, 1, 4, 2, 5, 3, 6).reshape(B, H, W, C)
    return out


# ------------------------- static tables (build time) ------------------------

def _relative_position_index(window):
    coords = np.stack(np.meshgrid(np.arange(window), np.arange(window),
                                  indexing='ij'))               # (2, w, w)
    cf = coords.reshape(2, -1)
    rel = cf[:, :, None] - cf[:, None, :]                        # (2, L, L)
    rel = rel.transpose(1, 2, 0).astype(np.int64)
    rel[:, :, 0] += window - 1
    rel[:, :, 1] += window - 1
    rel[:, :, 0] *= 2 * window - 1
    return rel.sum(-1)                                           # (L, L)


def _create_attn_mask(H, W, window, shift):
    """(nW, L, L) f32 shifted-window mask or None."""
    if shift <= 0:
        return None
    img_mask = np.zeros((H, W), dtype=np.float32)
    slices = (slice(0, -window), slice(-window, -shift), slice(-shift, None))
    cnt = 0
    for hs in slices:
        for ws in slices:
            img_mask[hs, ws] = cnt
            cnt += 1
    m = img_mask.reshape(H // window, window, W // window, window)
    m = m.transpose(0, 2, 1, 3).reshape(-1, window * window)     # (nW, L)
    diff = m[:, :, None] - m[:, None, :]
    return jnp.asarray(np.where(diff != 0, -100.0, 0.0).astype(np.float32))


def _combined_attn_bias(table, window, num_heads, wh, ww, mask):
    """Pre-combine the relative-position bias (broadcast over windows) and the
    shifted-window mask (broadcast over heads) into a single (G, L, L) tensor
    laid out in the same (window, head) order as the folded batch dim G, so
    the kernel adds it to the logits with zero reshapes."""
    L = window * window
    idx = _relative_position_index(window).reshape(-1)
    bias = table[idx].reshape(L, L, num_heads)
    bias = jnp.transpose(bias, (2, 0, 1))                        # (heads, L, L)
    nW = wh * ww
    full = jnp.broadcast_to(bias[None, :, :, :], (nW, num_heads, L, L))
    if mask is not None:
        full = full + mask[:, None, :, :]
    return full.reshape(nW * num_heads, L, L).astype(jnp.float32)


# ----------------------------- model forward ---------------------------------

def patch_embed_forward(x_nchw, patch, pp):
    B, C, H, W = x_nchw.shape
    Hp, Wp = H // patch, W // patch
    patches = x_nchw.reshape(B, C, Hp, patch, Wp, patch)
    patches = patches.transpose(0, 2, 4, 1, 3, 5).reshape(B * Hp * Wp,
                                                          C * patch * patch)
    y = pallas_linear_ln(patches, pp['proj_w'], pp['proj_b'],
                         pp['norm_g'], pp['norm_b'])
    return y.reshape(B, Hp, Wp, -1)


def swin_block_forward(x, blk):
    B, H, W, C = x.shape
    shift = blk['shift']
    ap = blk['attn']

    # --- sublayer 1: x + unshift(proj(attn(qkv(LN(shift(x)))))) -------------
    # LN is pointwise per token so it commutes with the cyclic shift; rolling
    # x first lets LN fuse into the qkv projection and the residual add fuse
    # into the output projection (both in the rolled frame).
    # TODO(synk): fold the cyclic shift into the window re-layout / attention
    # read path to save the two extra HBM passes per shifted block.
    xs = jnp.roll(x, (-shift, -shift), (1, 2)) if shift > 0 else x
    x2d = xs.reshape(-1, C)
    qkv = pallas_ln_linear(x2d, blk['ln1_g'], blk['ln1_b'],
                           ap['qkv_w'], ap['qkv_b'],
                           out_dtype=jnp.bfloat16).reshape(B, H, W, 3 * C)
    attn = pallas_window_attention(qkv, ap['bias_full'],
                                   blk['num_heads'], blk['window'])
    ys = pallas_linear_residual(attn.reshape(-1, C), x2d,
                                ap['proj_w'], ap['proj_b']).reshape(B, H, W, C)
    x = jnp.roll(ys, (shift, shift), (1, 2)) if shift > 0 else ys

    # --- sublayer 2: x + W2(GELU(W1(LN(x))))  (single fused kernel) ---------
    x = pallas_mlp_block(x.reshape(-1, C), blk['ln2_g'], blk['ln2_b'],
                         blk['mlp_w1'], blk['mlp_b1'],
                         blk['mlp_w2'], blk['mlp_b2']).reshape(B, H, W, C)
    return x


def patch_merging_forward(x, mp):
    B, H, W, C = x.shape
    # einops 'B (hh h1) (ww h2) C -> B hh ww (h1 h2 C)' -- matches the
    # reference module.
    y = x.reshape(B, H // 2, 2, W // 2, 2, C)
    y = y.transpose(0, 1, 3, 2, 4, 5).reshape(-1, 4 * C)
    y = pallas_ln_linear(y, mp['norm_g'], mp['norm_b'],
                         mp['red_w'], mp['red_b'])
    return y.reshape(B, H // 2, W // 2, 2 * C)


def swin_forward(x_nchw, params, patch_size):
    x = patch_embed_forward(x_nchw, patch_size, params['patch_embed'])
    for layer in params['layers']:
        if layer['merge'] is not None:
            x = patch_merging_forward(x, layer['merge'])
        for blk in layer['blocks']:
            x = swin_block_forward(x, blk)
    B, H, W, C = x.shape
    x = pallas_layernorm(x.reshape(-1, C), params['norm_g'], params['norm_b'])
    x = jnp.mean(x.reshape(B, H * W, C), axis=1)          # global average pool
    return pallas_linear(x, params['head_w'], params['head_b'])


# ------------------------- parameter construction ----------------------------

class _Keys:
    def __init__(self, key):
        self._key = key

    def __call__(self):
        self._key, k = jax.random.split(self._key)
        return k


def _w_f32(kg, shape):
    return 0.02 * jax.random.normal(kg(), shape, dtype=jnp.float32)


def _w(kg, shape):
    # Linear weights: stored PRE-TRANSPOSED (in_features, out_features) and
    # pre-cast to bf16 (torch (out,in) f32 weights -> w.T.astype(bf16) once).
    return _w_f32(kg, shape).astype(jnp.bfloat16)


def _zeros(shape):
    return jnp.zeros(shape, dtype=jnp.float32)


def _ones(shape):
    return jnp.ones(shape, dtype=jnp.float32)


def build_params(key, img_size, patch_size, in_chans, num_classes, embed_dim,
                 depths, num_heads, window_size, mlp_ratio):
    kg = _Keys(key)
    E = embed_dim
    params = {'patch_embed': dict(
        # conv weight flattened over (C, p, p) and pre-transposed: (C*p*p, E)
        proj_w=_w(kg, (in_chans * patch_size * patch_size, E)),
        proj_b=_zeros((E,)),
        norm_g=_ones((E,)), norm_b=_zeros((E,)),
    )}

    num_layers = len(depths)
    num_features = int(embed_dim * 2 ** (num_layers - 1))
    layers = []
    input_size = img_size // patch_size
    cur = embed_dim

    for i_layer in range(num_layers):
        if i_layer > 1:
            cur *= 2
            input_size //= 2
        if i_layer != 0:                       # patch merge at stage start
            merge = dict(
                norm_g=_ones((4 * cur,)), norm_b=_zeros((4 * cur,)),
                red_w=_w(kg, (4 * cur, 2 * cur)),     # bias-free reduction
                red_b=_zeros((2 * cur,)),
            )
            res = input_size // 2
            dim = cur * 2
        else:
            merge = None
            res = input_size
            dim = cur

        heads = num_heads[i_layer]
        hidden = int(dim * mlp_ratio)
        blocks = []
        for i in range(depths[i_layer]):
            shift = 0 if i % 2 == 0 else window_size // 2
            win = window_size
            if res <= win:
                shift = 0
                win = res
            hd = dim // heads
            scale = 1.0 / math.sqrt(hd)
            # Fold the 1/sqrt(hd) scale into the q-columns of the qkv weight
            # (and bias) at build time -> no per-token logits scaling at run
            # time.  When loading torch weights do the same transform once.
            qkv_w = _w_f32(kg, (dim, 3 * dim)).at[:, :dim].multiply(scale)
            qkv_b = _zeros((3 * dim,)).at[:dim].multiply(scale)
            table = 0.02 * jax.random.normal(
                kg(), ((2 * win - 1) * (2 * win - 1), heads), jnp.float32)
            wh = ww = res // win
            mask = _create_attn_mask(res, res, win, shift)
            blk = dict(
                num_heads=heads, window=win, shift=shift,
                ln1_g=_ones((dim,)), ln1_b=_zeros((dim,)),
                attn=dict(
                    qkv_w=qkv_w.astype(jnp.bfloat16), qkv_b=qkv_b,
                    proj_w=_w(kg, (dim, dim)), proj_b=_zeros((dim,)),
                    # rel-pos bias + shift mask pre-combined into (G, L, L)
                    bias_full=_combined_attn_bias(table, win, heads,
                                                  wh, ww, mask),
                ),
                ln2_g=_ones((dim,)), ln2_b=_zeros((dim,)),
                mlp_w1=_w(kg, (dim, hidden)), mlp_b1=_zeros((hidden,)),
                mlp_w2=_w(kg, (hidden, dim)), mlp_b2=_zeros((dim,)),
            )
            blocks.append(blk)
        layers.append(dict(merge=merge, blocks=blocks))

    params['layers'] = layers
    params['norm_g'] = _ones((num_features,))
    params['norm_b'] = _zeros((num_features,))
    params['head_w'] = _w(kg, (num_features, num_classes))
    params['head_b'] = _zeros((num_classes,))
    return params


# ---------------------------------- main -------------------------------------

if __name__ == "__main__":
    # Small Swin: 32x32 image, patch 4 -> 8x8 tokens, window 4,
    # depths [2,2] (second stage patch-merges to 4x4 tokens, dim doubles).
    # Stage 1 exercises both the masked (shift=2) and unmasked attention
    # paths (the mask is folded into the per-block bias tensor).
    cfg = dict(img_size=32, patch_size=4, in_chans=3, num_classes=10,
               embed_dim=16, depths=[2, 2], num_heads=[2, 4],
               window_size=4, mlp_ratio=4)

    key = jax.random.PRNGKey(0)
    pkey, xkey = jax.random.split(key)
    params = build_params(pkey, **cfg)

    x = jax.random.normal(xkey, (2, cfg['in_chans'],
                                 cfg['img_size'], cfg['img_size']),
                          dtype=jnp.float32)

    # params carry static python config (window/shift/heads), so close over
    # them instead of passing through jit.
    fwd = jax.jit(lambda inp: swin_forward(inp, params, cfg['patch_size']))
    out = jax.block_until_ready(fwd(x))

    assert out.shape == (2, cfg['num_classes'])
    assert bool(jnp.all(jnp.isfinite(out)))
    print("KERNEL_OK")
</pallas_src>

<mosaic_0001>
module attributes {stable_mosaic.version = 11 : i64} {
  func.func @_linear_ln_kernel(%arg0: i32, %arg1: memref<64x48xf32, #tpu.memory_space<vmem>>, %arg2: memref<48x16xbf16, #tpu.memory_space<vmem>>, %arg3: memref<1x16xf32, #tpu.memory_space<vmem>>, %arg4: memref<1x16xf32, #tpu.memory_space<vmem>>, %arg5: memref<1x16xf32, #tpu.memory_space<vmem>>, %arg6: memref<64x16xf32, #tpu.memory_space<vmem>>) attributes {dimension_semantics = [#tpu.dimension_semantics<parallel>], iteration_bounds = array<i64: 2>, scalar_prefetch = 0 : i64, scratch_operands = 0 : i64, tpu.core_type = #tpu.core_type<tc>, window_params = [{transform_indices = @transform_0, window_bounds = array<i64: 64, 48>}, {pipeline_mode = #tpu.pipeline_mode<synchronous>, transform_indices = @transform_1, window_bounds = array<i64: 48, 16>}, {pipeline_mode = #tpu.pipeline_mode<synchronous>, transform_indices = @transform_2, window_bounds = array<i64: 1, 16>}, {pipeline_mode = #tpu.pipeline_mode<synchronous>, transform_indices = @transform_3, window_bounds = array<i64: 1, 16>}, {pipeline_mode = #tpu.pipeline_mode<synchronous>, transform_indices = @transform_4, window_bounds = array<i64: 1, 16>}, {transform_indices = @transform_5, window_bounds = array<i64: 64, 16>}]} {
    %c0 = arith.constant 0 : index
    %c0_0 = arith.constant 0 : index
    %0 = vector.load %arg1[%c0, %c0_0] : memref<64x48xf32, #tpu.memory_space<vmem>>, vector<64x48xf32>
    %1 = arith.truncf %0 : vector<64x48xf32> to vector<64x48xbf16>
    %c0_1 = arith.constant 0 : index
    %c0_2 = arith.constant 0 : index
    %2 = vector.load %arg2[%c0_1, %c0_2] : memref<48x16xbf16, #tpu.memory_space<vmem>>, vector<48x16xbf16>
    %cst = arith.constant dense<0.000000e+00> : vector<64x16xf32>
    %3 = tpu.matmul %1, %2, %cst {dimension_numbers = #tpu.dot_dimension_numbers<[1], [0], [0], [1], [0, 0, 1, 1], [], []>} : vector<64x48xbf16>, vector<48x16xbf16>, vector<64x16xf32> -> vector<64x16xf32>
    %c0_3 = arith.constant 0 : index
    %c0_4 = arith.constant 0 : index
    %4 = vector.load %arg3[%c0_3, %c0_4] : memref<1x16xf32, #tpu.memory_space<vmem>>, vector<1x16xf32>
    %5 = vector.broadcast %4 : vector<1x16xf32> to vector<64x16xf32>
    %6 = arith.addf %3, %5 : vector<64x16xf32>
    %c0_5 = arith.constant 0 : index
    %c0_6 = arith.constant 0 : index
    %7 = vector.load %arg4[%c0_5, %c0_6] : memref<1x16xf32, #tpu.memory_space<vmem>>, vector<1x16xf32>
    %c0_7 = arith.constant 0 : index
    %c0_8 = arith.constant 0 : index
    %8 = vector.load %arg5[%c0_7, %c0_8] : memref<1x16xf32, #tpu.memory_space<vmem>>, vector<1x16xf32>
    %cst_9 = arith.constant dense<0.000000e+00> : vector<64xf32>
    %9 = vector.multi_reduction <add>, %6, %cst_9 [1] : vector<64x16xf32> to vector<64xf32>
    %10 = vector.shape_cast %9 : vector<64xf32> to vector<64x1xf32>
    %cst_10 = arith.constant 1.600000e+01 : f32
    %11 = vector.broadcast %cst_10 : f32 to vector<64x1xf32>
    %12 = arith.divf %10, %11 : vector<64x1xf32>
    %13 = vector.broadcast %12 : vector<64x1xf32> to vector<64x16xf32>
    %14 = arith.subf %6, %13 : vector<64x16xf32>
    %15 = arith.mulf %14, %14 : vector<64x16xf32>
    %cst_11 = arith.constant dense<0.000000e+00> : vector<64xf32>
    %16 = vector.multi_reduction <add>, %15, %cst_11 [1] : vector<64x16xf32> to vector<64xf32>
    %17 = vector.shape_cast %16 : vector<64xf32> to vector<64x1xf32>
    %cst_12 = arith.constant 1.600000e+01 : f32
    %18 = vector.broadcast %cst_12 : f32 to vector<64x1xf32>
    %19 = arith.divf %17, %18 : vector<64x1xf32>
    %20 = vector.broadcast %12 : vector<64x1xf32> to vector<64x16xf32>
    %21 = arith.subf %6, %20 : vector<64x16xf32>
    %cst_13 = arith.constant 9.99999974E-6 : f32
    %22 = vector.broadcast %cst_13 : f32 to vector<64x1xf32>
    %23 = arith.addf %19, %22 : vector<64x1xf32>
    %24 = math.rsqrt %23 : vector<64x1xf32>
    %25 = vector.broadcast %24 : vector<64x1xf32> to vector<64x16xf32>
    %26 = arith.mulf %21, %25 : vector<64x16xf32>
    %27 = vector.broadcast %7 : vector<1x16xf32> to vector<64x16xf32>
    %28 = arith.mulf %26, %27 : vector<64x16xf32>
    %29 = vector.broadcast %8 : vector<1x16xf32> to vector<64x16xf32>
    %30 = arith.addf %28, %29 : vector<64x16xf32>
    %c0_14 = arith.constant 0 : index
    %c0_15 = arith.constant 0 : index
    %31 = vector.load %arg6[%c0_14, %c0_15] : memref<64x16xf32, #tpu.memory_space<vmem>>, vector<64x16xf32>
    tpu.vector_store %arg6[%c0_14, %c0_15], %30 {strides = array<i32>} : memref<64x16xf32, #tpu.memory_space<vmem>>, vector<64x16xf32>,
    return
  }
  func.func @transform_0(%arg0: i32) -> (i32, i32) {
    %c0_i32 = arith.constant 0 : i32
    %c0_i32_0 = arith.constant 0 : i32
    return %arg0, %c0_i32 : i32, i32
  }
  func.func @transform_1(%arg0: i32) -> (i32, i32) {
    %c0_i32 = arith.constant 0 : i32
    %c0_i32_0 = arith.constant 0 : i32
    %c0_i32_1 = arith.constant 0 : i32
    return %c0_i32, %c0_i32_0 : i32, i32
  }
  func.func @transform_2(%arg0: i32) -> (i32, i32) {
    %c0_i32 = arith.constant 0 : i32
    %c0_i32_0 = arith.constant 0 : i32
    %c0_i32_1 = arith.constant 0 : i32
    return %c0_i32, %c0_i32_0 : i32, i32
  }
  func.func @transform_3(%arg0: i32) -> (i32, i32) {
    %c0_i32 = arith.constant 0 : i32
    %c0_i32_0 = arith.constant 0 : i32
    %c0_i32_1 = arith.constant 0 : i32
    return %c0_i32, %c0_i32_0 : i32, i32
  }
  func.func @transform_4(%arg0: i32) -> (i32, i32) {
    %c0_i32 = arith.constant 0 : i32
    %c0_i32_0 = arith.constant 0 : i32
    %c0_i32_1 = arith.constant 0 : i32
    return %c0_i32, %c0_i32_0 : i32, i32
  }
  func.func @transform_5(%arg0: i32) -> (i32, i32) {
    %c0_i32 = arith.constant 0 : i32
    %c0_i32_0 = arith.constant 0 : i32
    return %arg0, %c0_i32 : i32, i32
  }
}

module attributes {stable_mosaic.version = 11 : i64} {
  func.func @_ln_linear_kernel(%arg0: i32, %arg1: memref<64x16xf32, #tpu.memory_space<vmem>>, %arg2: memref<1x16xf32, #tpu.memory_space<vmem>>, %arg3: memref<1x16xf32, #tpu.memory_space<vmem>>, %arg4: memref<16x48xbf16, #tpu.memory_space<vmem>>, %arg5: memref<1x48xf32, #tpu.memory_space<vmem>>, %arg6: memref<64x48xbf16, #tpu.memory_space<vmem>>) attributes {dimension_semantics = [#tpu.dimension_semantics<parallel>], iteration_bounds = array<i64: 2>, scalar_prefetch = 0 : i64, scratch_operands = 0 : i64, tpu.core_type = #tpu.core_type<tc>, window_params = [{transform_indices = @transform_0, window_bounds = array<i64: 64, 16>}, {pipeline_mode = #tpu.pipeline_mode<synchronous>, transform_indices = @transform_1, window_bounds = array<i64: 1, 16>}, {pipeline_mode = #tpu.pipeline_mode<synchronous>, transform_indices = @transform_2, window_bounds = array<i64: 1, 16>}, {pipeline_mode = #tpu.pipeline_mode<synchronous>, transform_indices = @transform_3, window_bounds = array<i64: 16, 48>}, {pipeline_mode = #tpu.pipeline_mode<synchronous>, transform_indices = @transform_4, window_bounds = array<i64: 1, 48>}, {transform_indices = @transform_5, window_bounds = array<i64: 64, 48>}]} {
    %c0 = arith.constant 0 : index
    %c0_0 = arith.constant 0 : index
    %0 = vector.load %arg1[%c0, %c0_0] : memref<64x16xf32, #tpu.memory_space<vmem>>, vector<64x16xf32>
    %c0_1 = arith.constant 0 : index
    %c0_2 = arith.constant 0 : index
    %1 = vector.load %arg2[%c0_1, %c0_2] : memref<1x16xf32, #tpu.memory_space<vmem>>, vector<1x16xf32>
    %c0_3 = arith.constant 0 : index
    %c0_4 = arith.constant 0 : index
    %2 = vector.load %arg3[%c0_3, %c0_4] : memref<1x16xf32, #tpu.memory_space<vmem>>, vector<1x16xf32>
    %cst = arith.constant dense<0.000000e+00> : vector<64xf32>
    %3 = vector.multi_reduction <add>, %0, %cst [1] : vector<64x16xf32> to vector<64xf32>
    %4 = vector.shape_cast %3 : vector<64xf32> to vector<64x1xf32>
    %cst_5 = arith.constant 1.600000e+01 : f32
    %5 = vector.broadcast %cst_5 : f32 to vector<64x1xf32>
    %6 = arith.divf %4, %5 : vector<64x1xf32>
    %7 = vector.broadcast %6 : vector<64x1xf32> to vector<64x16xf32>
    %8 = arith.subf %0, %7 : vector<64x16xf32>
    %9 = arith.mulf %8, %8 : vector<64x16xf32>
    %cst_6 = arith.constant dense<0.000000e+00> : vector<64xf32>
    %10 = vector.multi_reduction <add>, %9, %cst_6 [1] : vector<64x16xf32> to vector<64xf32>
    %11 = vector.shape_cast %10 : vector<64xf32> to vector<64x1xf32>
    %cst_7 = arith.constant 1.600000e+01 : f32
    %12 = vector.broadcast %cst_7 : f32 to vector<64x1xf32>
    %13 = arith.divf %11, %12 : vector<64x1xf32>
    %14 = vector.broadcast %6 : vector<64x1xf32> to vector<64x16xf32>
    %15 = arith.subf %0, %14 : vector<64x16xf32>
    %cst_8 = arith.constant 9.99999974E-6 : f32
    %16 = vector.broadcast %cst_8 : f32 to vector<64x1xf32>
    %17 = arith.addf %13, %16 : vector<64x1xf32>
    %18 = math.rsqrt %17 : vector<64x1xf32>
    %19 = vector.broadcast %18 : vector<64x1xf32> to vector<64x16xf32>
    %20 = arith.mulf %15, %19 : vector<64x16xf32>
    %21 = vector.broadcast %1 : vector<1x16xf32> to vector<64x16xf32>
    %22 = arith.mulf %20, %21 : vector<64x16xf32>
    %23 = vector.broadcast %2 : vector<1x16xf32> to vector<64x16xf32>
    %24 = arith.addf %22, %23 : vector<64x16xf32>
    %25 = arith.truncf %24 : vector<64x16xf32> to vector<64x16xbf16>
    %c0_9 = arith.constant 0 : index
    %c0_10 = arith.constant 0 : index
    %26 = vector.load %arg4[%c0_9, %c0_10] : memref<16x48xbf16, #tpu.memory_space<vmem>>, vector<16x48xbf16>
    %cst_11 = arith.constant dense<0.000000e+00> : vector<64x48xf32>
    %27 = tpu.matmul %25, %26, %cst_11 {dimension_numbers = #tpu.dot_dimension_numbers<[1], [0], [0], [1], [0, 0, 1, 1], [], []>} : vector<64x16xbf16>, vector<16x48xbf16>, vector<64x48xf32> -> vector<64x48xf32>
    %c0_12 = arith.constant 0 : index
    %c0_13 = arith.constant 0 : index
    %28 = vector.load %arg5[%c0_12, %c0_13] : memref<1x48xf32, #tpu.memory_space<vmem>>, vector<1x48xf32>
    %29 = vector.broadcast %28 : vector<1x48xf32> to vector<64x48xf32>
    %30 = arith.addf %27, %29 : vector<64x48xf32>
    %31 = arith.truncf %30 : vector<64x48xf32> to vector<64x48xbf16>
    %c0_14 = arith.constant 0 : index
    %c0_15 = arith.constant 0 : index
    %32 = vector.load %arg6[%c0_14, %c0_15] : memref<64x48xbf16, #tpu.memory_space<vmem>>, vector<64x48xbf16>
    tpu.vector_store %arg6[%c0_14, %c0_15], %31 {strides = array<i32>} : memref<64x48xbf16, #tpu.memory_space<vmem>>, vector<64x48xbf16>,
    return
  }
  func.func @transform_0(%arg0: i32) -> (i32, i32) {
    %c0_i32 = arith.constant 0 : i32
    %c0_i32_0 = arith.constant 0 : i32
    return %arg0, %c0_i32 : i32, i32
  }
  func.func @transform_1(%arg0: i32) -> (i32, i32) {
    %c0_i32 = arith.constant 0 : i32
    %c0_i32_0 = arith.constant 0 : i32
    %c0_i32_1 = arith.constant 0 : i32
    return %c0_i32, %c0_i32_0 : i32, i32
  }
  func.func @transform_2(%arg0: i32) -> (i32, i32) {
    %c0_i32 = arith.constant 0 : i32
    %c0_i32_0 = arith.constant 0 : i32
    %c0_i32_1 = arith.constant 0 : i32
    return %c0_i32, %c0_i32_0 : i32, i32
  }
  func.func @transform_3(%arg0: i32) -> (i32, i32) {
    %c0_i32 = arith.constant 0 : i32
    %c0_i32_0 = arith.constant 0 : i32
    %c0_i32_1 = arith.constant 0 : i32
    return %c0_i32, %c0_i32_0 : i32, i32
  }
  func.func @transform_4(%arg0: i32) -> (i32, i32) {
    %c0_i32 = arith.constant 0 : i32
    %c0_i32_0 = arith.constant 0 : i32
    %c0_i32_1 = arith.constant 0 : i32
    return %c0_i32, %c0_i32_0 : i32, i32
  }
  func.func @transform_5(%arg0: i32) -> (i32, i32) {
    %c0_i32 = arith.constant 0 : i32
    %c0_i32_0 = arith.constant 0 : i32
    return %arg0, %c0_i32 : i32, i32
  }
}

module attributes {stable_mosaic.version = 11 : i64} {
  func.func @_wattn_kernel(%arg0: i32, %arg1: memref<1x8x16x8xbf16, #tpu.memory_space<vmem>>, %arg2: memref<1x8x16x8xbf16, #tpu.memory_space<vmem>>, %arg3: memref<1x8x16x8xbf16, #tpu.memory_space<vmem>>, %arg4: memref<8x16x16xf32, #tpu.memory_space<vmem>>, %arg5: memref<1x8x16x8xbf16, #tpu.memory_space<vmem>>) attributes {dimension_semantics = [#tpu.dimension_semantics<parallel>], iteration_bounds = array<i64: 2>, scalar_prefetch = 0 : i64, scratch_operands = 0 : i64, tpu.core_type = #tpu.core_type<tc>, window_params = [{transform_indices = @transform_0, window_bounds = array<i64: 1, 8, 16, 8>}, {transform_indices = @transform_1, window_bounds = array<i64: 1, 8, 16, 8>}, {transform_indices = @transform_2, window_bounds = array<i64: 1, 8, 16, 8>}, {pipeline_mode = #tpu.pipeline_mode<synchronous>, transform_indices = @transform_3, window_bounds = array<i64: 8, 16, 16>}, {transform_indices = @transform_4, window_bounds = array<i64: 1, 8, 16, 8>}]} {
    %c0 = arith.constant 0 : index
    %c0_0 = arith.constant 0 : index
    %c0_1 = arith.constant 0 : index
    %c0_2 = arith.constant 0 : index
    %0 = vector.load %arg1[%c0, %c0_0, %c0_1, %c0_2] : memref<1x8x16x8xbf16, #tpu.memory_space<vmem>>, vector<1x8x16x8xbf16>
    %1 = vector.shape_cast %0 : vector<1x8x16x8xbf16> to vector<8x16x8xbf16>
    %c0_3 = arith.constant 0 : index
    %c0_4 = arith.constant 0 : index
    %c0_5 = arith.constant 0 : index
    %c0_6 = arith.constant 0 : index
    %2 = vector.load %arg2[%c0_3, %c0_4, %c0_5, %c0_6] : memref<1x8x16x8xbf16, #tpu.memory_space<vmem>>, vector<1x8x16x8xbf16>
    %3 = vector.shape_cast %2 : vector<1x8x16x8xbf16> to vector<8x16x8xbf16>
    %c0_7 = arith.constant 0 : index
    %c0_8 = arith.constant 0 : index
    %c0_9 = arith.constant 0 : index
    %c0_10 = arith.constant 0 : index
    %4 = vector.load %arg3[%c0_7, %c0_8, %c0_9, %c0_10] : memref<1x8x16x8xbf16, #tpu.memory_space<vmem>>, vector<1x8x16x8xbf16>
    %5 = vector.shape_cast %4 : vector<1x8x16x8xbf16> to vector<8x16x8xbf16>
    %cst = arith.constant dense<0.000000e+00> : vector<8x16x16xf32>
    %6 = tpu.matmul %1, %3, %cst {dimension_numbers = #tpu.dot_dimension_numbers<[2], [2], [1], [1], [0, 0, 0, 1, 1, 1], [0], [0]>} : vector<8x16x8xbf16>, vector<8x16x8xbf16>, vector<8x16x16xf32> -> vector<8x16x16xf32>
    %c0_11 = arith.constant 0 : index
    %c0_12 = arith.constant 0 : index
    %c0_13 = arith.constant 0 : index
    %7 = vector.load %arg4[%c0_11, %c0_12, %c0_13] : memref<8x16x16xf32, #tpu.memory_space<vmem>>, vector<8x16x16xf32>
    %8 = arith.addf %6, %7 : vector<8x16x16xf32>
    %cst_14 = arith.constant dense<0xFF800000> : vector<8x16xf32>
    %9 = vector.multi_reduction <maximumf>, %8, %cst_14 [2] : vector<8x16x16xf32> to vector<8x16xf32>
    %10 = vector.shape_cast %9 : vector<8x16xf32> to vector<8x16x1xf32>
    %11 = vector.broadcast %10 : vector<8x16x1xf32> to vector<8x16x16xf32>
    %12 = arith.subf %8, %11 : vector<8x16x16xf32>
    %13 = math.exp %12 : vector<8x16x16xf32>
    %cst_15 = arith.constant dense<0.000000e+00> : vector<8x16xf32>
    %14 = vector.multi_reduction <add>, %13, %cst_15 [2] : vector<8x16x16xf32> to vector<8x16xf32>
    %15 = vector.shape_cast %14 : vector<8x16xf32> to vector<8x16x1xf32>
    %16 = tpu.reciprocal %15 {approx = true} : vector<8x16x1xf32> -> vector<8x16x1xf32>
    %17 = vector.broadcast %16 : vector<8x16x1xf32> to vector<8x16x16xf32>
    %18 = arith.mulf %13, %17 : vector<8x16x16xf32>
    %19 = arith.truncf %18 : vector<8x16x16xf32> to vector<8x16x16xbf16>
    %cst_16 = arith.constant dense<0.000000e+00> : vector<8x16x8xf32>
    %20 = tpu.matmul %19, %5, %cst_16 {dimension_numbers = #tpu.dot_dimension_numbers<[2], [1], [1], [2], [0, 0, 0, 1, 1, 2], [0], [0]>} : vector<8x16x16xbf16>, vector<8x16x8xbf16>, vector<8x16x8xf32> -> vector<8x16x8xf32>
    %21 = arith.truncf %20 : vector<8x16x8xf32> to vector<8x16x8xbf16>
    %c0_17 = arith.constant 0 : index
    %c0_18 = arith.constant 0 : index
    %c0_19 = arith.constant 0 : index
    %c0_20 = arith.constant 0 : index
    %22 = vector.load %arg5[%c0_17, %c0_18, %c0_19, %c0_20] : memref<1x8x16x8xbf16, #tpu.memory_space<vmem>>, vector<1x8x16x8xbf16>
    %23 = vector.shape_cast %22 : vector<1x8x16x8xbf16> to vector<8x16x8xbf16>
    %24 = vector.shape_cast %21 : vector<8x16x8xbf16> to vector<1x8x16x8xbf16>
    tpu.vector_store %arg5[%c0_17, %c0_18, %c0_19, %c0_20], %24 {strides = array<i32>} : memref<1x8x16x8xbf16, #tpu.memory_space<vmem>>, vector<1x8x16x8xbf16>,
    return
  }
  func.func @transform_0(%arg0: i32) -> (i32, i32, i32, i32) {
    %c0_i32 = arith.constant 0 : i32
    %c0_i32_0 = arith.constant 0 : i32
    %c0_i32_1 = arith.constant 0 : i32
    %c0_i32_2 = arith.constant 0 : i32
    return %arg0, %c0_i32, %c0_i32_0, %c0_i32_1 : i32, i32, i32, i32
  }
  func.func @transform_1(%arg0: i32) -> (i32, i32, i32, i32) {
    %c0_i32 = arith.constant 0 : i32
    %c0_i32_0 = arith.constant 0 : i32
    %c0_i32_1 = arith.constant 0 : i32
    %c0_i32_2 = arith.constant 0 : i32
    return %arg0, %c0_i32, %c0_i32_0, %c0_i32_1 : i32, i32, i32, i32
  }
  func.func @transform_2(%arg0: i32) -> (i32, i32, i32, i32) {
    %c0_i32 = arith.constant 0 : i32
    %c0_i32_0 = arith.constant 0 : i32
    %c0_i32_1 = arith.constant 0 : i32
    %c0_i32_2 = arith.constant 0 : i32
    return %arg0, %c0_i32, %c0_i32_0, %c0_i32_1 : i32, i32, i32, i32
  }
  func.func @transform_3(%arg0: i32) -> (i32, i32, i32) {
    %c0_i32 = arith.constant 0 : i32
    %c0_i32_0 = arith.constant 0 : i32
    %c0_i32_1 = arith.constant 0 : i32
    %c0_i32_2 = arith.constant 0 : i32
    return %c0_i32, %c0_i32_0, %c0_i32_1 : i32, i32, i32
  }
  func.func @transform_4(%arg0: i32) -> (i32, i32, i32, i32) {
    %c0_i32 = arith.constant 0 : i32
    %c0_i32_0 = arith.constant 0 : i32
    %c0_i32_1 = arith.constant 0 : i32
    %c0_i32_2 = arith.constant 0 : i32
    return %arg0, %c0_i32, %c0_i32_0, %c0_i32_1 : i32, i32, i32, i32
  }
}

module attributes {stable_mosaic.version = 11 : i64} {
  func.func @_linear_residual_kernel(%arg0: i32, %arg1: memref<64x16xbf16, #tpu.memory_space<vmem>>, %arg2: memref<64x16xf32, #tpu.memory_space<vmem>>, %arg3: memref<16x16xbf16, #tpu.memory_space<vmem>>, %arg4: memref<1x16xf32, #tpu.memory_space<vmem>>, %arg5: memref<64x16xf32, #tpu.memory_space<vmem>>) attributes {dimension_semantics = [#tpu.dimension_semantics<parallel>], iteration_bounds = array<i64: 2>, scalar_prefetch = 0 : i64, scratch_operands = 0 : i64, tpu.core_type = #tpu.core_type<tc>, window_params = [{transform_indices = @transform_0, window_bounds = array<i64: 64, 16>}, {transform_indices = @transform_1, window_bounds = array<i64: 64, 16>}, {pipeline_mode = #tpu.pipeline_mode<synchronous>, transform_indices = @transform_2, window_bounds = array<i64: 16, 16>}, {pipeline_mode = #tpu.pipeline_mode<synchronous>, transform_indices = @transform_3, window_bounds = array<i64: 1, 16>}, {transform_indices = @transform_4, window_bounds = array<i64: 64, 16>}]} {
    %c0 = arith.constant 0 : index
    %c0_0 = arith.constant 0 : index
    %0 = vector.load %arg1[%c0, %c0_0] : memref<64x16xbf16, #tpu.memory_space<vmem>>, vector<64x16xbf16>
    %c0_1 = arith.constant 0 : index
    %c0_2 = arith.constant 0 : index
    %1 = vector.load %arg3[%c0_1, %c0_2] : memref<16x16xbf16, #tpu.memory_space<vmem>>, vector<16x16xbf16>
    %cst = arith.constant dense<0.000000e+00> : vector<64x16xf32>
    %2 = tpu.matmul %0, %1, %cst {dimension_numbers = #tpu.dot_dimension_numbers<[1], [0], [0], [1], [0, 0, 1, 1], [], []>} : vector<64x16xbf16>, vector<16x16xbf16>, vector<64x16xf32> -> vector<64x16xf32>
    %c0_3 = arith.constant 0 : index
    %c0_4 = arith.constant 0 : index
    %3 = vector.load %arg4[%c0_3, %c0_4] : memref<1x16xf32, #tpu.memory_space<vmem>>, vector<1x16xf32>
    %4 = vector.broadcast %3 : vector<1x16xf32> to vector<64x16xf32>
    %5 = arith.addf %2, %4 : vector<64x16xf32>
    %c0_5 = arith.constant 0 : index
    %c0_6 = arith.constant 0 : index
    %6 = vector.load %arg2[%c0_5, %c0_6] : memref<64x16xf32, #tpu.memory_space<vmem>>, vector<64x16xf32>
    %7 = arith.addf %6, %5 : vector<64x16xf32>
    %c0_7 = arith.constant 0 : index
    %c0_8 = arith.constant 0 : index
    %8 = vector.load %arg5[%c0_7, %c0_8] : memref<64x16xf32, #tpu.memory_space<vmem>>, vector<64x16xf32>
    tpu.vector_store %arg5[%c0_7, %c0_8], %7 {strides = array<i32>} : memref<64x16xf32, #tpu.memory_space<vmem>>, vector<64x16xf32>,
    return
  }
  func.func @transform_0(%arg0: i32) -> (i32, i32) {
    %c0_i32 = arith.constant 0 : i32
    %c0_i32_0 = arith.constant 0 : i32
    return %arg0, %c0_i32 : i32, i32
  }
  func.func @transform_1(%arg0: i32) -> (i32, i32) {
    %c0_i32 = arith.constant 0 : i32
    %c0_i32_0 = arith.constant 0 : i32
    return %arg0, %c0_i32 : i32, i32
  }
  func.func @transform_2(%arg0: i32) -> (i32, i32) {
    %c0_i32 = arith.constant 0 : i32
    %c0_i32_0 = arith.constant 0 : i32
    %c0_i32_1 = arith.constant 0 : i32
    return %c0_i32, %c0_i32_0 : i32, i32
  }
  func.func @transform_3(%arg0: i32) -> (i32, i32) {
    %c0_i32 = arith.constant 0 : i32
    %c0_i32_0 = arith.constant 0 : i32
    %c0_i32_1 = arith.constant 0 : i32
    return %c0_i32, %c0_i32_0 : i32, i32
  }
  func.func @transform_4(%arg0: i32) -> (i32, i32) {
    %c0_i32 = arith.constant 0 : i32
    %c0_i32_0 = arith.constant 0 : i32
    return %arg0, %c0_i32 : i32, i32
  }
}

module attributes {stable_mosaic.version = 11 : i64} {
  func.func @_mlp_block_kernel(%arg0: i32, %arg1: memref<64x16xf32, #tpu.memory_space<vmem>>, %arg2: memref<1x16xf32, #tpu.memory_space<vmem>>, %arg3: memref<1x16xf32, #tpu.memory_space<vmem>>, %arg4: memref<16x64xbf16, #tpu.memory_space<vmem>>, %arg5: memref<1x64xf32, #tpu.memory_space<vmem>>, %arg6: memref<64x16xbf16, #tpu.memory_space<vmem>>, %arg7: memref<1x16xf32, #tpu.memory_space<vmem>>, %arg8: memref<64x16xf32, #tpu.memory_space<vmem>>) attributes {dimension_semantics = [#tpu.dimension_semantics<parallel>], iteration_bounds = array<i64: 2>, scalar_prefetch = 0 : i64, scratch_operands = 0 : i64, tpu.core_type = #tpu.core_type<tc>, window_params = [{transform_indices = @transform_0, window_bounds = array<i64: 64, 16>}, {pipeline_mode = #tpu.pipeline_mode<synchronous>, transform_indices = @transform_1, window_bounds = array<i64: 1, 16>}, {pipeline_mode = #tpu.pipeline_mode<synchronous>, transform_indices = @transform_2, window_bounds = array<i64: 1, 16>}, {pipeline_mode = #tpu.pipeline_mode<synchronous>, transform_indices = @transform_3, window_bounds = array<i64: 16, 64>}, {pipeline_mode = #tpu.pipeline_mode<synchronous>, transform_indices = @transform_4, window_bounds = array<i64: 1, 64>}, {pipeline_mode = #tpu.pipeline_mode<synchronous>, transform_indices = @transform_5, window_bounds = array<i64: 64, 16>}, {pipeline_mode = #tpu.pipeline_mode<synchronous>, transform_indices = @transform_6, window_bounds = array<i64: 1, 16>}, {transform_indices = @transform_7, window_bounds = array<i64: 64, 16>}]} {
    %c0 = arith.constant 0 : index
    %c0_0 = arith.constant 0 : index
    %0 = vector.load %arg1[%c0, %c0_0] : memref<64x16xf32, #tpu.memory_space<vmem>>, vector<64x16xf32>
    %c0_1 = arith.constant 0 : index
    %c0_2 = arith.constant 0 : index
    %1 = vector.load %arg2[%c0_1, %c0_2] : memref<1x16xf32, #tpu.memory_space<vmem>>, vector<1x16xf32>
    %c0_3 = arith.constant 0 : index
    %c0_4 = arith.constant 0 : index
    %2 = vector.load %arg3[%c0_3, %c0_4] : memref<1x16xf32, #tpu.memory_space<vmem>>, vector<1x16xf32>
    %cst = arith.constant dense<0.000000e+00> : vector<64xf32>
    %3 = vector.multi_reduction <add>, %0, %cst [1] : vector<64x16xf32> to vector<64xf32>
    %4 = vector.shape_cast %3 : vector<64xf32> to vector<64x1xf32>
    %cst_5 = arith.constant 1.600000e+01 : f32
    %5 = vector.broadcast %cst_5 : f32 to vector<64x1xf32>
    %6 = arith.divf %4, %5 : vector<64x1xf32>
    %7 = vector.broadcast %6 : vector<64x1xf32> to vector<64x16xf32>
    %8 = arith.subf %0, %7 : vector<64x16xf32>
    %9 = arith.mulf %8, %8 : vector<64x16xf32>
    %cst_6 = arith.constant dense<0.000000e+00> : vector<64xf32>
    %10 = vector.multi_reduction <add>, %9, %cst_6 [1] : vector<64x16xf32> to vector<64xf32>
    %11 = vector.shape_cast %10 : vector<64xf32> to vector<64x1xf32>
    %cst_7 = arith.constant 1.600000e+01 : f32
    %12 = vector.broadcast %cst_7 : f32 to vector<64x1xf32>
    %13 = arith.divf %11, %12 : vector<64x1xf32>
    %14 = vector.broadcast %6 : vector<64x1xf32> to vector<64x16xf32>
    %15 = arith.subf %0, %14 : vector<64x16xf32>
    %cst_8 = arith.constant 9.99999974E-6 : f32
    %16 = vector.broadcast %cst_8 : f32 to vector<64x1xf32>
    %17 = arith.addf %13, %16 : vector<64x1xf32>
    %18 = math.rsqrt %17 : vector<64x1xf32>
    %19 = vector.broadcast %18 : vector<64x1xf32> to vector<64x16xf32>
    %20 = arith.mulf %15, %19 : vector<64x16xf32>
    %21 = vector.broadcast %1 : vector<1x16xf32> to vector<64x16xf32>
    %22 = arith.mulf %20, %21 : vector<64x16xf32>
    %23 = vector.broadcast %2 : vector<1x16xf32> to vector<64x16xf32>
    %24 = arith.addf %22, %23 : vector<64x16xf32>
    %25 = arith.truncf %24 : vector<64x16xf32> to vector<64x16xbf16>
    %c0_9 = arith.constant 0 : index
    %c0_10 = arith.constant 0 : index
    %26 = vector.load %arg4[%c0_9, %c0_10] : memref<16x64xbf16, #tpu.memory_space<vmem>>, vector<16x64xbf16>
    %cst_11 = arith.constant dense<0.000000e+00> : vector<64x64xf32>
    %27 = tpu.matmul %25, %26, %cst_11 {dimension_numbers = #tpu.dot_dimension_numbers<[1], [0], [0], [1], [0, 0, 1, 1], [], []>} : vector<64x16xbf16>, vector<16x64xbf16>, vector<64x64xf32> -> vector<64x64xf32>
    %c0_12 = arith.constant 0 : index
    %c0_13 = arith.constant 0 : index
    %28 = vector.load %arg5[%c0_12, %c0_13] : memref<1x64xf32, #tpu.memory_space<vmem>>, vector<1x64xf32>
    %29 = vector.broadcast %28 : vector<1x64xf32> to vector<64x64xf32>
    %30 = arith.addf %27, %29 : vector<64x64xf32>
    %cst_14 = arith.constant 5.000000e-01 : f32
    %31 = vector.broadcast %cst_14 : f32 to vector<64x64xf32>
    %32 = arith.mulf %31, %30 : vector<64x64xf32>
    %cst_15 = arith.constant 0.707106769 : f32
    %33 = vector.broadcast %cst_15 : f32 to vector<64x64xf32>
    %34 = arith.mulf %30, %33 : vector<64x64xf32>
    %35 = math.absf %34 : vector<64x64xf32>
    %cst_16 = arith.constant 0.327591091 : f32
    %36 = vector.broadcast %cst_16 : f32 to vector<64x64xf32>
    %37 = arith.mulf %36, %35 : vector<64x64xf32>
    %cst_17 = arith.constant 1.000000e+00 : f32
    %38 = vector.broadcast %cst_17 : f32 to vector<64x64xf32>
    %39 = arith.addf %38, %37 : vector<64x64xf32>
    %cst_18 = arith.constant 1.000000e+00 : f32
    %40 = vector.broadcast %cst_18 : f32 to vector<64x64xf32>
    %41 = arith.divf %40, %39 : vector<64x64xf32>
    %cst_19 = arith.constant 1.06140542 : f32
    %42 = vector.broadcast %cst_19 : f32 to vector<64x64xf32>
    %43 = arith.mulf %42, %41 : vector<64x64xf32>
    %cst_20 = arith.constant -1.45315206 : f32
    %44 = vector.broadcast %cst_20 : f32 to vector<64x64xf32>
    %45 = arith.addf %43, %44 : vector<64x64xf32>
    %46 = arith.mulf %45, %41 : vector<64x64xf32>
    %cst_21 = arith.constant 1.42141378 : f32
    %47 = vector.broadcast %cst_21 : f32 to vector<64x64xf32>
    %48 = arith.addf %46, %47 : vector<64x64xf32>
    %49 = arith.mulf %48, %41 : vector<64x64xf32>
    %cst_22 = arith.constant -0.284496725 : f32
    %50 = vector.broadcast %cst_22 : f32 to vector<64x64xf32>
    %51 = arith.addf %49, %50 : vector<64x64xf32>
    %52 = arith.mulf %51, %41 : vector<64x64xf32>
    %cst_23 = arith.constant 0.254829586 : f32
    %53 = vector.broadcast %cst_23 : f32 to vector<64x64xf32>
    %54 = arith.addf %52, %53 : vector<64x64xf32>
    %55 = arith.mulf %54, %41 : vector<64x64xf32>
    %cst_24 = arith.constant 0.000000e+00 : f32
    %56 = vector.broadcast %cst_24 : f32 to vector<64x64xf32>
    %57 = arith.subf %56, %35 : vector<64x64xf32>
    %58 = arith.mulf %57, %35 : vector<64x64xf32>
    %59 = math.exp %58 : vector<64x64xf32>
    %60 = arith.mulf %55, %59 : vector<64x64xf32>
    %cst_25 = arith.constant 1.000000e+00 : f32
    %61 = vector.broadcast %cst_25 : f32 to vector<64x64xf32>
    %62 = arith.subf %61, %60 : vector<64x64xf32>
    %cst_26 = arith.constant 0.000000e+00 : f32
    %63 = vector.broadcast %cst_26 : f32 to vector<64x64xf32>
    %64 = arith.cmpf oge, %34, %63 : vector<64x64xf32>
    %cst_27 = arith.constant 0.000000e+00 : f32
    %65 = vector.broadcast %cst_27 : f32 to vector<64x64xf32>
    %66 = arith.subf %65, %62 : vector<64x64xf32>
    %67 = arith.select %64, %62, %66 : vector<64x64xi1>, vector<64x64xf32>
    %cst_28 = arith.constant 1.000000e+00 : f32
    %68 = vector.broadcast %cst_28 : f32 to vector<64x64xf32>
    %69 = arith.addf %68, %67 : vector<64x64xf32>
    %70 = arith.mulf %32, %69 : vector<64x64xf32>
    %71 = arith.truncf %70 : vector<64x64xf32> to vector<64x64xbf16>
    %c0_29 = arith.constant 0 : index
    %c0_30 = arith.constant 0 : index
    %72 = vector.load %arg6[%c0_29, %c0_30] : memref<64x16xbf16, #tpu.memory_space<vmem>>, vector<64x16xbf16>
    %cst_31 = arith.constant dense<0.000000e+00> : vector<64x16xf32>
    %73 = tpu.matmul %71, %72, %cst_31 {dimension_numbers = #tpu.dot_dimension_numbers<[1], [0], [0], [1], [0, 0, 1, 1], [], []>} : vector<64x64xbf16>, vector<64x16xbf16>, vector<64x16xf32> -> vector<64x16xf32>
    %c0_32 = arith.constant 0 : index
    %c0_33 = arith.constant 0 : index
    %74 = vector.load %arg7[%c0_32, %c0_33] : memref<1x16xf32, #tpu.memory_space<vmem>>, vector<1x16xf32>
    %75 = vector.broadcast %74 : vector<1x16xf32> to vector<64x16xf32>
    %76 = arith.addf %73, %75 : vector<64x16xf32>
    %77 = arith.addf %0, %76 : vector<64x16xf32>
    %c0_34 = arith.constant 0 : index
    %c0_35 = arith.constant 0 : index
    %78 = vector.load %arg8[%c0_34, %c0_35] : memref<64x16xf32, #tpu.memory_space<vmem>>, vector<64x16xf32>
    tpu.vector_store %arg8[%c0_34, %c0_35], %77 {strides = array<i32>} : memref<64x16xf32, #tpu.memory_space<vmem>>, vector<64x16xf32>,
    return
  }
  func.func @transform_0(%arg0: i32) -> (i32, i32) {
    %c0_i32 = arith.constant 0 : i32
    %c0_i32_0 = arith.constant 0 : i32
    return %arg0, %c0_i32 : i32, i32
  }
  func.func @transform_1(%arg0: i32) -> (i32, i32) {
    %c0_i32 = arith.constant 0 : i32
    %c0_i32_0 = arith.constant 0 : i32
    %c0_i32_1 = arith.constant 0 : i32
    return %c0_i32, %c0_i32_0 : i32, i32
  }
  func.func @transform_2(%arg0: i32) -> (i32, i32) {
    %c0_i32 = arith.constant 0 : i32
    %c0_i32_0 = arith.constant 0 : i32
    %c0_i32_1 = arith.constant 0 : i32
    return %c0_i32, %c0_i32_0 : i32, i32
  }
  func.func @transform_3(%arg0: i32) -> (i32, i32) {
    %c0_i32 = arith.constant 0 : i32
    %c0_i32_0 = arith.constant 0 : i32
    %c0_i32_1 = arith.constant 0 : i32
    return %c0_i32, %c0_i32_0 : i32, i32
  }
  func.func @transform_4(%arg0: i32) -> (i32, i32) {
    %c0_i32 = arith.constant 0 : i32
    %c0_i32_0 = arith.constant 0 : i32
    %c0_i32_1 = arith.constant 0 : i32
    return %c0_i32, %c0_i32_0 : i32, i32
  }
  func.func @transform_5(%arg0: i32) -> (i32, i32) {
    %c0_i32 = arith.constant 0 : i32
    %c0_i32_0 = arith.constant 0 : i32
    %c0_i32_1 = arith.constant 0 : i32
    return %c0_i32, %c0_i32_0 : i32, i32
  }
  func.func @transform_6(%arg0: i32) -> (i32, i32) {
    %c0_i32 = arith.constant 0 : i32
    %c0_i32_0 = arith.constant 0 : i32
    %c0_i32_1 = arith.constant 0 : i32
    return %c0_i32, %c0_i32_0 : i32, i32
  }
  func.func @transform_7(%arg0: i32) -> (i32, i32) {
    %c0_i32 = arith.constant 0 : i32
    %c0_i32_0 = arith.constant 0 : i32
    return %arg0, %c0_i32 : i32, i32
  }
}

module attributes {stable_mosaic.version = 11 : i64} {
  func.func @_ln_linear_kernel(%arg0: i32, %arg1: memref<16x64xf32, #tpu.memory_space<vmem>>, %arg2: memref<1x64xf32, #tpu.memory_space<vmem>>, %arg3: memref<1x64xf32, #tpu.memory_space<vmem>>, %arg4: memref<64x32xbf16, #tpu.memory_space<vmem>>, %arg5: memref<1x32xf32, #tpu.memory_space<vmem>>, %arg6: memref<16x32xf32, #tpu.memory_space<vmem>>) attributes {dimension_semantics = [#tpu.dimension_semantics<parallel>], iteration_bounds = array<i64: 2>, scalar_prefetch = 0 : i64, scratch_operands = 0 : i64, tpu.core_type = #tpu.core_type<tc>, window_params = [{transform_indices = @transform_0, window_bounds = array<i64: 16, 64>}, {pipeline_mode = #tpu.pipeline_mode<synchronous>, transform_indices = @transform_1, window_bounds = array<i64: 1, 64>}, {pipeline_mode = #tpu.pipeline_mode<synchronous>, transform_indices = @transform_2, window_bounds = array<i64: 1, 64>}, {pipeline_mode = #tpu.pipeline_mode<synchronous>, transform_indices = @transform_3, window_bounds = array<i64: 64, 32>}, {pipeline_mode = #tpu.pipeline_mode<synchronous>, transform_indices = @transform_4, window_bounds = array<i64: 1, 32>}, {transform_indices = @transform_5, window_bounds = array<i64: 16, 32>}]} {
    %c0 = arith.constant 0 : index
    %c0_0 = arith.constant 0 : index
    %0 = vector.load %arg1[%c0, %c0_0] : memref<16x64xf32, #tpu.memory_space<vmem>>, vector<16x64xf32>
    %c0_1 = arith.constant 0 : index
    %c0_2 = arith.constant 0 : index
    %1 = vector.load %arg2[%c0_1, %c0_2] : memref<1x64xf32, #tpu.memory_space<vmem>>, vector<1x64xf32>
    %c0_3 = arith.constant 0 : index
    %c0_4 = arith.constant 0 : index
    %2 = vector.load %arg3[%c0_3, %c0_4] : memref<1x64xf32, #tpu.memory_space<vmem>>, vector<1x64xf32>
    %cst = arith.constant dense<0.000000e+00> : vector<16xf32>
    %3 = vector.multi_reduction <add>, %0, %cst [1] : vector<16x64xf32> to vector<16xf32>
    %4 = vector.shape_cast %3 : vector<16xf32> to vector<16x1xf32>
    %cst_5 = arith.constant 6.400000e+01 : f32
    %5 = vector.broadcast %cst_5 : f32 to vector<16x1xf32>
    %6 = arith.divf %4, %5 : vector<16x1xf32>
    %7 = vector.broadcast %6 : vector<16x1xf32> to vector<16x64xf32>
    %8 = arith.subf %0, %7 : vector<16x64xf32>
    %9 = arith.mulf %8, %8 : vector<16x64xf32>
    %cst_6 = arith.constant dense<0.000000e+00> : vector<16xf32>
    %10 = vector.multi_reduction <add>, %9, %cst_6 [1] : vector<16x64xf32> to vector<16xf32>
    %11 = vector.shape_cast %10 : vector<16xf32> to vector<16x1xf32>
    %cst_7 = arith.constant 6.400000e+01 : f32
    %12 = vector.broadcast %cst_7 : f32 to vector<16x1xf32>
    %13 = arith.divf %11, %12 : vector<16x1xf32>
    %14 = vector.broadcast %6 : vector<16x1xf32> to vector<16x64xf32>
    %15 = arith.subf %0, %14 : vector<16x64xf32>
    %cst_8 = arith.constant 9.99999974E-6 : f32
    %16 = vector.broadcast %cst_8 : f32 to vector<16x1xf32>
    %17 = arith.addf %13, %16 : vector<16x1xf32>
    %18 = math.rsqrt %17 : vector<16x1xf32>
    %19 = vector.broadcast %18 : vector<16x1xf32> to vector<16x64xf32>
    %20 = arith.mulf %15, %19 : vector<16x64xf32>
    %21 = vector.broadcast %1 : vector<1x64xf32> to vector<16x64xf32>
    %22 = arith.mulf %20, %21 : vector<16x64xf32>
    %23 = vector.broadcast %2 : vector<1x64xf32> to vector<16x64xf32>
    %24 = arith.addf %22, %23 : vector<16x64xf32>
    %25 = arith.truncf %24 : vector<16x64xf32> to vector<16x64xbf16>
    %c0_9 = arith.constant 0 : index
    %c0_10 = arith.constant 0 : index
    %26 = vector.load %arg4[%c0_9, %c0_10] : memref<64x32xbf16, #tpu.memory_space<vmem>>, vector<64x32xbf16>
    %cst_11 = arith.constant dense<0.000000e+00> : vector<16x32xf32>
    %27 = tpu.matmul %25, %26, %cst_11 {dimension_numbers = #tpu.dot_dimension_numbers<[1], [0], [0], [1], [0, 0, 1, 1], [], []>} : vector<16x64xbf16>, vector<64x32xbf16>, vector<16x32xf32> -> vector<16x32xf32>
    %c0_12 = arith.constant 0 : index
    %c0_13 = arith.constant 0 : index
    %28 = vector.load %arg5[%c0_12, %c0_13] : memref<1x32xf32, #tpu.memory_space<vmem>>, vector<1x32xf32>
    %29 = vector.broadcast %28 : vector<1x32xf32> to vector<16x32xf32>
    %30 = arith.addf %27, %29 : vector<16x32xf32>
    %c0_14 = arith.constant 0 : index
    %c0_15 = arith.constant 0 : index
    %31 = vector.load %arg6[%c0_14, %c0_15] : memref<16x32xf32, #tpu.memory_space<vmem>>, vector<16x32xf32>
    tpu.vector_store %arg6[%c0_14, %c0_15], %30 {strides = array<i32>} : memref<16x32xf32, #tpu.memory_space<vmem>>, vector<16x32xf32>,
    return
  }
  func.func @transform_0(%arg0: i32) -> (i32, i32) {
    %c0_i32 = arith.constant 0 : i32
    %c0_i32_0 = arith.constant 0 : i32
    return %arg0, %c0_i32 : i32, i32
  }
  func.func @transform_1(%arg0: i32) -> (i32, i32) {
    %c0_i32 = arith.constant 0 : i32
    %c0_i32_0 = arith.constant 0 : i32
    %c0_i32_1 = arith.constant 0 : i32
    return %c0_i32, %c0_i32_0 : i32, i32
  }
  func.func @transform_2(%arg0: i32) -> (i32, i32) {
    %c0_i32 = arith.constant 0 : i32
    %c0_i32_0 = arith.constant 0 : i32
    %c0_i32_1 = arith.constant 0 : i32
    return %c0_i32, %c0_i32_0 : i32, i32
  }
  func.func @transform_3(%arg0: i32) -> (i32, i32) {
    %c0_i32 = arith.constant 0 : i32
    %c0_i32_0 = arith.constant 0 : i32
    %c0_i32_1 = arith.constant 0 : i32
    return %c0_i32, %c0_i32_0 : i32, i32
  }
  func.func @transform_4(%arg0: i32) -> (i32, i32) {
    %c0_i32 = arith.constant 0 : i32
    %c0_i32_0 = arith.constant 0 : i32
    %c0_i32_1 = arith.constant 0 : i32
    return %c0_i32, %c0_i32_0 : i32, i32
  }
  func.func @transform_5(%arg0: i32) -> (i32, i32) {
    %c0_i32 = arith.constant 0 : i32
    %c0_i32_0 = arith.constant 0 : i32
    return %arg0, %c0_i32 : i32, i32
  }
}

module attributes {stable_mosaic.version = 11 : i64} {
  func.func @_ln_linear_kernel(%arg0: i32, %arg1: memref<16x32xf32, #tpu.memory_space<vmem>>, %arg2: memref<1x32xf32, #tpu.memory_space<vmem>>, %arg3: memref<1x32xf32, #tpu.memory_space<vmem>>, %arg4: memref<32x96xbf16, #tpu.memory_space<vmem>>, %arg5: memref<1x96xf32, #tpu.memory_space<vmem>>, %arg6: memref<16x96xbf16, #tpu.memory_space<vmem>>) attributes {dimension_semantics = [#tpu.dimension_semantics<parallel>], iteration_bounds = array<i64: 2>, scalar_prefetch = 0 : i64, scratch_operands = 0 : i64, tpu.core_type = #tpu.core_type<tc>, window_params = [{transform_indices = @transform_0, window_bounds = array<i64: 16, 32>}, {pipeline_mode = #tpu.pipeline_mode<synchronous>, transform_indices = @transform_1, window_bounds = array<i64: 1, 32>}, {pipeline_mode = #tpu.pipeline_mode<synchronous>, transform_indices = @transform_2, window_bounds = array<i64: 1, 32>}, {pipeline_mode = #tpu.pipeline_mode<synchronous>, transform_indices = @transform_3, window_bounds = array<i64: 32, 96>}, {pipeline_mode = #tpu.pipeline_mode<synchronous>, transform_indices = @transform_4, window_bounds = array<i64: 1, 96>}, {transform_indices = @transform_5, window_bounds = array<i64: 16, 96>}]} {
    %c0 = arith.constant 0 : index
    %c0_0 = arith.constant 0 : index
    %0 = vector.load %arg1[%c0, %c0_0] : memref<16x32xf32, #tpu.memory_space<vmem>>, vector<16x32xf32>
    %c0_1 = arith.constant 0 : index
    %c0_2 = arith.constant 0 : index
    %1 = vector.load %arg2[%c0_1, %c0_2] : memref<1x32xf32, #tpu.memory_space<vmem>>, vector<1x32xf32>
    %c0_3 = arith.constant 0 : index
    %c0_4 = arith.constant 0 : index
    %2 = vector.load %arg3[%c0_3, %c0_4] : memref<1x32xf32, #tpu.memory_space<vmem>>, vector<1x32xf32>
    %cst = arith.constant dense<0.000000e+00> : vector<16xf32>
    %3 = vector.multi_reduction <add>, %0, %cst [1] : vector<16x32xf32> to vector<16xf32>
    %4 = vector.shape_cast %3 : vector<16xf32> to vector<16x1xf32>
    %cst_5 = arith.constant 3.200000e+01 : f32
    %5 = vector.broadcast %cst_5 : f32 to vector<16x1xf32>
    %6 = arith.divf %4, %5 : vector<16x1xf32>
    %7 = vector.broadcast %6 : vector<16x1xf32> to vector<16x32xf32>
    %8 = arith.subf %0, %7 : vector<16x32xf32>
    %9 = arith.mulf %8, %8 : vector<16x32xf32>
    %cst_6 = arith.constant dense<0.000000e+00> : vector<16xf32>
    %10 = vector.multi_reduction <add>, %9, %cst_6 [1] : vector<16x32xf32> to vector<16xf32>
    %11 = vector.shape_cast %10 : vector<16xf32> to vector<16x1xf32>
    %cst_7 = arith.constant 3.200000e+01 : f32
    %12 = vector.broadcast %cst_7 : f32 to vector<16x1xf32>
    %13 = arith.divf %11, %12 : vector<16x1xf32>
    %14 = vector.broadcast %6 : vector<16x1xf32> to vector<16x32xf32>
    %15 = arith.subf %0, %14 : vector<16x32xf32>
    %cst_8 = arith.constant 9.99999974E-6 : f32
    %16 = vector.broadcast %cst_8 : f32 to vector<16x1xf32>
    %17 = arith.addf %13, %16 : vector<16x1xf32>
    %18 = math.rsqrt %17 : vector<16x1xf32>
    %19 = vector.broadcast %18 : vector<16x1xf32> to vector<16x32xf32>
    %20 = arith.mulf %15, %19 : vector<16x32xf32>
    %21 = vector.broadcast %1 : vector<1x32xf32> to vector<16x32xf32>
    %22 = arith.mulf %20, %21 : vector<16x32xf32>
    %23 = vector.broadcast %2 : vector<1x32xf32> to vector<16x32xf32>
    %24 = arith.addf %22, %23 : vector<16x32xf32>
    %25 = arith.truncf %24 : vector<16x32xf32> to vector<16x32xbf16>
    %c0_9 = arith.constant 0 : index
    %c0_10 = arith.constant 0 : index
    %26 = vector.load %arg4[%c0_9, %c0_10] : memref<32x96xbf16, #tpu.memory_space<vmem>>, vector<32x96xbf16>
    %cst_11 = arith.constant dense<0.000000e+00> : vector<16x96xf32>
    %27 = tpu.matmul %25, %26, %cst_11 {dimension_numbers = #tpu.dot_dimension_numbers<[1], [0], [0], [1], [0, 0, 1, 1], [], []>} : vector<16x32xbf16>, vector<32x96xbf16>, vector<16x96xf32> -> vector<16x96xf32>
    %c0_12 = arith.constant 0 : index
    %c0_13 = arith.constant 0 : index
    %28 = vector.load %arg5[%c0_12, %c0_13] : memref<1x96xf32, #tpu.memory_space<vmem>>, vector<1x96xf32>
    %29 = vector.broadcast %28 : vector<1x96xf32> to vector<16x96xf32>
    %30 = arith.addf %27, %29 : vector<16x96xf32>
    %31 = arith.truncf %30 : vector<16x96xf32> to vector<16x96xbf16>
    %c0_14 = arith.constant 0 : index
    %c0_15 = arith.constant 0 : index
    %32 = vector.load %arg6[%c0_14, %c0_15] : memref<16x96xbf16, #tpu.memory_space<vmem>>, vector<16x96xbf16>
    tpu.vector_store %arg6[%c0_14, %c0_15], %31 {strides = array<i32>} : memref<16x96xbf16, #tpu.memory_space<vmem>>, vector<16x96xbf16>,
    return
  }
  func.func @transform_0(%arg0: i32) -> (i32, i32) {
    %c0_i32 = arith.constant 0 : i32
    %c0_i32_0 = arith.constant 0 : i32
    return %arg0, %c0_i32 : i32, i32
  }
  func.func @transform_1(%arg0: i32) -> (i32, i32) {
    %c0_i32 = arith.constant 0 : i32
    %c0_i32_0 = arith.constant 0 : i32
    %c0_i32_1 = arith.constant 0 : i32
    return %c0_i32, %c0_i32_0 : i32, i32
  }
  func.func @transform_2(%arg0: i32) -> (i32, i32) {
    %c0_i32 = arith.constant 0 : i32
    %c0_i32_0 = arith.constant 0 : i32
    %c0_i32_1 = arith.constant 0 : i32
    return %c0_i32, %c0_i32_0 : i32, i32
  }
  func.func @transform_3(%arg0: i32) -> (i32, i32) {
    %c0_i32 = arith.constant 0 : i32
    %c0_i32_0 = arith.constant 0 : i32
    %c0_i32_1 = arith.constant 0 : i32
    return %c0_i32, %c0_i32_0 : i32, i32
  }
  func.func @transform_4(%arg0: i32) -> (i32, i32) {
    %c0_i32 = arith.constant 0 : i32
    %c0_i32_0 = arith.constant 0 : i32
    %c0_i32_1 = arith.constant 0 : i32
    return %c0_i32, %c0_i32_0 : i32, i32
  }
  func.func @transform_5(%arg0: i32) -> (i32, i32) {
    %c0_i32 = arith.constant 0 : i32
    %c0_i32_0 = arith.constant 0 : i32
    return %arg0, %c0_i32 : i32, i32
  }
}

module attributes {stable_mosaic.version = 11 : i64} {
  func.func @_wattn_kernel(%arg0: i32, %arg1: memref<1x4x16x8xbf16, #tpu.memory_space<vmem>>, %arg2: memref<1x4x16x8xbf16, #tpu.memory_space<vmem>>, %arg3: memref<1x4x16x8xbf16, #tpu.memory_space<vmem>>, %arg4: memref<4x16x16xf32, #tpu.memory_space<vmem>>, %arg5: memref<1x4x16x8xbf16, #tpu.memory_space<vmem>>) attributes {dimension_semantics = [#tpu.dimension_semantics<parallel>], iteration_bounds = array<i64: 2>, scalar_prefetch = 0 : i64, scratch_operands = 0 : i64, tpu.core_type = #tpu.core_type<tc>, window_params = [{transform_indices = @transform_0, window_bounds = array<i64: 1, 4, 16, 8>}, {transform_indices = @transform_1, window_bounds = array<i64: 1, 4, 16, 8>}, {transform_indices = @transform_2, window_bounds = array<i64: 1, 4, 16, 8>}, {pipeline_mode = #tpu.pipeline_mode<synchronous>, transform_indices = @transform_3, window_bounds = array<i64: 4, 16, 16>}, {transform_indices = @transform_4, window_bounds = array<i64: 1, 4, 16, 8>}]} {
    %c0 = arith.constant 0 : index
    %c0_0 = arith.constant 0 : index
    %c0_1 = arith.constant 0 : index
    %c0_2 = arith.constant 0 : index
    %0 = vector.load %arg1[%c0, %c0_0, %c0_1, %c0_2] : memref<1x4x16x8xbf16, #tpu.memory_space<vmem>>, vector<1x4x16x8xbf16>
    %1 = vector.shape_cast %0 : vector<1x4x16x8xbf16> to vector<4x16x8xbf16>
    %c0_3 = arith.constant 0 : index
    %c0_4 = arith.constant 0 : index
    %c0_5 = arith.constant 0 : index
    %c0_6 = arith.constant 0 : index
    %2 = vector.load %arg2[%c0_3, %c0_4, %c0_5, %c0_6] : memref<1x4x16x8xbf16, #tpu.memory_space<vmem>>, vector<1x4x16x8xbf16>
    %3 = vector.shape_cast %2 : vector<1x4x16x8xbf16> to vector<4x16x8xbf16>
    %c0_7 = arith.constant 0 : index
    %c0_8 = arith.constant 0 : index
    %c0_9 = arith.constant 0 : index
    %c0_10 = arith.constant 0 : index
    %4 = vector.load %arg3[%c0_7, %c0_8, %c0_9, %c0_10] : memref<1x4x16x8xbf16, #tpu.memory_space<vmem>>, vector<1x4x16x8xbf16>
    %5 = vector.shape_cast %4 : vector<1x4x16x8xbf16> to vector<4x16x8xbf16>
    %cst = arith.constant dense<0.000000e+00> : vector<4x16x16xf32>
    %6 = tpu.matmul %1, %3, %cst {dimension_numbers = #tpu.dot_dimension_numbers<[2], [2], [1], [1], [0, 0, 0, 1, 1, 1], [0], [0]>} : vector<4x16x8xbf16>, vector<4x16x8xbf16>, vector<4x16x16xf32> -> vector<4x16x16xf32>
    %c0_11 = arith.constant 0 : index
    %c0_12 = arith.constant 0 : index
    %c0_13 = arith.constant 0 : index
    %7 = vector.load %arg4[%c0_11, %c0_12, %c0_13] : memref<4x16x16xf32, #tpu.memory_space<vmem>>, vector<4x16x16xf32>
    %8 = arith.addf %6, %7 : vector<4x16x16xf32>
    %cst_14 = arith.constant dense<0xFF800000> : vector<4x16xf32>
    %9 = vector.multi_reduction <maximumf>, %8, %cst_14 [2] : vector<4x16x16xf32> to vector<4x16xf32>
    %10 = vector.shape_cast %9 : vector<4x16xf32> to vector<4x16x1xf32>
    %11 = vector.broadcast %10 : vector<4x16x1xf32> to vector<4x16x16xf32>
    %12 = arith.subf %8, %11 : vector<4x16x16xf32>
    %13 = math.exp %12 : vector<4x16x16xf32>
    %cst_15 = arith.constant dense<0.000000e+00> : vector<4x16xf32>
    %14 = vector.multi_reduction <add>, %13, %cst_15 [2] : vector<4x16x16xf32> to vector<4x16xf32>
    %15 = vector.shape_cast %14 : vector<4x16xf32> to vector<4x16x1xf32>
    %16 = tpu.reciprocal %15 {approx = true} : vector<4x16x1xf32> -> vector<4x16x1xf32>
    %17 = vector.broadcast %16 : vector<4x16x1xf32> to vector<4x16x16xf32>
    %18 = arith.mulf %13, %17 : vector<4x16x16xf32>
    %19 = arith.truncf %18 : vector<4x16x16xf32> to vector<4x16x16xbf16>
    %cst_16 = arith.constant dense<0.000000e+00> : vector<4x16x8xf32>
    %20 = tpu.matmul %19, %5, %cst_16 {dimension_numbers = #tpu.dot_dimension_numbers<[2], [1], [1], [2], [0, 0, 0, 1, 1, 2], [0], [0]>} : vector<4x16x16xbf16>, vector<4x16x8xbf16>, vector<4x16x8xf32> -> vector<4x16x8xf32>
    %21 = arith.truncf %20 : vector<4x16x8xf32> to vector<4x16x8xbf16>
    %c0_17 = arith.constant 0 : index
    %c0_18 = arith.constant 0 : index
    %c0_19 = arith.constant 0 : index
    %c0_20 = arith.constant 0 : index
    %22 = vector.load %arg5[%c0_17, %c0_18, %c0_19, %c0_20] : memref<1x4x16x8xbf16, #tpu.memory_space<vmem>>, vector<1x4x16x8xbf16>
    %23 = vector.shape_cast %22 : vector<1x4x16x8xbf16> to vector<4x16x8xbf16>
    %24 = vector.shape_cast %21 : vector<4x16x8xbf16> to vector<1x4x16x8xbf16>
    tpu.vector_store %arg5[%c0_17, %c0_18, %c0_19, %c0_20], %24 {strides = array<i32>} : memref<1x4x16x8xbf16, #tpu.memory_space<vmem>>, vector<1x4x16x8xbf16>,
    return
  }
  func.func @transform_0(%arg0: i32) -> (i32, i32, i32, i32) {
    %c0_i32 = arith.constant 0 : i32
    %c0_i32_0 = arith.constant 0 : i32
    %c0_i32_1 = arith.constant 0 : i32
    %c0_i32_2 = arith.constant 0 : i32
    return %arg0, %c0_i32, %c0_i32_0, %c0_i32_1 : i32, i32, i32, i32
  }
  func.func @transform_1(%arg0: i32) -> (i32, i32, i32, i32) {
    %c0_i32 = arith.constant 0 : i32
    %c0_i32_0 = arith.constant 0 : i32
    %c0_i32_1 = arith.constant 0 : i32
    %c0_i32_2 = arith.constant 0 : i32
    return %arg0, %c0_i32, %c0_i32_0, %c0_i32_1 : i32, i32, i32, i32
  }
  func.func @transform_2(%arg0: i32) -> (i32, i32, i32, i32) {
    %c0_i32 = arith.constant 0 : i32
    %c0_i32_0 = arith.constant 0 : i32
    %c0_i32_1 = arith.constant 0 : i32
    %c0_i32_2 = arith.constant 0 : i32
    return %arg0, %c0_i32, %c0_i32_0, %c0_i32_1 : i32, i32, i32, i32
  }
  func.func @transform_3(%arg0: i32) -> (i32, i32, i32) {
    %c0_i32 = arith.constant 0 : i32
    %c0_i32_0 = arith.constant 0 : i32
    %c0_i32_1 = arith.constant 0 : i32
    %c0_i32_2 = arith.constant 0 : i32
    return %c0_i32, %c0_i32_0, %c0_i32_1 : i32, i32, i32
  }
  func.func @transform_4(%arg0: i32) -> (i32, i32, i32, i32) {
    %c0_i32 = arith.constant 0 : i32
    %c0_i32_0 = arith.constant 0 : i32
    %c0_i32_1 = arith.constant 0 : i32
    %c0_i32_2 = arith.constant 0 : i32
    return %arg0, %c0_i32, %c0_i32_0, %c0_i32_1 : i32, i32, i32, i32
  }
}

module attributes {stable_mosaic.version = 11 : i64} {
  func.func @_linear_residual_kernel(%arg0: i32, %arg1: memref<16x32xbf16, #tpu.memory_space<vmem>>, %arg2: memref<16x32xf32, #tpu.memory_space<vmem>>, %arg3: memref<32x32xbf16, #tpu.memory_space<vmem>>, %arg4: memref<1x32xf32, #tpu.memory_space<vmem>>, %arg5: memref<16x32xf32, #tpu.memory_space<vmem>>) attributes {dimension_semantics = [#tpu.dimension_semantics<parallel>], iteration_bounds = array<i64: 2>, scalar_prefetch = 0 : i64, scratch_operands = 0 : i64, tpu.core_type = #tpu.core_type<tc>, window_params = [{transform_indices = @transform_0, window_bounds = array<i64: 16, 32>}, {transform_indices = @transform_1, window_bounds = array<i64: 16, 32>}, {pipeline_mode = #tpu.pipeline_mode<synchronous>, transform_indices = @transform_2, window_bounds = array<i64: 32, 32>}, {pipeline_mode = #tpu.pipeline_mode<synchronous>, transform_indices = @transform_3, window_bounds = array<i64: 1, 32>}, {transform_indices = @transform_4, window_bounds = array<i64: 16, 32>}]} {
    %c0 = arith.constant 0 : index
    %c0_0 = arith.constant 0 : index
    %0 = vector.load %arg1[%c0, %c0_0] : memref<16x32xbf16, #tpu.memory_space<vmem>>, vector<16x32xbf16>
    %c0_1 = arith.constant 0 : index
    %c0_2 = arith.constant 0 : index
    %1 = vector.load %arg3[%c0_1, %c0_2] : memref<32x32xbf16, #tpu.memory_space<vmem>>, vector<32x32xbf16>
    %cst = arith.constant dense<0.000000e+00> : vector<16x32xf32>
    %2 = tpu.matmul %0, %1, %cst {dimension_numbers = #tpu.dot_dimension_numbers<[1], [0], [0], [1], [0, 0, 1, 1], [], []>} : vector<16x32xbf16>, vector<32x32xbf16>, vector<16x32xf32> -> vector<16x32xf32>
    %c0_3 = arith.constant 0 : index
    %c0_4 = arith.constant 0 : index
    %3 = vector.load %arg4[%c0_3, %c0_4] : memref<1x32xf32, #tpu.memory_space<vmem>>, vector<1x32xf32>
    %4 = vector.broadcast %3 : vector<1x32xf32> to vector<16x32xf32>
    %5 = arith.addf %2, %4 : vector<16x32xf32>
    %c0_5 = arith.constant 0 : index
    %c0_6 = arith.constant 0 : index
    %6 = vector.load %arg2[%c0_5, %c0_6] : memref<16x32xf32, #tpu.memory_space<vmem>>, vector<16x32xf32>
    %7 = arith.addf %6, %5 : vector<16x32xf32>
    %c0_7 = arith.constant 0 : index
    %c0_8 = arith.constant 0 : index
    %8 = vector.load %arg5[%c0_7, %c0_8] : memref<16x32xf32, #tpu.memory_space<vmem>>, vector<16x32xf32>
    tpu.vector_store %arg5[%c0_7, %c0_8], %7 {strides = array<i32>} : memref<16x32xf32, #tpu.memory_space<vmem>>, vector<16x32xf32>,
    return
  }
  func.func @transform_0(%arg0: i32) -> (i32, i32) {
    %c0_i32 = arith.constant 0 : i32
    %c0_i32_0 = arith.constant 0 : i32
    return %arg0, %c0_i32 : i32, i32
  }
  func.func @transform_1(%arg0: i32) -> (i32, i32) {
    %c0_i32 = arith.constant 0 : i32
    %c0_i32_0 = arith.constant 0 : i32
    return %arg0, %c0_i32 : i32, i32
  }
  func.func @transform_2(%arg0: i32) -> (i32, i32) {
    %c0_i32 = arith.constant 0 : i32
    %c0_i32_0 = arith.constant 0 : i32
    %c0_i32_1 = arith.constant 0 : i32
    return %c0_i32, %c0_i32_0 : i32, i32
  }
  func.func @transform_3(%arg0: i32) -> (i32, i32) {
    %c0_i32 = arith.constant 0 : i32
    %c0_i32_0 = arith.constant 0 : i32
    %c0_i32_1 = arith.constant 0 : i32
    return %c0_i32, %c0_i32_0 : i32, i32
  }
  func.func @transform_4(%arg0: i32) -> (i32, i32) {
    %c0_i32 = arith.constant 0 : i32
    %c0_i32_0 = arith.constant 0 : i32
    return %arg0, %c0_i32 : i32, i32
  }
}

module attributes {stable_mosaic.version = 11 : i64} {
  func.func @_mlp_block_kernel(%arg0: i32, %arg1: memref<16x32xf32, #tpu.memory_space<vmem>>, %arg2: memref<1x32xf32, #tpu.memory_space<vmem>>, %arg3: memref<1x32xf32, #tpu.memory_space<vmem>>, %arg4: memref<32x128xbf16, #tpu.memory_space<vmem>>, %arg5: memref<1x128xf32, #tpu.memory_space<vmem>>, %arg6: memref<128x32xbf16, #tpu.memory_space<vmem>>, %arg7: memref<1x32xf32, #tpu.memory_space<vmem>>, %arg8: memref<16x32xf32, #tpu.memory_space<vmem>>) attributes {dimension_semantics = [#tpu.dimension_semantics<parallel>], iteration_bounds = array<i64: 2>, scalar_prefetch = 0 : i64, scratch_operands = 0 : i64, tpu.core_type = #tpu.core_type<tc>, window_params = [{transform_indices = @transform_0, window_bounds = array<i64: 16, 32>}, {pipeline_mode = #tpu.pipeline_mode<synchronous>, transform_indices = @transform_1, window_bounds = array<i64: 1, 32>}, {pipeline_mode = #tpu.pipeline_mode<synchronous>, transform_indices = @transform_2, window_bounds = array<i64: 1, 32>}, {pipeline_mode = #tpu.pipeline_mode<synchronous>, transform_indices = @transform_3, window_bounds = array<i64: 32, 128>}, {pipeline_mode = #tpu.pipeline_mode<synchronous>, transform_indices = @transform_4, window_bounds = array<i64: 1, 128>}, {pipeline_mode = #tpu.pipeline_mode<synchronous>, transform_indices = @transform_5, window_bounds = array<i64: 128, 32>}, {pipeline_mode = #tpu.pipeline_mode<synchronous>, transform_indices = @transform_6, window_bounds = array<i64: 1, 32>}, {transform_indices = @transform_7, window_bounds = array<i64: 16, 32>}]} {
    %c0 = arith.constant 0 : index
    %c0_0 = arith.constant 0 : index
    %0 = vector.load %arg1[%c0, %c0_0] : memref<16x32xf32, #tpu.memory_space<vmem>>, vector<16x32xf32>
    %c0_1 = arith.constant 0 : index
    %c0_2 = arith.constant 0 : index
    %1 = vector.load %arg2[%c0_1, %c0_2] : memref<1x32xf32, #tpu.memory_space<vmem>>, vector<1x32xf32>
    %c0_3 = arith.constant 0 : index
    %c0_4 = arith.constant 0 : index
    %2 = vector.load %arg3[%c0_3, %c0_4] : memref<1x32xf32, #tpu.memory_space<vmem>>, vector<1x32xf32>
    %cst = arith.constant dense<0.000000e+00> : vector<16xf32>
    %3 = vector.multi_reduction <add>, %0, %cst [1] : vector<16x32xf32> to vector<16xf32>
    %4 = vector.shape_cast %3 : vector<16xf32> to vector<16x1xf32>
    %cst_5 = arith.constant 3.200000e+01 : f32
    %5 = vector.broadcast %cst_5 : f32 to vector<16x1xf32>
    %6 = arith.divf %4, %5 : vector<16x1xf32>
    %7 = vector.broadcast %6 : vector<16x1xf32> to vector<16x32xf32>
    %8 = arith.subf %0, %7 : vector<16x32xf32>
    %9 = arith.mulf %8, %8 : vector<16x32xf32>
    %cst_6 = arith.constant dense<0.000000e+00> : vector<16xf32>
    %10 = vector.multi_reduction <add>, %9, %cst_6 [1] : vector<16x32xf32> to vector<16xf32>
    %11 = vector.shape_cast %10 : vector<16xf32> to vector<16x1xf32>
    %cst_7 = arith.constant 3.200000e+01 : f32
    %12 = vector.broadcast %cst_7 : f32 to vector<16x1xf32>
    %13 = arith.divf %11, %12 : vector<16x1xf32>
    %14 = vector.broadcast %6 : vector<16x1xf32> to vector<16x32xf32>
    %15 = arith.subf %0, %14 : vector<16x32xf32>
    %cst_8 = arith.constant 9.99999974E-6 : f32
    %16 = vector.broadcast %cst_8 : f32 to vector<16x1xf32>
    %17 = arith.addf %13, %16 : vector<16x1xf32>
    %18 = math.rsqrt %17 : vector<16x1xf32>
    %19 = vector.broadcast %18 : vector<16x1xf32> to vector<16x32xf32>
    %20 = arith.mulf %15, %19 : vector<16x32xf32>
    %21 = vector.broadcast %1 : vector<1x32xf32> to vector<16x32xf32>
    %22 = arith.mulf %20, %21 : vector<16x32xf32>
    %23 = vector.broadcast %2 : vector<1x32xf32> to vector<16x32xf32>
    %24 = arith.addf %22, %23 : vector<16x32xf32>
    %25 = arith.truncf %24 : vector<16x32xf32> to vector<16x32xbf16>
    %c0_9 = arith.constant 0 : index
    %c0_10 = arith.constant 0 : index
    %26 = vector.load %arg4[%c0_9, %c0_10] : memref<32x128xbf16, #tpu.memory_space<vmem>>, vector<32x128xbf16>
    %cst_11 = arith.constant dense<0.000000e+00> : vector<16x128xf32>
    %27 = tpu.matmul %25, %26, %cst_11 {dimension_numbers = #tpu.dot_dimension_numbers<[1], [0], [0], [1], [0, 0, 1, 1], [], []>} : vector<16x32xbf16>, vector<32x128xbf16>, vector<16x128xf32> -> vector<16x128xf32>
    %c0_12 = arith.constant 0 : index
    %c0_13 = arith.constant 0 : index
    %28 = vector.load %arg5[%c0_12, %c0_13] : memref<1x128xf32, #tpu.memory_space<vmem>>, vector<1x128xf32>
    %29 = vector.broadcast %28 : vector<1x128xf32> to vector<16x128xf32>
    %30 = arith.addf %27, %29 : vector<16x128xf32>
    %cst_14 = arith.constant 5.000000e-01 : f32
    %31 = vector.broadcast %cst_14 : f32 to vector<16x128xf32>
    %32 = arith.mulf %31, %30 : vector<16x128xf32>
    %cst_15 = arith.constant 0.707106769 : f32
    %33 = vector.broadcast %cst_15 : f32 to vector<16x128xf32>
    %34 = arith.mulf %30, %33 : vector<16x128xf32>
    %35 = math.absf %34 : vector<16x128xf32>
    %cst_16 = arith.constant 0.327591091 : f32
    %36 = vector.broadcast %cst_16 : f32 to vector<16x128xf32>
    %37 = arith.mulf %36, %35 : vector<16x128xf32>
    %cst_17 = arith.constant 1.000000e+00 : f32
    %38 = vector.broadcast %cst_17 : f32 to vector<16x128xf32>
    %39 = arith.addf %38, %37 : vector<16x128xf32>
    %cst_18 = arith.constant 1.000000e+00 : f32
    %40 = vector.broadcast %cst_18 : f32 to vector<16x128xf32>
    %41 = arith.divf %40, %39 : vector<16x128xf32>
    %cst_19 = arith.constant 1.06140542 : f32
    %42 = vector.broadcast %cst_19 : f32 to vector<16x128xf32>
    %43 = arith.mulf %42, %41 : vector<16x128xf32>
    %cst_20 = arith.constant -1.45315206 : f32
    %44 = vector.broadcast %cst_20 : f32 to vector<16x128xf32>
    %45 = arith.addf %43, %44 : vector<16x128xf32>
    %46 = arith.mulf %45, %41 : vector<16x128xf32>
    %cst_21 = arith.constant 1.42141378 : f32
    %47 = vector.broadcast %cst_21 : f32 to vector<16x128xf32>
    %48 = arith.addf %46, %47 : vector<16x128xf32>
    %49 = arith.mulf %48, %41 : vector<16x128xf32>
    %cst_22 = arith.constant -0.284496725 : f32
    %50 = vector.broadcast %cst_22 : f32 to vector<16x128xf32>
    %51 = arith.addf %49, %50 : vector<16x128xf32>
    %52 = arith.mulf %51, %41 : vector<16x128xf32>
    %cst_23 = arith.constant 0.254829586 : f32
    %53 = vector.broadcast %cst_23 : f32 to vector<16x128xf32>
    %54 = arith.addf %52, %53 : vector<16x128xf32>
    %55 = arith.mulf %54, %41 : vector<16x128xf32>
    %cst_24 = arith.constant 0.000000e+00 : f32
    %56 = vector.broadcast %cst_24 : f32 to vector<16x128xf32>
    %57 = arith.subf %56, %35 : vector<16x128xf32>
    %58 = arith.mulf %57, %35 : vector<16x128xf32>
    %59 = math.exp %58 : vector<16x128xf32>
    %60 = arith.mulf %55, %59 : vector<16x128xf32>
    %cst_25 = arith.constant 1.000000e+00 : f32
    %61 = vector.broadcast %cst_25 : f32 to vector<16x128xf32>
    %62 = arith.subf %61, %60 : vector<16x128xf32>
    %cst_26 = arith.constant 0.000000e+00 : f32
    %63 = vector.broadcast %cst_26 : f32 to vector<16x128xf32>
    %64 = arith.cmpf oge, %34, %63 : vector<16x128xf32>
    %cst_27 = arith.constant 0.000000e+00 : f32
    %65 = vector.broadcast %cst_27 : f32 to vector<16x128xf32>
    %66 = arith.subf %65, %62 : vector<16x128xf32>
    %67 = arith.select %64, %62, %66 : vector<16x128xi1>, vector<16x128xf32>
    %cst_28 = arith.constant 1.000000e+00 : f32
    %68 = vector.broadcast %cst_28 : f32 to vector<16x128xf32>
    %69 = arith.addf %68, %67 : vector<16x128xf32>
    %70 = arith.mulf %32, %69 : vector<16x128xf32>
    %71 = arith.truncf %70 : vector<16x128xf32> to vector<16x128xbf16>
    %c0_29 = arith.constant 0 : index
    %c0_30 = arith.constant 0 : index
    %72 = vector.load %arg6[%c0_29, %c0_30] : memref<128x32xbf16, #tpu.memory_space<vmem>>, vector<128x32xbf16>
    %cst_31 = arith.constant dense<0.000000e+00> : vector<16x32xf32>
    %73 = tpu.matmul %71, %72, %cst_31 {dimension_numbers = #tpu.dot_dimension_numbers<[1], [0], [0], [1], [0, 0, 1, 1], [], []>} : vector<16x128xbf16>, vector<128x32xbf16>, vector<16x32xf32> -> vector<16x32xf32>
    %c0_32 = arith.constant 0 : index
    %c0_33 = arith.constant 0 : index
    %74 = vector.load %arg7[%c0_32, %c0_33] : memref<1x32xf32, #tpu.memory_space<vmem>>, vector<1x32xf32>
    %75 = vector.broadcast %74 : vector<1x32xf32> to vector<16x32xf32>
    %76 = arith.addf %73, %75 : vector<16x32xf32>
    %77 = arith.addf %0, %76 : vector<16x32xf32>
    %c0_34 = arith.constant 0 : index
    %c0_35 = arith.constant 0 : index
    %78 = vector.load %arg8[%c0_34, %c0_35] : memref<16x32xf32, #tpu.memory_space<vmem>>, vector<16x32xf32>
    tpu.vector_store %arg8[%c0_34, %c0_35], %77 {strides = array<i32>} : memref<16x32xf32, #tpu.memory_space<vmem>>, vector<16x32xf32>,
    return
  }
  func.func @transform_0(%arg0: i32) -> (i32, i32) {
    %c0_i32 = arith.constant 0 : i32
    %c0_i32_0 = arith.constant 0 : i32
    return %arg0, %c0_i32 : i32, i32
  }
  func.func @transform_1(%arg0: i32) -> (i32, i32) {
    %c0_i32 = arith.constant 0 : i32
    %c0_i32_0 = arith.constant 0 : i32
    %c0_i32_1 = arith.constant 0 : i32
    return %c0_i32, %c0_i32_0 : i32, i32
  }
  func.func @transform_2(%arg0: i32) -> (i32, i32) {
    %c0_i32 = arith.constant 0 : i32
    %c0_i32_0 = arith.constant 0 : i32
    %c0_i32_1 = arith.constant 0 : i32
    return %c0_i32, %c0_i32_0 : i32, i32
  }
  func.func @transform_3(%arg0: i32) -> (i32, i32) {
    %c0_i32 = arith.constant 0 : i32
    %c0_i32_0 = arith.constant 0 : i32
    %c0_i32_1 = arith.constant 0 : i32
    return %c0_i32, %c0_i32_0 : i32, i32
  }
  func.func @transform_4(%arg0: i32) -> (i32, i32) {
    %c0_i32 = arith.constant 0 : i32
    %c0_i32_0 = arith.constant 0 : i32
    %c0_i32_1 = arith.constant 0 : i32
    return %c0_i32, %c0_i32_0 : i32, i32
  }
  func.func @transform_5(%arg0: i32) -> (i32, i32) {
    %c0_i32 = arith.constant 0 : i32
    %c0_i32_0 = arith.constant 0 : i32
    %c0_i32_1 = arith.constant 0 : i32
    return %c0_i32, %c0_i32_0 : i32, i32
  }
  func.func @transform_6(%arg0: i32) -> (i32, i32) {
    %c0_i32 = arith.constant 0 : i32
    %c0_i32_0 = arith.constant 0 : i32
    %c0_i32_1 = arith.constant 0 : i32
    return %c0_i32, %c0_i32_0 : i32, i32
  }
  func.func @transform_7(%arg0: i32) -> (i32, i32) {
    %c0_i32 = arith.constant 0 : i32
    %c0_i32_0 = arith.constant 0 : i32
    return %arg0, %c0_i32 : i32, i32
  }
}

module attributes {stable_mosaic.version = 11 : i64} {
  func.func @_layernorm_kernel(%arg0: i32, %arg1: memref<16x32xf32, #tpu.memory_space<vmem>>, %arg2: memref<1x32xf32, #tpu.memory_space<vmem>>, %arg3: memref<1x32xf32, #tpu.memory_space<vmem>>, %arg4: memref<16x32xf32, #tpu.memory_space<vmem>>) attributes {dimension_semantics = [#tpu.dimension_semantics<parallel>], iteration_bounds = array<i64: 2>, scalar_prefetch = 0 : i64, scratch_operands = 0 : i64, tpu.core_type = #tpu.core_type<tc>, window_params = [{transform_indices = @transform_0, window_bounds = array<i64: 16, 32>}, {pipeline_mode = #tpu.pipeline_mode<synchronous>, transform_indices = @transform_1, window_bounds = array<i64: 1, 32>}, {pipeline_mode = #tpu.pipeline_mode<synchronous>, transform_indices = @transform_2, window_bounds = array<i64: 1, 32>}, {transform_indices = @transform_3, window_bounds = array<i64: 16, 32>}]} {
    %c0 = arith.constant 0 : index
    %c0_0 = arith.constant 0 : index
    %0 = vector.load %arg1[%c0, %c0_0] : memref<16x32xf32, #tpu.memory_space<vmem>>, vector<16x32xf32>
    %c0_1 = arith.constant 0 : index
    %c0_2 = arith.constant 0 : index
    %1 = vector.load %arg2[%c0_1, %c0_2] : memref<1x32xf32, #tpu.memory_space<vmem>>, vector<1x32xf32>
    %c0_3 = arith.constant 0 : index
    %c0_4 = arith.constant 0 : index
    %2 = vector.load %arg3[%c0_3, %c0_4] : memref<1x32xf32, #tpu.memory_space<vmem>>, vector<1x32xf32>
    %cst = arith.constant dense<0.000000e+00> : vector<16xf32>
    %3 = vector.multi_reduction <add>, %0, %cst [1] : vector<16x32xf32> to vector<16xf32>
    %4 = vector.shape_cast %3 : vector<16xf32> to vector<16x1xf32>
    %cst_5 = arith.constant 3.200000e+01 : f32
    %5 = vector.broadcast %cst_5 : f32 to vector<16x1xf32>
    %6 = arith.divf %4, %5 : vector<16x1xf32>
    %7 = vector.broadcast %6 : vector<16x1xf32> to vector<16x32xf32>
    %8 = arith.subf %0, %7 : vector<16x32xf32>
    %9 = arith.mulf %8, %8 : vector<16x32xf32>
    %cst_6 = arith.constant dense<0.000000e+00> : vector<16xf32>
    %10 = vector.multi_reduction <add>, %9, %cst_6 [1] : vector<16x32xf32> to vector<16xf32>
    %11 = vector.shape_cast %10 : vector<16xf32> to vector<16x1xf32>
    %cst_7 = arith.constant 3.200000e+01 : f32
    %12 = vector.broadcast %cst_7 : f32 to vector<16x1xf32>
    %13 = arith.divf %11, %12 : vector<16x1xf32>
    %14 = vector.broadcast %6 : vector<16x1xf32> to vector<16x32xf32>
    %15 = arith.subf %0, %14 : vector<16x32xf32>
    %cst_8 = arith.constant 9.99999974E-6 : f32
    %16 = vector.broadcast %cst_8 : f32 to vector<16x1xf32>
    %17 = arith.addf %13, %16 : vector<16x1xf32>
    %18 = math.rsqrt %17 : vector<16x1xf32>
    %19 = vector.broadcast %18 : vector<16x1xf32> to vector<16x32xf32>
    %20 = arith.mulf %15, %19 : vector<16x32xf32>
    %21 = vector.broadcast %1 : vector<1x32xf32> to vector<16x32xf32>
    %22 = arith.mulf %20, %21 : vector<16x32xf32>
    %23 = vector.broadcast %2 : vector<1x32xf32> to vector<16x32xf32>
    %24 = arith.addf %22, %23 : vector<16x32xf32>
    %c0_9 = arith.constant 0 : index
    %c0_10 = arith.constant 0 : index
    %25 = vector.load %arg4[%c0_9, %c0_10] : memref<16x32xf32, #tpu.memory_space<vmem>>, vector<16x32xf32>
    tpu.vector_store %arg4[%c0_9, %c0_10], %24 {strides = array<i32>} : memref<16x32xf32, #tpu.memory_space<vmem>>, vector<16x32xf32>,
    return
  }
  func.func @transform_0(%arg0: i32) -> (i32, i32) {
    %c0_i32 = arith.constant 0 : i32
    %c0_i32_0 = arith.constant 0 : i32
    return %arg0, %c0_i32 : i32, i32
  }
  func.func @transform_1(%arg0: i32) -> (i32, i32) {
    %c0_i32 = arith.constant 0 : i32
    %c0_i32_0 = arith.constant 0 : i32
    %c0_i32_1 = arith.constant 0 : i32
    return %c0_i32, %c0_i32_0 : i32, i32
  }
  func.func @transform_2(%arg0: i32) -> (i32, i32) {
    %c0_i32 = arith.constant 0 : i32
    %c0_i32_0 = arith.constant 0 : i32
    %c0_i32_1 = arith.constant 0 : i32
    return %c0_i32, %c0_i32_0 : i32, i32
  }
  func.func @transform_3(%arg0: i32) -> (i32, i32) {
    %c0_i32 = arith.constant 0 : i32
    %c0_i32_0 = arith.constant 0 : i32
    return %arg0, %c0_i32 : i32, i32
  }
}

module attributes {stable_mosaic.version = 11 : i64} {
  func.func @_linear_kernel(%arg0: i32, %arg1: memref<2x32xf32, #tpu.memory_space<vmem>>, %arg2: memref<32x10xbf16, #tpu.memory_space<vmem>>, %arg3: memref<1x10xf32, #tpu.memory_space<vmem>>, %arg4: memref<2x10xf32, #tpu.memory_space<vmem>>) attributes {dimension_semantics = [#tpu.dimension_semantics<parallel>], iteration_bounds = array<i64: 1>, scalar_prefetch = 0 : i64, scratch_operands = 0 : i64, tpu.core_type = #tpu.core_type<tc>, window_params = [{transform_indices = @transform_0, window_bounds = array<i64: 2, 32>}, {pipeline_mode = #tpu.pipeline_mode<synchronous>, transform_indices = @transform_1, window_bounds = array<i64: 32, 10>}, {pipeline_mode = #tpu.pipeline_mode<synchronous>, transform_indices = @transform_2, window_bounds = array<i64: 1, 10>}, {transform_indices = @transform_3, window_bounds = array<i64: 2, 10>}]} {
    %c0 = arith.constant 0 : index
    %c0_0 = arith.constant 0 : index
    %0 = vector.load %arg1[%c0, %c0_0] : memref<2x32xf32, #tpu.memory_space<vmem>>, vector<2x32xf32>
    %1 = arith.truncf %0 : vector<2x32xf32> to vector<2x32xbf16>
    %c0_1 = arith.constant 0 : index
    %c0_2 = arith.constant 0 : index
    %2 = vector.load %arg2[%c0_1, %c0_2] : memref<32x10xbf16, #tpu.memory_space<vmem>>, vector<32x10xbf16>
    %cst = arith.constant dense<0.000000e+00> : vector<2x10xf32>
    %3 = tpu.matmul %1, %2, %cst {dimension_numbers = #tpu.dot_dimension_numbers<[1], [0], [0], [1], [0, 0, 1, 1], [], []>} : vector<2x32xbf16>, vector<32x10xbf16>, vector<2x10xf32> -> vector<2x10xf32>
    %c0_3 = arith.constant 0 : index
    %c0_4 = arith.constant 0 : index
    %4 = vector.load %arg3[%c0_3, %c0_4] : memref<1x10xf32, #tpu.memory_space<vmem>>, vector<1x10xf32>
    %5 = vector.broadcast %4 : vector<1x10xf32> to vector<2x10xf32>
    %6 = arith.addf %3, %5 : vector<2x10xf32>
    %c0_5 = arith.constant 0 : index
    %c0_6 = arith.constant 0 : index
    %7 = vector.load %arg4[%c0_5, %c0_6] : memref<2x10xf32, #tpu.memory_space<vmem>>, vector<2x10xf32>
    tpu.vector_store %arg4[%c0_5, %c0_6], %6 {strides = array<i32>} : memref<2x10xf32, #tpu.memory_space<vmem>>, vector<2x10xf32>,
    return
  }
  func.func @transform_0(%arg0: i32) -> (i32, i32) {
    %c0_i32 = arith.constant 0 : i32
    %c0_i32_0 = arith.constant 0 : i32
    return %arg0, %c0_i32 : i32, i32
  }
  func.func @transform_1(%arg0: i32) -> (i32, i32) {
    %c0_i32 = arith.constant 0 : i32
    %c0_i32_0 = arith.constant 0 : i32
    %c0_i32_1 = arith.constant 0 : i32
    return %c0_i32, %c0_i32_0 : i32, i32
  }
  func.func @transform_2(%arg0: i32) -> (i32, i32) {
    %c0_i32 = arith.constant 0 : i32
    %c0_i32_0 = arith.constant 0 : i32
    %c0_i32_1 = arith.constant 0 : i32
    return %c0_i32, %c0_i32_0 : i32, i32
  }
  func.func @transform_3(%arg0: i32) -> (i32, i32) {
    %c0_i32 = arith.constant 0 : i32
    %c0_i32_0 = arith.constant 0 : i32
    return %arg0, %c0_i32 : i32, i32
  }
}

</mosaic_0001>

<llo_original>
// kernel: _lambda_.20
$region0: #{_lambda_.20}
  #allocation0 [shape = 'u32[]', space=smem, size = 0x4, offset = 0x4, fixed_abs, tag = 'smem constant byte address 0x4 - core index']
  #allocation1 [shape = 'u32[144,128]{1,0:T(1,128)}', space=vmem, size = 0x12000, scoped, tag = 'internal scratch']
  %s0 = inlined_call_operand.vmem [shape: f32[128,48], index: 0, kind: input, shape index: {}]
  %s1 = inlined_call_operand.vmem [shape: bf16[48,16], index: 1, kind: input, shape index: {}]
  %s2 = inlined_call_operand.vmem [shape: f32[1,16], index: 2, kind: input, shape index: {}, may-alias: {2,4}]
  %s3 = inlined_call_operand.vmem [shape: f32[1,16], index: 3, kind: input, shape index: {}]
  %s4 = inlined_call_operand.vmem [shape: f32[1,16], index: 4, kind: input, shape index: {}, may-alias: {2,4}]
  %s5 = inlined_call_operand.vmem [shape: f32[128,16], index: 5, kind: output, shape index: {}]
  %s6 = sld [smem:[#allocation0]]
  $region53: #{_lambda_.20} parent=0
    _
  %s8 = ssub.s32 1, %s6
  %s9 = scalar_select 0, %s8, %s6
  loop: start=0, step=1, limit=4
  $region2: #{_lambda_.20} parent=0 // loop_pre_header
    _
  $region3: #{_lambda_.20} parent=0 // loop_header
    %s11 = sphi 0, %s15
    %p12 = scmp.ge.s32.totalorder %s11, 4
    %s21 = sphi 0, %s23
    %s24 = sphi 0, %s21
    %s25 = sphi 0, %s24
    %s41 = sphi 0, %s25
    %s45 = sphi 0, %s45
    %s47 = sphi 0, %s45
    %s48 = sphi 0, %s47
    %s62 = sphi 0, %s48
    %s66 = sphi 0, %s66
    %s68 = sphi 0, %s66
    %s69 = sphi 0, %s68
    %s83 = sphi 0, %s69
    %s87 = sphi 0, %s87
    %s89 = sphi 0, %s87
    %s90 = sphi 0, %s89
    %s104 = sphi 0, %s90
    %s108 = sphi 0, %s108
    %s110 = sphi 0, %s108
    %s111 = sphi 0, %s110
    %s125 = sphi 0, %s111
    %s131 = sphi 0, %s133
    %s134 = sphi 0, %s131
    %s135 = sphi 0, %s134
    %s151 = sphi 0, %s135
  $region4: #{_lambda_.20} parent=0 // loop_header_branch
    %14 = sbr.rel (%p12) target = $region8
  $region5: #{_lambda_.20} parent=0 // loop_body
    %s16 = ssub.s32 %s11, 1
    %s17 = ssub.s32 %s11, 2
    %s18 = sadd.s32 %s11, 1
    %s19 = ssub.s32 %s11, %s18
    %p20 = scmp.eq.s32.totalorder %s19, 0
    %s22 = sadd.s32 %s21, 1
    %s23 = scalar_select %p20, %s21, %s22
    %p26 = pneg %p20
    %p27 = scmp.eq.s32.totalorder %s11, 1
    %p28 = por %p26, %p27
    %p29 = scmp.ne.s32.totalorder %s21, %s24
    %p30 = scmp.eq.s32.totalorder %s11, 0
    %p31 = por %p29, %p30
    %p32 = scmp.ne.s32.totalorder %s21, %s24
    %p33 = scmp.eq.s32.totalorder %s16, 1
    %p34 = por %p32, %p33
    %p35 = scmp.ne.s32.totalorder %s24, %s25
    %p36 = scmp.eq.s32.totalorder %s16, 0
    %p37 = por %p35, %p36
    %p38 = scmp.ne.s32.totalorder %s24, %s25
    %p39 = scmp.eq.s32.totalorder %s17, 1
    %p40 = por %p38, %p39
    %p42 = scmp.ne.s32.totalorder %s25, %s41
    %p43 = scmp.eq.s32.totalorder %s17, 0
    %p44 = por %p42, %p43
    %s46 = sadd.s32 %s45, 1
    %p49 = scmp.eq.s32.totalorder %s11, 1
    %p50 = scmp.ne.s32.totalorder %s45, %s47
    %p51 = scmp.eq.s32.totalorder %s11, 0
    %p52 = por %p50, %p51
    %p53 = scmp.ne.s32.totalorder %s45, %s47
    %p54 = scmp.eq.s32.totalorder %s16, 1
    %p55 = por %p53, %p54
    %p56 = scmp.ne.s32.totalorder %s47, %s48
    %p57 = scmp.eq.s32.totalorder %s16, 0
    %p58 = por %p56, %p57
    %p59 = scmp.ne.s32.totalorder %s47, %s48
    %p60 = scmp.eq.s32.totalorder %s17, 1
    %p61 = por %p59, %p60
    %p63 = scmp.ne.s32.totalorder %s48, %s62
    %p64 = scmp.eq.s32.totalorder %s17, 0
    %p65 = por %p63, %p64
    %s67 = sadd.s32 %s66, 1
    %p70 = scmp.eq.s32.totalorder %s11, 1
    %p71 = scmp.ne.s32.totalorder %s66, %s68
    %p72 = scmp.eq.s32.totalorder %s11, 0
    %p73 = por %p71, %p72
    %p74 = scmp.ne.s32.totalorder %s66, %s68
    %p75 = scmp.eq.s32.totalorder %s16, 1
    %p76 = por %p74, %p75
    %p77 = scmp.ne.s32.totalorder %s68, %s69
    %p78 = scmp.eq.s32.totalorder %s16, 0
    %p79 = por %p77, %p78
    %p80 = scmp.ne.s32.totalorder %s68, %s69
    %p81 = scmp.eq.s32.totalorder %s17, 1
    %p82 = por %p80, %p81
    %p84 = scmp.ne.s32.totalorder %s69, %s83
    %p85 = scmp.eq.s32.totalorder %s17, 0
    %p86 = por %p84, %p85
    %s88 = sadd.s32 %s87, 1
    %p91 = scmp.eq.s32.totalorder %s11, 1
    %p92 = scmp.ne.s32.totalorder %s87, %s89
    %p93 = scmp.eq.s32.totalorder %s11, 0
    %p94 = por %p92, %p93
    %p95 = scmp.ne.s32.totalorder %s87, %s89
    %p96 = scmp.eq.s32.totalorder %s16, 1
    %p97 = por %p95, %p96
    %p98 = scmp.ne.s32.totalorder %s89, %s90
    %p99 = scmp.eq.s32.totalorder %s16, 0
    %p100 = por %p98, %p99
    %p101 = scmp.ne.s32.totalorder %s89, %s90
    %p102 = scmp.eq.s32.totalorder %s17, 1
    %p103 = por %p101, %p102
    %p105 = scmp.ne.s32.totalorder %s90, %s104
    %p106 = scmp.eq.s32.totalorder %s17, 0
    %p107 = por %p105, %p106
    %s109 = sadd.s32 %s108, 1
    %p112 = scmp.eq.s32.totalorder %s11, 1
    %p113 = scmp.ne.s32.totalorder %s108, %s110
    %p114 = scmp.eq.s32.totalorder %s11, 0
    %p115 = por %p113, %p114
    %p116 = scmp.ne.s32.totalorder %s108, %s110
    %p117 = scmp.eq.s32.totalorder %s16, 1
    %p118 = por %p116, %p117
    %p119 = scmp.ne.s32.totalorder %s110, %s111
    %p120 = scmp.eq.s32.totalorder %s16, 0
    %p121 = por %p119, %p120
    %p122 = scmp.ne.s32.totalorder %s110, %s111
    %p123 = scmp.eq.s32.totalorder %s17, 1
    %p124 = por %p122, %p123
    %p126 = scmp.ne.s32.totalorder %s111, %s125
    %p127 = scmp.eq.s32.totalorder %s17, 0
    %p128 = por %p126, %p127
    %s129 = ssub.s32 %s11, %s18
    %p130 = scmp.eq.s32.totalorder %s129, 0
    %s132 = sadd.s32 %s131, 1
    %s133 = scalar_select %p130, %s131, %s132
    %p136 = pneg %p130
    %p137 = scmp.eq.s32.totalorder %s11, 1
    %p138 = por %p136, %p137
    %p139 = scmp.ne.s32.totalorder %s131, %s134
    %p140 = scmp.eq.s32.totalorder %s11, 0
    %p141 = por %p139, %p140
    %p142 = scmp.ne.s32.totalorder %s131, %s134
    %p143 = scmp.eq.s32.totalorder %s16, 1
    %p144 = por %p142, %p143
    %p145 = scmp.ne.s32.totalorder %s134, %s135
    %p146 = scmp.eq.s32.totalorder %s16, 0
    %p147 = por %p145, %p146
    %p148 = scmp.ne.s32.totalorder %s134, %s135
    %p149 = scmp.eq.s32.totalorder %s17, 1
    %p150 = por %p148, %p149
    %p152 = scmp.ne.s32.totalorder %s135, %s151
    %p153 = scmp.eq.s32.totalorder %s17, 0
    %p154 = por %p152, %p153
    %p155 = scmp.le.s32.totalorder 1, %s11
    %p156 = scmp.lt.s32.totalorder %s11, 3
    %p157 = pnand %p155, %p156
    %p158 = pneg %p157
    // Predicated region
    $region9: #{_lambda_.20} parent=5 // pred_check
      _
    $region10: #{_lambda_.20} parent=5 // pred_check_branch
      %160 = sbr.rel (%p157) target = $region12
    $region11: #{_lambda_.20} parent=5 // pred_region
      %s161 = ssub.s32 %s11, 1
      // Predicated region
      $region13: #{_lambda_.20} parent=11 // pred_check
        %p162 = pneg %p58
      $region14: #{_lambda_.20} parent=11 // pred_check_branch
        %164 = sbr.rel (%p162) target = $region16
      $region15: #{_lambda_.20} parent=11 // pred_region
        _
      $region16: #{_lambda_.20} parent=11 // pred_fallthru
        _
      // Predicated region
      $region17: #{_lambda_.20} parent=11 // pred_check
        %p165 = pneg %p79
      $region18: #{_lambda_.20} parent=11 // pred_check_branch
        %167 = sbr.rel (%p165) target = $region20
      $region19: #{_lambda_.20} parent=11 // pred_region
        _
      $region20: #{_lambda_.20} parent=11 // pred_fallthru
        _
      // Predicated region
      $region21: #{_lambda_.20} parent=11 // pred_check
        %p168 = pneg %p100
      $region22: #{_lambda_.20} parent=11 // pred_check_branch
        %170 = sbr.rel (%p168) target = $region24
      $region23: #{_lambda_.20} parent=11 // pred_region
        _
      $region24: #{_lambda_.20} parent=11 // pred_fallthru
        _
      // Predicated region
      $region25: #{_lambda_.20} parent=11 // pred_check
        %p171 = pneg %p121
      $region26: #{_lambda_.20} parent=11 // pred_check_branch
        %173 = sbr.rel (%p171) target = $region28
      $region27: #{_lambda_.20} parent=11 // pred_region
        _
      $region28: #{_lambda_.20} parent=11 // pred_fallthru
        _
    $region12: #{_lambda_.20} parent=5 // pred_fallthru
      _
    %p174 = scmp.lt.s32.totalorder %s11, 2
    // Predicated region
    $region29: #{_lambda_.20} parent=5 // pred_check
      %p175 = pneg %p174
    $region30: #{_lambda_.20} parent=5 // pred_check_branch
      %177 = sbr.rel (%p175) target = $region32
    $region31: #{_lambda_.20} parent=5 // pred_region
      // Predicated region
      $region33: #{_lambda_.20} parent=31 // pred_check
        %p178 = pneg %p31
      $region34: #{_lambda_.20} parent=31 // pred_check_branch
        %180 = sbr.rel (%p178) target = $region36
      $region35: #{_lambda_.20} parent=31 // pred_region
        %s181 = smul.u32 8, %s11
        %p182 = scmp.lt.s32.totalorder %s181, 15
        %s183 = scalar_select %p182, %s181, 15
        %s184 = smul.addr %s183, 8
        %s185 = scalar_lea.vmem %s0, %s184
        %s186 = smul.u32 8, %s11
      $region36: #{_lambda_.20} parent=31 // pred_fallthru
        _
    $region32: #{_lambda_.20} parent=5 // pred_fallthru
      _
    %p187 = scmp.le.s32.totalorder 1, %s11
    %p188 = scmp.lt.s32.totalorder %s11, 3
    %p189 = pnand %p187, %p188
    %p190 = pneg %p189
    // Predicated region
    $region37: #{_lambda_.20} parent=5 // pred_check
      _
    $region38: #{_lambda_.20} parent=5 // pred_check_branch
      %192 = sbr.rel (%p189) target = $region40
    $region39: #{_lambda_.20} parent=5 // pred_region
      %s193 = ssub.s32 %s11, 1
      %s194 = smul.u32 8, %s16
      %p195 = scmp.lt.s32.totalorder %s194, 15
      %s196 = scalar_select %p195, %s194, 15
      %s197 = smul.addr %s196, 8
      %s198 = scalar_lea.vmem %s0, %s197
      %p199 = pneg %p37
      %p200 = pneg %p34
      %p201 = pneg %p58
      %p202 = pneg %p55
      %p203 = pneg %p79
      %p204 = pneg %p76
      %p205 = pneg %p100
      %p206 = pneg %p97
      %p207 = pneg %p121
      %p208 = pneg %p118
      %p209 = pneg %p147
      %p210 = pneg %p144
      %s211 = smul.u32 8, %s16
      %p212 = scmp.lt.s32.totalorder %s211, 15
      %s213 = scalar_select %p212, %s211, 15
      %s214 = smul.addr %s213, 8
      %s215 = scalar_lea.vmem %s5, %s214
      %s216 = smul.u32 8, %s16
      %p217 = scmp.lt.s32.totalorder %s216, 15
      %s218 = scalar_select %p217, %s216, 15
      %s219 = smul.addr %s218, 8
      %s220 = scalar_lea.vmem %s0, %s219
      %s221 = smul.u32 8, %s16
      %s222 = smul.u32 8, %s16
      %p223 = scmp.lt.s32.totalorder %s222, 15
      %s224 = scalar_select %p223, %s222, 15
      %s225 = smul.addr %s224, 8
      %s226 = scalar_lea.vmem %s5, %s225
      %s227 = smul.u32 8, %s16
      %v229 = vld [vmem:[%s220] sm:$0xff]
      %v230 = vld [vmem:[%s220 + $0x8] sm:$0xff]
      %v231 = vld [vmem:[%s220 + $0x10] sm:$0xff]
      %v232 = vld [vmem:[%s220 + $0x18] sm:$0xff]
      %v233 = vld [vmem:[%s220 + $0x20] sm:$0xff]
      %v234 = vld [vmem:[%s220 + $0x28] sm:$0xff]
      %v235 = vld [vmem:[%s220 + $0x30] sm:$0xff]
      %v236 = vld [vmem:[%s220 + $0x38] sm:$0xff]
      %v237 = vpack.c.bf16 %v230, %v229
      %v238 = vpack.c.bf16 %v232, %v231
      %v239 = vpack.c.bf16 %v234, %v233
      %v240 = vpack.c.bf16 %v236, %v235
      %v241 = vld [vmem:[%s1] sm:$0xf]
      %v242 = vld [vmem:[%s1 + $0x4] sm:$0xf]
      %v243 = vld [vmem:[%s1 + $0x8] sm:$0xf]
      %v244 = vld [vmem:[%s1 + $0xc] sm:$0xf]
      %v245 = vld [vmem:[%s1 + $0x10] sm:$0xf]
      %v246 = vld [vmem:[%s1 + $0x14] sm:$0xf]
      %v247 = vld [vmem:[%s2] sm:$0x1]
      %v249 = vlaneseq
      %v250 = vshrl.u32 %v249, 7
      %v251 = vsub.s32 0, %v250
      %v252 = vrot.slane %v247, %v251
      %v260 = vunpack.c.l.b16 %v241
      %v261 = vunpack.c.l.b16 %v242
      %v262 = vunpack.c.l.b16 %v243
      %v263 = vunpack.c.l.b16 %v244
      %v264 = vunpack.c.l.b16 %v245
      %v265 = vunpack.c.l.b16 %v246
      %v266 = vpack.c.b16 %v261, %v260
      %v267 = vpack.c.b16 %v263, %v262
      %v268 = vpack.c.b16 %v265, %v264
      %vm272 = vcmask 392192
      %v274 = vsel %vm272, %v237, 0
      %v277 = vsel %vm272, %v238, 0
      %v280 = vsel %vm272, %v239, 0
      %v283 = vsel %vm272, %v240, 0
      %285 = vmatprep.subr.bf16.mxu0 0
      %286 = vmatpush1.bf16.msra.mxu0 0
      %287 = vmatprep.subr.bf16.mxu0 0
      %288 = vmatpush1.bf16.msra.mxu0 0
      %289 = vmatprep.subr.bf16.mxu0 0
      %290 = vmatpush1.bf16.msra.mxu0 0
      %291 = vmatprep.subr.bf16.mxu0 0
      %292 = vmatpush1.bf16.msra.mxu0 0
      %293 = vmatprep.subr.bf16.mxu0 0
      %294 = vmatpush1.bf16.msra.mxu0 0
      %295 = vmatprep.subr.bf16.mxu0 0
      %296 = vmatpush1.bf16.msra.mxu0 %v268
      %297 = vmatprep.subr.bf16.mxu0 0
      %298 = vmatpush1.bf16.msra.mxu0 %v267
      %299 = vmatprep.subr.bf16.mxu0 0
      %300 = vmatpush1.bf16.msra.mxu0 %v266
      %301 = vmatprep.subr.bf16.mxu0 0
      %302 = vmatpush2.bf16.msra.mxu0 0
      %303 = vmatprep.subr.bf16.mxu0 0
      %304 = vmatpush2.bf16.msra.mxu0 0
      %305 = vmatprep.subr.bf16.mxu0 0
      %306 = vmatpush2.bf16.msra.mxu0 0
      %307 = vmatprep.subr.bf16.mxu0 0
      %308 = vmatpush2.bf16.msra.mxu0 0
      %309 = vmatprep.subr.bf16.mxu0 0
      %310 = vmatpush2.bf16.msra.mxu0 0
      %311 = vmatprep.subr.bf16.mxu0 0
      %312 = vmatpush2.bf16.msra.mxu0 0
      %313 = vmatprep.subr.bf16.mxu0 0
      %314 = vmatpush2.bf16.msra.mxu0 0
      %315 = vmatprep.subr.bf16.mxu0 0
      %316 = vmatpush2.bf16.msra.mxu0 0
      %317 = vmatprep.mubr.bf16.mxu0 0
      %318 = vmatmul.mubr.bf16.gmra.mxu0 %v274
      %v319 = vpop.f32.mrf.mxu0
      %v320 = vadd.f32 %v252, %v319
      %v321 = vpop.f32.mrf.mxu0
      %v322 = vpop.f32.mrf.mxu0
      %v323 = vadd.f32 %v252, %v322
      %v324 = vpop.f32.mrf.mxu0
      %325 = vmatprep.mubr.bf16.mxu0 0
      %326 = vmatmul.mubr.bf16.gmra.mxu0 %v277
      %v327 = vpop.f32.mrf.mxu0
      %v328 = vadd.f32 %v252, %v327
      %v329 = vpop.f32.mrf.mxu0
      %v330 = vpop.f32.mrf.mxu0
      %v331 = vadd.f32 %v252, %v330
      %v332 = vpop.f32.mrf.mxu0
      %333 = vmatprep.mubr.bf16.mxu0 0
      %334 = vmatmul.mubr.bf16.gmra.mxu0 %v280
      %v335 = vpop.f32.mrf.mxu0
      %v336 = vadd.f32 %v252, %v335
      %v337 = vpop.f32.mrf.mxu0
      %v338 = vpop.f32.mrf.mxu0
      %v339 = vadd.f32 %v252, %v338
      %v340 = vpop.f32.mrf.mxu0
      %341 = vmatprep.mubr.bf16.mxu0 0
      %342 = vmatmul.mubr.bf16.gmra.mxu0 %v283
      %v343 = vpop.f32.mrf.mxu0
      %v344 = vadd.f32 %v252, %v343
      %v345 = vpop.f32.mrf.mxu0
      %v346 = vpop.f32.mrf.mxu0
      %v347 = vadd.f32 %v252, %v346
      %v348 = vpop.f32.mrf.mxu0
      %349 = vdwg.mxu0
      %v350 = vld [vmem:[%s3] sm:$0x1]
      %v351 = vld [vmem:[%s4] sm:$0x1]
      %vm352 = vcmask 130048
      %v353 = vsel %vm352, %v320, 0.0
      %354 = vadd.xlane.f32.xlu0 %v353
      %v355 = vpop.xlane.xlu0 %354
      %v356 = vsel %vm352, %v323, 0.0
      %357 = vadd.xlane.f32.xlu0 %v356
      %v358 = vpop.xlane.xlu0 %357
      %v359 = vsel %vm352, %v328, 0.0
      %360 = vadd.xlane.f32.xlu0 %v359
      %v361 = vpop.xlane.xlu0 %360
      %v362 = vsel %vm352, %v331, 0.0
      %363 = vadd.xlane.f32.xlu0 %v362
      %v364 = vpop.xlane.xlu0 %363
      %v365 = vsel %vm352, %v336, 0.0
      %366 = vadd.xlane.f32.xlu0 %v365
      %v367 = vpop.xlane.xlu0 %366
      %v368 = vsel %vm352, %v339, 0.0
      %369 = vadd.xlane.f32.xlu0 %v368
      %v370 = vpop.xlane.xlu0 %369
      %v371 = vsel %vm352, %v344, 0.0
      %372 = vadd.xlane.f32.xlu0 %v371
      %v373 = vpop.xlane.xlu0 %372
      %v374 = vsel %vm352, %v347, 0.0
      %375 = vadd.xlane.f32.xlu0 %v374
      %v376 = vpop.xlane.xlu0 %375
      %v377 = vrcp.pop 16.0
      %v378 = vmul.f32 %v355, %v377
      %v379 = vmul.f32 %v358, %v377
      %v380 = vmul.f32 %v361, %v377
      %v381 = vmul.f32 %v364, %v377
      %v382 = vmul.f32 %v367, %v377
      %v383 = vmul.f32 %v370, %v377
      %v384 = vmul.f32 %v373, %v377
      %v385 = vmul.f32 %v376, %v377
      %v386 = vsub.f32 %v320, %v378
      %v387 = vsub.f32 %v323, %v379
      %v388 = vsub.f32 %v328, %v380
      %v389 = vsub.f32 %v331, %v381
      %v390 = vsub.f32 %v336, %v382
      %v391 = vsub.f32 %v339, %v383
      %v392 = vsub.f32 %v344, %v384
      %v393 = vsub.f32 %v347, %v385
      %v394 = vmul.f32 %v386, %v386
      %v395 = vmul.f32 %v387, %v387
      %v396 = vmul.f32 %v388, %v388
      %v397 = vmul.f32 %v389, %v389
      %v398 = vmul.f32 %v390, %v390
      %v399 = vmul.f32 %v391, %v391
      %v400 = vmul.f32 %v392, %v392
      %v401 = vmul.f32 %v393, %v393
      %v402 = vsel %vm352, %v394, 0.0
      %403 = vadd.xlane.f32.xlu0 %v402
      %v404 = vpop.xlane.xlu0 %403
      %v405 = vsel %vm352, %v395, 0.0
      %406 = vadd.xlane.f32.xlu0 %v405
      %v407 = vpop.xlane.xlu0 %406
      %v408 = vsel %vm352, %v396, 0.0
      %409 = vadd.xlane.f32.xlu0 %v408
      %v410 = vpop.xlane.xlu0 %409
      %v411 = vsel %vm352, %v397, 0.0
      %412 = vadd.xlane.f32.xlu0 %v411
      %v413 = vpop.xlane.xlu0 %412
      %v414 = vsel %vm352, %v398, 0.0
      %415 = vadd.xlane.f32.xlu0 %v414
      %v416 = vpop.xlane.xlu0 %415
      %v417 = vsel %vm352, %v399, 0.0
      %418 = vadd.xlane.f32.xlu0 %v417
      %v419 = vpop.xlane.xlu0 %418
      %v420 = vsel %vm352, %v400, 0.0
      %421 = vadd.xlane.f32.xlu0 %v420
      %v422 = vpop.xlane.xlu0 %421
      %v423 = vsel %vm352, %v401, 0.0
      %424 = vadd.xlane.f32.xlu0 %v423
      %v425 = vpop.xlane.xlu0 %424
      %v426 = vmul.f32 %v404, %v377
      %v427 = vmul.f32 %v407, %v377
      %v428 = vmul.f32 %v410, %v377
      %v429 = vmul.f32 %v413, %v377
      %v430 = vmul.f32 %v416, %v377
      %v431 = vmul.f32 %v419, %v377
      %v432 = vmul.f32 %v422, %v377
      %v433 = vmul.f32 %v425, %v377
      %v434 = vadd.f32 %v426, 1e-05
      %v435 = vadd.f32 %v427, 1e-05
      %v436 = vadd.f32 %v428, 1e-05
      %v437 = vadd.f32 %v429, 1e-05
      %v438 = vadd.f32 %v430, 1e-05
      %v439 = vadd.f32 %v431, 1e-05
      %v440 = vadd.f32 %v432, 1e-05
      %v441 = vadd.f32 %v433, 1e-05
      %v442 = vrsqrt.pop %v434
      %v443 = vrsqrt.pop %v435
      %v444 = vrsqrt.pop %v436
      %v445 = vrsqrt.pop %v437
      %v446 = vrsqrt.pop %v438
      %v447 = vrsqrt.pop %v439
      %v448 = vrsqrt.pop %v440
      %v449 = vrsqrt.pop %v441
      %v450 = vmul.f32 %v386, %v442
      %v451 = vmul.f32 %v387, %v443
      %v452 = vmul.f32 %v388, %v444
      %v453 = vmul.f32 %v389, %v445
      %v454 = vmul.f32 %v390, %v446
      %v455 = vmul.f32 %v391, %v447
      %v456 = vmul.f32 %v392, %v448
      %v457 = vmul.f32 %v393, %v449
      %v459 = vlaneseq
      %v460 = vshrl.u32 %v459, 7
      %v461 = vsub.s32 0, %v460
      %v462 = vrot.slane %v350, %v461
      %v464 = vmul.f32 %v450, %v462
      %v465 = vmul.f32 %v451, %v462
      %v466 = vmul.f32 %v452, %v462
      %v467 = vmul.f32 %v453, %v462
      %v468 = vmul.f32 %v454, %v462
      %v469 = vmul.f32 %v455, %v462
      %v470 = vmul.f32 %v456, %v462
      %v471 = vmul.f32 %v457, %v462
      %v473 = vlaneseq
      %v474 = vshrl.u32 %v473, 7
      %v475 = vsub.s32 0, %v474
      %v476 = vrot.slane %v351, %v475
      %v478 = vadd.f32 %v464, %v476
      %v479 = vadd.f32 %v465, %v476
      %v480 = vadd.f32 %v466, %v476
      %v481 = vadd.f32 %v467, %v476
      %v482 = vadd.f32 %v468, %v476
      %v483 = vadd.f32 %v469, %v476
      %v484 = vadd.f32 %v470, %v476
      %v485 = vadd.f32 %v471, %v476
      %486 = vst.msk [vmem:[%s226] sm:$0xff] %vm352, %v478
      %487 = vst.msk [vmem:[%s226 + $0x8] sm:$0xff] %vm352, %v479
      %488 = vst.msk [vmem:[%s226 + $0x10] sm:$0xff] %vm352, %v480
      %489 = vst.msk [vmem:[%s226 + $0x18] sm:$0xff] %vm352, %v481
      %490 = vst.msk [vmem:[%s226 + $0x20] sm:$0xff] %vm352, %v482
      %491 = vst.msk [vmem:[%s226 + $0x28] sm:$0xff] %vm352, %v483
      %492 = vst.msk [vmem:[%s226 + $0x30] sm:$0xff] %vm352, %v484
      %493 = vst.msk [vmem:[%s226 + $0x38] sm:$0xff] %vm352, %v485
      %s494 = smul.u32 8, %s16
      %p495 = scmp.lt.s32.totalorder %s494, 15
      %s496 = scalar_select %p495, %s494, 15
      %s497 = smul.addr %s496, 8
      %s498 = scalar_lea.vmem %s5, %s497
      // Predicated region
      $region41: #{_lambda_.20} parent=39 // pred_check
        %p499 = pneg %p144
      $region42: #{_lambda_.20} parent=39 // pred_check_branch
        %501 = sbr.rel (%p499) target = $region44
      $region43: #{_lambda_.20} parent=39 // pred_region
        %s502 = smul.u32 8, %s16
      $region44: #{_lambda_.20} parent=39 // pred_fallthru
        _
    $region40: #{_lambda_.20} parent=5 // pred_fallthru
      _
    %p503 = scmp.le.s32.totalorder 2, %s11
    // Predicated region
    $region45: #{_lambda_.20} parent=5 // pred_check
      %p504 = pneg %p503
    $region46: #{_lambda_.20} parent=5 // pred_check_branch
      %506 = sbr.rel (%p504) target = $region48
    $region47: #{_lambda_.20} parent=5 // pred_region
      %s507 = ssub.s32 %s11, 2
      // Predicated region
      $region49: #{_lambda_.20} parent=47 // pred_check
        %p508 = pneg %p150
      $region50: #{_lambda_.20} parent=47 // pred_check_branch
        %510 = sbr.rel (%p508) target = $region52
      $region51: #{_lambda_.20} parent=47 // pred_region
        %s511 = smul.u32 8, %s17
        %p512 = scmp.lt.s32.totalorder %s511, 15
        %s513 = scalar_select %p512, %s511, 15
        %s514 = smul.addr %s513, 8
        %s515 = scalar_lea.vmem %s5, %s514
      $region52: #{_lambda_.20} parent=47 // pred_fallthru
        _
    $region48: #{_lambda_.20} parent=5 // pred_fallthru
      _
  $region6: #{_lambda_.20} parent=0 // loop_footer
    %s15 = sadd.s32 1, %s11
  $region7: #{_lambda_.20} parent=0 // loop_footer_branch
    %10 = sbr.rel target = $region3
  $region8: #{_lambda_.20} parent=0 // loop_exit
    _

// kernel: _lambda_.21
$region0: #{_lambda_.21}
  #allocation0 [shape = 'u32[]', space=smem, size = 0x4, offset = 0x4, fixed_abs, tag = 'smem constant byte address 0x4 - core index']
  #allocation1 [shape = 'u32[144,128]{1,0:T(1,128)}', space=vmem, size = 0x12000, scoped, tag = 'internal scratch']
  %s0 = inlined_call_operand.vmem [shape: f32[128,16], index: 0, kind: input, shape index: {}]
  %s1 = inlined_call_operand.vmem [shape: f32[1,16], index: 1, kind: input, shape index: {}]
  %s2 = inlined_call_operand.vmem [shape: f32[1,16], index: 2, kind: input, shape index: {}]
  %s3 = inlined_call_operand.vmem [shape: bf16[16,48], index: 3, kind: input, shape index: {}]
  %s4 = inlined_call_operand.vmem [shape: f32[1,48], index: 4, kind: input, shape index: {}]
  %s5 = inlined_call_operand.vmem [shape: bf16[128,48], index: 5, kind: output, shape index: {}]
  %s6 = sld [smem:[#allocation0]]
  $region53: #{_lambda_.21} parent=0
    _
  %s8 = ssub.s32 1, %s6
  %s9 = scalar_select 0, %s8, %s6
  loop: start=0, step=1, limit=4
  $region2: #{_lambda_.21} parent=0 // loop_pre_header
    _
  $region3: #{_lambda_.21} parent=0 // loop_header
    %s11 = sphi 0, %s15
    %p12 = scmp.ge.s32.totalorder %s11, 4
    %s21 = sphi 0, %s23
    %s24 = sphi 0, %s21
    %s25 = sphi 0, %s24
    %s41 = sphi 0, %s25
    %s45 = sphi 0, %s45
    %s47 = sphi 0, %s45
    %s48 = sphi 0, %s47
    %s62 = sphi 0, %s48
    %s66 = sphi 0, %s66
    %s68 = sphi 0, %s66
    %s69 = sphi 0, %s68
    %s83 = sphi 0, %s69
    %s87 = sphi 0, %s87
    %s89 = sphi 0, %s87
    %s90 = sphi 0, %s89
    %s104 = sphi 0, %s90
    %s108 = sphi 0, %s108
    %s110 = sphi 0, %s108
    %s111 = sphi 0, %s110
    %s125 = sphi 0, %s111
    %s131 = sphi 0, %s133
    %s134 = sphi 0, %s131
    %s135 = sphi 0, %s134
    %s151 = sphi 0, %s135
  $region4: #{_lambda_.21} parent=0 // loop_header_branch
    %14 = sbr.rel (%p12) target = $region8
  $region5: #{_lambda_.21} parent=0 // loop_body
    %s16 = ssub.s32 %s11, 1
    %s17 = ssub.s32 %s11, 2
    %s18 = sadd.s32 %s11, 1
    %s19 = ssub.s32 %s11, %s18
    %p20 = scmp.eq.s32.totalorder %s19, 0
    %s22 = sadd.s32 %s21, 1
    %s23 = scalar_select %p20, %s21, %s22
    %p26 = pneg %p20
    %p27 = scmp.eq.s32.totalorder %s11, 1
    %p28 = por %p26, %p27
    %p29 = scmp.ne.s32.totalorder %s21, %s24
    %p30 = scmp.eq.s32.totalorder %s11, 0
    %p31 = por %p29, %p30
    %p32 = scmp.ne.s32.totalorder %s21, %s24
    %p33 = scmp.eq.s32.totalorder %s16, 1
    %p34 = por %p32, %p33
    %p35 = scmp.ne.s32.totalorder %s24, %s25
    %p36 = scmp.eq.s32.totalorder %s16, 0
    %p37 = por %p35, %p36
    %p38 = scmp.ne.s32.totalorder %s24, %s25
    %p39 = scmp.eq.s32.totalorder %s17, 1
    %p40 = por %p38, %p39
    %p42 = scmp.ne.s32.totalorder %s25, %s41
    %p43 = scmp.eq.s32.totalorder %s17, 0
    %p44 = por %p42, %p43
    %s46 = sadd.s32 %s45, 1
    %p49 = scmp.eq.s32.totalorder %s11, 1
    %p50 = scmp.ne.s32.totalorder %s45, %s47
    %p51 = scmp.eq.s32.totalorder %s11, 0
    %p52 = por %p50, %p51
    %p53 = scmp.ne.s32.totalorder %s45, %s47
    %p54 = scmp.eq.s32.totalorder %s16, 1
    %p55 = por %p53, %p54
    %p56 = scmp.ne.s32.totalorder %s47, %s48
    %p57 = scmp.eq.s32.totalorder %s16, 0
    %p58 = por %p56, %p57
    %p59 = scmp.ne.s32.totalorder %s47, %s48
    %p60 = scmp.eq.s32.totalorder %s17, 1
    %p61 = por %p59, %p60
    %p63 = scmp.ne.s32.totalorder %s48, %s62
    %p64 = scmp.eq.s32.totalorder %s17, 0
    %p65 = por %p63, %p64
    %s67 = sadd.s32 %s66, 1
    %p70 = scmp.eq.s32.totalorder %s11, 1
    %p71 = scmp.ne.s32.totalorder %s66, %s68
    %p72 = scmp.eq.s32.totalorder %s11, 0
    %p73 = por %p71, %p72
    %p74 = scmp.ne.s32.totalorder %s66, %s68
    %p75 = scmp.eq.s32.totalorder %s16, 1
    %p76 = por %p74, %p75
    %p77 = scmp.ne.s32.totalorder %s68, %s69
    %p78 = scmp.eq.s32.totalorder %s16, 0
    %p79 = por %p77, %p78
    %p80 = scmp.ne.s32.totalorder %s68, %s69
    %p81 = scmp.eq.s32.totalorder %s17, 1
    %p82 = por %p80, %p81
    %p84 = scmp.ne.s32.totalorder %s69, %s83
    %p85 = scmp.eq.s32.totalorder %s17, 0
    %p86 = por %p84, %p85
    %s88 = sadd.s32 %s87, 1
    %p91 = scmp.eq.s32.totalorder %s11, 1
    %p92 = scmp.ne.s32.totalorder %s87, %s89
    %p93 = scmp.eq.s32.totalorder %s11, 0
    %p94 = por %p92, %p93
    %p95 = scmp.ne.s32.totalorder %s87, %s89
    %p96 = scmp.eq.s32.totalorder %s16, 1
    %p97 = por %p95, %p96
    %p98 = scmp.ne.s32.totalorder %s89, %s90
    %p99 = scmp.eq.s32.totalorder %s16, 0
    %p100 = por %p98, %p99
    %p101 = scmp.ne.s32.totalorder %s89, %s90
    %p102 = scmp.eq.s32.totalorder %s17, 1
    %p103 = por %p101, %p102
    %p105 = scmp.ne.s32.totalorder %s90, %s104
    %p106 = scmp.eq.s32.totalorder %s17, 0
    %p107 = por %p105, %p106
    %s109 = sadd.s32 %s108, 1
    %p112 = scmp.eq.s32.totalorder %s11, 1
    %p113 = scmp.ne.s32.totalorder %s108, %s110
    %p114 = scmp.eq.s32.totalorder %s11, 0
    %p115 = por %p113, %p114
    %p116 = scmp.ne.s32.totalorder %s108, %s110
    %p117 = scmp.eq.s32.totalorder %s16, 1
    %p118 = por %p116, %p117
    %p119 = scmp.ne.s32.totalorder %s110, %s111
    %p120 = scmp.eq.s32.totalorder %s16, 0
    %p121 = por %p119, %p120
    %p122 = scmp.ne.s32.totalorder %s110, %s111
    %p123 = scmp.eq.s32.totalorder %s17, 1
    %p124 = por %p122, %p123
    %p126 = scmp.ne.s32.totalorder %s111, %s125
    %p127 = scmp.eq.s32.totalorder %s17, 0
    %p128 = por %p126, %p127
    %s129 = ssub.s32 %s11, %s18
    %p130 = scmp.eq.s32.totalorder %s129, 0
    %s132 = sadd.s32 %s131, 1
    %s133 = scalar_select %p130, %s131, %s132
    %p136 = pneg %p130
    %p137 = scmp.eq.s32.totalorder %s11, 1
    %p138 = por %p136, %p137
    %p139 = scmp.ne.s32.totalorder %s131, %s134
    %p140 = scmp.eq.s32.totalorder %s11, 0
    %p141 = por %p139, %p140
    %p142 = scmp.ne.s32.totalorder %s131, %s134
    %p143 = scmp.eq.s32.totalorder %s16, 1
    %p144 = por %p142, %p143
    %p145 = scmp.ne.s32.totalorder %s134, %s135
    %p146 = scmp.eq.s32.totalorder %s16, 0
    %p147 = por %p145, %p146
    %p148 = scmp.ne.s32.totalorder %s134, %s135
    %p149 = scmp.eq.s32.totalorder %s17, 1
    %p150 = por %p148, %p149
    %p152 = scmp.ne.s32.totalorder %s135, %s151
    %p153 = scmp.eq.s32.totalorder %s17, 0
    %p154 = por %p152, %p153
    %p155 = scmp.le.s32.totalorder 1, %s11
    %p156 = scmp.lt.s32.totalorder %s11, 3
    %p157 = pnand %p155, %p156
    %p158 = pneg %p157
    // Predicated region
    $region9: #{_lambda_.21} parent=5 // pred_check
      _
    $region10: #{_lambda_.21} parent=5 // pred_check_branch
      %160 = sbr.rel (%p157) target = $region12
    $region11: #{_lambda_.21} parent=5 // pred_region
      %s161 = ssub.s32 %s11, 1
      // Predicated region
      $region13: #{_lambda_.21} parent=11 // pred_check
        %p162 = pneg %p58
      $region14: #{_lambda_.21} parent=11 // pred_check_branch
        %164 = sbr.rel (%p162) target = $region16
      $region15: #{_lambda_.21} parent=11 // pred_region
        _
      $region16: #{_lambda_.21} parent=11 // pred_fallthru
        _
      // Predicated region
      $region17: #{_lambda_.21} parent=11 // pred_check
        %p165 = pneg %p79
      $region18: #{_lambda_.21} parent=11 // pred_check_branch
        %167 = sbr.rel (%p165) target = $region20
      $region19: #{_lambda_.21} parent=11 // pred_region
        _
      $region20: #{_lambda_.21} parent=11 // pred_fallthru
        _
      // Predicated region
      $region21: #{_lambda_.21} parent=11 // pred_check
        %p168 = pneg %p100
      $region22: #{_lambda_.21} parent=11 // pred_check_branch
        %170 = sbr.rel (%p168) target = $region24
      $region23: #{_lambda_.21} parent=11 // pred_region
        _
      $region24: #{_lambda_.21} parent=11 // pred_fallthru
        _
      // Predicated region
      $region25: #{_lambda_.21} parent=11 // pred_check
        %p171 = pneg %p121
      $region26: #{_lambda_.21} parent=11 // pred_check_branch
        %173 = sbr.rel (%p171) target = $region28
      $region27: #{_lambda_.21} parent=11 // pred_region
        _
      $region28: #{_lambda_.21} parent=11 // pred_fallthru
        _
    $region12: #{_lambda_.21} parent=5 // pred_fallthru
      _
    %p174 = scmp.lt.s32.totalorder %s11, 2
    // Predicated region
    $region29: #{_lambda_.21} parent=5 // pred_check
      %p175 = pneg %p174
    $region30: #{_lambda_.21} parent=5 // pred_check_branch
      %177 = sbr.rel (%p175) target = $region32
    $region31: #{_lambda_.21} parent=5 // pred_region
      // Predicated region
      $region33: #{_lambda_.21} parent=31 // pred_check
        %p178 = pneg %p31
      $region34: #{_lambda_.21} parent=31 // pred_check_branch
        %180 = sbr.rel (%p178) target = $region36
      $region35: #{_lambda_.21} parent=31 // pred_region
        %s181 = smul.u32 8, %s11
        %p182 = scmp.lt.s32.totalorder %s181, 15
        %s183 = scalar_select %p182, %s181, 15
        %s184 = smul.addr %s183, 8
        %s185 = scalar_lea.vmem %s0, %s184
        %s186 = smul.u32 8, %s11
      $region36: #{_lambda_.21} parent=31 // pred_fallthru
        _
    $region32: #{_lambda_.21} parent=5 // pred_fallthru
      _
    %p187 = scmp.le.s32.totalorder 1, %s11
    %p188 = scmp.lt.s32.totalorder %s11, 3
    %p189 = pnand %p187, %p188
    %p190 = pneg %p189
    // Predicated region
    $region37: #{_lambda_.21} parent=5 // pred_check
      _
    $region38: #{_lambda_.21} parent=5 // pred_check_branch
      %192 = sbr.rel (%p189) target = $region40
    $region39: #{_lambda_.21} parent=5 // pred_region
      %s193 = ssub.s32 %s11, 1
      %s194 = smul.u32 8, %s16
      %p195 = scmp.lt.s32.totalorder %s194, 15
      %s196 = scalar_select %p195, %s194, 15
      %s197 = smul.addr %s196, 8
      %s198 = scalar_lea.vmem %s0, %s197
      %p199 = pneg %p37
      %p200 = pneg %p34
      %p201 = pneg %p58
      %p202 = pneg %p55
      %p203 = pneg %p79
      %p204 = pneg %p76
      %p205 = pneg %p100
      %p206 = pneg %p97
      %p207 = pneg %p121
      %p208 = pneg %p118
      %p209 = pneg %p147
      %p210 = pneg %p144
      %s211 = smul.u32 8, %s16
      %p212 = scmp.lt.s32.totalorder %s211, 15
      %s213 = scalar_select %p212, %s211, 15
      %s214 = smul.addr %s213, 4
      %s215 = scalar_lea.vmem %s5, %s214
      %s216 = smul.u32 8, %s16
      %p217 = scmp.lt.s32.totalorder %s216, 15
      %s218 = scalar_select %p217, %s216, 15
      %s219 = smul.addr %s218, 8
      %s220 = scalar_lea.vmem %s0, %s219
      %s221 = smul.u32 8, %s16
      %s222 = smul.u32 8, %s16
      %p223 = scmp.lt.s32.totalorder %s222, 15
      %s224 = scalar_select %p223, %s222, 15
      %s225 = smul.addr %s224, 4
      %s226 = scalar_lea.vmem %s5, %s225
      %s227 = smul.u32 8, %s16
      %v229 = vld [vmem:[%s220] sm:$0xff]
      %v230 = vld [vmem:[%s220 + $0x8] sm:$0xff]
      %v231 = vld [vmem:[%s220 + $0x10] sm:$0xff]
      %v232 = vld [vmem:[%s220 + $0x18] sm:$0xff]
      %v233 = vld [vmem:[%s220 + $0x20] sm:$0xff]
      %v234 = vld [vmem:[%s220 + $0x28] sm:$0xff]
      %v235 = vld [vmem:[%s220 + $0x30] sm:$0xff]
      %v236 = vld [vmem:[%s220 + $0x38] sm:$0xff]
      %v237 = vld [vmem:[%s1] sm:$0x1]
      %v238 = vld [vmem:[%s2] sm:$0x1]
      %vm239 = vcmask 130048
      %v240 = vsel %vm239, %v229, 0.0
      %241 = vadd.xlane.f32.xlu0 %v240
      %v242 = vpop.xlane.xlu0 %241
      %v243 = vsel %vm239, %v230, 0.0
      %244 = vadd.xlane.f32.xlu0 %v243
      %v245 = vpop.xlane.xlu0 %244
      %v246 = vsel %vm239, %v231, 0.0
      %247 = vadd.xlane.f32.xlu0 %v246
      %v248 = vpop.xlane.xlu0 %247
      %v249 = vsel %vm239, %v232, 0.0
      %250 = vadd.xlane.f32.xlu0 %v249
      %v251 = vpop.xlane.xlu0 %250
      %v252 = vsel %vm239, %v233, 0.0
      %253 = vadd.xlane.f32.xlu0 %v252
      %v254 = vpop.xlane.xlu0 %253
      %v255 = vsel %vm239, %v234, 0.0
      %256 = vadd.xlane.f32.xlu0 %v255
      %v257 = vpop.xlane.xlu0 %256
      %v258 = vsel %vm239, %v235, 0.0
      %259 = vadd.xlane.f32.xlu0 %v258
      %v260 = vpop.xlane.xlu0 %259
      %v261 = vsel %vm239, %v236, 0.0
      %262 = vadd.xlane.f32.xlu0 %v261
      %v263 = vpop.xlane.xlu0 %262
      %v264 = vrcp.pop 16.0
      %v265 = vmul.f32 %v242, %v264
      %v266 = vmul.f32 %v245, %v264
      %v267 = vmul.f32 %v248, %v264
      %v268 = vmul.f32 %v251, %v264
      %v269 = vmul.f32 %v254, %v264
      %v270 = vmul.f32 %v257, %v264
      %v271 = vmul.f32 %v260, %v264
      %v272 = vmul.f32 %v263, %v264
      %v273 = vsub.f32 %v229, %v265
      %v274 = vsub.f32 %v230, %v266
      %v275 = vsub.f32 %v231, %v267
      %v276 = vsub.f32 %v232, %v268
      %v277 = vsub.f32 %v233, %v269
      %v278 = vsub.f32 %v234, %v270
      %v279 = vsub.f32 %v235, %v271
      %v280 = vsub.f32 %v236, %v272
      %v281 = vmul.f32 %v273, %v273
      %v282 = vmul.f32 %v274, %v274
      %v283 = vmul.f32 %v275, %v275
      %v284 = vmul.f32 %v276, %v276
      %v285 = vmul.f32 %v277, %v277
      %v286 = vmul.f32 %v278, %v278
      %v287 = vmul.f32 %v279, %v279
      %v288 = vmul.f32 %v280, %v280
      %v289 = vsel %vm239, %v281, 0.0
      %290 = vadd.xlane.f32.xlu0 %v289
      %v291 = vpop.xlane.xlu0 %290
      %v292 = vsel %vm239, %v282, 0.0
      %293 = vadd.xlane.f32.xlu0 %v292
      %v294 = vpop.xlane.xlu0 %293
      %v295 = vsel %vm239, %v283, 0.0
      %296 = vadd.xlane.f32.xlu0 %v295
      %v297 = vpop.xlane.xlu0 %296
      %v298 = vsel %vm239, %v284, 0.0
      %299 = vadd.xlane.f32.xlu0 %v298
      %v300 = vpop.xlane.xlu0 %299
      %v301 = vsel %vm239, %v285, 0.0
      %302 = vadd.xlane.f32.xlu0 %v301
      %v303 = vpop.xlane.xlu0 %302
      %v304 = vsel %vm239, %v286, 0.0
      %305 = vadd.xlane.f32.xlu0 %v304
      %v306 = vpop.xlane.xlu0 %305
      %v307 = vsel %vm239, %v287, 0.0
      %308 = vadd.xlane.f32.xlu0 %v307
      %v309 = vpop.xlane.xlu0 %308
      %v310 = vsel %vm239, %v288, 0.0
      %311 = vadd.xlane.f32.xlu0 %v310
      %v312 = vpop.xlane.xlu0 %311
      %v313 = vmul.f32 %v291, %v264
      %v314 = vmul.f32 %v294, %v264
      %v315 = vmul.f32 %v297, %v264
      %v316 = vmul.f32 %v300, %v264
      %v317 = vmul.f32 %v303, %v264
      %v318 = vmul.f32 %v306, %v264
      %v319 = vmul.f32 %v309, %v264
      %v320 = vmul.f32 %v312, %v264
      %v321 = vadd.f32 %v313, 1e-05
      %v322 = vadd.f32 %v314, 1e-05
      %v323 = vadd.f32 %v315, 1e-05
      %v324 = vadd.f32 %v316, 1e-05
      %v325 = vadd.f32 %v317, 1e-05
      %v326 = vadd.f32 %v318, 1e-05
      %v327 = vadd.f32 %v319, 1e-05
      %v328 = vadd.f32 %v320, 1e-05
      %v329 = vrsqrt.pop %v321
      %v330 = vrsqrt.pop %v322
      %v331 = vrsqrt.pop %v323
      %v332 = vrsqrt.pop %v324
      %v333 = vrsqrt.pop %v325
      %v334 = vrsqrt.pop %v326
      %v335 = vrsqrt.pop %v327
      %v336 = vrsqrt.pop %v328
      %v337 = vmul.f32 %v273, %v329
      %v338 = vmul.f32 %v274, %v330
      %v339 = vmul.f32 %v275, %v331
      %v340 = vmul.f32 %v276, %v332
      %v341 = vmul.f32 %v277, %v333
      %v342 = vmul.f32 %v278, %v334
      %v343 = vmul.f32 %v279, %v335
      %v344 = vmul.f32 %v280, %v336
      %v346 = vlaneseq
      %v347 = vshrl.u32 %v346, 7
      %v348 = vsub.s32 0, %v347
      %v349 = vrot.slane %v237, %v348
      %v351 = vmul.f32 %v337, %v349
      %v352 = vmul.f32 %v338, %v349
      %v353 = vmul.f32 %v339, %v349
      %v354 = vmul.f32 %v340, %v349
      %v355 = vmul.f32 %v341, %v349
      %v356 = vmul.f32 %v342, %v349
      %v357 = vmul.f32 %v343, %v349
      %v358 = vmul.f32 %v344, %v349
      %v360 = vlaneseq
      %v361 = vshrl.u32 %v360, 7
      %v362 = vsub.s32 0, %v361
      %v363 = vrot.slane %v238, %v362
      %v365 = vadd.f32 %v351, %v363
      %v366 = vadd.f32 %v352, %v363
      %v367 = vadd.f32 %v353, %v363
      %v368 = vadd.f32 %v354, %v363
      %v369 = vadd.f32 %v355, %v363
      %v370 = vadd.f32 %v356, %v363
      %v371 = vadd.f32 %v357, %v363
      %v372 = vadd.f32 %v358, %v363
      %v373 = vpack.c.bf16 %v366, %v365
      %v374 = vpack.c.bf16 %v368, %v367
      %v375 = vpack.c.bf16 %v370, %v369
      %v376 = vpack.c.bf16 %v372, %v371
      %v377 = vld [vmem:[%s3] sm:$0xf]
      %v378 = vld [vmem:[%s3 + $0x4] sm:$0xf]
      %v379 = vld [vmem:[%s4] sm:$0x1]
      %v381 = vlaneseq
      %v382 = vshrl.u32 %v381, 7
      %v383 = vsub.s32 0, %v382
      %v384 = vrot.slane %v379, %v383
      %v388 = vunpack.c.l.b16 %v377
      %v389 = vunpack.c.l.b16 %v378
      %v390 = vpack.c.b16 %v389, %v388
      %v393 = vsel %vm239, %v373, 0
      %v396 = vsel %vm239, %v374, 0
      %v399 = vsel %vm239, %v375, 0
      %v402 = vsel %vm239, %v376, 0
      %404 = vmatprep.subr.bf16.mxu0 0
      %405 = vmatpush1.bf16.msra.mxu0 0
      %406 = vmatprep.subr.bf16.mxu0 0
      %407 = vmatpush1.bf16.msra.mxu0 0
      %408 = vmatprep.subr.bf16.mxu0 0
      %409 = vmatpush1.bf16.msra.mxu0 0
      %410 = vmatprep.subr.bf16.mxu0 0
      %411 = vmatpush1.bf16.msra.mxu0 0
      %412 = vmatprep.subr.bf16.mxu0 0
      %413 = vmatpush1.bf16.msra.mxu0 0
      %414 = vmatprep.subr.bf16.mxu0 0
      %415 = vmatpush1.bf16.msra.mxu0 0
      %416 = vmatprep.subr.bf16.mxu0 0
      %417 = vmatpush1.bf16.msra.mxu0 0
      %418 = vmatprep.subr.bf16.mxu0 0
      %419 = vmatpush1.bf16.msra.mxu0 %v390
      %420 = vmatprep.subr.bf16.mxu0 0
      %421 = vmatpush2.bf16.msra.mxu0 0
      %422 = vmatprep.subr.bf16.mxu0 0
      %423 = vmatpush2.bf16.msra.mxu0 0
      %424 = vmatprep.subr.bf16.mxu0 0
      %425 = vmatpush2.bf16.msra.mxu0 0
      %426 = vmatprep.subr.bf16.mxu0 0
      %427 = vmatpush2.bf16.msra.mxu0 0
      %428 = vmatprep.subr.bf16.mxu0 0
      %429 = vmatpush2.bf16.msra.mxu0 0
      %430 = vmatprep.subr.bf16.mxu0 0
      %431 = vmatpush2.bf16.msra.mxu0 0
      %432 = vmatprep.subr.bf16.mxu0 0
      %433 = vmatpush2.bf16.msra.mxu0 0
      %434 = vmatprep.subr.bf16.mxu0 0
      %435 = vmatpush2.bf16.msra.mxu0 0
      %436 = vmatprep.mubr.bf16.mxu0 0
      %437 = vmatmul.mubr.bf16.gmra.mxu0 %v393
      %v438 = vpop.f32.mrf.mxu0
      %v439 = vadd.f32 %v384, %v438
      %v440 = vpop.f32.mrf.mxu0
      %v441 = vpop.f32.mrf.mxu0
      %v442 = vadd.f32 %v384, %v441
      %v443 = vpop.f32.mrf.mxu0
      %444 = vmatprep.mubr.bf16.mxu0 0
      %445 = vmatmul.mubr.bf16.gmra.mxu0 %v396
      %v446 = vpop.f32.mrf.mxu0
      %v447 = vadd.f32 %v384, %v446
      %v448 = vpop.f32.mrf.mxu0
      %v449 = vpop.f32.mrf.mxu0
      %v450 = vadd.f32 %v384, %v449
      %v451 = vpop.f32.mrf.mxu0
      %452 = vmatprep.mubr.bf16.mxu0 0
      %453 = vmatmul.mubr.bf16.gmra.mxu0 %v399
      %v454 = vpop.f32.mrf.mxu0
      %v455 = vadd.f32 %v384, %v454
      %v456 = vpop.f32.mrf.mxu0
      %v457 = vpop.f32.mrf.mxu0
      %v458 = vadd.f32 %v384, %v457
      %v459 = vpop.f32.mrf.mxu0
      %460 = vmatprep.mubr.bf16.mxu0 0
      %461 = vmatmul.mubr.bf16.gmra.mxu0 %v402
      %v462 = vpop.f32.mrf.mxu0
      %v463 = vadd.f32 %v384, %v462
      %v464 = vpop.f32.mrf.mxu0
      %v465 = vpop.f32.mrf.mxu0
      %v466 = vadd.f32 %v384, %v465
      %v467 = vpop.f32.mrf.mxu0
      %468 = vdwg.mxu0
      %v469 = vpack.c.bf16 %v442, %v439
      %v470 = vpack.c.bf16 %v450, %v447
      %v471 = vpack.c.bf16 %v458, %v455
      %v472 = vpack.c.bf16 %v466, %v463
      %v477 = vunpack.c.l.b16 %v469
      %v478 = vunpack.c.h.b16 %v469
      %v479 = vunpack.c.l.b16 %v470
      %v480 = vunpack.c.h.b16 %v470
      %v481 = vunpack.c.l.b16 %v471
      %v482 = vunpack.c.h.b16 %v471
      %v483 = vunpack.c.l.b16 %v472
      %v484 = vunpack.c.h.b16 %v472
      %v485 = vpack.c.b16 %v477, %v477
      %v486 = vpack.c.b16 %v478, %v478
      %v487 = vpack.c.b16 %v479, %v479
      %v488 = vpack.c.b16 %v480, %v480
      %v489 = vpack.c.b16 %v481, %v481
      %v490 = vpack.c.b16 %v482, %v482
      %v491 = vpack.c.b16 %v483, %v483
      %v492 = vpack.c.b16 %v484, %v484
      %vm501 = vcmask 388096
      %502 = vst.msk [vmem:[%s226] sm:$0xf] %vm501, %v485
      %503 = vst.msk [vmem:[%s226 + $0x4] sm:$0xf] %vm501, %v486
      %504 = vst.msk [vmem:[%s226 + $0x8] sm:$0xf] %vm501, %v487
      %505 = vst.msk [vmem:[%s226 + $0xc] sm:$0xf] %vm501, %v488
      %506 = vst.msk [vmem:[%s226 + $0x10] sm:$0xf] %vm501, %v489
      %507 = vst.msk [vmem:[%s226 + $0x14] sm:$0xf] %vm501, %v490
      %508 = vst.msk [vmem:[%s226 + $0x18] sm:$0xf] %vm501, %v491
      %509 = vst.msk [vmem:[%s226 + $0x1c] sm:$0xf] %vm501, %v492
      %s510 = smul.u32 8, %s16
      %p511 = scmp.lt.s32.totalorder %s510, 15
      %s512 = scalar_select %p511, %s510, 15
      %s513 = smul.addr %s512, 4
      %s514 = scalar_lea.vmem %s5, %s513
      // Predicated region
      $region41: #{_lambda_.21} parent=39 // pred_check
        %p515 = pneg %p144
      $region42: #{_lambda_.21} parent=39 // pred_check_branch
        %517 = sbr.rel (%p515) target = $region44
      $region43: #{_lambda_.21} parent=39 // pred_region
        %s518 = smul.u32 8, %s16
      $region44: #{_lambda_.21} parent=39 // pred_fallthru
        _
    $region40: #{_lambda_.21} parent=5 // pred_fallthru
      _
    %p519 = scmp.le.s32.totalorder 2, %s11
    // Predicated region
    $region45: #{_lambda_.21} parent=5 // pred_check
      %p520 = pneg %p519
    $region46: #{_lambda_.21} parent=5 // pred_check_branch
      %522 = sbr.rel (%p520) target = $region48
    $region47: #{_lambda_.21} parent=5 // pred_region
      %s523 = ssub.s32 %s11, 2
      // Predicated region
      $region49: #{_lambda_.21} parent=47 // pred_check
        %p524 = pneg %p150
      $region50: #{_lambda_.21} parent=47 // pred_check_branch
        %526 = sbr.rel (%p524) target = $region52
      $region51: #{_lambda_.21} parent=47 // pred_region
        %s527 = smul.u32 8, %s17
        %p528 = scmp.lt.s32.totalorder %s527, 15
        %s529 = scalar_select %p528, %s527, 15
        %s530 = smul.addr %s529, 4
        %s531 = scalar_lea.vmem %s5, %s530
      $region52: #{_lambda_.21} parent=47 // pred_fallthru
        _
    $region48: #{_lambda_.21} parent=5 // pred_fallthru
      _
  $region6: #{_lambda_.21} parent=0 // loop_footer
    %s15 = sadd.s32 1, %s11
  $region7: #{_lambda_.21} parent=0 // loop_footer_branch
    %10 = sbr.rel target = $region3
  $region8: #{_lambda_.21} parent=0 // loop_exit
    _

// kernel: _lambda_.23
$region0: #{_lambda_.23}
  #allocation0 [shape = 'u32[]', space=smem, size = 0x4, offset = 0x4, fixed_abs, tag = 'smem constant byte address 0x4 - core index']
  #allocation1 [shape = 'u32[144,128]{1,0:T(1,128)}', space=vmem, size = 0x12000, scoped, tag = 'internal scratch']
  %s0 = inlined_call_operand.vmem [shape: bf16[128,16], index: 0, kind: input, shape index: {}]
  %s1 = inlined_call_operand.vmem [shape: f32[128,16], index: 1, kind: input, shape index: {}]
  %s2 = inlined_call_operand.vmem [shape: bf16[16,16], index: 2, kind: input, shape index: {}]
  %s3 = inlined_call_operand.vmem [shape: f32[1,16], index: 3, kind: input, shape index: {}]
  %s4 = inlined_call_operand.vmem [shape: f32[128,16], index: 4, kind: output, shape index: {}]
  %s5 = sld [smem:[#allocation0]]
  $region49: #{_lambda_.23} parent=0
    _
  %s7 = ssub.s32 1, %s5
  %s8 = scalar_select 0, %s7, %s5
  loop: start=0, step=1, limit=4
  $region2: #{_lambda_.23} parent=0 // loop_pre_header
    _
  $region3: #{_lambda_.23} parent=0 // loop_header
    %s10 = sphi 0, %s14
    %p11 = scmp.ge.s32.totalorder %s10, 4
    %s20 = sphi 0, %s22
    %s23 = sphi 0, %s20
    %s24 = sphi 0, %s23
    %s40 = sphi 0, %s24
    %s46 = sphi 0, %s48
    %s49 = sphi 0, %s46
    %s50 = sphi 0, %s49
    %s66 = sphi 0, %s50
    %s70 = sphi 0, %s70
    %s72 = sphi 0, %s70
    %s73 = sphi 0, %s72
    %s87 = sphi 0, %s73
    %s91 = sphi 0, %s91
    %s93 = sphi 0, %s91
    %s94 = sphi 0, %s93
    %s108 = sphi 0, %s94
    %s114 = sphi 0, %s116
    %s117 = sphi 0, %s114
    %s118 = sphi 0, %s117
    %s134 = sphi 0, %s118
  $region4: #{_lambda_.23} parent=0 // loop_header_branch
    %13 = sbr.rel (%p11) target = $region8
  $region5: #{_lambda_.23} parent=0 // loop_body
    %s15 = ssub.s32 %s10, 1
    %s16 = ssub.s32 %s10, 2
    %s17 = sadd.s32 %s10, 1
    %s18 = ssub.s32 %s10, %s17
    %p19 = scmp.eq.s32.totalorder %s18, 0
    %s21 = sadd.s32 %s20, 1
    %s22 = scalar_select %p19, %s20, %s21
    %p25 = pneg %p19
    %p26 = scmp.eq.s32.totalorder %s10, 1
    %p27 = por %p25, %p26
    %p28 = scmp.ne.s32.totalorder %s20, %s23
    %p29 = scmp.eq.s32.totalorder %s10, 0
    %p30 = por %p28, %p29
    %p31 = scmp.ne.s32.totalorder %s20, %s23
    %p32 = scmp.eq.s32.totalorder %s15, 1
    %p33 = por %p31, %p32
    %p34 = scmp.ne.s32.totalorder %s23, %s24
    %p35 = scmp.eq.s32.totalorder %s15, 0
    %p36 = por %p34, %p35
    %p37 = scmp.ne.s32.totalorder %s23, %s24
    %p38 = scmp.eq.s32.totalorder %s16, 1
    %p39 = por %p37, %p38
    %p41 = scmp.ne.s32.totalorder %s24, %s40
    %p42 = scmp.eq.s32.totalorder %s16, 0
    %p43 = por %p41, %p42
    %s44 = ssub.s32 %s10, %s17
    %p45 = scmp.eq.s32.totalorder %s44, 0
    %s47 = sadd.s32 %s46, 1
    %s48 = scalar_select %p45, %s46, %s47
    %p51 = pneg %p45
    %p52 = scmp.eq.s32.totalorder %s10, 1
    %p53 = por %p51, %p52
    %p54 = scmp.ne.s32.totalorder %s46, %s49
    %p55 = scmp.eq.s32.totalorder %s10, 0
    %p56 = por %p54, %p55
    %p57 = scmp.ne.s32.totalorder %s46, %s49
    %p58 = scmp.eq.s32.totalorder %s15, 1
    %p59 = por %p57, %p58
    %p60 = scmp.ne.s32.totalorder %s49, %s50
    %p61 = scmp.eq.s32.totalorder %s15, 0
    %p62 = por %p60, %p61
    %p63 = scmp.ne.s32.totalorder %s49, %s50
    %p64 = scmp.eq.s32.totalorder %s16, 1
    %p65 = por %p63, %p64
    %p67 = scmp.ne.s32.totalorder %s50, %s66
    %p68 = scmp.eq.s32.totalorder %s16, 0
    %p69 = por %p67, %p68
    %s71 = sadd.s32 %s70, 1
    %p74 = scmp.eq.s32.totalorder %s10, 1
    %p75 = scmp.ne.s32.totalorder %s70, %s72
    %p76 = scmp.eq.s32.totalorder %s10, 0
    %p77 = por %p75, %p76
    %p78 = scmp.ne.s32.totalorder %s70, %s72
    %p79 = scmp.eq.s32.totalorder %s15, 1
    %p80 = por %p78, %p79
    %p81 = scmp.ne.s32.totalorder %s72, %s73
    %p82 = scmp.eq.s32.totalorder %s15, 0
    %p83 = por %p81, %p82
    %p84 = scmp.ne.s32.totalorder %s72, %s73
    %p85 = scmp.eq.s32.totalorder %s16, 1
    %p86 = por %p84, %p85
    %p88 = scmp.ne.s32.totalorder %s73, %s87
    %p89 = scmp.eq.s32.totalorder %s16, 0
    %p90 = por %p88, %p89
    %s92 = sadd.s32 %s91, 1
    %p95 = scmp.eq.s32.totalorder %s10, 1
    %p96 = scmp.ne.s32.totalorder %s91, %s93
    %p97 = scmp.eq.s32.totalorder %s10, 0
    %p98 = por %p96, %p97
    %p99 = scmp.ne.s32.totalorder %s91, %s93
    %p100 = scmp.eq.s32.totalorder %s15, 1
    %p101 = por %p99, %p100
    %p102 = scmp.ne.s32.totalorder %s93, %s94
    %p103 = scmp.eq.s32.totalorder %s15, 0
    %p104 = por %p102, %p103
    %p105 = scmp.ne.s32.totalorder %s93, %s94
    %p106 = scmp.eq.s32.totalorder %s16, 1
    %p107 = por %p105, %p106
    %p109 = scmp.ne.s32.totalorder %s94, %s108
    %p110 = scmp.eq.s32.totalorder %s16, 0
    %p111 = por %p109, %p110
    %s112 = ssub.s32 %s10, %s17
    %p113 = scmp.eq.s32.totalorder %s112, 0
    %s115 = sadd.s32 %s114, 1
    %s116 = scalar_select %p113, %s114, %s115
    %p119 = pneg %p113
    %p120 = scmp.eq.s32.totalorder %s10, 1
    %p121 = por %p119, %p120
    %p122 = scmp.ne.s32.totalorder %s114, %s117
    %p123 = scmp.eq.s32.totalorder %s10, 0
    %p124 = por %p122, %p123
    %p125 = scmp.ne.s32.totalorder %s114, %s117
    %p126 = scmp.eq.s32.totalorder %s15, 1
    %p127 = por %p125, %p126
    %p128 = scmp.ne.s32.totalorder %s117, %s118
    %p129 = scmp.eq.s32.totalorder %s15, 0
    %p130 = por %p128, %p129
    %p131 = scmp.ne.s32.totalorder %s117, %s118
    %p132 = scmp.eq.s32.totalorder %s16, 1
    %p133 = por %p131, %p132
    %p135 = scmp.ne.s32.totalorder %s118, %s134
    %p136 = scmp.eq.s32.totalorder %s16, 0
    %p137 = por %p135, %p136
    %p138 = scmp.le.s32.totalorder 1, %s10
    %p139 = scmp.lt.s32.totalorder %s10, 3
    %p140 = pnand %p138, %p139
    %p141 = pneg %p140
    // Predicated region
    $region9: #{_lambda_.23} parent=5 // pred_check
      _
    $region10: #{_lambda_.23} parent=5 // pred_check_branch
      %143 = sbr.rel (%p140) target = $region12
    $region11: #{_lambda_.23} parent=5 // pred_region
      %s144 = ssub.s32 %s10, 1
      // Predicated region
      $region13: #{_lambda_.23} parent=11 // pred_check
        %p145 = pneg %p83
      $region14: #{_lambda_.23} parent=11 // pred_check_branch
        %147 = sbr.rel (%p145) target = $region16
      $region15: #{_lambda_.23} parent=11 // pred_region
        _
      $region16: #{_lambda_.23} parent=11 // pred_fallthru
        _
      // Predicated region
      $region17: #{_lambda_.23} parent=11 // pred_check
        %p148 = pneg %p104
      $region18: #{_lambda_.23} parent=11 // pred_check_branch
        %150 = sbr.rel (%p148) target = $region20
      $region19: #{_lambda_.23} parent=11 // pred_region
        _
      $region20: #{_lambda_.23} parent=11 // pred_fallthru
        _
    $region12: #{_lambda_.23} parent=5 // pred_fallthru
      _
    %p151 = scmp.lt.s32.totalorder %s10, 2
    // Predicated region
    $region21: #{_lambda_.23} parent=5 // pred_check
      %p152 = pneg %p151
    $region22: #{_lambda_.23} parent=5 // pred_check_branch
      %154 = sbr.rel (%p152) target = $region24
    $region23: #{_lambda_.23} parent=5 // pred_region
      // Predicated region
      $region25: #{_lambda_.23} parent=23 // pred_check
        %p155 = pneg %p30
      $region26: #{_lambda_.23} parent=23 // pred_check_branch
        %157 = sbr.rel (%p155) target = $region28
      $region27: #{_lambda_.23} parent=23 // pred_region
        %s158 = smul.u32 8, %s10
        %p159 = scmp.lt.s32.totalorder %s158, 15
        %s160 = scalar_select %p159, %s158, 15
        %s161 = smul.addr %s160, 4
        %s162 = scalar_lea.vmem %s0, %s161
        %s163 = smul.u32 8, %s10
      $region28: #{_lambda_.23} parent=23 // pred_fallthru
        _
      // Predicated region
      $region29: #{_lambda_.23} parent=23 // pred_check
        %p164 = pneg %p56
      $region30: #{_lambda_.23} parent=23 // pred_check_branch
        %166 = sbr.rel (%p164) target = $region32
      $region31: #{_lambda_.23} parent=23 // pred_region
        %s167 = smul.u32 8, %s10
        %p168 = scmp.lt.s32.totalorder %s167, 15
        %s169 = scalar_select %p168, %s167, 15
        %s170 = smul.addr %s169, 8
        %s171 = scalar_lea.vmem %s1, %s170
        %s172 = smul.u32 8, %s10
      $region32: #{_lambda_.23} parent=23 // pred_fallthru
        _
    $region24: #{_lambda_.23} parent=5 // pred_fallthru
      _
    %p173 = scmp.le.s32.totalorder 1, %s10
    %p174 = scmp.lt.s32.totalorder %s10, 3
    %p175 = pnand %p173, %p174
    %p176 = pneg %p175
    // Predicated region
    $region33: #{_lambda_.23} parent=5 // pred_check
      _
    $region34: #{_lambda_.23} parent=5 // pred_check_branch
      %178 = sbr.rel (%p175) target = $region36
    $region35: #{_lambda_.23} parent=5 // pred_region
      %s179 = ssub.s32 %s10, 1
      %s180 = smul.u32 8, %s15
      %p181 = scmp.lt.s32.totalorder %s180, 15
      %s182 = scalar_select %p181, %s180, 15
      %s183 = smul.addr %s182, 4
      %s184 = scalar_lea.vmem %s0, %s183
      %p185 = pneg %p36
      %p186 = pneg %p33
      %s187 = smul.u32 8, %s15
      %p188 = scmp.lt.s32.totalorder %s187, 15
      %s189 = scalar_select %p188, %s187, 15
      %s190 = smul.addr %s189, 8
      %s191 = scalar_lea.vmem %s1, %s190
      %p192 = pneg %p62
      %p193 = pneg %p59
      %p194 = pneg %p83
      %p195 = pneg %p80
      %p196 = pneg %p104
      %p197 = pneg %p101
      %p198 = pneg %p130
      %p199 = pneg %p127
      %s200 = smul.u32 8, %s15
      %p201 = scmp.lt.s32.totalorder %s200, 15
      %s202 = scalar_select %p201, %s200, 15
      %s203 = smul.addr %s202, 8
      %s204 = scalar_lea.vmem %s4, %s203
      %s205 = smul.u32 8, %s15
      %p206 = scmp.lt.s32.totalorder %s205, 15
      %s207 = scalar_select %p206, %s205, 15
      %s208 = smul.addr %s207, 4
      %s209 = scalar_lea.vmem %s0, %s208
      %s210 = smul.u32 8, %s15
      %s211 = smul.u32 8, %s15
      %p212 = scmp.lt.s32.totalorder %s211, 15
      %s213 = scalar_select %p212, %s211, 15
      %s214 = smul.addr %s213, 8
      %s215 = scalar_lea.vmem %s1, %s214
      %s216 = smul.u32 8, %s15
      %s217 = smul.u32 8, %s15
      %p218 = scmp.lt.s32.totalorder %s217, 15
      %s219 = scalar_select %p218, %s217, 15
      %s220 = smul.addr %s219, 8
      %s221 = scalar_lea.vmem %s4, %s220
      %s222 = smul.u32 8, %s15
      %v224 = vld [vmem:[%s209] sm:$0xf]
      %v225 = vld [vmem:[%s209 + $0x4] sm:$0xf]
      %v226 = vld [vmem:[%s209 + $0x8] sm:$0xf]
      %v227 = vld [vmem:[%s209 + $0xc] sm:$0xf]
      %v228 = vld [vmem:[%s209 + $0x10] sm:$0xf]
      %v229 = vld [vmem:[%s209 + $0x14] sm:$0xf]
      %v230 = vld [vmem:[%s209 + $0x18] sm:$0xf]
      %v231 = vld [vmem:[%s209 + $0x1c] sm:$0xf]
      %v232 = vld [vmem:[%s2] sm:$0xf]
      %v233 = vld [vmem:[%s2 + $0x4] sm:$0xf]
      %v234 = vld [vmem:[%s3] sm:$0x1]
      %v236 = vlaneseq
      %v237 = vshrl.u32 %v236, 7
      %v238 = vsub.s32 0, %v237
      %v239 = vrot.slane %v234, %v238
      %v249 = vunpack.c.l.b16 %v224
      %v250 = vunpack.c.l.b16 %v225
      %v251 = vunpack.c.l.b16 %v226
      %v252 = vunpack.c.l.b16 %v227
      %v253 = vunpack.c.l.b16 %v228
      %v254 = vunpack.c.l.b16 %v229
      %v255 = vunpack.c.l.b16 %v230
      %v256 = vunpack.c.l.b16 %v231
      %v257 = vpack.c.b16 %v250, %v249
      %v258 = vpack.c.b16 %v252, %v251
      %v259 = vpack.c.b16 %v254, %v253
      %v260 = vpack.c.b16 %v256, %v255
      %v263 = vunpack.c.l.b16 %v232
      %v264 = vunpack.c.l.b16 %v233
      %v265 = vpack.c.b16 %v264, %v263
      %vm267 = vcmask 130048
      %v269 = vsel %vm267, %v257, 0
      %v272 = vsel %vm267, %v258, 0
      %v275 = vsel %vm267, %v259, 0
      %v278 = vsel %vm267, %v260, 0
      %280 = vmatprep.subr.bf16.mxu0 0
      %281 = vmatpush1.bf16.msra.mxu0 0
      %282 = vmatprep.subr.bf16.mxu0 0
      %283 = vmatpush1.bf16.msra.mxu0 0
      %284 = vmatprep.subr.bf16.mxu0 0
      %285 = vmatpush1.bf16.msra.mxu0 0
      %286 = vmatprep.subr.bf16.mxu0 0
      %287 = vmatpush1.bf16.msra.mxu0 0
      %288 = vmatprep.subr.bf16.mxu0 0
      %289 = vmatpush1.bf16.msra.mxu0 0
      %290 = vmatprep.subr.bf16.mxu0 0
      %291 = vmatpush1.bf16.msra.mxu0 0
      %292 = vmatprep.subr.bf16.mxu0 0
      %293 = vmatpush1.bf16.msra.mxu0 0
      %294 = vmatprep.subr.bf16.mxu0 0
      %295 = vmatpush1.bf16.msra.mxu0 %v265
      %296 = vmatprep.subr.bf16.mxu0 0
      %297 = vmatpush2.bf16.msra.mxu0 0
      %298 = vmatprep.subr.bf16.mxu0 0
      %299 = vmatpush2.bf16.msra.mxu0 0
      %300 = vmatprep.subr.bf16.mxu0 0
      %301 = vmatpush2.bf16.msra.mxu0 0
      %302 = vmatprep.subr.bf16.mxu0 0
      %303 = vmatpush2.bf16.msra.mxu0 0
      %304 = vmatprep.subr.bf16.mxu0 0
      %305 = vmatpush2.bf16.msra.mxu0 0
      %306 = vmatprep.subr.bf16.mxu0 0
      %307 = vmatpush2.bf16.msra.mxu0 0
      %308 = vmatprep.subr.bf16.mxu0 0
      %309 = vmatpush2.bf16.msra.mxu0 0
      %310 = vmatprep.subr.bf16.mxu0 0
      %311 = vmatpush2.bf16.msra.mxu0 0
      %312 = vmatprep.mubr.bf16.mxu0 0
      %313 = vmatmul.mubr.bf16.gmra.mxu0 %v269
      %v314 = vpop.f32.mrf.mxu0
      %v315 = vadd.f32 %v239, %v314
      %v316 = vpop.f32.mrf.mxu0
      %v317 = vpop.f32.mrf.mxu0
      %v318 = vadd.f32 %v239, %v317
      %v319 = vpop.f32.mrf.mxu0
      %320 = vmatprep.mubr.bf16.mxu0 0
      %321 = vmatmul.mubr.bf16.gmra.mxu0 %v272
      %v322 = vpop.f32.mrf.mxu0
      %v323 = vadd.f32 %v239, %v322
      %v324 = vpop.f32.mrf.mxu0
      %v325 = vpop.f32.mrf.mxu0
      %v326 = vadd.f32 %v239, %v325
      %v327 = vpop.f32.mrf.mxu0
      %328 = vmatprep.mubr.bf16.mxu0 0
      %329 = vmatmul.mubr.bf16.gmra.mxu0 %v275
      %v330 = vpop.f32.mrf.mxu0
      %v331 = vadd.f32 %v239, %v330
      %v332 = vpop.f32.mrf.mxu0
      %v333 = vpop.f32.mrf.mxu0
      %v334 = vadd.f32 %v239, %v333
      %v335 = vpop.f32.mrf.mxu0
      %336 = vmatprep.mubr.bf16.mxu0 0
      %337 = vmatmul.mubr.bf16.gmra.mxu0 %v278
      %v338 = vpop.f32.mrf.mxu0
      %v339 = vadd.f32 %v239, %v338
      %v340 = vpop.f32.mrf.mxu0
      %v341 = vpop.f32.mrf.mxu0
      %v342 = vadd.f32 %v239, %v341
      %v343 = vpop.f32.mrf.mxu0
      %344 = vdwg.mxu0
      %v345 = vld [vmem:[%s215] sm:$0xff]
      %v346 = vld [vmem:[%s215 + $0x8] sm:$0xff]
      %v347 = vld [vmem:[%s215 + $0x10] sm:$0xff]
      %v348 = vld [vmem:[%s215 + $0x18] sm:$0xff]
      %v349 = vld [vmem:[%s215 + $0x20] sm:$0xff]
      %v350 = vld [vmem:[%s215 + $0x28] sm:$0xff]
      %v351 = vld [vmem:[%s215 + $0x30] sm:$0xff]
      %v352 = vld [vmem:[%s215 + $0x38] sm:$0xff]
      %v353 = vadd.f32 %v345, %v315
      %v354 = vadd.f32 %v346, %v318
      %v355 = vadd.f32 %v347, %v323
      %v356 = vadd.f32 %v348, %v326
      %v357 = vadd.f32 %v349, %v331
      %v358 = vadd.f32 %v350, %v334
      %v359 = vadd.f32 %v351, %v339
      %v360 = vadd.f32 %v352, %v342
      %361 = vst.msk [vmem:[%s221] sm:$0xff] %vm267, %v353
      %362 = vst.msk [vmem:[%s221 + $0x8] sm:$0xff] %vm267, %v354
      %363 = vst.msk [vmem:[%s221 + $0x10] sm:$0xff] %vm267, %v355
      %364 = vst.msk [vmem:[%s221 + $0x18] sm:$0xff] %vm267, %v356
      %365 = vst.msk [vmem:[%s221 + $0x20] sm:$0xff] %vm267, %v357
      %366 = vst.msk [vmem:[%s221 + $0x28] sm:$0xff] %vm267, %v358
      %367 = vst.msk [vmem:[%s221 + $0x30] sm:$0xff] %vm267, %v359
      %368 = vst.msk [vmem:[%s221 + $0x38] sm:$0xff] %vm267, %v360
      %s369 = smul.u32 8, %s15
      %p370 = scmp.lt.s32.totalorder %s369, 15
      %s371 = scalar_select %p370, %s369, 15
      %s372 = smul.addr %s371, 8
      %s373 = scalar_lea.vmem %s4, %s372
      // Predicated region
      $region37: #{_lambda_.23} parent=35 // pred_check
        %p374 = pneg %p127
      $region38: #{_lambda_.23} parent=35 // pred_check_branch
        %376 = sbr.rel (%p374) target = $region40
      $region39: #{_lambda_.23} parent=35 // pred_region
        %s377 = smul.u32 8, %s15
      $region40: #{_lambda_.23} parent=35 // pred_fallthru
        _
    $region36: #{_lambda_.23} parent=5 // pred_fallthru
      _
    %p378 = scmp.le.s32.totalorder 2, %s10
    // Predicated region
    $region41: #{_lambda_.23} parent=5 // pred_check
      %p379 = pneg %p378
    $region42: #{_lambda_.23} parent=5 // pred_check_branch
      %381 = sbr.rel (%p379) target = $region44
    $region43: #{_lambda_.23} parent=5 // pred_region
      %s382 = ssub.s32 %s10, 2
      // Predicated region
      $region45: #{_lambda_.23} parent=43 // pred_check
        %p383 = pneg %p133
      $region46: #{_lambda_.23} parent=43 // pred_check_branch
        %385 = sbr.rel (%p383) target = $region48
      $region47: #{_lambda_.23} parent=43 // pred_region
        %s386 = smul.u32 8, %s16
        %p387 = scmp.lt.s32.totalorder %s386, 15
        %s388 = scalar_select %p387, %s386, 15
        %s389 = smul.addr %s388, 8
        %s390 = scalar_lea.vmem %s4, %s389
      $region48: #{_lambda_.23} parent=43 // pred_fallthru
        _
    $region44: #{_lambda_.23} parent=5 // pred_fallthru
      _
  $region6: #{_lambda_.23} parent=0 // loop_footer
    %s14 = sadd.s32 1, %s10
  $region7: #{_lambda_.23} parent=0 // loop_footer_branch
    %9 = sbr.rel target = $region3
  $region8: #{_lambda_.23} parent=0 // loop_exit
    _

// kernel: _lambda_.24
$region0: #{_lambda_.24}
  #allocation0 [shape = 'u32[]', space=smem, size = 0x4, offset = 0x4, fixed_abs, tag = 'smem constant byte address 0x4 - core index']
  #allocation1 [shape = 'u32[144,128]{1,0:T(1,128)}', space=vmem, size = 0x12000, scoped, tag = 'internal scratch']
  %s0 = inlined_call_operand.vmem [shape: f32[128,16], index: 0, kind: input, shape index: {}]
  %s1 = inlined_call_operand.vmem [shape: f32[1,16], index: 1, kind: input, shape index: {}]
  %s2 = inlined_call_operand.vmem [shape: f32[1,16], index: 2, kind: input, shape index: {}, may-alias: {2,6}]
  %s3 = inlined_call_operand.vmem [shape: bf16[16,64], index: 3, kind: input, shape index: {}]
  %s4 = inlined_call_operand.vmem [shape: f32[1,64], index: 4, kind: input, shape index: {}]
  %s5 = inlined_call_operand.vmem [shape: bf16[64,16], index: 5, kind: input, shape index: {}]
  %s6 = inlined_call_operand.vmem [shape: f32[1,16], index: 6, kind: input, shape index: {}, may-alias: {2,6}]
  %s7 = inlined_call_operand.vmem [shape: f32[128,16], index: 7, kind: output, shape index: {}]
  %s8 = sld [smem:[#allocation0]]
  $region61: #{_lambda_.24} parent=0
    _
  %s10 = ssub.s32 1, %s8
  %s11 = scalar_select 0, %s10, %s8
  loop: start=0, step=1, limit=4
  $region2: #{_lambda_.24} parent=0 // loop_pre_header
    _
  $region3: #{_lambda_.24} parent=0 // loop_header
    %s13 = sphi 0, %s17
    %p14 = scmp.ge.s32.totalorder %s13, 4
    %s23 = sphi 0, %s25
    %s26 = sphi 0, %s23
    %s27 = sphi 0, %s26
    %s43 = sphi 0, %s27
    %s47 = sphi 0, %s47
    %s49 = sphi 0, %s47
    %s50 = sphi 0, %s49
    %s64 = sphi 0, %s50
    %s68 = sphi 0, %s68
    %s70 = sphi 0, %s68
    %s71 = sphi 0, %s70
    %s85 = sphi 0, %s71
    %s89 = sphi 0, %s89
    %s91 = sphi 0, %s89
    %s92 = sphi 0, %s91
    %s106 = sphi 0, %s92
    %s110 = sphi 0, %s110
    %s112 = sphi 0, %s110
    %s113 = sphi 0, %s112
    %s127 = sphi 0, %s113
    %s131 = sphi 0, %s131
    %s133 = sphi 0, %s131
    %s134 = sphi 0, %s133
    %s148 = sphi 0, %s134
    %s152 = sphi 0, %s152
    %s154 = sphi 0, %s152
    %s155 = sphi 0, %s154
    %s169 = sphi 0, %s155
    %s175 = sphi 0, %s177
    %s178 = sphi 0, %s175
    %s179 = sphi 0, %s178
    %s195 = sphi 0, %s179
  $region4: #{_lambda_.24} parent=0 // loop_header_branch
    %16 = sbr.rel (%p14) target = $region8
  $region5: #{_lambda_.24} parent=0 // loop_body
    %s18 = ssub.s32 %s13, 1
    %s19 = ssub.s32 %s13, 2
    %s20 = sadd.s32 %s13, 1
    %s21 = ssub.s32 %s13, %s20
    %p22 = scmp.eq.s32.totalorder %s21, 0
    %s24 = sadd.s32 %s23, 1
    %s25 = scalar_select %p22, %s23, %s24
    %p28 = pneg %p22
    %p29 = scmp.eq.s32.totalorder %s13, 1
    %p30 = por %p28, %p29
    %p31 = scmp.ne.s32.totalorder %s23, %s26
    %p32 = scmp.eq.s32.totalorder %s13, 0
    %p33 = por %p31, %p32
    %p34 = scmp.ne.s32.totalorder %s23, %s26
    %p35 = scmp.eq.s32.totalorder %s18, 1
    %p36 = por %p34, %p35
    %p37 = scmp.ne.s32.totalorder %s26, %s27
    %p38 = scmp.eq.s32.totalorder %s18, 0
    %p39 = por %p37, %p38
    %p40 = scmp.ne.s32.totalorder %s26, %s27
    %p41 = scmp.eq.s32.totalorder %s19, 1
    %p42 = por %p40, %p41
    %p44 = scmp.ne.s32.totalorder %s27, %s43
    %p45 = scmp.eq.s32.totalorder %s19, 0
    %p46 = por %p44, %p45
    %s48 = sadd.s32 %s47, 1
    %p51 = scmp.eq.s32.totalorder %s13, 1
    %p52 = scmp.ne.s32.totalorder %s47, %s49
    %p53 = scmp.eq.s32.totalorder %s13, 0
    %p54 = por %p52, %p53
    %p55 = scmp.ne.s32.totalorder %s47, %s49
    %p56 = scmp.eq.s32.totalorder %s18, 1
    %p57 = por %p55, %p56
    %p58 = scmp.ne.s32.totalorder %s49, %s50
    %p59 = scmp.eq.s32.totalorder %s18, 0
    %p60 = por %p58, %p59
    %p61 = scmp.ne.s32.totalorder %s49, %s50
    %p62 = scmp.eq.s32.totalorder %s19, 1
    %p63 = por %p61, %p62
    %p65 = scmp.ne.s32.totalorder %s50, %s64
    %p66 = scmp.eq.s32.totalorder %s19, 0
    %p67 = por %p65, %p66
    %s69 = sadd.s32 %s68, 1
    %p72 = scmp.eq.s32.totalorder %s13, 1
    %p73 = scmp.ne.s32.totalorder %s68, %s70
    %p74 = scmp.eq.s32.totalorder %s13, 0
    %p75 = por %p73, %p74
    %p76 = scmp.ne.s32.totalorder %s68, %s70
    %p77 = scmp.eq.s32.totalorder %s18, 1
    %p78 = por %p76, %p77
    %p79 = scmp.ne.s32.totalorder %s70, %s71
    %p80 = scmp.eq.s32.totalorder %s18, 0
    %p81 = por %p79, %p80
    %p82 = scmp.ne.s32.totalorder %s70, %s71
    %p83 = scmp.eq.s32.totalorder %s19, 1
    %p84 = por %p82, %p83
    %p86 = scmp.ne.s32.totalorder %s71, %s85
    %p87 = scmp.eq.s32.totalorder %s19, 0
    %p88 = por %p86, %p87
    %s90 = sadd.s32 %s89, 1
    %p93 = scmp.eq.s32.totalorder %s13, 1
    %p94 = scmp.ne.s32.totalorder %s89, %s91
    %p95 = scmp.eq.s32.totalorder %s13, 0
    %p96 = por %p94, %p95
    %p97 = scmp.ne.s32.totalorder %s89, %s91
    %p98 = scmp.eq.s32.totalorder %s18, 1
    %p99 = por %p97, %p98
    %p100 = scmp.ne.s32.totalorder %s91, %s92
    %p101 = scmp.eq.s32.totalorder %s18, 0
    %p102 = por %p100, %p101
    %p103 = scmp.ne.s32.totalorder %s91, %s92
    %p104 = scmp.eq.s32.totalorder %s19, 1
    %p105 = por %p103, %p104
    %p107 = scmp.ne.s32.totalorder %s92, %s106
    %p108 = scmp.eq.s32.totalorder %s19, 0
    %p109 = por %p107, %p108
    %s111 = sadd.s32 %s110, 1
    %p114 = scmp.eq.s32.totalorder %s13, 1
    %p115 = scmp.ne.s32.totalorder %s110, %s112
    %p116 = scmp.eq.s32.totalorder %s13, 0
    %p117 = por %p115, %p116
    %p118 = scmp.ne.s32.totalorder %s110, %s112
    %p119 = scmp.eq.s32.totalorder %s18, 1
    %p120 = por %p118, %p119
    %p121 = scmp.ne.s32.totalorder %s112, %s113
    %p122 = scmp.eq.s32.totalorder %s18, 0
    %p123 = por %p121, %p122
    %p124 = scmp.ne.s32.totalorder %s112, %s113
    %p125 = scmp.eq.s32.totalorder %s19, 1
    %p126 = por %p124, %p125
    %p128 = scmp.ne.s32.totalorder %s113, %s127
    %p129 = scmp.eq.s32.totalorder %s19, 0
    %p130 = por %p128, %p129
    %s132 = sadd.s32 %s131, 1
    %p135 = scmp.eq.s32.totalorder %s13, 1
    %p136 = scmp.ne.s32.totalorder %s131, %s133
    %p137 = scmp.eq.s32.totalorder %s13, 0
    %p138 = por %p136, %p137
    %p139 = scmp.ne.s32.totalorder %s131, %s133
    %p140 = scmp.eq.s32.totalorder %s18, 1
    %p141 = por %p139, %p140
    %p142 = scmp.ne.s32.totalorder %s133, %s134
    %p143 = scmp.eq.s32.totalorder %s18, 0
    %p144 = por %p142, %p143
    %p145 = scmp.ne.s32.totalorder %s133, %s134
    %p146 = scmp.eq.s32.totalorder %s19, 1
    %p147 = por %p145, %p146
    %p149 = scmp.ne.s32.totalorder %s134, %s148
    %p150 = scmp.eq.s32.totalorder %s19, 0
    %p151 = por %p149, %p150
    %s153 = sadd.s32 %s152, 1
    %p156 = scmp.eq.s32.totalorder %s13, 1
    %p157 = scmp.ne.s32.totalorder %s152, %s154
    %p158 = scmp.eq.s32.totalorder %s13, 0
    %p159 = por %p157, %p158
    %p160 = scmp.ne.s32.totalorder %s152, %s154
    %p161 = scmp.eq.s32.totalorder %s18, 1
    %p162 = por %p160, %p161
    %p163 = scmp.ne.s32.totalorder %s154, %s155
    %p164 = scmp.eq.s32.totalorder %s18, 0
    %p165 = por %p163, %p164
    %p166 = scmp.ne.s32.totalorder %s154, %s155
    %p167 = scmp.eq.s32.totalorder %s19, 1
    %p168 = por %p166, %p167
    %p170 = scmp.ne.s32.totalorder %s155, %s169
    %p171 = scmp.eq.s32.totalorder %s19, 0
    %p172 = por %p170, %p171
    %s173 = ssub.s32 %s13, %s20
    %p174 = scmp.eq.s32.totalorder %s173, 0
    %s176 = sadd.s32 %s175, 1
    %s177 = scalar_select %p174, %s175, %s176
    %p180 = pneg %p174
    %p181 = scmp.eq.s32.totalorder %s13, 1
    %p182 = por %p180, %p181
    %p183 = scmp.ne.s32.totalorder %s175, %s178
    %p184 = scmp.eq.s32.totalorder %s13, 0
    %p185 = por %p183, %p184
    %p186 = scmp.ne.s32.totalorder %s175, %s178
    %p187 = scmp.eq.s32.totalorder %s18, 1
    %p188 = por %p186, %p187
    %p189 = scmp.ne.s32.totalorder %s178, %s179
    %p190 = scmp.eq.s32.totalorder %s18, 0
    %p191 = por %p189, %p190
    %p192 = scmp.ne.s32.totalorder %s178, %s179
    %p193 = scmp.eq.s32.totalorder %s19, 1
    %p194 = por %p192, %p193
    %p196 = scmp.ne.s32.totalorder %s179, %s195
    %p197 = scmp.eq.s32.totalorder %s19, 0
    %p198 = por %p196, %p197
    %p199 = scmp.le.s32.totalorder 1, %s13
    %p200 = scmp.lt.s32.totalorder %s13, 3
    %p201 = pnand %p199, %p200
    %p202 = pneg %p201
    // Predicated region
    $region9: #{_lambda_.24} parent=5 // pred_check
      _
    $region10: #{_lambda_.24} parent=5 // pred_check_branch
      %204 = sbr.rel (%p201) target = $region12
    $region11: #{_lambda_.24} parent=5 // pred_region
      %s205 = ssub.s32 %s13, 1
      // Predicated region
      $region13: #{_lambda_.24} parent=11 // pred_check
        %p206 = pneg %p60
      $region14: #{_lambda_.24} parent=11 // pred_check_branch
        %208 = sbr.rel (%p206) target = $region16
      $region15: #{_lambda_.24} parent=11 // pred_region
        _
      $region16: #{_lambda_.24} parent=11 // pred_fallthru
        _
      // Predicated region
      $region17: #{_lambda_.24} parent=11 // pred_check
        %p209 = pneg %p81
      $region18: #{_lambda_.24} parent=11 // pred_check_branch
        %211 = sbr.rel (%p209) target = $region20
      $region19: #{_lambda_.24} parent=11 // pred_region
        _
      $region20: #{_lambda_.24} parent=11 // pred_fallthru
        _
      // Predicated region
      $region21: #{_lambda_.24} parent=11 // pred_check
        %p212 = pneg %p102
      $region22: #{_lambda_.24} parent=11 // pred_check_branch
        %214 = sbr.rel (%p212) target = $region24
      $region23: #{_lambda_.24} parent=11 // pred_region
        _
      $region24: #{_lambda_.24} parent=11 // pred_fallthru
        _
      // Predicated region
      $region25: #{_lambda_.24} parent=11 // pred_check
        %p215 = pneg %p123
      $region26: #{_lambda_.24} parent=11 // pred_check_branch
        %217 = sbr.rel (%p215) target = $region28
      $region27: #{_lambda_.24} parent=11 // pred_region
        _
      $region28: #{_lambda_.24} parent=11 // pred_fallthru
        _
      // Predicated region
      $region29: #{_lambda_.24} parent=11 // pred_check
        %p218 = pneg %p144
      $region30: #{_lambda_.24} parent=11 // pred_check_branch
        %220 = sbr.rel (%p218) target = $region32
      $region31: #{_lambda_.24} parent=11 // pred_region
        _
      $region32: #{_lambda_.24} parent=11 // pred_fallthru
        _
      // Predicated region
      $region33: #{_lambda_.24} parent=11 // pred_check
        %p221 = pneg %p165
      $region34: #{_lambda_.24} parent=11 // pred_check_branch
        %223 = sbr.rel (%p221) target = $region36
      $region35: #{_lambda_.24} parent=11 // pred_region
        _
      $region36: #{_lambda_.24} parent=11 // pred_fallthru
        _
    $region12: #{_lambda_.24} parent=5 // pred_fallthru
      _
    %p224 = scmp.lt.s32.totalorder %s13, 2
    // Predicated region
    $region37: #{_lambda_.24} parent=5 // pred_check
      %p225 = pneg %p224
    $region38: #{_lambda_.24} parent=5 // pred_check_branch
      %227 = sbr.rel (%p225) target = $region40
    $region39: #{_lambda_.24} parent=5 // pred_region
      // Predicated region
      $region41: #{_lambda_.24} parent=39 // pred_check
        %p228 = pneg %p33
      $region42: #{_lambda_.24} parent=39 // pred_check_branch
        %230 = sbr.rel (%p228) target = $region44
      $region43: #{_lambda_.24} parent=39 // pred_region
        %s231 = smul.u32 8, %s13
        %p232 = scmp.lt.s32.totalorder %s231, 15
        %s233 = scalar_select %p232, %s231, 15
        %s234 = smul.addr %s233, 8
        %s235 = scalar_lea.vmem %s0, %s234
        %s236 = smul.u32 8, %s13
      $region44: #{_lambda_.24} parent=39 // pred_fallthru
        _
    $region40: #{_lambda_.24} parent=5 // pred_fallthru
      _
    %p237 = scmp.le.s32.totalorder 1, %s13
    %p238 = scmp.lt.s32.totalorder %s13, 3
    %p239 = pnand %p237, %p238
    %p240 = pneg %p239
    // Predicated region
    $region45: #{_lambda_.24} parent=5 // pred_check
      _
    $region46: #{_lambda_.24} parent=5 // pred_check_branch
      %242 = sbr.rel (%p239) target = $region48
    $region47: #{_lambda_.24} parent=5 // pred_region
      %s243 = ssub.s32 %s13, 1
      %s244 = smul.u32 8, %s18
      %p245 = scmp.lt.s32.totalorder %s244, 15
      %s246 = scalar_select %p245, %s244, 15
      %s247 = smul.addr %s246, 8
      %s248 = scalar_lea.vmem %s0, %s247
      %p249 = pneg %p39
      %p250 = pneg %p36
      %p251 = pneg %p60
      %p252 = pneg %p57
      %p253 = pneg %p81
      %p254 = pneg %p78
      %p255 = pneg %p102
      %p256 = pneg %p99
      %p257 = pneg %p123
      %p258 = pneg %p120
      %p259 = pneg %p144
      %p260 = pneg %p141
      %p261 = pneg %p165
      %p262 = pneg %p162
      %p263 = pneg %p191
      %p264 = pneg %p188
      %s265 = smul.u32 8, %s18
      %p266 = scmp.lt.s32.totalorder %s265, 15
      %s267 = scalar_select %p266, %s265, 15
      %s268 = smul.addr %s267, 8
      %s269 = scalar_lea.vmem %s7, %s268
      %s270 = smul.u32 8, %s18
      %p271 = scmp.lt.s32.totalorder %s270, 15
      %s272 = scalar_select %p271, %s270, 15
      %s273 = smul.addr %s272, 8
      %s274 = scalar_lea.vmem %s0, %s273
      %s275 = smul.u32 8, %s18
      %s276 = smul.u32 8, %s18
      %p277 = scmp.lt.s32.totalorder %s276, 15
      %s278 = scalar_select %p277, %s276, 15
      %s279 = smul.addr %s278, 8
      %s280 = scalar_lea.vmem %s7, %s279
      %s281 = smul.u32 8, %s18
      %v283 = vld [vmem:[%s274] sm:$0xff]
      %v284 = vld [vmem:[%s274 + $0x8] sm:$0xff]
      %v285 = vld [vmem:[%s274 + $0x10] sm:$0xff]
      %v286 = vld [vmem:[%s274 + $0x18] sm:$0xff]
      %v287 = vld [vmem:[%s274 + $0x20] sm:$0xff]
      %v288 = vld [vmem:[%s274 + $0x28] sm:$0xff]
      %v289 = vld [vmem:[%s274 + $0x30] sm:$0xff]
      %v290 = vld [vmem:[%s274 + $0x38] sm:$0xff]
      %v291 = vld [vmem:[%s1] sm:$0x1]
      %v292 = vld [vmem:[%s2] sm:$0x1]
      %vm293 = vcmask 130048
      %v294 = vsel %vm293, %v283, 0.0
      %295 = vadd.xlane.f32.xlu0 %v294
      %v296 = vpop.xlane.xlu0 %295
      %v297 = vsel %vm293, %v284, 0.0
      %298 = vadd.xlane.f32.xlu0 %v297
      %v299 = vpop.xlane.xlu0 %298
      %v300 = vsel %vm293, %v285, 0.0
      %301 = vadd.xlane.f32.xlu0 %v300
      %v302 = vpop.xlane.xlu0 %301
      %v303 = vsel %vm293, %v286, 0.0
      %304 = vadd.xlane.f32.xlu0 %v303
      %v305 = vpop.xlane.xlu0 %304
      %v306 = vsel %vm293, %v287, 0.0
      %307 = vadd.xlane.f32.xlu0 %v306
      %v308 = vpop.xlane.xlu0 %307
      %v309 = vsel %vm293, %v288, 0.0
      %310 = vadd.xlane.f32.xlu0 %v309
      %v311 = vpop.xlane.xlu0 %310
      %v312 = vsel %vm293, %v289, 0.0
      %313 = vadd.xlane.f32.xlu0 %v312
      %v314 = vpop.xlane.xlu0 %313
      %v315 = vsel %vm293, %v290, 0.0
      %316 = vadd.xlane.f32.xlu0 %v315
      %v317 = vpop.xlane.xlu0 %316
      %v318 = vrcp.pop 16.0
      %v319 = vmul.f32 %v296, %v318
      %v320 = vmul.f32 %v299, %v318
      %v321 = vmul.f32 %v302, %v318
      %v322 = vmul.f32 %v305, %v318
      %v323 = vmul.f32 %v308, %v318
      %v324 = vmul.f32 %v311, %v318
      %v325 = vmul.f32 %v314, %v318
      %v326 = vmul.f32 %v317, %v318
      %v327 = vsub.f32 %v283, %v319
      %v328 = vsub.f32 %v284, %v320
      %v329 = vsub.f32 %v285, %v321
      %v330 = vsub.f32 %v286, %v322
      %v331 = vsub.f32 %v287, %v323
      %v332 = vsub.f32 %v288, %v324
      %v333 = vsub.f32 %v289, %v325
      %v334 = vsub.f32 %v290, %v326
      %v335 = vmul.f32 %v327, %v327
      %v336 = vmul.f32 %v328, %v328
      %v337 = vmul.f32 %v329, %v329
      %v338 = vmul.f32 %v330, %v330
      %v339 = vmul.f32 %v331, %v331
      %v340 = vmul.f32 %v332, %v332
      %v341 = vmul.f32 %v333, %v333
      %v342 = vmul.f32 %v334, %v334
      %v343 = vsel %vm293, %v335, 0.0
      %344 = vadd.xlane.f32.xlu0 %v343
      %v345 = vpop.xlane.xlu0 %344
      %v346 = vsel %vm293, %v336, 0.0
      %347 = vadd.xlane.f32.xlu0 %v346
      %v348 = vpop.xlane.xlu0 %347
      %v349 = vsel %vm293, %v337, 0.0
      %350 = vadd.xlane.f32.xlu0 %v349
      %v351 = vpop.xlane.xlu0 %350
      %v352 = vsel %vm293, %v338, 0.0
      %353 = vadd.xlane.f32.xlu0 %v352
      %v354 = vpop.xlane.xlu0 %353
      %v355 = vsel %vm293, %v339, 0.0
      %356 = vadd.xlane.f32.xlu0 %v355
      %v357 = vpop.xlane.xlu0 %356
      %v358 = vsel %vm293, %v340, 0.0
      %359 = vadd.xlane.f32.xlu0 %v358
      %v360 = vpop.xlane.xlu0 %359
      %v361 = vsel %vm293, %v341, 0.0
      %362 = vadd.xlane.f32.xlu0 %v361
      %v363 = vpop.xlane.xlu0 %362
      %v364 = vsel %vm293, %v342, 0.0
      %365 = vadd.xlane.f32.xlu0 %v364
      %v366 = vpop.xlane.xlu0 %365
      %v367 = vmul.f32 %v345, %v318
      %v368 = vmul.f32 %v348, %v318
      %v369 = vmul.f32 %v351, %v318
      %v370 = vmul.f32 %v354, %v318
      %v371 = vmul.f32 %v357, %v318
      %v372 = vmul.f32 %v360, %v318
      %v373 = vmul.f32 %v363, %v318
      %v374 = vmul.f32 %v366, %v318
      %v375 = vadd.f32 %v367, 1e-05
      %v376 = vadd.f32 %v368, 1e-05
      %v377 = vadd.f32 %v369, 1e-05
      %v378 = vadd.f32 %v370, 1e-05
      %v379 = vadd.f32 %v371, 1e-05
      %v380 = vadd.f32 %v372, 1e-05
      %v381 = vadd.f32 %v373, 1e-05
      %v382 = vadd.f32 %v374, 1e-05
      %v383 = vrsqrt.pop %v375
      %v384 = vrsqrt.pop %v376
      %v385 = vrsqrt.pop %v377
      %v386 = vrsqrt.pop %v378
      %v387 = vrsqrt.pop %v379
      %v388 = vrsqrt.pop %v380
      %v389 = vrsqrt.pop %v381
      %v390 = vrsqrt.pop %v382
      %v391 = vmul.f32 %v327, %v383
      %v392 = vmul.f32 %v328, %v384
      %v393 = vmul.f32 %v329, %v385
      %v394 = vmul.f32 %v330, %v386
      %v395 = vmul.f32 %v331, %v387
      %v396 = vmul.f32 %v332, %v388
      %v397 = vmul.f32 %v333, %v389
      %v398 = vmul.f32 %v334, %v390
      %v400 = vlaneseq
      %v401 = vshrl.u32 %v400, 7
      %v402 = vsub.s32 0, %v401
      %v403 = vrot.slane %v291, %v402
      %v405 = vmul.f32 %v391, %v403
      %v406 = vmul.f32 %v392, %v403
      %v407 = vmul.f32 %v393, %v403
      %v408 = vmul.f32 %v394, %v403
      %v409 = vmul.f32 %v395, %v403
      %v410 = vmul.f32 %v396, %v403
      %v411 = vmul.f32 %v397, %v403
      %v412 = vmul.f32 %v398, %v403
      %v414 = vlaneseq
      %v415 = vshrl.u32 %v414, 7
      %v416 = vsub.s32 0, %v415
      %v417 = vrot.slane %v292, %v416
      %v419 = vadd.f32 %v405, %v417
      %v420 = vadd.f32 %v406, %v417
      %v421 = vadd.f32 %v407, %v417
      %v422 = vadd.f32 %v408, %v417
      %v423 = vadd.f32 %v409, %v417
      %v424 = vadd.f32 %v410, %v417
      %v425 = vadd.f32 %v411, %v417
      %v426 = vadd.f32 %v412, %v417
      %v427 = vpack.c.bf16 %v420, %v419
      %v428 = vpack.c.bf16 %v422, %v421
      %v429 = vpack.c.bf16 %v424, %v423
      %v430 = vpack.c.bf16 %v426, %v425
      %v431 = vld [vmem:[%s3] sm:$0xf]
      %v432 = vld [vmem:[%s3 + $0x4] sm:$0xf]
      %v433 = vld [vmem:[%s4] sm:$0x1]
      %v435 = vlaneseq
      %v436 = vshrl.u32 %v435, 7
      %v437 = vsub.s32 0, %v436
      %v438 = vrot.slane %v433, %v437
      %v442 = vunpack.c.l.b16 %v431
      %v443 = vunpack.c.l.b16 %v432
      %v444 = vpack.c.b16 %v443, %v442
      %v447 = vsel %vm293, %v427, 0
      %v450 = vsel %vm293, %v428, 0
      %v453 = vsel %vm293, %v429, 0
      %v456 = vsel %vm293, %v430, 0
      %458 = vmatprep.subr.bf16.mxu0 0
      %459 = vmatpush1.bf16.msra.mxu0 0
      %460 = vmatprep.subr.bf16.mxu0 0
      %461 = vmatpush1.bf16.msra.mxu0 0
      %462 = vmatprep.subr.bf16.mxu0 0
      %463 = vmatpush1.bf16.msra.mxu0 0
      %464 = vmatprep.subr.bf16.mxu0 0
      %465 = vmatpush1.bf16.msra.mxu0 0
      %466 = vmatprep.subr.bf16.mxu0 0
      %467 = vmatpush1.bf16.msra.mxu0 0
      %468 = vmatprep.subr.bf16.mxu0 0
      %469 = vmatpush1.bf16.msra.mxu0 0
      %470 = vmatprep.subr.bf16.mxu0 0
      %471 = vmatpush1.bf16.msra.mxu0 0
      %472 = vmatprep.subr.bf16.mxu0 0
      %473 = vmatpush1.bf16.msra.mxu0 %v444
      %474 = vmatprep.subr.bf16.mxu0 0
      %475 = vmatpush2.bf16.msra.mxu0 0
      %476 = vmatprep.subr.bf16.mxu0 0
      %477 = vmatpush2.bf16.msra.mxu0 0
      %478 = vmatprep.subr.bf16.mxu0 0
      %479 = vmatpush2.bf16.msra.mxu0 0
      %480 = vmatprep.subr.bf16.mxu0 0
      %481 = vmatpush2.bf16.msra.mxu0 0
      %482 = vmatprep.subr.bf16.mxu0 0
      %483 = vmatpush2.bf16.msra.mxu0 0
      %484 = vmatprep.subr.bf16.mxu0 0
      %485 = vmatpush2.bf16.msra.mxu0 0
      %486 = vmatprep.subr.bf16.mxu0 0
      %487 = vmatpush2.bf16.msra.mxu0 0
      %488 = vmatprep.subr.bf16.mxu0 0
      %489 = vmatpush2.bf16.msra.mxu0 0
      %490 = vmatprep.mubr.bf16.mxu0 0
      %491 = vmatmul.mubr.bf16.gmra.mxu0 %v447
      %v492 = vpop.f32.mrf.mxu0
      %v493 = vadd.f32 %v438, %v492
      %v494 = vpop.f32.mrf.mxu0
      %v495 = vpop.f32.mrf.mxu0
      %v496 = vadd.f32 %v438, %v495
      %v497 = vpop.f32.mrf.mxu0
      %498 = vmatprep.mubr.bf16.mxu0 0
      %499 = vmatmul.mubr.bf16.gmra.mxu0 %v450
      %v500 = vpop.f32.mrf.mxu0
      %v501 = vadd.f32 %v438, %v500
      %v502 = vpop.f32.mrf.mxu0
      %v503 = vpop.f32.mrf.mxu0
      %v504 = vadd.f32 %v438, %v503
      %v505 = vpop.f32.mrf.mxu0
      %506 = vmatprep.mubr.bf16.mxu0 0
      %507 = vmatmul.mubr.bf16.gmra.mxu0 %v453
      %v508 = vpop.f32.mrf.mxu0
      %v509 = vadd.f32 %v438, %v508
      %v510 = vpop.f32.mrf.mxu0
      %v511 = vpop.f32.mrf.mxu0
      %v512 = vadd.f32 %v438, %v511
      %v513 = vpop.f32.mrf.mxu0
      %514 = vmatprep.mubr.bf16.mxu0 0
      %515 = vmatmul.mubr.bf16.gmra.mxu0 %v456
      %v516 = vpop.f32.mrf.mxu0
      %v517 = vadd.f32 %v438, %v516
      %v518 = vpop.f32.mrf.mxu0
      %v519 = vpop.f32.mrf.mxu0
      %v520 = vadd.f32 %v438, %v519
      %v521 = vpop.f32.mrf.mxu0
      %522 = vdwg.mxu0
      %v523 = vmul.f32 %v493, 0.5
      %v524 = vmul.f32 %v496, 0.5
      %v525 = vmul.f32 %v501, 0.5
      %v526 = vmul.f32 %v504, 0.5
      %v527 = vmul.f32 %v509, 0.5
      %v528 = vmul.f32 %v512, 0.5
      %v529 = vmul.f32 %v517, 0.5
      %v530 = vmul.f32 %v520, 0.5
      %v531 = vmul.f32 %v493, 0.70710677
      %v532 = vmul.f32 %v496, 0.70710677
      %v533 = vmul.f32 %v501, 0.70710677
      %v534 = vmul.f32 %v504, 0.70710677
      %v535 = vmul.f32 %v509, 0.70710677
      %v536 = vmul.f32 %v512, 0.70710677
      %v537 = vmul.f32 %v517, 0.70710677
      %v538 = vmul.f32 %v520, 0.70710677
      %v539 = vand.u32 2147483647, %v531
      %v540 = vand.u32 2147483647, %v532
      %v541 = vand.u32 2147483647, %v533
      %v542 = vand.u32 2147483647, %v534
      %v543 = vand.u32 2147483647, %v535
      %v544 = vand.u32 2147483647, %v536
      %v545 = vand.u32 2147483647, %v537
      %v546 = vand.u32 2147483647, %v538
      %v547 = vmul.f32 %v539, 0.3275911
      %v548 = vmul.f32 %v540, 0.3275911
      %v549 = vmul.f32 %v541, 0.3275911
      %v550 = vmul.f32 %v542, 0.3275911
      %v551 = vmul.f32 %v543, 0.3275911
      %v552 = vmul.f32 %v544, 0.3275911
      %v553 = vmul.f32 %v545, 0.3275911
      %v554 = vmul.f32 %v546, 0.3275911
      %v555 = vadd.f32 %v547, 1.0
      %v556 = vadd.f32 %v548, 1.0
      %v557 = vadd.f32 %v549, 1.0
      %v558 = vadd.f32 %v550, 1.0
      %v559 = vadd.f32 %v551, 1.0
      %v560 = vadd.f32 %v552, 1.0
      %v561 = vadd.f32 %v553, 1.0
      %v562 = vadd.f32 %v554, 1.0
      %v563 = vrcp.pop %v555
      %v564 = vmul.f32 1.0, %v563
      %v565 = vrcp.pop %v556
      %v566 = vmul.f32 1.0, %v565
      %v567 = vrcp.pop %v557
      %v568 = vmul.f32 1.0, %v567
      %v569 = vrcp.pop %v558
      %v570 = vmul.f32 1.0, %v569
      %v571 = vrcp.pop %v559
      %v572 = vmul.f32 1.0, %v571
      %v573 = vrcp.pop %v560
      %v574 = vmul.f32 1.0, %v573
      %v575 = vrcp.pop %v561
      %v576 = vmul.f32 1.0, %v575
      %v577 = vrcp.pop %v562
      %v578 = vmul.f32 1.0, %v577
      %v579 = vmul.f32 %v564, 1.0614054
      %v580 = vmul.f32 %v566, 1.0614054
      %v581 = vmul.f32 %v568, 1.0614054
      %v582 = vmul.f32 %v570, 1.0614054
      %v583 = vmul.f32 %v572, 1.0614054
      %v584 = vmul.f32 %v574, 1.0614054
      %v585 = vmul.f32 %v576, 1.0614054
      %v586 = vmul.f32 %v578, 1.0614054
      %v587 = vadd.f32 %v579, -1.4531521
      %v588 = vadd.f32 %v580, -1.4531521
      %v589 = vadd.f32 %v581, -1.4531521
      %v590 = vadd.f32 %v582, -1.4531521
      %v591 = vadd.f32 %v583, -1.4531521
      %v592 = vadd.f32 %v584, -1.4531521
      %v593 = vadd.f32 %v585, -1.4531521
      %v594 = vadd.f32 %v586, -1.4531521
      %v595 = vmul.f32 %v587, %v564
      %v596 = vmul.f32 %v588, %v566
      %v597 = vmul.f32 %v589, %v568
      %v598 = vmul.f32 %v590, %v570
      %v599 = vmul.f32 %v591, %v572
      %v600 = vmul.f32 %v592, %v574
      %v601 = vmul.f32 %v593, %v576
      %v602 = vmul.f32 %v594, %v578
      %v603 = vadd.f32 %v595, 1.4214138
      %v604 = vadd.f32 %v596, 1.4214138
      %v605 = vadd.f32 %v597, 1.4214138
      %v606 = vadd.f32 %v598, 1.4214138
      %v607 = vadd.f32 %v599, 1.4214138
      %v608 = vadd.f32 %v600, 1.4214138
      %v609 = vadd.f32 %v601, 1.4214138
      %v610 = vadd.f32 %v602, 1.4214138
      %v611 = vmul.f32 %v603, %v564
      %v612 = vmul.f32 %v604, %v566
      %v613 = vmul.f32 %v605, %v568
      %v614 = vmul.f32 %v606, %v570
      %v615 = vmul.f32 %v607, %v572
      %v616 = vmul.f32 %v608, %v574
      %v617 = vmul.f32 %v609, %v576
      %v618 = vmul.f32 %v610, %v578
      %v619 = vadd.f32 %v611, -0.28449672
      %v620 = vadd.f32 %v612, -0.28449672
      %v621 = vadd.f32 %v613, -0.28449672
      %v622 = vadd.f32 %v614, -0.28449672
      %v623 = vadd.f32 %v615, -0.28449672
      %v624 = vadd.f32 %v616, -0.28449672
      %v625 = vadd.f32 %v617, -0.28449672
      %v626 = vadd.f32 %v618, -0.28449672
      %v627 = vmul.f32 %v619, %v564
      %v628 = vmul.f32 %v620, %v566
      %v629 = vmul.f32 %v621, %v568
      %v630 = vmul.f32 %v622, %v570
      %v631 = vmul.f32 %v623, %v572
      %v632 = vmul.f32 %v624, %v574
      %v633 = vmul.f32 %v625, %v576
      %v634 = vmul.f32 %v626, %v578
      %v635 = vadd.f32 %v627, 0.2548296
      %v636 = vadd.f32 %v628, 0.2548296
      %v637 = vadd.f32 %v629, 0.2548296
      %v638 = vadd.f32 %v630, 0.2548296
      %v639 = vadd.f32 %v631, 0.2548296
      %v640 = vadd.f32 %v632, 0.2548296
      %v641 = vadd.f32 %v633, 0.2548296
      %v642 = vadd.f32 %v634, 0.2548296
      %v643 = vmul.f32 %v635, %v564
      %v644 = vmul.f32 %v636, %v566
      %v645 = vmul.f32 %v637, %v568
      %v646 = vmul.f32 %v638, %v570
      %v647 = vmul.f32 %v639, %v572
      %v648 = vmul.f32 %v640, %v574
      %v649 = vmul.f32 %v641, %v576
      %v650 = vmul.f32 %v642, %v578
      %v651 = vsub.f32 0.0, %v539
      %v652 = vsub.f32 0.0, %v540
      %v653 = vsub.f32 0.0, %v541
      %v654 = vsub.f32 0.0, %v542
      %v655 = vsub.f32 0.0, %v543
      %v656 = vsub.f32 0.0, %v544
      %v657 = vsub.f32 0.0, %v545
      %v658 = vsub.f32 0.0, %v546
      %v659 = vmul.f32 %v651, %v539
      %v660 = vmul.f32 %v652, %v540
      %v661 = vmul.f32 %v653, %v541
      %v662 = vmul.f32 %v654, %v542
      %v663 = vmul.f32 %v655, %v543
      %v664 = vmul.f32 %v656, %v544
      %v665 = vmul.f32 %v657, %v545
      %v666 = vmul.f32 %v658, %v546
      %v667 = vmul.f32 %v659, 1.442695
      %v668 = vpow.pop %v667
      %v669 = vmul.f32 %v660, 1.442695
      %v670 = vpow.pop %v669
      %v671 = vmul.f32 %v661, 1.442695
      %v672 = vpow.pop %v671
      %v673 = vmul.f32 %v662, 1.442695
      %v674 = vpow.pop %v673
      %v675 = vmul.f32 %v663, 1.442695
      %v676 = vpow.pop %v675
      %v677 = vmul.f32 %v664, 1.442695
      %v678 = vpow.pop %v677
      %v679 = vmul.f32 %v665, 1.442695
      %v680 = vpow.pop %v679
      %v681 = vmul.f32 %v666, 1.442695
      %v682 = vpow.pop %v681
      %v683 = vmul.f32 %v643, %v668
      %v684 = vmul.f32 %v644, %v670
      %v685 = vmul.f32 %v645, %v672
      %v686 = vmul.f32 %v646, %v674
      %v687 = vmul.f32 %v647, %v676
      %v688 = vmul.f32 %v648, %v678
      %v689 = vmul.f32 %v649, %v680
      %v690 = vmul.f32 %v650, %v682
      %v691 = vsub.f32 1.0, %v683
      %v692 = vsub.f32 1.0, %v684
      %v693 = vsub.f32 1.0, %v685
      %v694 = vsub.f32 1.0, %v686
      %v695 = vsub.f32 1.0, %v687
      %v696 = vsub.f32 1.0, %v688
      %v697 = vsub.f32 1.0, %v689
      %v698 = vsub.f32 1.0, %v690
      %vm699 = vcmp.ge.f32.partialorder %v531, 0.0
      %vm700 = vcmp.ge.f32.partialorder %v532, 0.0
      %vm701 = vcmp.ge.f32.partialorder %v533, 0.0
      %vm702 = vcmp.ge.f32.partialorder %v534, 0.0
      %vm703 = vcmp.ge.f32.partialorder %v535, 0.0
      %vm704 = vcmp.ge.f32.partialorder %v536, 0.0
      %vm705 = vcmp.ge.f32.partialorder %v537, 0.0
      %vm706 = vcmp.ge.f32.partialorder %v538, 0.0
      %v707 = vsub.f32 0.0, %v691
      %v708 = vsub.f32 0.0, %v692
      %v709 = vsub.f32 0.0, %v693
      %v710 = vsub.f32 0.0, %v694
      %v711 = vsub.f32 0.0, %v695
      %v712 = vsub.f32 0.0, %v696
      %v713 = vsub.f32 0.0, %v697
      %v714 = vsub.f32 0.0, %v698
      %v715 = vsel %vm699, %v691, %v707
      %v716 = vsel %vm700, %v692, %v708
      %v717 = vsel %vm701, %v693, %v709
      %v718 = vsel %vm702, %v694, %v710
      %v719 = vsel %vm703, %v695, %v711
      %v720 = vsel %vm704, %v696, %v712
      %v721 = vsel %vm705, %v697, %v713
      %v722 = vsel %vm706, %v698, %v714
      %v723 = vadd.f32 %v715, 1.0
      %v724 = vadd.f32 %v716, 1.0
      %v725 = vadd.f32 %v717, 1.0
      %v726 = vadd.f32 %v718, 1.0
      %v727 = vadd.f32 %v719, 1.0
      %v728 = vadd.f32 %v720, 1.0
      %v729 = vadd.f32 %v721, 1.0
      %v730 = vadd.f32 %v722, 1.0
      %v731 = vmul.f32 %v523, %v723
      %v732 = vmul.f32 %v524, %v724
      %v733 = vmul.f32 %v525, %v725
      %v734 = vmul.f32 %v526, %v726
      %v735 = vmul.f32 %v527, %v727
      %v736 = vmul.f32 %v528, %v728
      %v737 = vmul.f32 %v529, %v729
      %v738 = vmul.f32 %v530, %v730
      %v739 = vpack.c.bf16 %v732, %v731
      %v740 = vpack.c.bf16 %v734, %v733
      %v741 = vpack.c.bf16 %v736, %v735
      %v742 = vpack.c.bf16 %v738, %v737
      %v743 = vld [vmem:[%s5] sm:$0xf]
      %v744 = vld [vmem:[%s5 + $0x4] sm:$0xf]
      %v745 = vld [vmem:[%s5 + $0x8] sm:$0xf]
      %v746 = vld [vmem:[%s5 + $0xc] sm:$0xf]
      %v747 = vld [vmem:[%s5 + $0x10] sm:$0xf]
      %v748 = vld [vmem:[%s5 + $0x14] sm:$0xf]
      %v749 = vld [vmem:[%s5 + $0x18] sm:$0xf]
      %v750 = vld [vmem:[%s5 + $0x1c] sm:$0xf]
      %v751 = vld [vmem:[%s6] sm:$0x1]
      %v753 = vlaneseq
      %v754 = vshrl.u32 %v753, 7
      %v755 = vsub.s32 0, %v754
      %v756 = vrot.slane %v751, %v755
      %v766 = vunpack.c.l.b16 %v743
      %v767 = vunpack.c.l.b16 %v744
      %v768 = vunpack.c.l.b16 %v745
      %v769 = vunpack.c.l.b16 %v746
      %v770 = vunpack.c.l.b16 %v747
      %v771 = vunpack.c.l.b16 %v748
      %v772 = vunpack.c.l.b16 %v749
      %v773 = vunpack.c.l.b16 %v750
      %v774 = vpack.c.b16 %v767, %v766
      %v775 = vpack.c.b16 %v769, %v768
      %v776 = vpack.c.b16 %v771, %v770
      %v777 = vpack.c.b16 %v773, %v772
      %vm782 = vcmask 523264
      %v784 = vsel %vm782, %v739, 0
      %v787 = vsel %vm782, %v740, 0
      %v790 = vsel %vm782, %v741, 0
      %v793 = vsel %vm782, %v742, 0
      %795 = vmatprep.subr.bf16.mxu0 0
      %796 = vmatpush1.bf16.msra.mxu0 0
      %797 = vmatprep.subr.bf16.mxu0 0
      %798 = vmatpush1.bf16.msra.mxu0 0
      %799 = vmatprep.subr.bf16.mxu0 0
      %800 = vmatpush1.bf16.msra.mxu0 0
      %801 = vmatprep.subr.bf16.mxu0 0
      %802 = vmatpush1.bf16.msra.mxu0 0
      %803 = vmatprep.subr.bf16.mxu0 0
      %804 = vmatpush1.bf16.msra.mxu0 %v777
      %805 = vmatprep.subr.bf16.mxu0 0
      %806 = vmatpush1.bf16.msra.mxu0 %v776
      %807 = vmatprep.subr.bf16.mxu0 0
      %808 = vmatpush1.bf16.msra.mxu0 %v775
      %809 = vmatprep.subr.bf16.mxu0 0
      %810 = vmatpush1.bf16.msra.mxu0 %v774
      %811 = vmatprep.subr.bf16.mxu0 0
      %812 = vmatpush2.bf16.msra.mxu0 0
      %813 = vmatprep.subr.bf16.mxu0 0
      %814 = vmatpush2.bf16.msra.mxu0 0
      %815 = vmatprep.subr.bf16.mxu0 0
      %816 = vmatpush2.bf16.msra.mxu0 0
      %817 = vmatprep.subr.bf16.mxu0 0
      %818 = vmatpush2.bf16.msra.mxu0 0
      %819 = vmatprep.subr.bf16.mxu0 0
      %820 = vmatpush2.bf16.msra.mxu0 0
      %821 = vmatprep.subr.bf16.mxu0 0
      %822 = vmatpush2.bf16.msra.mxu0 0
      %823 = vmatprep.subr.bf16.mxu0 0
      %824 = vmatpush2.bf16.msra.mxu0 0
      %825 = vmatprep.subr.bf16.mxu0 0
      %826 = vmatpush2.bf16.msra.mxu0 0
      %827 = vmatprep.mubr.bf16.mxu0 0
      %828 = vmatmul.mubr.bf16.gmra.mxu0 %v784
      %v829 = vpop.f32.mrf.mxu0
      %v830 = vadd.f32 %v756, %v829
      %v831 = vpop.f32.mrf.mxu0
      %v832 = vpop.f32.mrf.mxu0
      %v833 = vadd.f32 %v756, %v832
      %v834 = vpop.f32.mrf.mxu0
      %835 = vmatprep.mubr.bf16.mxu0 0
      %836 = vmatmul.mubr.bf16.gmra.mxu0 %v787
      %v837 = vpop.f32.mrf.mxu0
      %v838 = vadd.f32 %v756, %v837
      %v839 = vpop.f32.mrf.mxu0
      %v840 = vpop.f32.mrf.mxu0
      %v841 = vadd.f32 %v756, %v840
      %v842 = vpop.f32.mrf.mxu0
      %843 = vmatprep.mubr.bf16.mxu0 0
      %844 = vmatmul.mubr.bf16.gmra.mxu0 %v790
      %v845 = vpop.f32.mrf.mxu0
      %v846 = vadd.f32 %v756, %v845
      %v847 = vpop.f32.mrf.mxu0
      %v848 = vpop.f32.mrf.mxu0
      %v849 = vadd.f32 %v756, %v848
      %v850 = vpop.f32.mrf.mxu0
      %851 = vmatprep.mubr.bf16.mxu0 0
      %852 = vmatmul.mubr.bf16.gmra.mxu0 %v793
      %v853 = vpop.f32.mrf.mxu0
      %v854 = vadd.f32 %v756, %v853
      %v855 = vpop.f32.mrf.mxu0
      %v856 = vpop.f32.mrf.mxu0
      %v857 = vadd.f32 %v756, %v856
      %v858 = vpop.f32.mrf.mxu0
      %859 = vdwg.mxu0
      %v860 = vadd.f32 %v283, %v830
      %v861 = vadd.f32 %v284, %v833
      %v862 = vadd.f32 %v285, %v838
      %v863 = vadd.f32 %v286, %v841
      %v864 = vadd.f32 %v287, %v846
      %v865 = vadd.f32 %v288, %v849
      %v866 = vadd.f32 %v289, %v854
      %v867 = vadd.f32 %v290, %v857
      %868 = vst.msk [vmem:[%s280] sm:$0xff] %vm293, %v860
      %869 = vst.msk [vmem:[%s280 + $0x8] sm:$0xff] %vm293, %v861
      %870 = vst.msk [vmem:[%s280 + $0x10] sm:$0xff] %vm293, %v862
      %871 = vst.msk [vmem:[%s280 + $0x18] sm:$0xff] %vm293, %v863
      %872 = vst.msk [vmem:[%s280 + $0x20] sm:$0xff] %vm293, %v864
      %873 = vst.msk [vmem:[%s280 + $0x28] sm:$0xff] %vm293, %v865
      %874 = vst.msk [vmem:[%s280 + $0x30] sm:$0xff] %vm293, %v866
      %875 = vst.msk [vmem:[%s280 + $0x38] sm:$0xff] %vm293, %v867
      %s876 = smul.u32 8, %s18
      %p877 = scmp.lt.s32.totalorder %s876, 15
      %s878 = scalar_select %p877, %s876, 15
      %s879 = smul.addr %s878, 8
      %s880 = scalar_lea.vmem %s7, %s879
      // Predicated region
      $region49: #{_lambda_.24} parent=47 // pred_check
        %p881 = pneg %p188
      $region50: #{_lambda_.24} parent=47 // pred_check_branch
        %883 = sbr.rel (%p881) target = $region52
      $region51: #{_lambda_.24} parent=47 // pred_region
        %s884 = smul.u32 8, %s18
      $region52: #{_lambda_.24} parent=47 // pred_fallthru
        _
    $region48: #{_lambda_.24} parent=5 // pred_fallthru
      _
    %p885 = scmp.le.s32.totalorder 2, %s13
    // Predicated region
    $region53: #{_lambda_.24} parent=5 // pred_check
      %p886 = pneg %p885
    $region54: #{_lambda_.24} parent=5 // pred_check_branch
      %888 = sbr.rel (%p886) target = $region56
    $region55: #{_lambda_.24} parent=5 // pred_region
      %s889 = ssub.s32 %s13, 2
      // Predicated region
      $region57: #{_lambda_.24} parent=55 // pred_check
        %p890 = pneg %p194
      $region58: #{_lambda_.24} parent=55 // pred_check_branch
        %892 = sbr.rel (%p890) target = $region60
      $region59: #{_lambda_.24} parent=55 // pred_region
        %s893 = smul.u32 8, %s19
        %p894 = scmp.lt.s32.totalorder %s893, 15
        %s895 = scalar_select %p894, %s893, 15
        %s896 = smul.addr %s895, 8
        %s897 = scalar_lea.vmem %s7, %s896
      $region60: #{_lambda_.24} parent=55 // pred_fallthru
        _
    $region56: #{_lambda_.24} parent=5 // pred_fallthru
      _
  $region6: #{_lambda_.24} parent=0 // loop_footer
    %s17 = sadd.s32 1, %s13
  $region7: #{_lambda_.24} parent=0 // loop_footer_branch
    %12 = sbr.rel target = $region3
  $region8: #{_lambda_.24} parent=0 // loop_exit
    _

// kernel: _lambda_.22
$region0: #{_lambda_.22}
  #allocation0 [shape = 'u32[]', space=smem, size = 0x4, offset = 0x4, fixed_abs, tag = 'smem constant byte address 0x4 - core index']
  #allocation1 [shape = 'u32[144,128]{1,0:T(1,128)}', space=vmem, size = 0x12000, scoped, tag = 'internal scratch']
  %s0 = inlined_call_operand.vmem [shape: bf16[2,8,16,8], index: 0, kind: input, shape index: {}]
  %s1 = inlined_call_operand.vmem [shape: bf16[2,8,16,8], index: 1, kind: input, shape index: {}]
  %s2 = inlined_call_operand.vmem [shape: bf16[2,8,16,8], index: 2, kind: input, shape index: {}]
  %s3 = inlined_call_operand.vmem [shape: f32[8,16,16], index: 3, kind: input, shape index: {}]
  %s4 = inlined_call_operand.vmem [shape: bf16[2,8,16,8], index: 4, kind: output, shape index: {}]
  %s5 = sld [smem:[#allocation0]]
  $region49: #{_lambda_.22} parent=0
    _
  %s7 = ssub.s32 1, %s5
  %s8 = scalar_select 0, %s7, %s5
  loop: start=0, step=1, limit=4
  $region2: #{_lambda_.22} parent=0 // loop_pre_header
    _
  $region3: #{_lambda_.22} parent=0 // loop_header
    %s10 = sphi 0, %s14
    %p11 = scmp.ge.s32.totalorder %s10, 4
    %s20 = sphi 0, %s22
    %s23 = sphi 0, %s20
    %s24 = sphi 0, %s23
    %s40 = sphi 0, %s24
    %s46 = sphi 0, %s48
    %s49 = sphi 0, %s46
    %s50 = sphi 0, %s49
    %s66 = sphi 0, %s50
    %s72 = sphi 0, %s74
    %s75 = sphi 0, %s72
    %s76 = sphi 0, %s75
    %s92 = sphi 0, %s76
    %s96 = sphi 0, %s96
    %s98 = sphi 0, %s96
    %s99 = sphi 0, %s98
    %s113 = sphi 0, %s99
    %s119 = sphi 0, %s121
    %s122 = sphi 0, %s119
    %s123 = sphi 0, %s122
    %s139 = sphi 0, %s123
  $region4: #{_lambda_.22} parent=0 // loop_header_branch
    %13 = sbr.rel (%p11) target = $region8
  $region5: #{_lambda_.22} parent=0 // loop_body
    %s15 = ssub.s32 %s10, 1
    %s16 = ssub.s32 %s10, 2
    %s17 = sadd.s32 %s10, 1
    %s18 = ssub.s32 %s10, %s17
    %p19 = scmp.eq.s32.totalorder %s18, 0
    %s21 = sadd.s32 %s20, 1
    %s22 = scalar_select %p19, %s20, %s21
    %p25 = pneg %p19
    %p26 = scmp.eq.s32.totalorder %s10, 1
    %p27 = por %p25, %p26
    %p28 = scmp.ne.s32.totalorder %s20, %s23
    %p29 = scmp.eq.s32.totalorder %s10, 0
    %p30 = por %p28, %p29
    %p31 = scmp.ne.s32.totalorder %s20, %s23
    %p32 = scmp.eq.s32.totalorder %s15, 1
    %p33 = por %p31, %p32
    %p34 = scmp.ne.s32.totalorder %s23, %s24
    %p35 = scmp.eq.s32.totalorder %s15, 0
    %p36 = por %p34, %p35
    %p37 = scmp.ne.s32.totalorder %s23, %s24
    %p38 = scmp.eq.s32.totalorder %s16, 1
    %p39 = por %p37, %p38
    %p41 = scmp.ne.s32.totalorder %s24, %s40
    %p42 = scmp.eq.s32.totalorder %s16, 0
    %p43 = por %p41, %p42
    %s44 = ssub.s32 %s10, %s17
    %p45 = scmp.eq.s32.totalorder %s44, 0
    %s47 = sadd.s32 %s46, 1
    %s48 = scalar_select %p45, %s46, %s47
    %p51 = pneg %p45
    %p52 = scmp.eq.s32.totalorder %s10, 1
    %p53 = por %p51, %p52
    %p54 = scmp.ne.s32.totalorder %s46, %s49
    %p55 = scmp.eq.s32.totalorder %s10, 0
    %p56 = por %p54, %p55
    %p57 = scmp.ne.s32.totalorder %s46, %s49
    %p58 = scmp.eq.s32.totalorder %s15, 1
    %p59 = por %p57, %p58
    %p60 = scmp.ne.s32.totalorder %s49, %s50
    %p61 = scmp.eq.s32.totalorder %s15, 0
    %p62 = por %p60, %p61
    %p63 = scmp.ne.s32.totalorder %s49, %s50
    %p64 = scmp.eq.s32.totalorder %s16, 1
    %p65 = por %p63, %p64
    %p67 = scmp.ne.s32.totalorder %s50, %s66
    %p68 = scmp.eq.s32.totalorder %s16, 0
    %p69 = por %p67, %p68
    %s70 = ssub.s32 %s10, %s17
    %p71 = scmp.eq.s32.totalorder %s70, 0
    %s73 = sadd.s32 %s72, 1
    %s74 = scalar_select %p71, %s72, %s73
    %p77 = pneg %p71
    %p78 = scmp.eq.s32.totalorder %s10, 1
    %p79 = por %p77, %p78
    %p80 = scmp.ne.s32.totalorder %s72, %s75
    %p81 = scmp.eq.s32.totalorder %s10, 0
    %p82 = por %p80, %p81
    %p83 = scmp.ne.s32.totalorder %s72, %s75
    %p84 = scmp.eq.s32.totalorder %s15, 1
    %p85 = por %p83, %p84
    %p86 = scmp.ne.s32.totalorder %s75, %s76
    %p87 = scmp.eq.s32.totalorder %s15, 0
    %p88 = por %p86, %p87
    %p89 = scmp.ne.s32.totalorder %s75, %s76
    %p90 = scmp.eq.s32.totalorder %s16, 1
    %p91 = por %p89, %p90
    %p93 = scmp.ne.s32.totalorder %s76, %s92
    %p94 = scmp.eq.s32.totalorder %s16, 0
    %p95 = por %p93, %p94
    %s97 = sadd.s32 %s96, 1
    %p100 = scmp.eq.s32.totalorder %s10, 1
    %p101 = scmp.ne.s32.totalorder %s96, %s98
    %p102 = scmp.eq.s32.totalorder %s10, 0
    %p103 = por %p101, %p102
    %p104 = scmp.ne.s32.totalorder %s96, %s98
    %p105 = scmp.eq.s32.totalorder %s15, 1
    %p106 = por %p104, %p105
    %p107 = scmp.ne.s32.totalorder %s98, %s99
    %p108 = scmp.eq.s32.totalorder %s15, 0
    %p109 = por %p107, %p108
    %p110 = scmp.ne.s32.totalorder %s98, %s99
    %p111 = scmp.eq.s32.totalorder %s16, 1
    %p112 = por %p110, %p111
    %p114 = scmp.ne.s32.totalorder %s99, %s113
    %p115 = scmp.eq.s32.totalorder %s16, 0
    %p116 = por %p114, %p115
    %s117 = ssub.s32 %s10, %s17
    %p118 = scmp.eq.s32.totalorder %s117, 0
    %s120 = sadd.s32 %s119, 1
    %s121 = scalar_select %p118, %s119, %s120
    %p124 = pneg %p118
    %p125 = scmp.eq.s32.totalorder %s10, 1
    %p126 = por %p124, %p125
    %p127 = scmp.ne.s32.totalorder %s119, %s122
    %p128 = scmp.eq.s32.totalorder %s10, 0
    %p129 = por %p127, %p128
    %p130 = scmp.ne.s32.totalorder %s119, %s122
    %p131 = scmp.eq.s32.totalorder %s15, 1
    %p132 = por %p130, %p131
    %p133 = scmp.ne.s32.totalorder %s122, %s123
    %p134 = scmp.eq.s32.totalorder %s15, 0
    %p135 = por %p133, %p134
    %p136 = scmp.ne.s32.totalorder %s122, %s123
    %p137 = scmp.eq.s32.totalorder %s16, 1
    %p138 = por %p136, %p137
    %p140 = scmp.ne.s32.totalorder %s123, %s139
    %p141 = scmp.eq.s32.totalorder %s16, 0
    %p142 = por %p140, %p141
    %p143 = scmp.le.s32.totalorder 1, %s10
    %p144 = scmp.lt.s32.totalorder %s10, 3
    %p145 = pnand %p143, %p144
    %p146 = pneg %p145
    // Predicated region
    $region9: #{_lambda_.22} parent=5 // pred_check
      _
    $region10: #{_lambda_.22} parent=5 // pred_check_branch
      %148 = sbr.rel (%p145) target = $region12
    $region11: #{_lambda_.22} parent=5 // pred_region
      %s149 = ssub.s32 %s10, 1
      // Predicated region
      $region13: #{_lambda_.22} parent=11 // pred_check
        %p150 = pneg %p109
      $region14: #{_lambda_.22} parent=11 // pred_check_branch
        %152 = sbr.rel (%p150) target = $region16
      $region15: #{_lambda_.22} parent=11 // pred_region
        _
      $region16: #{_lambda_.22} parent=11 // pred_fallthru
        _
    $region12: #{_lambda_.22} parent=5 // pred_fallthru
      _
    %p153 = scmp.lt.s32.totalorder %s10, 2
    // Predicated region
    $region17: #{_lambda_.22} parent=5 // pred_check
      %p154 = pneg %p153
    $region18: #{_lambda_.22} parent=5 // pred_check_branch
      %156 = sbr.rel (%p154) target = $region20
    $region19: #{_lambda_.22} parent=5 // pred_region
      // Predicated region
      $region21: #{_lambda_.22} parent=19 // pred_check
        %p157 = pneg %p30
      $region22: #{_lambda_.22} parent=19 // pred_check_branch
        %159 = sbr.rel (%p157) target = $region24
      $region23: #{_lambda_.22} parent=19 // pred_region
        %p160 = scmp.lt.s32.totalorder %s10, 1
        %s161 = scalar_select %p160, %s10, 1
        %s162 = smul.addr %s161, 16
        %s163 = smul.addr %s162, 4
        %s164 = scalar_lea.vmem %s0, %s163
      $region24: #{_lambda_.22} parent=19 // pred_fallthru
        _
      // Predicated region
      $region25: #{_lambda_.22} parent=19 // pred_check
        %p165 = pneg %p56
      $region26: #{_lambda_.22} parent=19 // pred_check_branch
        %167 = sbr.rel (%p165) target = $region28
      $region27: #{_lambda_.22} parent=19 // pred_region
        %p168 = scmp.lt.s32.totalorder %s10, 1
        %s169 = scalar_select %p168, %s10, 1
        %s170 = smul.addr %s169, 16
        %s171 = smul.addr %s170, 4
        %s172 = scalar_lea.vmem %s1, %s171
      $region28: #{_lambda_.22} parent=19 // pred_fallthru
        _
      // Predicated region
      $region29: #{_lambda_.22} parent=19 // pred_check
        %p173 = pneg %p82
      $region30: #{_lambda_.22} parent=19 // pred_check_branch
        %175 = sbr.rel (%p173) target = $region32
      $region31: #{_lambda_.22} parent=19 // pred_region
        %p176 = scmp.lt.s32.totalorder %s10, 1
        %s177 = scalar_select %p176, %s10, 1
        %s178 = smul.addr %s177, 16
        %s179 = smul.addr %s178, 4
        %s180 = scalar_lea.vmem %s2, %s179
      $region32: #{_lambda_.22} parent=19 // pred_fallthru
        _
    $region20: #{_lambda_.22} parent=5 // pred_fallthru
      _
    %p181 = scmp.le.s32.totalorder 1, %s10
    %p182 = scmp.lt.s32.totalorder %s10, 3
    %p183 = pnand %p181, %p182
    %p184 = pneg %p183
    // Predicated region
    $region33: #{_lambda_.22} parent=5 // pred_check
      _
    $region34: #{_lambda_.22} parent=5 // pred_check_branch
      %186 = sbr.rel (%p183) target = $region36
    $region35: #{_lambda_.22} parent=5 // pred_region
      %s187 = ssub.s32 %s10, 1
      %p188 = scmp.lt.s32.totalorder %s15, 1
      %s189 = scalar_select %p188, %s15, 1
      %s190 = smul.addr %s189, 16
      %s191 = smul.addr %s190, 4
      %s192 = scalar_lea.vmem %s0, %s191
      %p193 = pneg %p36
      %p194 = pneg %p33
      %p195 = scmp.lt.s32.totalorder %s15, 1
      %s196 = scalar_select %p195, %s15, 1
      %s197 = smul.addr %s196, 16
      %s198 = smul.addr %s197, 4
      %s199 = scalar_lea.vmem %s1, %s198
      %p200 = pneg %p62
      %p201 = pneg %p59
      %p202 = scmp.lt.s32.totalorder %s15, 1
      %s203 = scalar_select %p202, %s15, 1
      %s204 = smul.addr %s203, 16
      %s205 = smul.addr %s204, 4
      %s206 = scalar_lea.vmem %s2, %s205
      %p207 = pneg %p88
      %p208 = pneg %p85
      %p209 = pneg %p109
      %p210 = pneg %p106
      %p211 = pneg %p135
      %p212 = pneg %p132
      %p213 = scmp.lt.s32.totalorder %s15, 1
      %s214 = scalar_select %p213, %s15, 1
      %s215 = smul.addr %s214, 16
      %s216 = smul.addr %s215, 4
      %s217 = scalar_lea.vmem %s4, %s216
      %p218 = scmp.lt.s32.totalorder %s15, 1
      %s219 = scalar_select %p218, %s15, 1
      %s220 = smul.addr %s219, 16
      %s221 = smul.addr %s220, 4
      %s222 = scalar_lea.vmem %s0, %s221
      %p223 = scmp.lt.s32.totalorder %s15, 1
      %s224 = scalar_select %p223, %s15, 1
      %s225 = smul.addr %s224, 16
      %s226 = smul.addr %s225, 4
      %s227 = scalar_lea.vmem %s1, %s226
      %p228 = scmp.lt.s32.totalorder %s15, 1
      %s229 = scalar_select %p228, %s15, 1
      %s230 = smul.addr %s229, 16
      %s231 = smul.addr %s230, 4
      %s232 = scalar_lea.vmem %s2, %s231
      %p233 = scmp.lt.s32.totalorder %s15, 1
      %s234 = scalar_select %p233, %s15, 1
      %s235 = smul.addr %s234, 16
      %s236 = smul.addr %s235, 4
      %s237 = scalar_lea.vmem %s4, %s236
      %v239 = vld [vmem:[%s222] sm:$0xf]
      %v240 = vld [vmem:[%s222 + $0x4] sm:$0xf]
      %v241 = vld [vmem:[%s222 + $0x8] sm:$0xf]
      %v242 = vld [vmem:[%s222 + $0xc] sm:$0xf]
      %v243 = vld [vmem:[%s222 + $0x10] sm:$0xf]
      %v244 = vld [vmem:[%s222 + $0x14] sm:$0xf]
      %v245 = vld [vmem:[%s222 + $0x18] sm:$0xf]
      %v246 = vld [vmem:[%s222 + $0x1c] sm:$0xf]
      %v247 = vld [vmem:[%s222 + $0x20] sm:$0xf]
      %v248 = vld [vmem:[%s222 + $0x24] sm:$0xf]
      %v249 = vld [vmem:[%s222 + $0x28] sm:$0xf]
      %v250 = vld [vmem:[%s222 + $0x2c] sm:$0xf]
      %v251 = vld [vmem:[%s222 + $0x30] sm:$0xf]
      %v252 = vld [vmem:[%s222 + $0x34] sm:$0xf]
      %v253 = vld [vmem:[%s222 + $0x38] sm:$0xf]
      %v254 = vld [vmem:[%s222 + $0x3c] sm:$0xf]
      %v255 = vld [vmem:[%s227] sm:$0xf]
      %v256 = vld [vmem:[%s227 + $0x4] sm:$0xf]
      %v257 = vld [vmem:[%s227 + $0x8] sm:$0xf]
      %v258 = vld [vmem:[%s227 + $0xc] sm:$0xf]
      %v259 = vld [vmem:[%s227 + $0x10] sm:$0xf]
      %v260 = vld [vmem:[%s227 + $0x14] sm:$0xf]
      %v261 = vld [vmem:[%s227 + $0x18] sm:$0xf]
      %v262 = vld [vmem:[%s227 + $0x1c] sm:$0xf]
      %v263 = vld [vmem:[%s227 + $0x20] sm:$0xf]
      %v264 = vld [vmem:[%s227 + $0x24] sm:$0xf]
      %v265 = vld [vmem:[%s227 + $0x28] sm:$0xf]
      %v266 = vld [vmem:[%s227 + $0x2c] sm:$0xf]
      %v267 = vld [vmem:[%s227 + $0x30] sm:$0xf]
      %v268 = vld [vmem:[%s227 + $0x34] sm:$0xf]
      %v269 = vld [vmem:[%s227 + $0x38] sm:$0xf]
      %v270 = vld [vmem:[%s227 + $0x3c] sm:$0xf]
      %v271 = vld [vmem:[%s232] sm:$0xf]
      %v272 = vld [vmem:[%s232 + $0x4] sm:$0xf]
      %v273 = vld [vmem:[%s232 + $0x8] sm:$0xf]
      %v274 = vld [vmem:[%s232 + $0xc] sm:$0xf]
      %v275 = vld [vmem:[%s232 + $0x10] sm:$0xf]
      %v276 = vld [vmem:[%s232 + $0x14] sm:$0xf]
      %v277 = vld [vmem:[%s232 + $0x18] sm:$0xf]
      %v278 = vld [vmem:[%s232 + $0x1c] sm:$0xf]
      %v279 = vld [vmem:[%s232 + $0x20] sm:$0xf]
      %v280 = vld [vmem:[%s232 + $0x24] sm:$0xf]
      %v281 = vld [vmem:[%s232 + $0x28] sm:$0xf]
      %v282 = vld [vmem:[%s232 + $0x2c] sm:$0xf]
      %v283 = vld [vmem:[%s232 + $0x30] sm:$0xf]
      %v284 = vld [vmem:[%s232 + $0x34] sm:$0xf]
      %v285 = vld [vmem:[%s232 + $0x38] sm:$0xf]
      %v286 = vld [vmem:[%s232 + $0x3c] sm:$0xf]
      %v287 = vld [vmem:[%s3] sm:$0xff]
      %v288 = vld [vmem:[%s3 + $0x8] sm:$0xff]
      %v289 = vld [vmem:[%s3 + $0x10] sm:$0xff]
      %v290 = vld [vmem:[%s3 + $0x18] sm:$0xff]
      %v291 = vld [vmem:[%s3 + $0x20] sm:$0xff]
      %v292 = vld [vmem:[%s3 + $0x28] sm:$0xff]
      %v293 = vld [vmem:[%s3 + $0x30] sm:$0xff]
      %v294 = vld [vmem:[%s3 + $0x38] sm:$0xff]
      %v295 = vld [vmem:[%s3 + $0x40] sm:$0xff]
      %v296 = vld [vmem:[%s3 + $0x48] sm:$0xff]
      %v297 = vld [vmem:[%s3 + $0x50] sm:$0xff]
      %v298 = vld [vmem:[%s3 + $0x58] sm:$0xff]
      %v299 = vld [vmem:[%s3 + $0x60] sm:$0xff]
      %v300 = vld [vmem:[%s3 + $0x68] sm:$0xff]
      %v301 = vld [vmem:[%s3 + $0x70] sm:$0xff]
      %v302 = vld [vmem:[%s3 + $0x78] sm:$0xff]
      %v305 = vunpack.c.l.b16 %v239
      %v306 = vunpack.c.l.b16 %v240
      %v307 = vpack.c.b16 %v306, %v305
      %v310 = vunpack.c.l.b16 %v255
      %v311 = vunpack.c.l.b16 %v256
      %v312 = vpack.c.b16 %v311, %v310
      %vm313 = vcmask 64512
      %v315 = vsel %vm313, %v307, 0
      %v318 = vsel %vm313, %v312, 0
      %320 = vmatprep.subr.bf16.mxu0 0
      %321 = vmatpush1.bf16.xpose.msra.mxu0 0
      %322 = vmatprep.subr.bf16.mxu0 0
      %323 = vmatpush1.bf16.xpose.msra.mxu0 0
      %324 = vmatprep.subr.bf16.mxu0 0
      %325 = vmatpush1.bf16.xpose.msra.mxu0 0
      %326 = vmatprep.subr.bf16.mxu0 0
      %327 = vmatpush1.bf16.xpose.msra.mxu0 0
      %328 = vmatprep.subr.bf16.mxu0 0
      %329 = vmatpush1.bf16.xpose.msra.mxu0 0
      %330 = vmatprep.subr.bf16.mxu0 0
      %331 = vmatpush1.bf16.xpose.msra.mxu0 0
      %332 = vmatprep.subr.bf16.mxu0 0
      %333 = vmatpush1.bf16.xpose.msra.mxu0 0
      %334 = vmatprep.subr.bf16.mxu0 0
      %335 = vmatpush1.bf16.xpose.msra.mxu0 %v318
      %336 = vmatprep.subr.bf16.mxu0 0
      %337 = vmatpush2.bf16.xpose.msra.mxu0 0
      %338 = vmatprep.subr.bf16.mxu0 0
      %339 = vmatpush2.bf16.xpose.msra.mxu0 0
      %340 = vmatprep.subr.bf16.mxu0 0
      %341 = vmatpush2.bf16.xpose.msra.mxu0 0
      %342 = vmatprep.subr.bf16.mxu0 0
      %343 = vmatpush2.bf16.xpose.msra.mxu0 0
      %344 = vmatprep.subr.bf16.mxu0 0
      %345 = vmatpush2.bf16.xpose.msra.mxu0 0
      %346 = vmatprep.subr.bf16.mxu0 0
      %347 = vmatpush2.bf16.xpose.msra.mxu0 0
      %348 = vmatprep.subr.bf16.mxu0 0
      %349 = vmatpush2.bf16.xpose.msra.mxu0 0
      %350 = vmatprep.subr.bf16.mxu0 0
      %351 = vmatpush2.bf16.xpose.msra.mxu0 0
      %352 = vmatprep.mubr.bf16.mxu0 0
      %353 = vmatmul.mubr.bf16.gmra.mxu0 %v315
      %v354 = vpop.f32.mrf.mxu0
      %v355 = vadd.f32 %v287, %v354
      %v356 = vpop.f32.mrf.mxu0
      %v357 = vpop.f32.mrf.mxu0
      %v358 = vadd.f32 %v288, %v357
      %v359 = vpop.f32.mrf.mxu0
      %360 = vdwg.mxu0
      %v363 = vunpack.c.l.b16 %v241
      %v364 = vunpack.c.l.b16 %v242
      %v365 = vpack.c.b16 %v364, %v363
      %v368 = vunpack.c.l.b16 %v257
      %v369 = vunpack.c.l.b16 %v258
      %v370 = vpack.c.b16 %v369, %v368
      %v372 = vsel %vm313, %v365, 0
      %v375 = vsel %vm313, %v370, 0
      %377 = vmatprep.subr.bf16.mxu0 0
      %378 = vmatpush1.bf16.xpose.msra.mxu0 0
      %379 = vmatprep.subr.bf16.mxu0 0
      %380 = vmatpush1.bf16.xpose.msra.mxu0 0
      %381 = vmatprep.subr.bf16.mxu0 0
      %382 = vmatpush1.bf16.xpose.msra.mxu0 0
      %383 = vmatprep.subr.bf16.mxu0 0
      %384 = vmatpush1.bf16.xpose.msra.mxu0 0
      %385 = vmatprep.subr.bf16.mxu0 0
      %386 = vmatpush1.bf16.xpose.msra.mxu0 0
      %387 = vmatprep.subr.bf16.mxu0 0
      %388 = vmatpush1.bf16.xpose.msra.mxu0 0
      %389 = vmatprep.subr.bf16.mxu0 0
      %390 = vmatpush1.bf16.xpose.msra.mxu0 0
      %391 = vmatprep.subr.bf16.mxu0 0
      %392 = vmatpush1.bf16.xpose.msra.mxu0 %v375
      %393 = vmatprep.subr.bf16.mxu0 0
      %394 = vmatpush2.bf16.xpose.msra.mxu0 0
      %395 = vmatprep.subr.bf16.mxu0 0
      %396 = vmatpush2.bf16.xpose.msra.mxu0 0
      %397 = vmatprep.subr.bf16.mxu0 0
      %398 = vmatpush2.bf16.xpose.msra.mxu0 0
      %399 = vmatprep.subr.bf16.mxu0 0
      %400 = vmatpush2.bf16.xpose.msra.mxu0 0
      %401 = vmatprep.subr.bf16.mxu0 0
      %402 = vmatpush2.bf16.xpose.msra.mxu0 0
      %403 = vmatprep.subr.bf16.mxu0 0
      %404 = vmatpush2.bf16.xpose.msra.mxu0 0
      %405 = vmatprep.subr.bf16.mxu0 0
      %406 = vmatpush2.bf16.xpose.msra.mxu0 0
      %407 = vmatprep.subr.bf16.mxu0 0
      %408 = vmatpush2.bf16.xpose.msra.mxu0 0
      %409 = vmatprep.mubr.bf16.mxu0 0
      %410 = vmatmul.mubr.bf16.gmra.mxu0 %v372
      %v411 = vpop.f32.mrf.mxu0
      %v412 = vadd.f32 %v289, %v411
      %v413 = vpop.f32.mrf.mxu0
      %v414 = vpop.f32.mrf.mxu0
      %v415 = vadd.f32 %v290, %v414
      %v416 = vpop.f32.mrf.mxu0
      %417 = vdwg.mxu0
      %v420 = vunpack.c.l.b16 %v243
      %v421 = vunpack.c.l.b16 %v244
      %v422 = vpack.c.b16 %v421, %v420
      %v425 = vunpack.c.l.b16 %v259
      %v426 = vunpack.c.l.b16 %v260
      %v427 = vpack.c.b16 %v426, %v425
      %v429 = vsel %vm313, %v422, 0
      %v432 = vsel %vm313, %v427, 0
      %434 = vmatprep.subr.bf16.mxu0 0
      %435 = vmatpush1.bf16.xpose.msra.mxu0 0
      %436 = vmatprep.subr.bf16.mxu0 0
      %437 = vmatpush1.bf16.xpose.msra.mxu0 0
      %438 = vmatprep.subr.bf16.mxu0 0
      %439 = vmatpush1.bf16.xpose.msra.mxu0 0
      %440 = vmatprep.subr.bf16.mxu0 0
      %441 = vmatpush1.bf16.xpose.msra.mxu0 0
      %442 = vmatprep.subr.bf16.mxu0 0
      %443 = vmatpush1.bf16.xpose.msra.mxu0 0
      %444 = vmatprep.subr.bf16.mxu0 0
      %445 = vmatpush1.bf16.xpose.msra.mxu0 0
      %446 = vmatprep.subr.bf16.mxu0 0
      %447 = vmatpush1.bf16.xpose.msra.mxu0 0
      %448 = vmatprep.subr.bf16.mxu0 0
      %449 = vmatpush1.bf16.xpose.msra.mxu0 %v432
      %450 = vmatprep.subr.bf16.mxu0 0
      %451 = vmatpush2.bf16.xpose.msra.mxu0 0
      %452 = vmatprep.subr.bf16.mxu0 0
      %453 = vmatpush2.bf16.xpose.msra.mxu0 0
      %454 = vmatprep.subr.bf16.mxu0 0
      %455 = vmatpush2.bf16.xpose.msra.mxu0 0
      %456 = vmatprep.subr.bf16.mxu0 0
      %457 = vmatpush2.bf16.xpose.msra.mxu0 0
      %458 = vmatprep.subr.bf16.mxu0 0
      %459 = vmatpush2.bf16.xpose.msra.mxu0 0
      %460 = vmatprep.subr.bf16.mxu0 0
      %461 = vmatpush2.bf16.xpose.msra.mxu0 0
      %462 = vmatprep.subr.bf16.mxu0 0
      %463 = vmatpush2.bf16.xpose.msra.mxu0 0
      %464 = vmatprep.subr.bf16.mxu0 0
      %465 = vmatpush2.bf16.xpose.msra.mxu0 0
      %466 = vmatprep.mubr.bf16.mxu0 0
      %467 = vmatmul.mubr.bf16.gmra.mxu0 %v429
      %v468 = vpop.f32.mrf.mxu0
      %v469 = vadd.f32 %v291, %v468
      %v470 = vpop.f32.mrf.mxu0
      %v471 = vpop.f32.mrf.mxu0
      %v472 = vadd.f32 %v292, %v471
      %v473 = vpop.f32.mrf.mxu0
      %474 = vdwg.mxu0
      %v477 = vunpack.c.l.b16 %v245
      %v478 = vunpack.c.l.b16 %v246
      %v479 = vpack.c.b16 %v478, %v477
      %v482 = vunpack.c.l.b16 %v261
      %v483 = vunpack.c.l.b16 %v262
      %v484 = vpack.c.b16 %v483, %v482
      %v486 = vsel %vm313, %v479, 0
      %v489 = vsel %vm313, %v484, 0
      %491 = vmatprep.subr.bf16.mxu0 0
      %492 = vmatpush1.bf16.xpose.msra.mxu0 0
      %493 = vmatprep.subr.bf16.mxu0 0
      %494 = vmatpush1.bf16.xpose.msra.mxu0 0
      %495 = vmatprep.subr.bf16.mxu0 0
      %496 = vmatpush1.bf16.xpose.msra.mxu0 0
      %497 = vmatprep.subr.bf16.mxu0 0
      %498 = vmatpush1.bf16.xpose.msra.mxu0 0
      %499 = vmatprep.subr.bf16.mxu0 0
      %500 = vmatpush1.bf16.xpose.msra.mxu0 0
      %501 = vmatprep.subr.bf16.mxu0 0
      %502 = vmatpush1.bf16.xpose.msra.mxu0 0
      %503 = vmatprep.subr.bf16.mxu0 0
      %504 = vmatpush1.bf16.xpose.msra.mxu0 0
      %505 = vmatprep.subr.bf16.mxu0 0
      %506 = vmatpush1.bf16.xpose.msra.mxu0 %v489
      %507 = vmatprep.subr.bf16.mxu0 0
      %508 = vmatpush2.bf16.xpose.msra.mxu0 0
      %509 = vmatprep.subr.bf16.mxu0 0
      %510 = vmatpush2.bf16.xpose.msra.mxu0 0
      %511 = vmatprep.subr.bf16.mxu0 0
      %512 = vmatpush2.bf16.xpose.msra.mxu0 0
      %513 = vmatprep.subr.bf16.mxu0 0
      %514 = vmatpush2.bf16.xpose.msra.mxu0 0
      %515 = vmatprep.subr.bf16.mxu0 0
      %516 = vmatpush2.bf16.xpose.msra.mxu0 0
      %517 = vmatprep.subr.bf16.mxu0 0
      %518 = vmatpush2.bf16.xpose.msra.mxu0 0
      %519 = vmatprep.subr.bf16.mxu0 0
      %520 = vmatpush2.bf16.xpose.msra.mxu0 0
      %521 = vmatprep.subr.bf16.mxu0 0
      %522 = vmatpush2.bf16.xpose.msra.mxu0 0
      %523 = vmatprep.mubr.bf16.mxu0 0
      %524 = vmatmul.mubr.bf16.gmra.mxu0 %v486
      %v525 = vpop.f32.mrf.mxu0
      %v526 = vadd.f32 %v293, %v525
      %v527 = vpop.f32.mrf.mxu0
      %v528 = vpop.f32.mrf.mxu0
      %v529 = vadd.f32 %v294, %v528
      %v530 = vpop.f32.mrf.mxu0
      %531 = vdwg.mxu0
      %v534 = vunpack.c.l.b16 %v247
      %v535 = vunpack.c.l.b16 %v248
      %v536 = vpack.c.b16 %v535, %v534
      %v539 = vunpack.c.l.b16 %v263
      %v540 = vunpack.c.l.b16 %v264
      %v541 = vpack.c.b16 %v540, %v539
      %v543 = vsel %vm313, %v536, 0
      %v546 = vsel %vm313, %v541, 0
      %548 = vmatprep.subr.bf16.mxu0 0
      %549 = vmatpush1.bf16.xpose.msra.mxu0 0
      %550 = vmatprep.subr.bf16.mxu0 0
      %551 = vmatpush1.bf16.xpose.msra.mxu0 0
      %552 = vmatprep.subr.bf16.mxu0 0
      %553 = vmatpush1.bf16.xpose.msra.mxu0 0
      %554 = vmatprep.subr.bf16.mxu0 0
      %555 = vmatpush1.bf16.xpose.msra.mxu0 0
      %556 = vmatprep.subr.bf16.mxu0 0
      %557 = vmatpush1.bf16.xpose.msra.mxu0 0
      %558 = vmatprep.subr.bf16.mxu0 0
      %559 = vmatpush1.bf16.xpose.msra.mxu0 0
      %560 = vmatprep.subr.bf16.mxu0 0
      %561 = vmatpush1.bf16.xpose.msra.mxu0 0
      %562 = vmatprep.subr.bf16.mxu0 0
      %563 = vmatpush1.bf16.xpose.msra.mxu0 %v546
      %564 = vmatprep.subr.bf16.mxu0 0
      %565 = vmatpush2.bf16.xpose.msra.mxu0 0
      %566 = vmatprep.subr.bf16.mxu0 0
      %567 = vmatpush2.bf16.xpose.msra.mxu0 0
      %568 = vmatprep.subr.bf16.mxu0 0
      %569 = vmatpush2.bf16.xpose.msra.mxu0 0
      %570 = vmatprep.subr.bf16.mxu0 0
      %571 = vmatpush2.bf16.xpose.msra.mxu0 0
      %572 = vmatprep.subr.bf16.mxu0 0
      %573 = vmatpush2.bf16.xpose.msra.mxu0 0
      %574 = vmatprep.subr.bf16.mxu0 0
      %575 = vmatpush2.bf16.xpose.msra.mxu0 0
      %576 = vmatprep.subr.bf16.mxu0 0
      %577 = vmatpush2.bf16.xpose.msra.mxu0 0
      %578 = vmatprep.subr.bf16.mxu0 0
      %579 = vmatpush2.bf16.xpose.msra.mxu0 0
      %580 = vmatprep.mubr.bf16.mxu0 0
      %581 = vmatmul.mubr.bf16.gmra.mxu0 %v543
      %v582 = vpop.f32.mrf.mxu0
      %v583 = vadd.f32 %v295, %v582
      %v584 = vpop.f32.mrf.mxu0
      %v585 = vpop.f32.mrf.mxu0
      %v586 = vadd.f32 %v296, %v585
      %v587 = vpop.f32.mrf.mxu0
      %588 = vdwg.mxu0
      %v591 = vunpack.c.l.b16 %v249
      %v592 = vunpack.c.l.b16 %v250
      %v593 = vpack.c.b16 %v592, %v591
      %v596 = vunpack.c.l.b16 %v265
      %v597 = vunpack.c.l.b16 %v266
      %v598 = vpack.c.b16 %v597, %v596
      %v600 = vsel %vm313, %v593, 0
      %v603 = vsel %vm313, %v598, 0
      %605 = vmatprep.subr.bf16.mxu0 0
      %606 = vmatpush1.bf16.xpose.msra.mxu0 0
      %607 = vmatprep.subr.bf16.mxu0 0
      %608 = vmatpush1.bf16.xpose.msra.mxu0 0
      %609 = vmatprep.subr.bf16.mxu0 0
      %610 = vmatpush1.bf16.xpose.msra.mxu0 0
      %611 = vmatprep.subr.bf16.mxu0 0
      %612 = vmatpush1.bf16.xpose.msra.mxu0 0
      %613 = vmatprep.subr.bf16.mxu0 0
      %614 = vmatpush1.bf16.xpose.msra.mxu0 0
      %615 = vmatprep.subr.bf16.mxu0 0
      %616 = vmatpush1.bf16.xpose.msra.mxu0 0
      %617 = vmatprep.subr.bf16.mxu0 0
      %618 = vmatpush1.bf16.xpose.msra.mxu0 0
      %619 = vmatprep.subr.bf16.mxu0 0
      %620 = vmatpush1.bf16.xpose.msra.mxu0 %v603
      %621 = vmatprep.subr.bf16.mxu0 0
      %622 = vmatpush2.bf16.xpose.msra.mxu0 0
      %623 = vmatprep.subr.bf16.mxu0 0
      %624 = vmatpush2.bf16.xpose.msra.mxu0 0
      %625 = vmatprep.subr.bf16.mxu0 0
      %626 = vmatpush2.bf16.xpose.msra.mxu0 0
      %627 = vmatprep.subr.bf16.mxu0 0
      %628 = vmatpush2.bf16.xpose.msra.mxu0 0
      %629 = vmatprep.subr.bf16.mxu0 0
      %630 = vmatpush2.bf16.xpose.msra.mxu0 0
      %631 = vmatprep.subr.bf16.mxu0 0
      %632 = vmatpush2.bf16.xpose.msra.mxu0 0
      %633 = vmatprep.subr.bf16.mxu0 0
      %634 = vmatpush2.bf16.xpose.msra.mxu0 0
      %635 = vmatprep.subr.bf16.mxu0 0
      %636 = vmatpush2.bf16.xpose.msra.mxu0 0
      %637 = vmatprep.mubr.bf16.mxu0 0
      %638 = vmatmul.mubr.bf16.gmra.mxu0 %v600
      %v639 = vpop.f32.mrf.mxu0
      %v640 = vadd.f32 %v297, %v639
      %v641 = vpop.f32.mrf.mxu0
      %v642 = vpop.f32.mrf.mxu0
      %v643 = vadd.f32 %v298, %v642
      %v644 = vpop.f32.mrf.mxu0
      %645 = vdwg.mxu0
      %v648 = vunpack.c.l.b16 %v251
      %v649 = vunpack.c.l.b16 %v252
      %v650 = vpack.c.b16 %v649, %v648
      %v653 = vunpack.c.l.b16 %v267
      %v654 = vunpack.c.l.b16 %v268
      %v655 = vpack.c.b16 %v654, %v653
      %v657 = vsel %vm313, %v650, 0
      %v660 = vsel %vm313, %v655, 0
      %662 = vmatprep.subr.bf16.mxu0 0
      %663 = vmatpush1.bf16.xpose.msra.mxu0 0
      %664 = vmatprep.subr.bf16.mxu0 0
      %665 = vmatpush1.bf16.xpose.msra.mxu0 0
      %666 = vmatprep.subr.bf16.mxu0 0
      %667 = vmatpush1.bf16.xpose.msra.mxu0 0
      %668 = vmatprep.subr.bf16.mxu0 0
      %669 = vmatpush1.bf16.xpose.msra.mxu0 0
      %670 = vmatprep.subr.bf16.mxu0 0
      %671 = vmatpush1.bf16.xpose.msra.mxu0 0
      %672 = vmatprep.subr.bf16.mxu0 0
      %673 = vmatpush1.bf16.xpose.msra.mxu0 0
      %674 = vmatprep.subr.bf16.mxu0 0
      %675 = vmatpush1.bf16.xpose.msra.mxu0 0
      %676 = vmatprep.subr.bf16.mxu0 0
      %677 = vmatpush1.bf16.xpose.msra.mxu0 %v660
      %678 = vmatprep.subr.bf16.mxu0 0
      %679 = vmatpush2.bf16.xpose.msra.mxu0 0
      %680 = vmatprep.subr.bf16.mxu0 0
      %681 = vmatpush2.bf16.xpose.msra.mxu0 0
      %682 = vmatprep.subr.bf16.mxu0 0
      %683 = vmatpush2.bf16.xpose.msra.mxu0 0
      %684 = vmatprep.subr.bf16.mxu0 0
      %685 = vmatpush2.bf16.xpose.msra.mxu0 0
      %686 = vmatprep.subr.bf16.mxu0 0
      %687 = vmatpush2.bf16.xpose.msra.mxu0 0
      %688 = vmatprep.subr.bf16.mxu0 0
      %689 = vmatpush2.bf16.xpose.msra.mxu0 0
      %690 = vmatprep.subr.bf16.mxu0 0
      %691 = vmatpush2.bf16.xpose.msra.mxu0 0
      %692 = vmatprep.subr.bf16.mxu0 0
      %693 = vmatpush2.bf16.xpose.msra.mxu0 0
      %694 = vmatprep.mubr.bf16.mxu0 0
      %695 = vmatmul.mubr.bf16.gmra.mxu0 %v657
      %v696 = vpop.f32.mrf.mxu0
      %v697 = vadd.f32 %v299, %v696
      %v698 = vpop.f32.mrf.mxu0
      %v699 = vpop.f32.mrf.mxu0
      %v700 = vadd.f32 %v300, %v699
      %v701 = vpop.f32.mrf.mxu0
      %702 = vdwg.mxu0
      %v705 = vunpack.c.l.b16 %v253
      %v706 = vunpack.c.l.b16 %v254
      %v707 = vpack.c.b16 %v706, %v705
      %v710 = vunpack.c.l.b16 %v269
      %v711 = vunpack.c.l.b16 %v270
      %v712 = vpack.c.b16 %v711, %v710
      %v714 = vsel %vm313, %v707, 0
      %v717 = vsel %vm313, %v712, 0
      %719 = vmatprep.subr.bf16.mxu0 0
      %720 = vmatpush1.bf16.xpose.msra.mxu0 0
      %721 = vmatprep.subr.bf16.mxu0 0
      %722 = vmatpush1.bf16.xpose.msra.mxu0 0
      %723 = vmatprep.subr.bf16.mxu0 0
      %724 = vmatpush1.bf16.xpose.msra.mxu0 0
      %725 = vmatprep.subr.bf16.mxu0 0
      %726 = vmatpush1.bf16.xpose.msra.mxu0 0
      %727 = vmatprep.subr.bf16.mxu0 0
      %728 = vmatpush1.bf16.xpose.msra.mxu0 0
      %729 = vmatprep.subr.bf16.mxu0 0
      %730 = vmatpush1.bf16.xpose.msra.mxu0 0
      %731 = vmatprep.subr.bf16.mxu0 0
      %732 = vmatpush1.bf16.xpose.msra.mxu0 0
      %733 = vmatprep.subr.bf16.mxu0 0
      %734 = vmatpush1.bf16.xpose.msra.mxu0 %v717
      %735 = vmatprep.subr.bf16.mxu0 0
      %736 = vmatpush2.bf16.xpose.msra.mxu0 0
      %737 = vmatprep.subr.bf16.mxu0 0
      %738 = vmatpush2.bf16.xpose.msra.mxu0 0
      %739 = vmatprep.subr.bf16.mxu0 0
      %740 = vmatpush2.bf16.xpose.msra.mxu0 0
      %741 = vmatprep.subr.bf16.mxu0 0
      %742 = vmatpush2.bf16.xpose.msra.mxu0 0
      %743 = vmatprep.subr.bf16.mxu0 0
      %744 = vmatpush2.bf16.xpose.msra.mxu0 0
      %745 = vmatprep.subr.bf16.mxu0 0
      %746 = vmatpush2.bf16.xpose.msra.mxu0 0
      %747 = vmatprep.subr.bf16.mxu0 0
      %748 = vmatpush2.bf16.xpose.msra.mxu0 0
      %749 = vmatprep.subr.bf16.mxu0 0
      %750 = vmatpush2.bf16.xpose.msra.mxu0 0
      %751 = vmatprep.mubr.bf16.mxu0 0
      %752 = vmatmul.mubr.bf16.gmra.mxu0 %v714
      %v753 = vpop.f32.mrf.mxu0
      %v754 = vadd.f32 %v301, %v753
      %v755 = vpop.f32.mrf.mxu0
      %v756 = vpop.f32.mrf.mxu0
      %v757 = vadd.f32 %v302, %v756
      %v758 = vpop.f32.mrf.mxu0
      %759 = vdwg.mxu0
      %vm760 = vcmask 130048
      %v761 = vsel %vm760, %v355, -inf
      %762 = vmax.xlane.f32.xlu0 %v761
      %v763 = vpop.xlane.xlu0 %762
      %v764 = vsel %vm760, %v358, -inf
      %765 = vmax.xlane.f32.xlu0 %v764
      %v766 = vpop.xlane.xlu0 %765
      %v767 = vsel %vm760, %v412, -inf
      %768 = vmax.xlane.f32.xlu0 %v767
      %v769 = vpop.xlane.xlu0 %768
      %v770 = vsel %vm760, %v415, -inf
      %771 = vmax.xlane.f32.xlu0 %v770
      %v772 = vpop.xlane.xlu0 %771
      %v773 = vsel %vm760, %v469, -inf
      %774 = vmax.xlane.f32.xlu0 %v773
      %v775 = vpop.xlane.xlu0 %774
      %v776 = vsel %vm760, %v472, -inf
      %777 = vmax.xlane.f32.xlu0 %v776
      %v778 = vpop.xlane.xlu0 %777
      %v779 = vsel %vm760, %v526, -inf
      %780 = vmax.xlane.f32.xlu0 %v779
      %v781 = vpop.xlane.xlu0 %780
      %v782 = vsel %vm760, %v529, -inf
      %783 = vmax.xlane.f32.xlu0 %v782
      %v784 = vpop.xlane.xlu0 %783
      %v785 = vsel %vm760, %v583, -inf
      %786 = vmax.xlane.f32.xlu0 %v785
      %v787 = vpop.xlane.xlu0 %786
      %v788 = vsel %vm760, %v586, -inf
      %789 = vmax.xlane.f32.xlu0 %v788
      %v790 = vpop.xlane.xlu0 %789
      %v791 = vsel %vm760, %v640, -inf
      %792 = vmax.xlane.f32.xlu0 %v791
      %v793 = vpop.xlane.xlu0 %792
      %v794 = vsel %vm760, %v643, -inf
      %795 = vmax.xlane.f32.xlu0 %v794
      %v796 = vpop.xlane.xlu0 %795
      %v797 = vsel %vm760, %v697, -inf
      %798 = vmax.xlane.f32.xlu0 %v797
      %v799 = vpop.xlane.xlu0 %798
      %v800 = vsel %vm760, %v700, -inf
      %801 = vmax.xlane.f32.xlu0 %v800
      %v802 = vpop.xlane.xlu0 %801
      %v803 = vsel %vm760, %v754, -inf
      %804 = vmax.xlane.f32.xlu0 %v803
      %v805 = vpop.xlane.xlu0 %804
      %v806 = vsel %vm760, %v757, -inf
      %807 = vmax.xlane.f32.xlu0 %v806
      %v808 = vpop.xlane.xlu0 %807
      %v809 = vsub.f32 %v355, %v763
      %v810 = vsub.f32 %v358, %v766
      %v811 = vsub.f32 %v412, %v769
      %v812 = vsub.f32 %v415, %v772
      %v813 = vsub.f32 %v469, %v775
      %v814 = vsub.f32 %v472, %v778
      %v815 = vsub.f32 %v526, %v781
      %v816 = vsub.f32 %v529, %v784
      %v817 = vsub.f32 %v583, %v787
      %v818 = vsub.f32 %v586, %v790
      %v819 = vsub.f32 %v640, %v793
      %v820 = vsub.f32 %v643, %v796
      %v821 = vsub.f32 %v697, %v799
      %v822 = vsub.f32 %v700, %v802
      %v823 = vsub.f32 %v754, %v805
      %v824 = vsub.f32 %v757, %v808
      %v825 = vmul.f32 %v809, 1.442695
      %v826 = vpow.pop %v825
      %v827 = vmul.f32 %v810, 1.442695
      %v828 = vpow.pop %v827
      %v829 = vmul.f32 %v811, 1.442695
      %v830 = vpow.pop %v829
      %v831 = vmul.f32 %v812, 1.442695
      %v832 = vpow.pop %v831
      %v833 = vmul.f32 %v813, 1.442695
      %v834 = vpow.pop %v833
      %v835 = vmul.f32 %v814, 1.442695
      %v836 = vpow.pop %v835
      %v837 = vmul.f32 %v815, 1.442695
      %v838 = vpow.pop %v837
      %v839 = vmul.f32 %v816, 1.442695
      %v840 = vpow.pop %v839
      %v841 = vmul.f32 %v817, 1.442695
      %v842 = vpow.pop %v841
      %v843 = vmul.f32 %v818, 1.442695
      %v844 = vpow.pop %v843
      %v845 = vmul.f32 %v819, 1.442695
      %v846 = vpow.pop %v845
      %v847 = vmul.f32 %v820, 1.442695
      %v848 = vpow.pop %v847
      %v849 = vmul.f32 %v821, 1.442695
      %v850 = vpow.pop %v849
      %v851 = vmul.f32 %v822, 1.442695
      %v852 = vpow.pop %v851
      %v853 = vmul.f32 %v823, 1.442695
      %v854 = vpow.pop %v853
      %v855 = vmul.f32 %v824, 1.442695
      %v856 = vpow.pop %v855
      %v857 = vsel %vm760, %v826, 0.0
      %858 = vadd.xlane.f32.xlu0 %v857
      %v859 = vpop.xlane.xlu0 %858
      %v860 = vsel %vm760, %v828, 0.0
      %861 = vadd.xlane.f32.xlu0 %v860
      %v862 = vpop.xlane.xlu0 %861
      %v863 = vsel %vm760, %v830, 0.0
      %864 = vadd.xlane.f32.xlu0 %v863
      %v865 = vpop.xlane.xlu0 %864
      %v866 = vsel %vm760, %v832, 0.0
      %867 = vadd.xlane.f32.xlu0 %v866
      %v868 = vpop.xlane.xlu0 %867
      %v869 = vsel %vm760, %v834, 0.0
      %870 = vadd.xlane.f32.xlu0 %v869
      %v871 = vpop.xlane.xlu0 %870
      %v872 = vsel %vm760, %v836, 0.0
      %873 = vadd.xlane.f32.xlu0 %v872
      %v874 = vpop.xlane.xlu0 %873
      %v875 = vsel %vm760, %v838, 0.0
      %876 = vadd.xlane.f32.xlu0 %v875
      %v877 = vpop.xlane.xlu0 %876
      %v878 = vsel %vm760, %v840, 0.0
      %879 = vadd.xlane.f32.xlu0 %v878
      %v880 = vpop.xlane.xlu0 %879
      %v881 = vsel %vm760, %v842, 0.0
      %882 = vadd.xlane.f32.xlu0 %v881
      %v883 = vpop.xlane.xlu0 %882
      %v884 = vsel %vm760, %v844, 0.0
      %885 = vadd.xlane.f32.xlu0 %v884
      %v886 = vpop.xlane.xlu0 %885
      %v887 = vsel %vm760, %v846, 0.0
      %888 = vadd.xlane.f32.xlu0 %v887
      %v889 = vpop.xlane.xlu0 %888
      %v890 = vsel %vm760, %v848, 0.0
      %891 = vadd.xlane.f32.xlu0 %v890
      %v892 = vpop.xlane.xlu0 %891
      %v893 = vsel %vm760, %v850, 0.0
      %894 = vadd.xlane.f32.xlu0 %v893
      %v895 = vpop.xlane.xlu0 %894
      %v896 = vsel %vm760, %v852, 0.0
      %897 = vadd.xlane.f32.xlu0 %v896
      %v898 = vpop.xlane.xlu0 %897
      %v899 = vsel %vm760, %v854, 0.0
      %900 = vadd.xlane.f32.xlu0 %v899
      %v901 = vpop.xlane.xlu0 %900
      %v902 = vsel %vm760, %v856, 0.0
      %903 = vadd.xlane.f32.xlu0 %v902
      %v904 = vpop.xlane.xlu0 %903
      %v905 = vrcp.pop %v859
      %v906 = vrcp.pop %v862
      %v907 = vrcp.pop %v865
      %v908 = vrcp.pop %v868
      %v909 = vrcp.pop %v871
      %v910 = vrcp.pop %v874
      %v911 = vrcp.pop %v877
      %v912 = vrcp.pop %v880
      %v913 = vrcp.pop %v883
      %v914 = vrcp.pop %v886
      %v915 = vrcp.pop %v889
      %v916 = vrcp.pop %v892
      %v917 = vrcp.pop %v895
      %v918 = vrcp.pop %v898
      %v919 = vrcp.pop %v901
      %v920 = vrcp.pop %v904
      %v921 = vmul.f32 %v826, %v905
      %v922 = vmul.f32 %v828, %v906
      %v923 = vmul.f32 %v830, %v907
      %v924 = vmul.f32 %v832, %v908
      %v925 = vmul.f32 %v834, %v909
      %v926 = vmul.f32 %v836, %v910
      %v927 = vmul.f32 %v838, %v911
      %v928 = vmul.f32 %v840, %v912
      %v929 = vmul.f32 %v842, %v913
      %v930 = vmul.f32 %v844, %v914
      %v931 = vmul.f32 %v846, %v915
      %v932 = vmul.f32 %v848, %v916
      %v933 = vmul.f32 %v850, %v917
      %v934 = vmul.f32 %v852, %v918
      %v935 = vmul.f32 %v854, %v919
      %v936 = vmul.f32 %v856, %v920
      %v937 = vpack.c.bf16 %v922, %v921
      %v938 = vpack.c.bf16 %v924, %v923
      %v939 = vpack.c.bf16 %v926, %v925
      %v940 = vpack.c.bf16 %v928, %v927
      %v941 = vpack.c.bf16 %v930, %v929
      %v942 = vpack.c.bf16 %v932, %v931
      %v943 = vpack.c.bf16 %v934, %v933
      %v944 = vpack.c.bf16 %v936, %v935
      %v947 = vunpack.c.l.b16 %v271
      %v948 = vunpack.c.l.b16 %v272
      %v949 = vpack.c.b16 %v948, %v947
      %v952 = vsel %vm760, %v937, 0
      %954 = vmatprep.subr.bf16.mxu0 0
      %955 = vmatpush1.bf16.msra.mxu0 0
      %956 = vmatprep.subr.bf16.mxu0 0
      %957 = vmatpush1.bf16.msra.mxu0 0
      %958 = vmatprep.subr.bf16.mxu0 0
      %959 = vmatpush1.bf16.msra.mxu0 0
      %960 = vmatprep.subr.bf16.mxu0 0
      %961 = vmatpush1.bf16.msra.mxu0 0
      %962 = vmatprep.subr.bf16.mxu0 0
      %963 = vmatpush1.bf16.msra.mxu0 0
      %964 = vmatprep.subr.bf16.mxu0 0
      %965 = vmatpush1.bf16.msra.mxu0 0
      %966 = vmatprep.subr.bf16.mxu0 0
      %967 = vmatpush1.bf16.msra.mxu0 0
      %968 = vmatprep.subr.bf16.mxu0 0
      %969 = vmatpush1.bf16.msra.mxu0 %v949
      %970 = vmatprep.subr.bf16.mxu0 0
      %971 = vmatpush2.bf16.msra.mxu0 0
      %972 = vmatprep.subr.bf16.mxu0 0
      %973 = vmatpush2.bf16.msra.mxu0 0
      %974 = vmatprep.subr.bf16.mxu0 0
      %975 = vmatpush2.bf16.msra.mxu0 0
      %976 = vmatprep.subr.bf16.mxu0 0
      %977 = vmatpush2.bf16.msra.mxu0 0
      %978 = vmatprep.subr.bf16.mxu0 0
      %979 = vmatpush2.bf16.msra.mxu0 0
      %980 = vmatprep.subr.bf16.mxu0 0
      %981 = vmatpush2.bf16.msra.mxu0 0
      %982 = vmatprep.subr.bf16.mxu0 0
      %983 = vmatpush2.bf16.msra.mxu0 0
      %984 = vmatprep.subr.bf16.mxu0 0
      %985 = vmatpush2.bf16.msra.mxu0 0
      %986 = vmatprep.mubr.bf16.mxu0 0
      %987 = vmatmul.mubr.bf16.gmra.mxu0 %v952
      %v988 = vpop.f32.mrf.mxu0
      %v989 = vadd.f32 0.0, %v988
      %v990 = vpop.f32.mrf.mxu0
      %v991 = vpop.f32.mrf.mxu0
      %v992 = vadd.f32 0.0, %v991
      %v993 = vpop.f32.mrf.mxu0
      %994 = vdwg.mxu0
      %v997 = vunpack.c.l.b16 %v273
      %v998 = vunpack.c.l.b16 %v274
      %v999 = vpack.c.b16 %v998, %v997
      %v1002 = vsel %vm760, %v938, 0
      %1004 = vmatprep.subr.bf16.mxu0 0
      %1005 = vmatpush1.bf16.msra.mxu0 0
      %1006 = vmatprep.subr.bf16.mxu0 0
      %1007 = vmatpush1.bf16.msra.mxu0 0
      %1008 = vmatprep.subr.bf16.mxu0 0
      %1009 = vmatpush1.bf16.msra.mxu0 0
      %1010 = vmatprep.subr.bf16.mxu0 0
      %1011 = vmatpush1.bf16.msra.mxu0 0
      %1012 = vmatprep.subr.bf16.mxu0 0
      %1013 = vmatpush1.bf16.msra.mxu0 0
      %1014 = vmatprep.subr.bf16.mxu0 0
      %1015 = vmatpush1.bf16.msra.mxu0 0
      %1016 = vmatprep.subr.bf16.mxu0 0
      %1017 = vmatpush1.bf16.msra.mxu0 0
      %1018 = vmatprep.subr.bf16.mxu0 0
      %1019 = vmatpush1.bf16.msra.mxu0 %v999
      %1020 = vmatprep.subr.bf16.mxu0 0
      %1021 = vmatpush2.bf16.msra.mxu0 0
      %1022 = vmatprep.subr.bf16.mxu0 0
      %1023 = vmatpush2.bf16.msra.mxu0 0
      %1024 = vmatprep.subr.bf16.mxu0 0
      %1025 = vmatpush2.bf16.msra.mxu0 0
      %1026 = vmatprep.subr.bf16.mxu0 0
      %1027 = vmatpush2.bf16.msra.mxu0 0
      %1028 = vmatprep.subr.bf16.mxu0 0
      %1029 = vmatpush2.bf16.msra.mxu0 0
      %1030 = vmatprep.subr.bf16.mxu0 0
      %1031 = vmatpush2.bf16.msra.mxu0 0
      %1032 = vmatprep.subr.bf16.mxu0 0
      %1033 = vmatpush2.bf16.msra.mxu0 0
      %1034 = vmatprep.subr.bf16.mxu0 0
      %1035 = vmatpush2.bf16.msra.mxu0 0
      %1036 = vmatprep.mubr.bf16.mxu0 0
      %1037 = vmatmul.mubr.bf16.gmra.mxu0 %v1002
      %v1038 = vpop.f32.mrf.mxu0
      %v1039 = vadd.f32 0.0, %v1038
      %v1040 = vpop.f32.mrf.mxu0
      %v1041 = vpop.f32.mrf.mxu0
      %v1042 = vadd.f32 0.0, %v1041
      %v1043 = vpop.f32.mrf.mxu0
      %1044 = vdwg.mxu0
      %v1047 = vunpack.c.l.b16 %v275
      %v1048 = vunpack.c.l.b16 %v276
      %v1049 = vpack.c.b16 %v1048, %v1047
      %v1052 = vsel %vm760, %v939, 0
      %1054 = vmatprep.subr.bf16.mxu0 0
      %1055 = vmatpush1.bf16.msra.mxu0 0
      %1056 = vmatprep.subr.bf16.mxu0 0
      %1057 = vmatpush1.bf16.msra.mxu0 0
      %1058 = vmatprep.subr.bf16.mxu0 0
      %1059 = vmatpush1.bf16.msra.mxu0 0
      %1060 = vmatprep.subr.bf16.mxu0 0
      %1061 = vmatpush1.bf16.msra.mxu0 0
      %1062 = vmatprep.subr.bf16.mxu0 0
      %1063 = vmatpush1.bf16.msra.mxu0 0
      %1064 = vmatprep.subr.bf16.mxu0 0
      %1065 = vmatpush1.bf16.msra.mxu0 0
      %1066 = vmatprep.subr.bf16.mxu0 0
      %1067 = vmatpush1.bf16.msra.mxu0 0
      %1068 = vmatprep.subr.bf16.mxu0 0
      %1069 = vmatpush1.bf16.msra.mxu0 %v1049
      %1070 = vmatprep.subr.bf16.mxu0 0
      %1071 = vmatpush2.bf16.msra.mxu0 0
      %1072 = vmatprep.subr.bf16.mxu0 0
      %1073 = vmatpush2.bf16.msra.mxu0 0
      %1074 = vmatprep.subr.bf16.mxu0 0
      %1075 = vmatpush2.bf16.msra.mxu0 0
      %1076 = vmatprep.subr.bf16.mxu0 0
      %1077 = vmatpush2.bf16.msra.mxu0 0
      %1078 = vmatprep.subr.bf16.mxu0 0
      %1079 = vmatpush2.bf16.msra.mxu0 0
      %1080 = vmatprep.subr.bf16.mxu0 0
      %1081 = vmatpush2.bf16.msra.mxu0 0
      %1082 = vmatprep.subr.bf16.mxu0 0
      %1083 = vmatpush2.bf16.msra.mxu0 0
      %1084 = vmatprep.subr.bf16.mxu0 0
      %1085 = vmatpush2.bf16.msra.mxu0 0
      %1086 = vmatprep.mubr.bf16.mxu0 0
      %1087 = vmatmul.mubr.bf16.gmra.mxu0 %v1052
      %v1088 = vpop.f32.mrf.mxu0
      %v1089 = vadd.f32 0.0, %v1088
      %v1090 = vpop.f32.mrf.mxu0
      %v1091 = vpop.f32.mrf.mxu0
      %v1092 = vadd.f32 0.0, %v1091
      %v1093 = vpop.f32.mrf.mxu0
      %1094 = vdwg.mxu0
      %v1097 = vunpack.c.l.b16 %v277
      %v1098 = vunpack.c.l.b16 %v278
      %v1099 = vpack.c.b16 %v1098, %v1097
      %v1102 = vsel %vm760, %v940, 0
      %1104 = vmatprep.subr.bf16.mxu0 0
      %1105 = vmatpush1.bf16.msra.mxu0 0
      %1106 = vmatprep.subr.bf16.mxu0 0
      %1107 = vmatpush1.bf16.msra.mxu0 0
      %1108 = vmatprep.subr.bf16.mxu0 0
      %1109 = vmatpush1.bf16.msra.mxu0 0
      %1110 = vmatprep.subr.bf16.mxu0 0
      %1111 = vmatpush1.bf16.msra.mxu0 0
      %1112 = vmatprep.subr.bf16.mxu0 0
      %1113 = vmatpush1.bf16.msra.mxu0 0
      %1114 = vmatprep.subr.bf16.mxu0 0
      %1115 = vmatpush1.bf16.msra.mxu0 0
      %1116 = vmatprep.subr.bf16.mxu0 0
      %1117 = vmatpush1.bf16.msra.mxu0 0
      %1118 = vmatprep.subr.bf16.mxu0 0
      %1119 = vmatpush1.bf16.msra.mxu0 %v1099
      %1120 = vmatprep.subr.bf16.mxu0 0
      %1121 = vmatpush2.bf16.msra.mxu0 0
      %1122 = vmatprep.subr.bf16.mxu0 0
      %1123 = vmatpush2.bf16.msra.mxu0 0
      %1124 = vmatprep.subr.bf16.mxu0 0
      %1125 = vmatpush2.bf16.msra.mxu0 0
      %1126 = vmatprep.subr.bf16.mxu0 0
      %1127 = vmatpush2.bf16.msra.mxu0 0
      %1128 = vmatprep.subr.bf16.mxu0 0
      %1129 = vmatpush2.bf16.msra.mxu0 0
      %1130 = vmatprep.subr.bf16.mxu0 0
      %1131 = vmatpush2.bf16.msra.mxu0 0
      %1132 = vmatprep.subr.bf16.mxu0 0
      %1133 = vmatpush2.bf16.msra.mxu0 0
      %1134 = vmatprep.subr.bf16.mxu0 0
      %1135 = vmatpush2.bf16.msra.mxu0 0
      %1136 = vmatprep.mubr.bf16.mxu0 0
      %1137 = vmatmul.mubr.bf16.gmra.mxu0 %v1102
      %v1138 = vpop.f32.mrf.mxu0
      %v1139 = vadd.f32 0.0, %v1138
      %v1140 = vpop.f32.mrf.mxu0
      %v1141 = vpop.f32.mrf.mxu0
      %v1142 = vadd.f32 0.0, %v1141
      %v1143 = vpop.f32.mrf.mxu0
      %1144 = vdwg.mxu0
      %v1147 = vunpack.c.l.b16 %v279
      %v1148 = vunpack.c.l.b16 %v280
      %v1149 = vpack.c.b16 %v1148, %v1147
      %v1152 = vsel %vm760, %v941, 0
      %1154 = vmatprep.subr.bf16.mxu0 0
      %1155 = vmatpush1.bf16.msra.mxu0 0
      %1156 = vmatprep.subr.bf16.mxu0 0
      %1157 = vmatpush1.bf16.msra.mxu0 0
      %1158 = vmatprep.subr.bf16.mxu0 0
      %1159 = vmatpush1.bf16.msra.mxu0 0
      %1160 = vmatprep.subr.bf16.mxu0 0
      %1161 = vmatpush1.bf16.msra.mxu0 0
      %1162 = vmatprep.subr.bf16.mxu0 0
      %1163 = vmatpush1.bf16.msra.mxu0 0
      %1164 = vmatprep.subr.bf16.mxu0 0
      %1165 = vmatpush1.bf16.msra.mxu0 0
      %1166 = vmatprep.subr.bf16.mxu0 0
      %1167 = vmatpush1.bf16.msra.mxu0 0
      %1168 = vmatprep.subr.bf16.mxu0 0
      %1169 = vmatpush1.bf16.msra.mxu0 %v1149
      %1170 = vmatprep.subr.bf16.mxu0 0
      %1171 = vmatpush2.bf16.msra.mxu0 0
      %1172 = vmatprep.subr.bf16.mxu0 0
      %1173 = vmatpush2.bf16.msra.mxu0 0
      %1174 = vmatprep.subr.bf16.mxu0 0
      %1175 = vmatpush2.bf16.msra.mxu0 0
      %1176 = vmatprep.subr.bf16.mxu0 0
      %1177 = vmatpush2.bf16.msra.mxu0 0
      %1178 = vmatprep.subr.bf16.mxu0 0
      %1179 = vmatpush2.bf16.msra.mxu0 0
      %1180 = vmatprep.subr.bf16.mxu0 0
      %1181 = vmatpush2.bf16.msra.mxu0 0
      %1182 = vmatprep.subr.bf16.mxu0 0
      %1183 = vmatpush2.bf16.msra.mxu0 0
      %1184 = vmatprep.subr.bf16.mxu0 0
      %1185 = vmatpush2.bf16.msra.mxu0 0
      %1186 = vmatprep.mubr.bf16.mxu0 0
      %1187 = vmatmul.mubr.bf16.gmra.mxu0 %v1152
      %v1188 = vpop.f32.mrf.mxu0
      %v1189 = vadd.f32 0.0, %v1188
      %v1190 = vpop.f32.mrf.mxu0
      %v1191 = vpop.f32.mrf.mxu0
      %v1192 = vadd.f32 0.0, %v1191
      %v1193 = vpop.f32.mrf.mxu0
      %1194 = vdwg.mxu0
      %v1197 = vunpack.c.l.b16 %v281
      %v1198 = vunpack.c.l.b16 %v282
      %v1199 = vpack.c.b16 %v1198, %v1197
      %v1202 = vsel %vm760, %v942, 0
      %1204 = vmatprep.subr.bf16.mxu0 0
      %1205 = vmatpush1.bf16.msra.mxu0 0
      %1206 = vmatprep.subr.bf16.mxu0 0
      %1207 = vmatpush1.bf16.msra.mxu0 0
      %1208 = vmatprep.subr.bf16.mxu0 0
      %1209 = vmatpush1.bf16.msra.mxu0 0
      %1210 = vmatprep.subr.bf16.mxu0 0
      %1211 = vmatpush1.bf16.msra.mxu0 0
      %1212 = vmatprep.subr.bf16.mxu0 0
      %1213 = vmatpush1.bf16.msra.mxu0 0
      %1214 = vmatprep.subr.bf16.mxu0 0
      %1215 = vmatpush1.bf16.msra.mxu0 0
      %1216 = vmatprep.subr.bf16.mxu0 0
      %1217 = vmatpush1.bf16.msra.mxu0 0
      %1218 = vmatprep.subr.bf16.mxu0 0
      %1219 = vmatpush1.bf16.msra.mxu0 %v1199
      %1220 = vmatprep.subr.bf16.mxu0 0
      %1221 = vmatpush2.bf16.msra.mxu0 0
      %1222 = vmatprep.subr.bf16.mxu0 0
      %1223 = vmatpush2.bf16.msra.mxu0 0
      %1224 = vmatprep.subr.bf16.mxu0 0
      %1225 = vmatpush2.bf16.msra.mxu0 0
      %1226 = vmatprep.subr.bf16.mxu0 0
      %1227 = vmatpush2.bf16.msra.mxu0 0
      %1228 = vmatprep.subr.bf16.mxu0 0
      %1229 = vmatpush2.bf16.msra.mxu0 0
      %1230 = vmatprep.subr.bf16.mxu0 0
      %1231 = vmatpush2.bf16.msra.mxu0 0
      %1232 = vmatprep.subr.bf16.mxu0 0
      %1233 = vmatpush2.bf16.msra.mxu0 0
      %1234 = vmatprep.subr.bf16.mxu0 0
      %1235 = vmatpush2.bf16.msra.mxu0 0
      %1236 = vmatprep.mubr.bf16.mxu0 0
      %1237 = vmatmul.mubr.bf16.gmra.mxu0 %v1202
      %v1238 = vpop.f32.mrf.mxu0
      %v1239 = vadd.f32 0.0, %v1238
      %v1240 = vpop.f32.mrf.mxu0
      %v1241 = vpop.f32.mrf.mxu0
      %v1242 = vadd.f32 0.0, %v1241
      %v1243 = vpop.f32.mrf.mxu0
      %1244 = vdwg.mxu0
      %v1247 = vunpack.c.l.b16 %v283
      %v1248 = vunpack.c.l.b16 %v284
      %v1249 = vpack.c.b16 %v1248, %v1247
      %v1252 = vsel %vm760, %v943, 0
      %1254 = vmatprep.subr.bf16.mxu0 0
      %1255 = vmatpush1.bf16.msra.mxu0 0
      %1256 = vmatprep.subr.bf16.mxu0 0
      %1257 = vmatpush1.bf16.msra.mxu0 0
      %1258 = vmatprep.subr.bf16.mxu0 0
      %1259 = vmatpush1.bf16.msra.mxu0 0
      %1260 = vmatprep.subr.bf16.mxu0 0
      %1261 = vmatpush1.bf16.msra.mxu0 0
      %1262 = vmatprep.subr.bf16.mxu0 0
      %1263 = vmatpush1.bf16.msra.mxu0 0
      %1264 = vmatprep.subr.bf16.mxu0 0
      %1265 = vmatpush1.bf16.msra.mxu0 0
      %1266 = vmatprep.subr.bf16.mxu0 0
      %1267 = vmatpush1.bf16.msra.mxu0 0
      %1268 = vmatprep.subr.bf16.mxu0 0
      %1269 = vmatpush1.bf16.msra.mxu0 %v1249
      %1270 = vmatprep.subr.bf16.mxu0 0
      %1271 = vmatpush2.bf16.msra.mxu0 0
      %1272 = vmatprep.subr.bf16.mxu0 0
      %1273 = vmatpush2.bf16.msra.mxu0 0
      %1274 = vmatprep.subr.bf16.mxu0 0
      %1275 = vmatpush2.bf16.msra.mxu0 0
      %1276 = vmatprep.subr.bf16.mxu0 0
      %1277 = vmatpush2.bf16.msra.mxu0 0
      %1278 = vmatprep.subr.bf16.mxu0 0
      %1279 = vmatpush2.bf16.msra.mxu0 0
      %1280 = vmatprep.subr.bf16.mxu0 0
      %1281 = vmatpush2.bf16.msra.mxu0 0
      %1282 = vmatprep.subr.bf16.mxu0 0
      %1283 = vmatpush2.bf16.msra.mxu0 0
      %1284 = vmatprep.subr.bf16.mxu0 0
      %1285 = vmatpush2.bf16.msra.mxu0 0
      %1286 = vmatprep.mubr.bf16.mxu0 0
      %1287 = vmatmul.mubr.bf16.gmra.mxu0 %v1252
      %v1288 = vpop.f32.mrf.mxu0
      %v1289 = vadd.f32 0.0, %v1288
      %v1290 = vpop.f32.mrf.mxu0
      %v1291 = vpop.f32.mrf.mxu0
      %v1292 = vadd.f32 0.0, %v1291
      %v1293 = vpop.f32.mrf.mxu0
      %1294 = vdwg.mxu0
      %v1297 = vunpack.c.l.b16 %v285
      %v1298 = vunpack.c.l.b16 %v286
      %v1299 = vpack.c.b16 %v1298, %v1297
      %v1302 = vsel %vm760, %v944, 0
      %1304 = vmatprep.subr.bf16.mxu0 0
      %1305 = vmatpush1.bf16.msra.mxu0 0
      %1306 = vmatprep.subr.bf16.mxu0 0
      %1307 = vmatpush1.bf16.msra.mxu0 0
      %1308 = vmatprep.subr.bf16.mxu0 0
      %1309 = vmatpush1.bf16.msra.mxu0 0
      %1310 = vmatprep.subr.bf16.mxu0 0
      %1311 = vmatpush1.bf16.msra.mxu0 0
      %1312 = vmatprep.subr.bf16.mxu0 0
      %1313 = vmatpush1.bf16.msra.mxu0 0
      %1314 = vmatprep.subr.bf16.mxu0 0
      %1315 = vmatpush1.bf16.msra.mxu0 0
      %1316 = vmatprep.subr.bf16.mxu0 0
      %1317 = vmatpush1.bf16.msra.mxu0 0
      %1318 = vmatprep.subr.bf16.mxu0 0
      %1319 = vmatpush1.bf16.msra.mxu0 %v1299
      %1320 = vmatprep.subr.bf16.mxu0 0
      %1321 = vmatpush2.bf16.msra.mxu0 0
      %1322 = vmatprep.subr.bf16.mxu0 0
      %1323 = vmatpush2.bf16.msra.mxu0 0
      %1324 = vmatprep.subr.bf16.mxu0 0
      %1325 = vmatpush2.bf16.msra.mxu0 0
      %1326 = vmatprep.subr.bf16.mxu0 0
      %1327 = vmatpush2.bf16.msra.mxu0 0
      %1328 = vmatprep.subr.bf16.mxu0 0
      %1329 = vmatpush2.bf16.msra.mxu0 0
      %1330 = vmatprep.subr.bf16.mxu0 0
      %1331 = vmatpush2.bf16.msra.mxu0 0
      %1332 = vmatprep.subr.bf16.mxu0 0
      %1333 = vmatpush2.bf16.msra.mxu0 0
      %1334 = vmatprep.subr.bf16.mxu0 0
      %1335 = vmatpush2.bf16.msra.mxu0 0
      %1336 = vmatprep.mubr.bf16.mxu0 0
      %1337 = vmatmul.mubr.bf16.gmra.mxu0 %v1302
      %v1338 = vpop.f32.mrf.mxu0
      %v1339 = vadd.f32 0.0, %v1338
      %v1340 = vpop.f32.mrf.mxu0
      %v1341 = vpop.f32.mrf.mxu0
      %v1342 = vadd.f32 0.0, %v1341
      %v1343 = vpop.f32.mrf.mxu0
      %1344 = vdwg.mxu0
      %v1345 = vpack.c.bf16 %v992, %v989
      %v1346 = vpack.c.bf16 %v1042, %v1039
      %v1347 = vpack.c.bf16 %v1092, %v1089
      %v1348 = vpack.c.bf16 %v1142, %v1139
      %v1349 = vpack.c.bf16 %v1192, %v1189
      %v1350 = vpack.c.bf16 %v1242, %v1239
      %v1351 = vpack.c.bf16 %v1292, %v1289
      %v1352 = vpack.c.bf16 %v1342, %v1339
      %v1361 = vunpack.c.l.b16 %v1345
      %v1362 = vunpack.c.h.b16 %v1345
      %v1363 = vunpack.c.l.b16 %v1346
      %v1364 = vunpack.c.h.b16 %v1346
      %v1365 = vunpack.c.l.b16 %v1347
      %v1366 = vunpack.c.h.b16 %v1347
      %v1367 = vunpack.c.l.b16 %v1348
      %v1368 = vunpack.c.h.b16 %v1348
      %v1369 = vunpack.c.l.b16 %v1349
      %v1370 = vunpack.c.h.b16 %v1349
      %v1371 = vunpack.c.l.b16 %v1350
      %v1372 = vunpack.c.h.b16 %v1350
      %v1373 = vunpack.c.l.b16 %v1351
      %v1374 = vunpack.c.h.b16 %v1351
      %v1375 = vunpack.c.l.b16 %v1352
      %v1376 = vunpack.c.h.b16 %v1352
      %v1377 = vpack.c.b16 %v1361, %v1361
      %v1378 = vpack.c.b16 %v1362, %v1362
      %v1379 = vpack.c.b16 %v1363, %v1363
      %v1380 = vpack.c.b16 %v1364, %v1364
      %v1381 = vpack.c.b16 %v1365, %v1365
      %v1382 = vpack.c.b16 %v1366, %v1366
      %v1383 = vpack.c.b16 %v1367, %v1367
      %v1384 = vpack.c.b16 %v1368, %v1368
      %v1385 = vpack.c.b16 %v1369, %v1369
      %v1386 = vpack.c.b16 %v1370, %v1370
      %v1387 = vpack.c.b16 %v1371, %v1371
      %v1388 = vpack.c.b16 %v1372, %v1372
      %v1389 = vpack.c.b16 %v1373, %v1373
      %v1390 = vpack.c.b16 %v1374, %v1374
      %v1391 = vpack.c.b16 %v1375, %v1375
      %v1392 = vpack.c.b16 %v1376, %v1376
      %vm1409 = vcmask 60416
      %1410 = vst.msk [vmem:[%s237] sm:$0xf] %vm1409, %v1377
      %1411 = vst.msk [vmem:[%s237 + $0x4] sm:$0xf] %vm1409, %v1378
      %1412 = vst.msk [vmem:[%s237 + $0x8] sm:$0xf] %vm1409, %v1379
      %1413 = vst.msk [vmem:[%s237 + $0xc] sm:$0xf] %vm1409, %v1380
      %1414 = vst.msk [vmem:[%s237 + $0x10] sm:$0xf] %vm1409, %v1381
      %1415 = vst.msk [vmem:[%s237 + $0x14] sm:$0xf] %vm1409, %v1382
      %1416 = vst.msk [vmem:[%s237 + $0x18] sm:$0xf] %vm1409, %v1383
      %1417 = vst.msk [vmem:[%s237 + $0x1c] sm:$0xf] %vm1409, %v1384
      %1418 = vst.msk [vmem:[%s237 + $0x20] sm:$0xf] %vm1409, %v1385
      %1419 = vst.msk [vmem:[%s237 + $0x24] sm:$0xf] %vm1409, %v1386
      %1420 = vst.msk [vmem:[%s237 + $0x28] sm:$0xf] %vm1409, %v1387
      %1421 = vst.msk [vmem:[%s237 + $0x2c] sm:$0xf] %vm1409, %v1388
      %1422 = vst.msk [vmem:[%s237 + $0x30] sm:$0xf] %vm1409, %v1389
      %1423 = vst.msk [vmem:[%s237 + $0x34] sm:$0xf] %vm1409, %v1390
      %1424 = vst.msk [vmem:[%s237 + $0x38] sm:$0xf] %vm1409, %v1391
      %1425 = vst.msk [vmem:[%s237 + $0x3c] sm:$0xf] %vm1409, %v1392
      %p1426 = scmp.lt.s32.totalorder %s15, 1
      %s1427 = scalar_select %p1426, %s15, 1
      %s1428 = smul.addr %s1427, 16
      %s1429 = smul.addr %s1428, 4
      %s1430 = scalar_lea.vmem %s4, %s1429
      // Predicated region
      $region37: #{_lambda_.22} parent=35 // pred_check
        %p1431 = pneg %p132
      $region38: #{_lambda_.22} parent=35 // pred_check_branch
        %1433 = sbr.rel (%p1431) target = $region40
      $region39: #{_lambda_.22} parent=35 // pred_region
        _
      $region40: #{_lambda_.22} parent=35 // pred_fallthru
        _
    $region36: #{_lambda_.22} parent=5 // pred_fallthru
      _
    %p1434 = scmp.le.s32.totalorder 2, %s10
    // Predicated region
    $region41: #{_lambda_.22} parent=5 // pred_check
      %p1435 = pneg %p1434
    $region42: #{_lambda_.22} parent=5 // pred_check_branch
      %1437 = sbr.rel (%p1435) target = $region44
    $region43: #{_lambda_.22} parent=5 // pred_region
      %s1438 = ssub.s32 %s10, 2
      // Predicated region
      $region45: #{_lambda_.22} parent=43 // pred_check
        %p1439 = pneg %p138
      $region46: #{_lambda_.22} parent=43 // pred_check_branch
        %1441 = sbr.rel (%p1439) target = $region48
      $region47: #{_lambda_.22} parent=43 // pred_region
        %p1442 = scmp.lt.s32.totalorder %s16, 1
        %s1443 = scalar_select %p1442, %s16, 1
        %s1444 = smul.addr %s1443, 16
        %s1445 = smul.addr %s1444, 4
        %s1446 = scalar_lea.vmem %s4, %s1445
      $region48: #{_lambda_.22} parent=43 // pred_fallthru
        _
    $region44: #{_lambda_.22} parent=5 // pred_fallthru
      _
  $region6: #{_lambda_.22} parent=0 // loop_footer
    %s14 = sadd.s32 1, %s10
  $region7: #{_lambda_.22} parent=0 // loop_footer_branch
    %9 = sbr.rel target = $region3
  $region8: #{_lambda_.22} parent=0 // loop_exit
    _

// kernel: _lambda_.29
$region0: #{_lambda_.29}
  #allocation0 [shape = 'u32[]', space=smem, size = 0x4, offset = 0x4, fixed_abs, tag = 'smem constant byte address 0x4 - core index']
  #allocation1 [shape = 'u32[144,128]{1,0:T(1,128)}', space=vmem, size = 0x12000, scoped, tag = 'internal scratch']
  %s0 = inlined_call_operand.vmem [shape: f32[32,64], index: 0, kind: input, shape index: {}]
  %s1 = inlined_call_operand.vmem [shape: f32[1,64], index: 1, kind: input, shape index: {}]
  %s2 = inlined_call_operand.vmem [shape: f32[1,64], index: 2, kind: input, shape index: {}]
  %s3 = inlined_call_operand.vmem [shape: bf16[64,32], index: 3, kind: input, shape index: {}]
  %s4 = inlined_call_operand.vmem [shape: f32[1,32], index: 4, kind: input, shape index: {}]
  %s5 = inlined_call_operand.vmem [shape: f32[32,32], index: 5, kind: output, shape index: {}]
  %s6 = sld [smem:[#allocation0]]
  $region53: #{_lambda_.29} parent=0
    _
  %s8 = ssub.s32 1, %s6
  %s9 = scalar_select 0, %s8, %s6
  loop: start=0, step=1, limit=4
  $region2: #{_lambda_.29} parent=0 // loop_pre_header
    _
  $region3: #{_lambda_.29} parent=0 // loop_header
    %s11 = sphi 0, %s15
    %p12 = scmp.ge.s32.totalorder %s11, 4
    %s21 = sphi 0, %s23
    %s24 = sphi 0, %s21
    %s25 = sphi 0, %s24
    %s41 = sphi 0, %s25
    %s45 = sphi 0, %s45
    %s47 = sphi 0, %s45
    %s48 = sphi 0, %s47
    %s62 = sphi 0, %s48
    %s66 = sphi 0, %s66
    %s68 = sphi 0, %s66
    %s69 = sphi 0, %s68
    %s83 = sphi 0, %s69
    %s87 = sphi 0, %s87
    %s89 = sphi 0, %s87
    %s90 = sphi 0, %s89
    %s104 = sphi 0, %s90
    %s108 = sphi 0, %s108
    %s110 = sphi 0, %s108
    %s111 = sphi 0, %s110
    %s125 = sphi 0, %s111
    %s131 = sphi 0, %s133
    %s134 = sphi 0, %s131
    %s135 = sphi 0, %s134
    %s151 = sphi 0, %s135
  $region4: #{_lambda_.29} parent=0 // loop_header_branch
    %14 = sbr.rel (%p12) target = $region8
  $region5: #{_lambda_.29} parent=0 // loop_body
    %s16 = ssub.s32 %s11, 1
    %s17 = ssub.s32 %s11, 2
    %s18 = sadd.s32 %s11, 1
    %s19 = ssub.s32 %s11, %s18
    %p20 = scmp.eq.s32.totalorder %s19, 0
    %s22 = sadd.s32 %s21, 1
    %s23 = scalar_select %p20, %s21, %s22
    %p26 = pneg %p20
    %p27 = scmp.eq.s32.totalorder %s11, 1
    %p28 = por %p26, %p27
    %p29 = scmp.ne.s32.totalorder %s21, %s24
    %p30 = scmp.eq.s32.totalorder %s11, 0
    %p31 = por %p29, %p30
    %p32 = scmp.ne.s32.totalorder %s21, %s24
    %p33 = scmp.eq.s32.totalorder %s16, 1
    %p34 = por %p32, %p33
    %p35 = scmp.ne.s32.totalorder %s24, %s25
    %p36 = scmp.eq.s32.totalorder %s16, 0
    %p37 = por %p35, %p36
    %p38 = scmp.ne.s32.totalorder %s24, %s25
    %p39 = scmp.eq.s32.totalorder %s17, 1
    %p40 = por %p38, %p39
    %p42 = scmp.ne.s32.totalorder %s25, %s41
    %p43 = scmp.eq.s32.totalorder %s17, 0
    %p44 = por %p42, %p43
    %s46 = sadd.s32 %s45, 1
    %p49 = scmp.eq.s32.totalorder %s11, 1
    %p50 = scmp.ne.s32.totalorder %s45, %s47
    %p51 = scmp.eq.s32.totalorder %s11, 0
    %p52 = por %p50, %p51
    %p53 = scmp.ne.s32.totalorder %s45, %s47
    %p54 = scmp.eq.s32.totalorder %s16, 1
    %p55 = por %p53, %p54
    %p56 = scmp.ne.s32.totalorder %s47, %s48
    %p57 = scmp.eq.s32.totalorder %s16, 0
    %p58 = por %p56, %p57
    %p59 = scmp.ne.s32.totalorder %s47, %s48
    %p60 = scmp.eq.s32.totalorder %s17, 1
    %p61 = por %p59, %p60
    %p63 = scmp.ne.s32.totalorder %s48, %s62
    %p64 = scmp.eq.s32.totalorder %s17, 0
    %p65 = por %p63, %p64
    %s67 = sadd.s32 %s66, 1
    %p70 = scmp.eq.s32.totalorder %s11, 1
    %p71 = scmp.ne.s32.totalorder %s66, %s68
    %p72 = scmp.eq.s32.totalorder %s11, 0
    %p73 = por %p71, %p72
    %p74 = scmp.ne.s32.totalorder %s66, %s68
    %p75 = scmp.eq.s32.totalorder %s16, 1
    %p76 = por %p74, %p75
    %p77 = scmp.ne.s32.totalorder %s68, %s69
    %p78 = scmp.eq.s32.totalorder %s16, 0
    %p79 = por %p77, %p78
    %p80 = scmp.ne.s32.totalorder %s68, %s69
    %p81 = scmp.eq.s32.totalorder %s17, 1
    %p82 = por %p80, %p81
    %p84 = scmp.ne.s32.totalorder %s69, %s83
    %p85 = scmp.eq.s32.totalorder %s17, 0
    %p86 = por %p84, %p85
    %s88 = sadd.s32 %s87, 1
    %p91 = scmp.eq.s32.totalorder %s11, 1
    %p92 = scmp.ne.s32.totalorder %s87, %s89
    %p93 = scmp.eq.s32.totalorder %s11, 0
    %p94 = por %p92, %p93
    %p95 = scmp.ne.s32.totalorder %s87, %s89
    %p96 = scmp.eq.s32.totalorder %s16, 1
    %p97 = por %p95, %p96
    %p98 = scmp.ne.s32.totalorder %s89, %s90
    %p99 = scmp.eq.s32.totalorder %s16, 0
    %p100 = por %p98, %p99
    %p101 = scmp.ne.s32.totalorder %s89, %s90
    %p102 = scmp.eq.s32.totalorder %s17, 1
    %p103 = por %p101, %p102
    %p105 = scmp.ne.s32.totalorder %s90, %s104
    %p106 = scmp.eq.s32.totalorder %s17, 0
    %p107 = por %p105, %p106
    %s109 = sadd.s32 %s108, 1
    %p112 = scmp.eq.s32.totalorder %s11, 1
    %p113 = scmp.ne.s32.totalorder %s108, %s110
    %p114 = scmp.eq.s32.totalorder %s11, 0
    %p115 = por %p113, %p114
    %p116 = scmp.ne.s32.totalorder %s108, %s110
    %p117 = scmp.eq.s32.totalorder %s16, 1
    %p118 = por %p116, %p117
    %p119 = scmp.ne.s32.totalorder %s110, %s111
    %p120 = scmp.eq.s32.totalorder %s16, 0
    %p121 = por %p119, %p120
    %p122 = scmp.ne.s32.totalorder %s110, %s111
    %p123 = scmp.eq.s32.totalorder %s17, 1
    %p124 = por %p122, %p123
    %p126 = scmp.ne.s32.totalorder %s111, %s125
    %p127 = scmp.eq.s32.totalorder %s17, 0
    %p128 = por %p126, %p127
    %s129 = ssub.s32 %s11, %s18
    %p130 = scmp.eq.s32.totalorder %s129, 0
    %s132 = sadd.s32 %s131, 1
    %s133 = scalar_select %p130, %s131, %s132
    %p136 = pneg %p130
    %p137 = scmp.eq.s32.totalorder %s11, 1
    %p138 = por %p136, %p137
    %p139 = scmp.ne.s32.totalorder %s131, %s134
    %p140 = scmp.eq.s32.totalorder %s11, 0
    %p141 = por %p139, %p140
    %p142 = scmp.ne.s32.totalorder %s131, %s134
    %p143 = scmp.eq.s32.totalorder %s16, 1
    %p144 = por %p142, %p143
    %p145 = scmp.ne.s32.totalorder %s134, %s135
    %p146 = scmp.eq.s32.totalorder %s16, 0
    %p147 = por %p145, %p146
    %p148 = scmp.ne.s32.totalorder %s134, %s135
    %p149 = scmp.eq.s32.totalorder %s17, 1
    %p150 = por %p148, %p149
    %p152 = scmp.ne.s32.totalorder %s135, %s151
    %p153 = scmp.eq.s32.totalorder %s17, 0
    %p154 = por %p152, %p153
    %p155 = scmp.le.s32.totalorder 1, %s11
    %p156 = scmp.lt.s32.totalorder %s11, 3
    %p157 = pnand %p155, %p156
    %p158 = pneg %p157
    // Predicated region
    $region9: #{_lambda_.29} parent=5 // pred_check
      _
    $region10: #{_lambda_.29} parent=5 // pred_check_branch
      %160 = sbr.rel (%p157) target = $region12
    $region11: #{_lambda_.29} parent=5 // pred_region
      %s161 = ssub.s32 %s11, 1
      // Predicated region
      $region13: #{_lambda_.29} parent=11 // pred_check
        %p162 = pneg %p58
      $region14: #{_lambda_.29} parent=11 // pred_check_branch
        %164 = sbr.rel (%p162) target = $region16
      $region15: #{_lambda_.29} parent=11 // pred_region
        _
      $region16: #{_lambda_.29} parent=11 // pred_fallthru
        _
      // Predicated region
      $region17: #{_lambda_.29} parent=11 // pred_check
        %p165 = pneg %p79
      $region18: #{_lambda_.29} parent=11 // pred_check_branch
        %167 = sbr.rel (%p165) target = $region20
      $region19: #{_lambda_.29} parent=11 // pred_region
        _
      $region20: #{_lambda_.29} parent=11 // pred_fallthru
        _
      // Predicated region
      $region21: #{_lambda_.29} parent=11 // pred_check
        %p168 = pneg %p100
      $region22: #{_lambda_.29} parent=11 // pred_check_branch
        %170 = sbr.rel (%p168) target = $region24
      $region23: #{_lambda_.29} parent=11 // pred_region
        _
      $region24: #{_lambda_.29} parent=11 // pred_fallthru
        _
      // Predicated region
      $region25: #{_lambda_.29} parent=11 // pred_check
        %p171 = pneg %p121
      $region26: #{_lambda_.29} parent=11 // pred_check_branch
        %173 = sbr.rel (%p171) target = $region28
      $region27: #{_lambda_.29} parent=11 // pred_region
        _
      $region28: #{_lambda_.29} parent=11 // pred_fallthru
        _
    $region12: #{_lambda_.29} parent=5 // pred_fallthru
      _
    %p174 = scmp.lt.s32.totalorder %s11, 2
    // Predicated region
    $region29: #{_lambda_.29} parent=5 // pred_check
      %p175 = pneg %p174
    $region30: #{_lambda_.29} parent=5 // pred_check_branch
      %177 = sbr.rel (%p175) target = $region32
    $region31: #{_lambda_.29} parent=5 // pred_region
      // Predicated region
      $region33: #{_lambda_.29} parent=31 // pred_check
        %p178 = pneg %p31
      $region34: #{_lambda_.29} parent=31 // pred_check_branch
        %180 = sbr.rel (%p178) target = $region36
      $region35: #{_lambda_.29} parent=31 // pred_region
        %s181 = smul.u32 2, %s11
        %p182 = scmp.lt.s32.totalorder %s181, 3
        %s183 = scalar_select %p182, %s181, 3
        %s184 = smul.addr %s183, 8
        %s185 = scalar_lea.vmem %s0, %s184
        %s186 = smul.u32 2, %s11
      $region36: #{_lambda_.29} parent=31 // pred_fallthru
        _
    $region32: #{_lambda_.29} parent=5 // pred_fallthru
      _
    %p187 = scmp.le.s32.totalorder 1, %s11
    %p188 = scmp.lt.s32.totalorder %s11, 3
    %p189 = pnand %p187, %p188
    %p190 = pneg %p189
    // Predicated region
    $region37: #{_lambda_.29} parent=5 // pred_check
      _
    $region38: #{_lambda_.29} parent=5 // pred_check_branch
      %192 = sbr.rel (%p189) target = $region40
    $region39: #{_lambda_.29} parent=5 // pred_region
      %s193 = ssub.s32 %s11, 1
      %s194 = smul.u32 2, %s16
      %p195 = scmp.lt.s32.totalorder %s194, 3
      %s196 = scalar_select %p195, %s194, 3
      %s197 = smul.addr %s196, 8
      %s198 = scalar_lea.vmem %s0, %s197
      %p199 = pneg %p37
      %p200 = pneg %p34
      %p201 = pneg %p58
      %p202 = pneg %p55
      %p203 = pneg %p79
      %p204 = pneg %p76
      %p205 = pneg %p100
      %p206 = pneg %p97
      %p207 = pneg %p121
      %p208 = pneg %p118
      %p209 = pneg %p147
      %p210 = pneg %p144
      %s211 = smul.u32 2, %s16
      %p212 = scmp.lt.s32.totalorder %s211, 3
      %s213 = scalar_select %p212, %s211, 3
      %s214 = smul.addr %s213, 8
      %s215 = scalar_lea.vmem %s5, %s214
      %s216 = smul.u32 2, %s16
      %p217 = scmp.lt.s32.totalorder %s216, 3
      %s218 = scalar_select %p217, %s216, 3
      %s219 = smul.addr %s218, 8
      %s220 = scalar_lea.vmem %s0, %s219
      %s221 = smul.u32 2, %s16
      %s222 = smul.u32 2, %s16
      %p223 = scmp.lt.s32.totalorder %s222, 3
      %s224 = scalar_select %p223, %s222, 3
      %s225 = smul.addr %s224, 8
      %s226 = scalar_lea.vmem %s5, %s225
      %s227 = smul.u32 2, %s16
      %v229 = vld [vmem:[%s220] sm:$0xff]
      %v230 = vld [vmem:[%s220 + $0x8] sm:$0xff]
      %v231 = vld [vmem:[%s1] sm:$0x1]
      %v232 = vld [vmem:[%s2] sm:$0x1]
      %vm233 = vcmask 523264
      %v234 = vsel %vm233, %v229, 0.0
      %235 = vadd.xlane.f32.xlu0 %v234
      %v236 = vpop.xlane.xlu0 %235
      %v237 = vsel %vm233, %v230, 0.0
      %238 = vadd.xlane.f32.xlu0 %v237
      %v239 = vpop.xlane.xlu0 %238
      %v240 = vrcp.pop 64.0
      %v241 = vmul.f32 %v236, %v240
      %v242 = vmul.f32 %v239, %v240
      %v243 = vsub.f32 %v229, %v241
      %v244 = vsub.f32 %v230, %v242
      %v245 = vmul.f32 %v243, %v243
      %v246 = vmul.f32 %v244, %v244
      %v247 = vsel %vm233, %v245, 0.0
      %248 = vadd.xlane.f32.xlu0 %v247
      %v249 = vpop.xlane.xlu0 %248
      %v250 = vsel %vm233, %v246, 0.0
      %251 = vadd.xlane.f32.xlu0 %v250
      %v252 = vpop.xlane.xlu0 %251
      %v253 = vmul.f32 %v249, %v240
      %v254 = vmul.f32 %v252, %v240
      %v255 = vadd.f32 %v253, 1e-05
      %v256 = vadd.f32 %v254, 1e-05
      %v257 = vrsqrt.pop %v255
      %v258 = vrsqrt.pop %v256
      %v259 = vmul.f32 %v243, %v257
      %v260 = vmul.f32 %v244, %v258
      %v262 = vlaneseq
      %v263 = vshrl.u32 %v262, 7
      %v264 = vsub.s32 0, %v263
      %v265 = vrot.slane %v231, %v264
      %v267 = vmul.f32 %v259, %v265
      %v268 = vmul.f32 %v260, %v265
      %v270 = vlaneseq
      %v271 = vshrl.u32 %v270, 7
      %v272 = vsub.s32 0, %v271
      %v273 = vrot.slane %v232, %v272
      %v275 = vadd.f32 %v267, %v273
      %v276 = vadd.f32 %v268, %v273
      %v277 = vpack.c.bf16 %v276, %v275
      %v278 = vld [vmem:[%s3] sm:$0xf]
      %v279 = vld [vmem:[%s3 + $0x4] sm:$0xf]
      %v280 = vld [vmem:[%s3 + $0x8] sm:$0xf]
      %v281 = vld [vmem:[%s3 + $0xc] sm:$0xf]
      %v282 = vld [vmem:[%s3 + $0x10] sm:$0xf]
      %v283 = vld [vmem:[%s3 + $0x14] sm:$0xf]
      %v284 = vld [vmem:[%s3 + $0x18] sm:$0xf]
      %v285 = vld [vmem:[%s3 + $0x1c] sm:$0xf]
      %v286 = vld [vmem:[%s4] sm:$0x1]
      %v288 = vlaneseq
      %v289 = vshrl.u32 %v288, 7
      %v290 = vsub.s32 0, %v289
      %v291 = vrot.slane %v286, %v290
      %v301 = vunpack.c.l.b16 %v278
      %v302 = vunpack.c.l.b16 %v279
      %v303 = vunpack.c.l.b16 %v280
      %v304 = vunpack.c.l.b16 %v281
      %v305 = vunpack.c.l.b16 %v282
      %v306 = vunpack.c.l.b16 %v283
      %v307 = vunpack.c.l.b16 %v284
      %v308 = vunpack.c.l.b16 %v285
      %v309 = vpack.c.b16 %v302, %v301
      %v310 = vpack.c.b16 %v304, %v303
      %v311 = vpack.c.b16 %v306, %v305
      %v312 = vpack.c.b16 %v308, %v307
      %v318 = vsel %vm233, %v277, 0
      %320 = vmatprep.subr.bf16.mxu0 0
      %321 = vmatpush1.bf16.msra.mxu0 0
      %322 = vmatprep.subr.bf16.mxu0 0
      %323 = vmatpush1.bf16.msra.mxu0 0
      %324 = vmatprep.subr.bf16.mxu0 0
      %325 = vmatpush1.bf16.msra.mxu0 0
      %326 = vmatprep.subr.bf16.mxu0 0
      %327 = vmatpush1.bf16.msra.mxu0 0
      %328 = vmatprep.subr.bf16.mxu0 0
      %329 = vmatpush1.bf16.msra.mxu0 %v312
      %330 = vmatprep.subr.bf16.mxu0 0
      %331 = vmatpush1.bf16.msra.mxu0 %v311
      %332 = vmatprep.subr.bf16.mxu0 0
      %333 = vmatpush1.bf16.msra.mxu0 %v310
      %334 = vmatprep.subr.bf16.mxu0 0
      %335 = vmatpush1.bf16.msra.mxu0 %v309
      %336 = vmatprep.subr.bf16.mxu0 0
      %337 = vmatpush2.bf16.msra.mxu0 0
      %338 = vmatprep.subr.bf16.mxu0 0
      %339 = vmatpush2.bf16.msra.mxu0 0
      %340 = vmatprep.subr.bf16.mxu0 0
      %341 = vmatpush2.bf16.msra.mxu0 0
      %342 = vmatprep.subr.bf16.mxu0 0
      %343 = vmatpush2.bf16.msra.mxu0 0
      %344 = vmatprep.subr.bf16.mxu0 0
      %345 = vmatpush2.bf16.msra.mxu0 0
      %346 = vmatprep.subr.bf16.mxu0 0
      %347 = vmatpush2.bf16.msra.mxu0 0
      %348 = vmatprep.subr.bf16.mxu0 0
      %349 = vmatpush2.bf16.msra.mxu0 0
      %350 = vmatprep.subr.bf16.mxu0 0
      %351 = vmatpush2.bf16.msra.mxu0 0
      %352 = vmatprep.mubr.bf16.mxu0 0
      %353 = vmatmul.mubr.bf16.gmra.mxu0 %v318
      %v354 = vpop.f32.mrf.mxu0
      %v355 = vadd.f32 %v291, %v354
      %v356 = vpop.f32.mrf.mxu0
      %v357 = vpop.f32.mrf.mxu0
      %v358 = vadd.f32 %v291, %v357
      %v359 = vpop.f32.mrf.mxu0
      %360 = vdwg.mxu0
      %vm361 = vcmask 261120
      %362 = vst.msk [vmem:[%s226] sm:$0xff] %vm361, %v355
      %363 = vst.msk [vmem:[%s226 + $0x8] sm:$0xff] %vm361, %v358
      %s364 = smul.u32 2, %s16
      %p365 = scmp.lt.s32.totalorder %s364, 3
      %s366 = scalar_select %p365, %s364, 3
      %s367 = smul.addr %s366, 8
      %s368 = scalar_lea.vmem %s5, %s367
      // Predicated region
      $region41: #{_lambda_.29} parent=39 // pred_check
        %p369 = pneg %p144
      $region42: #{_lambda_.29} parent=39 // pred_check_branch
        %371 = sbr.rel (%p369) target = $region44
      $region43: #{_lambda_.29} parent=39 // pred_region
        %s372 = smul.u32 2, %s16
      $region44: #{_lambda_.29} parent=39 // pred_fallthru
        _
    $region40: #{_lambda_.29} parent=5 // pred_fallthru
      _
    %p373 = scmp.le.s32.totalorder 2, %s11
    // Predicated region
    $region45: #{_lambda_.29} parent=5 // pred_check
      %p374 = pneg %p373
    $region46: #{_lambda_.29} parent=5 // pred_check_branch
      %376 = sbr.rel (%p374) target = $region48
    $region47: #{_lambda_.29} parent=5 // pred_region
      %s377 = ssub.s32 %s11, 2
      // Predicated region
      $region49: #{_lambda_.29} parent=47 // pred_check
        %p378 = pneg %p150
      $region50: #{_lambda_.29} parent=47 // pred_check_branch
        %380 = sbr.rel (%p378) target = $region52
      $region51: #{_lambda_.29} parent=47 // pred_region
        %s381 = smul.u32 2, %s17
        %p382 = scmp.lt.s32.totalorder %s381, 3
        %s383 = scalar_select %p382, %s381, 3
        %s384 = smul.addr %s383, 8
        %s385 = scalar_lea.vmem %s5, %s384
      $region52: #{_lambda_.29} parent=47 // pred_fallthru
        _
    $region48: #{_lambda_.29} parent=5 // pred_fallthru
      _
  $region6: #{_lambda_.29} parent=0 // loop_footer
    %s15 = sadd.s32 1, %s11
  $region7: #{_lambda_.29} parent=0 // loop_footer_branch
    %10 = sbr.rel target = $region3
  $region8: #{_lambda_.29} parent=0 // loop_exit
    _

// kernel: _lambda_.30
$region0: #{_lambda_.30}
  #allocation0 [shape = 'u32[]', space=smem, size = 0x4, offset = 0x4, fixed_abs, tag = 'smem constant byte address 0x4 - core index']
  #allocation1 [shape = 'u32[144,128]{1,0:T(1,128)}', space=vmem, size = 0x12000, scoped, tag = 'internal scratch']
  %s0 = inlined_call_operand.vmem [shape: f32[32,32], index: 0, kind: input, shape index: {}]
  %s1 = inlined_call_operand.vmem [shape: f32[1,32], index: 1, kind: input, shape index: {}]
  %s2 = inlined_call_operand.vmem [shape: f32[1,32], index: 2, kind: input, shape index: {}]
  %s3 = inlined_call_operand.vmem [shape: bf16[32,96], index: 3, kind: input, shape index: {}]
  %s4 = inlined_call_operand.vmem [shape: f32[1,96], index: 4, kind: input, shape index: {}]
  %s5 = inlined_call_operand.vmem [shape: bf16[32,96], index: 5, kind: output, shape index: {}]
  %s6 = sld [smem:[#allocation0]]
  $region53: #{_lambda_.30} parent=0
    _
  %s8 = ssub.s32 1, %s6
  %s9 = scalar_select 0, %s8, %s6
  loop: start=0, step=1, limit=4
  $region2: #{_lambda_.30} parent=0 // loop_pre_header
    _
  $region3: #{_lambda_.30} parent=0 // loop_header
    %s11 = sphi 0, %s15
    %p12 = scmp.ge.s32.totalorder %s11, 4
    %s21 = sphi 0, %s23
    %s24 = sphi 0, %s21
    %s25 = sphi 0, %s24
    %s41 = sphi 0, %s25
    %s45 = sphi 0, %s45
    %s47 = sphi 0, %s45
    %s48 = sphi 0, %s47
    %s62 = sphi 0, %s48
    %s66 = sphi 0, %s66
    %s68 = sphi 0, %s66
    %s69 = sphi 0, %s68
    %s83 = sphi 0, %s69
    %s87 = sphi 0, %s87
    %s89 = sphi 0, %s87
    %s90 = sphi 0, %s89
    %s104 = sphi 0, %s90
    %s108 = sphi 0, %s108
    %s110 = sphi 0, %s108
    %s111 = sphi 0, %s110
    %s125 = sphi 0, %s111
    %s131 = sphi 0, %s133
    %s134 = sphi 0, %s131
    %s135 = sphi 0, %s134
    %s151 = sphi 0, %s135
  $region4: #{_lambda_.30} parent=0 // loop_header_branch
    %14 = sbr.rel (%p12) target = $region8
  $region5: #{_lambda_.30} parent=0 // loop_body
    %s16 = ssub.s32 %s11, 1
    %s17 = ssub.s32 %s11, 2
    %s18 = sadd.s32 %s11, 1
    %s19 = ssub.s32 %s11, %s18
    %p20 = scmp.eq.s32.totalorder %s19, 0
    %s22 = sadd.s32 %s21, 1
    %s23 = scalar_select %p20, %s21, %s22
    %p26 = pneg %p20
    %p27 = scmp.eq.s32.totalorder %s11, 1
    %p28 = por %p26, %p27
    %p29 = scmp.ne.s32.totalorder %s21, %s24
    %p30 = scmp.eq.s32.totalorder %s11, 0
    %p31 = por %p29, %p30
    %p32 = scmp.ne.s32.totalorder %s21, %s24
    %p33 = scmp.eq.s32.totalorder %s16, 1
    %p34 = por %p32, %p33
    %p35 = scmp.ne.s32.totalorder %s24, %s25
    %p36 = scmp.eq.s32.totalorder %s16, 0
    %p37 = por %p35, %p36
    %p38 = scmp.ne.s32.totalorder %s24, %s25
    %p39 = scmp.eq.s32.totalorder %s17, 1
    %p40 = por %p38, %p39
    %p42 = scmp.ne.s32.totalorder %s25, %s41
    %p43 = scmp.eq.s32.totalorder %s17, 0
    %p44 = por %p42, %p43
    %s46 = sadd.s32 %s45, 1
    %p49 = scmp.eq.s32.totalorder %s11, 1
    %p50 = scmp.ne.s32.totalorder %s45, %s47
    %p51 = scmp.eq.s32.totalorder %s11, 0
    %p52 = por %p50, %p51
    %p53 = scmp.ne.s32.totalorder %s45, %s47
    %p54 = scmp.eq.s32.totalorder %s16, 1
    %p55 = por %p53, %p54
    %p56 = scmp.ne.s32.totalorder %s47, %s48
    %p57 = scmp.eq.s32.totalorder %s16, 0
    %p58 = por %p56, %p57
    %p59 = scmp.ne.s32.totalorder %s47, %s48
    %p60 = scmp.eq.s32.totalorder %s17, 1
    %p61 = por %p59, %p60
    %p63 = scmp.ne.s32.totalorder %s48, %s62
    %p64 = scmp.eq.s32.totalorder %s17, 0
    %p65 = por %p63, %p64
    %s67 = sadd.s32 %s66, 1
    %p70 = scmp.eq.s32.totalorder %s11, 1
    %p71 = scmp.ne.s32.totalorder %s66, %s68
    %p72 = scmp.eq.s32.totalorder %s11, 0
    %p73 = por %p71, %p72
    %p74 = scmp.ne.s32.totalorder %s66, %s68
    %p75 = scmp.eq.s32.totalorder %s16, 1
    %p76 = por %p74, %p75
    %p77 = scmp.ne.s32.totalorder %s68, %s69
    %p78 = scmp.eq.s32.totalorder %s16, 0
    %p79 = por %p77, %p78
    %p80 = scmp.ne.s32.totalorder %s68, %s69
    %p81 = scmp.eq.s32.totalorder %s17, 1
    %p82 = por %p80, %p81
    %p84 = scmp.ne.s32.totalorder %s69, %s83
    %p85 = scmp.eq.s32.totalorder %s17, 0
    %p86 = por %p84, %p85
    %s88 = sadd.s32 %s87, 1
    %p91 = scmp.eq.s32.totalorder %s11, 1
    %p92 = scmp.ne.s32.totalorder %s87, %s89
    %p93 = scmp.eq.s32.totalorder %s11, 0
    %p94 = por %p92, %p93
    %p95 = scmp.ne.s32.totalorder %s87, %s89
    %p96 = scmp.eq.s32.totalorder %s16, 1
    %p97 = por %p95, %p96
    %p98 = scmp.ne.s32.totalorder %s89, %s90
    %p99 = scmp.eq.s32.totalorder %s16, 0
    %p100 = por %p98, %p99
    %p101 = scmp.ne.s32.totalorder %s89, %s90
    %p102 = scmp.eq.s32.totalorder %s17, 1
    %p103 = por %p101, %p102
    %p105 = scmp.ne.s32.totalorder %s90, %s104
    %p106 = scmp.eq.s32.totalorder %s17, 0
    %p107 = por %p105, %p106
    %s109 = sadd.s32 %s108, 1
    %p112 = scmp.eq.s32.totalorder %s11, 1
    %p113 = scmp.ne.s32.totalorder %s108, %s110
    %p114 = scmp.eq.s32.totalorder %s11, 0
    %p115 = por %p113, %p114
    %p116 = scmp.ne.s32.totalorder %s108, %s110
    %p117 = scmp.eq.s32.totalorder %s16, 1
    %p118 = por %p116, %p117
    %p119 = scmp.ne.s32.totalorder %s110, %s111
    %p120 = scmp.eq.s32.totalorder %s16, 0
    %p121 = por %p119, %p120
    %p122 = scmp.ne.s32.totalorder %s110, %s111
    %p123 = scmp.eq.s32.totalorder %s17, 1
    %p124 = por %p122, %p123
    %p126 = scmp.ne.s32.totalorder %s111, %s125
    %p127 = scmp.eq.s32.totalorder %s17, 0
    %p128 = por %p126, %p127
    %s129 = ssub.s32 %s11, %s18
    %p130 = scmp.eq.s32.totalorder %s129, 0
    %s132 = sadd.s32 %s131, 1
    %s133 = scalar_select %p130, %s131, %s132
    %p136 = pneg %p130
    %p137 = scmp.eq.s32.totalorder %s11, 1
    %p138 = por %p136, %p137
    %p139 = scmp.ne.s32.totalorder %s131, %s134
    %p140 = scmp.eq.s32.totalorder %s11, 0
    %p141 = por %p139, %p140
    %p142 = scmp.ne.s32.totalorder %s131, %s134
    %p143 = scmp.eq.s32.totalorder %s16, 1
    %p144 = por %p142, %p143
    %p145 = scmp.ne.s32.totalorder %s134, %s135
    %p146 = scmp.eq.s32.totalorder %s16, 0
    %p147 = por %p145, %p146
    %p148 = scmp.ne.s32.totalorder %s134, %s135
    %p149 = scmp.eq.s32.totalorder %s17, 1
    %p150 = por %p148, %p149
    %p152 = scmp.ne.s32.totalorder %s135, %s151
    %p153 = scmp.eq.s32.totalorder %s17, 0
    %p154 = por %p152, %p153
    %p155 = scmp.le.s32.totalorder 1, %s11
    %p156 = scmp.lt.s32.totalorder %s11, 3
    %p157 = pnand %p155, %p156
    %p158 = pneg %p157
    // Predicated region
    $region9: #{_lambda_.30} parent=5 // pred_check
      _
    $region10: #{_lambda_.30} parent=5 // pred_check_branch
      %160 = sbr.rel (%p157) target = $region12
    $region11: #{_lambda_.30} parent=5 // pred_region
      %s161 = ssub.s32 %s11, 1
      // Predicated region
      $region13: #{_lambda_.30} parent=11 // pred_check
        %p162 = pneg %p58
      $region14: #{_lambda_.30} parent=11 // pred_check_branch
        %164 = sbr.rel (%p162) target = $region16
      $region15: #{_lambda_.30} parent=11 // pred_region
        _
      $region16: #{_lambda_.30} parent=11 // pred_fallthru
        _
      // Predicated region
      $region17: #{_lambda_.30} parent=11 // pred_check
        %p165 = pneg %p79
      $region18: #{_lambda_.30} parent=11 // pred_check_branch
        %167 = sbr.rel (%p165) target = $region20
      $region19: #{_lambda_.30} parent=11 // pred_region
        _
      $region20: #{_lambda_.30} parent=11 // pred_fallthru
        _
      // Predicated region
      $region21: #{_lambda_.30} parent=11 // pred_check
        %p168 = pneg %p100
      $region22: #{_lambda_.30} parent=11 // pred_check_branch
        %170 = sbr.rel (%p168) target = $region24
      $region23: #{_lambda_.30} parent=11 // pred_region
        _
      $region24: #{_lambda_.30} parent=11 // pred_fallthru
        _
      // Predicated region
      $region25: #{_lambda_.30} parent=11 // pred_check
        %p171 = pneg %p121
      $region26: #{_lambda_.30} parent=11 // pred_check_branch
        %173 = sbr.rel (%p171) target = $region28
      $region27: #{_lambda_.30} parent=11 // pred_region
        _
      $region28: #{_lambda_.30} parent=11 // pred_fallthru
        _
    $region12: #{_lambda_.30} parent=5 // pred_fallthru
      _
    %p174 = scmp.lt.s32.totalorder %s11, 2
    // Predicated region
    $region29: #{_lambda_.30} parent=5 // pred_check
      %p175 = pneg %p174
    $region30: #{_lambda_.30} parent=5 // pred_check_branch
      %177 = sbr.rel (%p175) target = $region32
    $region31: #{_lambda_.30} parent=5 // pred_region
      // Predicated region
      $region33: #{_lambda_.30} parent=31 // pred_check
        %p178 = pneg %p31
      $region34: #{_lambda_.30} parent=31 // pred_check_branch
        %180 = sbr.rel (%p178) target = $region36
      $region35: #{_lambda_.30} parent=31 // pred_region
        %s181 = smul.u32 2, %s11
        %p182 = scmp.lt.s32.totalorder %s181, 3
        %s183 = scalar_select %p182, %s181, 3
        %s184 = smul.addr %s183, 8
        %s185 = scalar_lea.vmem %s0, %s184
        %s186 = smul.u32 2, %s11
      $region36: #{_lambda_.30} parent=31 // pred_fallthru
        _
    $region32: #{_lambda_.30} parent=5 // pred_fallthru
      _
    %p187 = scmp.le.s32.totalorder 1, %s11
    %p188 = scmp.lt.s32.totalorder %s11, 3
    %p189 = pnand %p187, %p188
    %p190 = pneg %p189
    // Predicated region
    $region37: #{_lambda_.30} parent=5 // pred_check
      _
    $region38: #{_lambda_.30} parent=5 // pred_check_branch
      %192 = sbr.rel (%p189) target = $region40
    $region39: #{_lambda_.30} parent=5 // pred_region
      %s193 = ssub.s32 %s11, 1
      %s194 = smul.u32 2, %s16
      %p195 = scmp.lt.s32.totalorder %s194, 3
      %s196 = scalar_select %p195, %s194, 3
      %s197 = smul.addr %s196, 8
      %s198 = scalar_lea.vmem %s0, %s197
      %p199 = pneg %p37
      %p200 = pneg %p34
      %p201 = pneg %p58
      %p202 = pneg %p55
      %p203 = pneg %p79
      %p204 = pneg %p76
      %p205 = pneg %p100
      %p206 = pneg %p97
      %p207 = pneg %p121
      %p208 = pneg %p118
      %p209 = pneg %p147
      %p210 = pneg %p144
      %s211 = smul.u32 2, %s16
      %p212 = scmp.lt.s32.totalorder %s211, 3
      %s213 = scalar_select %p212, %s211, 3
      %s214 = smul.addr %s213, 4
      %s215 = scalar_lea.vmem %s5, %s214
      %s216 = smul.u32 2, %s16
      %p217 = scmp.lt.s32.totalorder %s216, 3
      %s218 = scalar_select %p217, %s216, 3
      %s219 = smul.addr %s218, 8
      %s220 = scalar_lea.vmem %s0, %s219
      %s221 = smul.u32 2, %s16
      %s222 = smul.u32 2, %s16
      %p223 = scmp.lt.s32.totalorder %s222, 3
      %s224 = scalar_select %p223, %s222, 3
      %s225 = smul.addr %s224, 4
      %s226 = scalar_lea.vmem %s5, %s225
      %s227 = smul.u32 2, %s16
      %v229 = vld [vmem:[%s220] sm:$0xff]
      %v230 = vld [vmem:[%s220 + $0x8] sm:$0xff]
      %v231 = vld [vmem:[%s1] sm:$0x1]
      %v232 = vld [vmem:[%s2] sm:$0x1]
      %vm233 = vcmask 261120
      %v234 = vsel %vm233, %v229, 0.0
      %235 = vadd.xlane.f32.xlu0 %v234
      %v236 = vpop.xlane.xlu0 %235
      %v237 = vsel %vm233, %v230, 0.0
      %238 = vadd.xlane.f32.xlu0 %v237
      %v239 = vpop.xlane.xlu0 %238
      %v240 = vrcp.pop 32.0
      %v241 = vmul.f32 %v236, %v240
      %v242 = vmul.f32 %v239, %v240
      %v243 = vsub.f32 %v229, %v241
      %v244 = vsub.f32 %v230, %v242
      %v245 = vmul.f32 %v243, %v243
      %v246 = vmul.f32 %v244, %v244
      %v247 = vsel %vm233, %v245, 0.0
      %248 = vadd.xlane.f32.xlu0 %v247
      %v249 = vpop.xlane.xlu0 %248
      %v250 = vsel %vm233, %v246, 0.0
      %251 = vadd.xlane.f32.xlu0 %v250
      %v252 = vpop.xlane.xlu0 %251
      %v253 = vmul.f32 %v249, %v240
      %v254 = vmul.f32 %v252, %v240
      %v255 = vadd.f32 %v253, 1e-05
      %v256 = vadd.f32 %v254, 1e-05
      %v257 = vrsqrt.pop %v255
      %v258 = vrsqrt.pop %v256
      %v259 = vmul.f32 %v243, %v257
      %v260 = vmul.f32 %v244, %v258
      %v262 = vlaneseq
      %v263 = vshrl.u32 %v262, 7
      %v264 = vsub.s32 0, %v263
      %v265 = vrot.slane %v231, %v264
      %v267 = vmul.f32 %v259, %v265
      %v268 = vmul.f32 %v260, %v265
      %v270 = vlaneseq
      %v271 = vshrl.u32 %v270, 7
      %v272 = vsub.s32 0, %v271
      %v273 = vrot.slane %v232, %v272
      %v275 = vadd.f32 %v267, %v273
      %v276 = vadd.f32 %v268, %v273
      %v277 = vpack.c.bf16 %v276, %v275
      %v278 = vld [vmem:[%s3] sm:$0xf]
      %v279 = vld [vmem:[%s3 + $0x4] sm:$0xf]
      %v280 = vld [vmem:[%s3 + $0x8] sm:$0xf]
      %v281 = vld [vmem:[%s3 + $0xc] sm:$0xf]
      %v282 = vld [vmem:[%s4] sm:$0x1]
      %v284 = vlaneseq
      %v285 = vshrl.u32 %v284, 7
      %v286 = vsub.s32 0, %v285
      %v287 = vrot.slane %v282, %v286
      %v293 = vunpack.c.l.b16 %v278
      %v294 = vunpack.c.l.b16 %v279
      %v295 = vunpack.c.l.b16 %v280
      %v296 = vunpack.c.l.b16 %v281
      %v297 = vpack.c.b16 %v294, %v293
      %v298 = vpack.c.b16 %v296, %v295
      %v302 = vsel %vm233, %v277, 0
      %304 = vmatprep.subr.bf16.mxu0 0
      %305 = vmatpush1.bf16.msra.mxu0 0
      %306 = vmatprep.subr.bf16.mxu0 0
      %307 = vmatpush1.bf16.msra.mxu0 0
      %308 = vmatprep.subr.bf16.mxu0 0
      %309 = vmatpush1.bf16.msra.mxu0 0
      %310 = vmatprep.subr.bf16.mxu0 0
      %311 = vmatpush1.bf16.msra.mxu0 0
      %312 = vmatprep.subr.bf16.mxu0 0
      %313 = vmatpush1.bf16.msra.mxu0 0
      %314 = vmatprep.subr.bf16.mxu0 0
      %315 = vmatpush1.bf16.msra.mxu0 0
      %316 = vmatprep.subr.bf16.mxu0 0
      %317 = vmatpush1.bf16.msra.mxu0 %v298
      %318 = vmatprep.subr.bf16.mxu0 0
      %319 = vmatpush1.bf16.msra.mxu0 %v297
      %320 = vmatprep.subr.bf16.mxu0 0
      %321 = vmatpush2.bf16.msra.mxu0 0
      %322 = vmatprep.subr.bf16.mxu0 0
      %323 = vmatpush2.bf16.msra.mxu0 0
      %324 = vmatprep.subr.bf16.mxu0 0
      %325 = vmatpush2.bf16.msra.mxu0 0
      %326 = vmatprep.subr.bf16.mxu0 0
      %327 = vmatpush2.bf16.msra.mxu0 0
      %328 = vmatprep.subr.bf16.mxu0 0
      %329 = vmatpush2.bf16.msra.mxu0 0
      %330 = vmatprep.subr.bf16.mxu0 0
      %331 = vmatpush2.bf16.msra.mxu0 0
      %332 = vmatprep.subr.bf16.mxu0 0
      %333 = vmatpush2.bf16.msra.mxu0 0
      %334 = vmatprep.subr.bf16.mxu0 0
      %335 = vmatpush2.bf16.msra.mxu0 0
      %336 = vmatprep.mubr.bf16.mxu0 0
      %337 = vmatmul.mubr.bf16.gmra.mxu0 %v302
      %v338 = vpop.f32.mrf.mxu0
      %v339 = vadd.f32 %v287, %v338
      %v340 = vpop.f32.mrf.mxu0
      %v341 = vpop.f32.mrf.mxu0
      %v342 = vadd.f32 %v287, %v341
      %v343 = vpop.f32.mrf.mxu0
      %344 = vdwg.mxu0
      %v345 = vpack.c.bf16 %v342, %v339
      %v347 = vunpack.c.l.b16 %v345
      %v348 = vunpack.c.h.b16 %v345
      %v349 = vpack.c.b16 %v347, %v347
      %v350 = vpack.c.b16 %v348, %v348
      %vm353 = vcmask 781312
      %354 = vst.msk [vmem:[%s226] sm:$0xf] %vm353, %v349
      %355 = vst.msk [vmem:[%s226 + $0x4] sm:$0xf] %vm353, %v350
      %s356 = smul.u32 2, %s16
      %p357 = scmp.lt.s32.totalorder %s356, 3
      %s358 = scalar_select %p357, %s356, 3
      %s359 = smul.addr %s358, 4
      %s360 = scalar_lea.vmem %s5, %s359
      // Predicated region
      $region41: #{_lambda_.30} parent=39 // pred_check
        %p361 = pneg %p144
      $region42: #{_lambda_.30} parent=39 // pred_check_branch
        %363 = sbr.rel (%p361) target = $region44
      $region43: #{_lambda_.30} parent=39 // pred_region
        %s364 = smul.u32 2, %s16
      $region44: #{_lambda_.30} parent=39 // pred_fallthru
        _
    $region40: #{_lambda_.30} parent=5 // pred_fallthru
      _
    %p365 = scmp.le.s32.totalorder 2, %s11
    // Predicated region
    $region45: #{_lambda_.30} parent=5 // pred_check
      %p366 = pneg %p365
    $region46: #{_lambda_.30} parent=5 // pred_check_branch
      %368 = sbr.rel (%p366) target = $region48
    $region47: #{_lambda_.30} parent=5 // pred_region
      %s369 = ssub.s32 %s11, 2
      // Predicated region
      $region49: #{_lambda_.30} parent=47 // pred_check
        %p370 = pneg %p150
      $region50: #{_lambda_.30} parent=47 // pred_check_branch
        %372 = sbr.rel (%p370) target = $region52
      $region51: #{_lambda_.30} parent=47 // pred_region
        %s373 = smul.u32 2, %s17
        %p374 = scmp.lt.s32.totalorder %s373, 3
        %s375 = scalar_select %p374, %s373, 3
        %s376 = smul.addr %s375, 4
        %s377 = scalar_lea.vmem %s5, %s376
      $region52: #{_lambda_.30} parent=47 // pred_fallthru
        _
    $region48: #{_lambda_.30} parent=5 // pred_fallthru
      _
  $region6: #{_lambda_.30} parent=0 // loop_footer
    %s15 = sadd.s32 1, %s11
  $region7: #{_lambda_.30} parent=0 // loop_footer_branch
    %10 = sbr.rel target = $region3
  $region8: #{_lambda_.30} parent=0 // loop_exit
    _

// kernel: _lambda_.32
$region0: #{_lambda_.32}
  #allocation0 [shape = 'u32[]', space=smem, size = 0x4, offset = 0x4, fixed_abs, tag = 'smem constant byte address 0x4 - core index']
  #allocation1 [shape = 'u32[144,128]{1,0:T(1,128)}', space=vmem, size = 0x12000, scoped, tag = 'internal scratch']
  %s0 = inlined_call_operand.vmem [shape: bf16[32,32], index: 0, kind: input, shape index: {}]
  %s1 = inlined_call_operand.vmem [shape: f32[32,32], index: 1, kind: input, shape index: {}]
  %s2 = inlined_call_operand.vmem [shape: bf16[32,32], index: 2, kind: input, shape index: {}]
  %s3 = inlined_call_operand.vmem [shape: f32[1,32], index: 3, kind: input, shape index: {}]
  %s4 = inlined_call_operand.vmem [shape: f32[32,32], index: 4, kind: output, shape index: {}]
  %s5 = sld [smem:[#allocation0]]
  $region49: #{_lambda_.32} parent=0
    _
  %s7 = ssub.s32 1, %s5
  %s8 = scalar_select 0, %s7, %s5
  loop: start=0, step=1, limit=4
  $region2: #{_lambda_.32} parent=0 // loop_pre_header
    _
  $region3: #{_lambda_.32} parent=0 // loop_header
    %s10 = sphi 0, %s14
    %p11 = scmp.ge.s32.totalorder %s10, 4
    %s20 = sphi 0, %s22
    %s23 = sphi 0, %s20
    %s24 = sphi 0, %s23
    %s40 = sphi 0, %s24
    %s46 = sphi 0, %s48
    %s49 = sphi 0, %s46
    %s50 = sphi 0, %s49
    %s66 = sphi 0, %s50
    %s70 = sphi 0, %s70
    %s72 = sphi 0, %s70
    %s73 = sphi 0, %s72
    %s87 = sphi 0, %s73
    %s91 = sphi 0, %s91
    %s93 = sphi 0, %s91
    %s94 = sphi 0, %s93
    %s108 = sphi 0, %s94
    %s114 = sphi 0, %s116
    %s117 = sphi 0, %s114
    %s118 = sphi 0, %s117
    %s134 = sphi 0, %s118
  $region4: #{_lambda_.32} parent=0 // loop_header_branch
    %13 = sbr.rel (%p11) target = $region8
  $region5: #{_lambda_.32} parent=0 // loop_body
    %s15 = ssub.s32 %s10, 1
    %s16 = ssub.s32 %s10, 2
    %s17 = sadd.s32 %s10, 1
    %s18 = ssub.s32 %s10, %s17
    %p19 = scmp.eq.s32.totalorder %s18, 0
    %s21 = sadd.s32 %s20, 1
    %s22 = scalar_select %p19, %s20, %s21
    %p25 = pneg %p19
    %p26 = scmp.eq.s32.totalorder %s10, 1
    %p27 = por %p25, %p26
    %p28 = scmp.ne.s32.totalorder %s20, %s23
    %p29 = scmp.eq.s32.totalorder %s10, 0
    %p30 = por %p28, %p29
    %p31 = scmp.ne.s32.totalorder %s20, %s23
    %p32 = scmp.eq.s32.totalorder %s15, 1
    %p33 = por %p31, %p32
    %p34 = scmp.ne.s32.totalorder %s23, %s24
    %p35 = scmp.eq.s32.totalorder %s15, 0
    %p36 = por %p34, %p35
    %p37 = scmp.ne.s32.totalorder %s23, %s24
    %p38 = scmp.eq.s32.totalorder %s16, 1
    %p39 = por %p37, %p38
    %p41 = scmp.ne.s32.totalorder %s24, %s40
    %p42 = scmp.eq.s32.totalorder %s16, 0
    %p43 = por %p41, %p42
    %s44 = ssub.s32 %s10, %s17
    %p45 = scmp.eq.s32.totalorder %s44, 0
    %s47 = sadd.s32 %s46, 1
    %s48 = scalar_select %p45, %s46, %s47
    %p51 = pneg %p45
    %p52 = scmp.eq.s32.totalorder %s10, 1
    %p53 = por %p51, %p52
    %p54 = scmp.ne.s32.totalorder %s46, %s49
    %p55 = scmp.eq.s32.totalorder %s10, 0
    %p56 = por %p54, %p55
    %p57 = scmp.ne.s32.totalorder %s46, %s49
    %p58 = scmp.eq.s32.totalorder %s15, 1
    %p59 = por %p57, %p58
    %p60 = scmp.ne.s32.totalorder %s49, %s50
    %p61 = scmp.eq.s32.totalorder %s15, 0
    %p62 = por %p60, %p61
    %p63 = scmp.ne.s32.totalorder %s49, %s50
    %p64 = scmp.eq.s32.totalorder %s16, 1
    %p65 = por %p63, %p64
    %p67 = scmp.ne.s32.totalorder %s50, %s66
    %p68 = scmp.eq.s32.totalorder %s16, 0
    %p69 = por %p67, %p68
    %s71 = sadd.s32 %s70, 1
    %p74 = scmp.eq.s32.totalorder %s10, 1
    %p75 = scmp.ne.s32.totalorder %s70, %s72
    %p76 = scmp.eq.s32.totalorder %s10, 0
    %p77 = por %p75, %p76
    %p78 = scmp.ne.s32.totalorder %s70, %s72
    %p79 = scmp.eq.s32.totalorder %s15, 1
    %p80 = por %p78, %p79
    %p81 = scmp.ne.s32.totalorder %s72, %s73
    %p82 = scmp.eq.s32.totalorder %s15, 0
    %p83 = por %p81, %p82
    %p84 = scmp.ne.s32.totalorder %s72, %s73
    %p85 = scmp.eq.s32.totalorder %s16, 1
    %p86 = por %p84, %p85
    %p88 = scmp.ne.s32.totalorder %s73, %s87
    %p89 = scmp.eq.s32.totalorder %s16, 0
    %p90 = por %p88, %p89
    %s92 = sadd.s32 %s91, 1
    %p95 = scmp.eq.s32.totalorder %s10, 1
    %p96 = scmp.ne.s32.totalorder %s91, %s93
    %p97 = scmp.eq.s32.totalorder %s10, 0
    %p98 = por %p96, %p97
    %p99 = scmp.ne.s32.totalorder %s91, %s93
    %p100 = scmp.eq.s32.totalorder %s15, 1
    %p101 = por %p99, %p100
    %p102 = scmp.ne.s32.totalorder %s93, %s94
    %p103 = scmp.eq.s32.totalorder %s15, 0
    %p104 = por %p102, %p103
    %p105 = scmp.ne.s32.totalorder %s93, %s94
    %p106 = scmp.eq.s32.totalorder %s16, 1
    %p107 = por %p105, %p106
    %p109 = scmp.ne.s32.totalorder %s94, %s108
    %p110 = scmp.eq.s32.totalorder %s16, 0
    %p111 = por %p109, %p110
    %s112 = ssub.s32 %s10, %s17
    %p113 = scmp.eq.s32.totalorder %s112, 0
    %s115 = sadd.s32 %s114, 1
    %s116 = scalar_select %p113, %s114, %s115
    %p119 = pneg %p113
    %p120 = scmp.eq.s32.totalorder %s10, 1
    %p121 = por %p119, %p120
    %p122 = scmp.ne.s32.totalorder %s114, %s117
    %p123 = scmp.eq.s32.totalorder %s10, 0
    %p124 = por %p122, %p123
    %p125 = scmp.ne.s32.totalorder %s114, %s117
    %p126 = scmp.eq.s32.totalorder %s15, 1
    %p127 = por %p125, %p126
    %p128 = scmp.ne.s32.totalorder %s117, %s118
    %p129 = scmp.eq.s32.totalorder %s15, 0
    %p130 = por %p128, %p129
    %p131 = scmp.ne.s32.totalorder %s117, %s118
    %p132 = scmp.eq.s32.totalorder %s16, 1
    %p133 = por %p131, %p132
    %p135 = scmp.ne.s32.totalorder %s118, %s134
    %p136 = scmp.eq.s32.totalorder %s16, 0
    %p137 = por %p135, %p136
    %p138 = scmp.le.s32.totalorder 1, %s10
    %p139 = scmp.lt.s32.totalorder %s10, 3
    %p140 = pnand %p138, %p139
    %p141 = pneg %p140
    // Predicated region
    $region9: #{_lambda_.32} parent=5 // pred_check
      _
    $region10: #{_lambda_.32} parent=5 // pred_check_branch
      %143 = sbr.rel (%p140) target = $region12
    $region11: #{_lambda_.32} parent=5 // pred_region
      %s144 = ssub.s32 %s10, 1
      // Predicated region
      $region13: #{_lambda_.32} parent=11 // pred_check
        %p145 = pneg %p83
      $region14: #{_lambda_.32} parent=11 // pred_check_branch
        %147 = sbr.rel (%p145) target = $region16
      $region15: #{_lambda_.32} parent=11 // pred_region
        _
      $region16: #{_lambda_.32} parent=11 // pred_fallthru
        _
      // Predicated region
      $region17: #{_lambda_.32} parent=11 // pred_check
        %p148 = pneg %p104
      $region18: #{_lambda_.32} parent=11 // pred_check_branch
        %150 = sbr.rel (%p148) target = $region20
      $region19: #{_lambda_.32} parent=11 // pred_region
        _
      $region20: #{_lambda_.32} parent=11 // pred_fallthru
        _
    $region12: #{_lambda_.32} parent=5 // pred_fallthru
      _
    %p151 = scmp.lt.s32.totalorder %s10, 2
    // Predicated region
    $region21: #{_lambda_.32} parent=5 // pred_check
      %p152 = pneg %p151
    $region22: #{_lambda_.32} parent=5 // pred_check_branch
      %154 = sbr.rel (%p152) target = $region24
    $region23: #{_lambda_.32} parent=5 // pred_region
      // Predicated region
      $region25: #{_lambda_.32} parent=23 // pred_check
        %p155 = pneg %p30
      $region26: #{_lambda_.32} parent=23 // pred_check_branch
        %157 = sbr.rel (%p155) target = $region28
      $region27: #{_lambda_.32} parent=23 // pred_region
        %s158 = smul.u32 2, %s10
        %p159 = scmp.lt.s32.totalorder %s158, 3
        %s160 = scalar_select %p159, %s158, 3
        %s161 = smul.addr %s160, 4
        %s162 = scalar_lea.vmem %s0, %s161
        %s163 = smul.u32 2, %s10
      $region28: #{_lambda_.32} parent=23 // pred_fallthru
        _
      // Predicated region
      $region29: #{_lambda_.32} parent=23 // pred_check
        %p164 = pneg %p56
      $region30: #{_lambda_.32} parent=23 // pred_check_branch
        %166 = sbr.rel (%p164) target = $region32
      $region31: #{_lambda_.32} parent=23 // pred_region
        %s167 = smul.u32 2, %s10
        %p168 = scmp.lt.s32.totalorder %s167, 3
        %s169 = scalar_select %p168, %s167, 3
        %s170 = smul.addr %s169, 8
        %s171 = scalar_lea.vmem %s1, %s170
        %s172 = smul.u32 2, %s10
      $region32: #{_lambda_.32} parent=23 // pred_fallthru
        _
    $region24: #{_lambda_.32} parent=5 // pred_fallthru
      _
    %p173 = scmp.le.s32.totalorder 1, %s10
    %p174 = scmp.lt.s32.totalorder %s10, 3
    %p175 = pnand %p173, %p174
    %p176 = pneg %p175
    // Predicated region
    $region33: #{_lambda_.32} parent=5 // pred_check
      _
    $region34: #{_lambda_.32} parent=5 // pred_check_branch
      %178 = sbr.rel (%p175) target = $region36
    $region35: #{_lambda_.32} parent=5 // pred_region
      %s179 = ssub.s32 %s10, 1
      %s180 = smul.u32 2, %s15
      %p181 = scmp.lt.s32.totalorder %s180, 3
      %s182 = scalar_select %p181, %s180, 3
      %s183 = smul.addr %s182, 4
      %s184 = scalar_lea.vmem %s0, %s183
      %p185 = pneg %p36
      %p186 = pneg %p33
      %s187 = smul.u32 2, %s15
      %p188 = scmp.lt.s32.totalorder %s187, 3
      %s189 = scalar_select %p188, %s187, 3
      %s190 = smul.addr %s189, 8
      %s191 = scalar_lea.vmem %s1, %s190
      %p192 = pneg %p62
      %p193 = pneg %p59
      %p194 = pneg %p83
      %p195 = pneg %p80
      %p196 = pneg %p104
      %p197 = pneg %p101
      %p198 = pneg %p130
      %p199 = pneg %p127
      %s200 = smul.u32 2, %s15
      %p201 = scmp.lt.s32.totalorder %s200, 3
      %s202 = scalar_select %p201, %s200, 3
      %s203 = smul.addr %s202, 8
      %s204 = scalar_lea.vmem %s4, %s203
      %s205 = smul.u32 2, %s15
      %p206 = scmp.lt.s32.totalorder %s205, 3
      %s207 = scalar_select %p206, %s205, 3
      %s208 = smul.addr %s207, 4
      %s209 = scalar_lea.vmem %s0, %s208
      %s210 = smul.u32 2, %s15
      %s211 = smul.u32 2, %s15
      %p212 = scmp.lt.s32.totalorder %s211, 3
      %s213 = scalar_select %p212, %s211, 3
      %s214 = smul.addr %s213, 8
      %s215 = scalar_lea.vmem %s1, %s214
      %s216 = smul.u32 2, %s15
      %s217 = smul.u32 2, %s15
      %p218 = scmp.lt.s32.totalorder %s217, 3
      %s219 = scalar_select %p218, %s217, 3
      %s220 = smul.addr %s219, 8
      %s221 = scalar_lea.vmem %s4, %s220
      %s222 = smul.u32 2, %s15
      %v224 = vld [vmem:[%s209] sm:$0xf]
      %v225 = vld [vmem:[%s209 + $0x4] sm:$0xf]
      %v226 = vld [vmem:[%s2] sm:$0xf]
      %v227 = vld [vmem:[%s2 + $0x4] sm:$0xf]
      %v228 = vld [vmem:[%s2 + $0x8] sm:$0xf]
      %v229 = vld [vmem:[%s2 + $0xc] sm:$0xf]
      %v230 = vld [vmem:[%s3] sm:$0x1]
      %v232 = vlaneseq
      %v233 = vshrl.u32 %v232, 7
      %v234 = vsub.s32 0, %v233
      %v235 = vrot.slane %v230, %v234
      %v239 = vunpack.c.l.b16 %v224
      %v240 = vunpack.c.l.b16 %v225
      %v241 = vpack.c.b16 %v240, %v239
      %v246 = vunpack.c.l.b16 %v226
      %v247 = vunpack.c.l.b16 %v227
      %v248 = vunpack.c.l.b16 %v228
      %v249 = vunpack.c.l.b16 %v229
      %v250 = vpack.c.b16 %v247, %v246
      %v251 = vpack.c.b16 %v249, %v248
      %vm254 = vcmask 261120
      %v256 = vsel %vm254, %v241, 0
      %258 = vmatprep.subr.bf16.mxu0 0
      %259 = vmatpush1.bf16.msra.mxu0 0
      %260 = vmatprep.subr.bf16.mxu0 0
      %261 = vmatpush1.bf16.msra.mxu0 0
      %262 = vmatprep.subr.bf16.mxu0 0
      %263 = vmatpush1.bf16.msra.mxu0 0
      %264 = vmatprep.subr.bf16.mxu0 0
      %265 = vmatpush1.bf16.msra.mxu0 0
      %266 = vmatprep.subr.bf16.mxu0 0
      %267 = vmatpush1.bf16.msra.mxu0 0
      %268 = vmatprep.subr.bf16.mxu0 0
      %269 = vmatpush1.bf16.msra.mxu0 0
      %270 = vmatprep.subr.bf16.mxu0 0
      %271 = vmatpush1.bf16.msra.mxu0 %v251
      %272 = vmatprep.subr.bf16.mxu0 0
      %273 = vmatpush1.bf16.msra.mxu0 %v250
      %274 = vmatprep.subr.bf16.mxu0 0
      %275 = vmatpush2.bf16.msra.mxu0 0
      %276 = vmatprep.subr.bf16.mxu0 0
      %277 = vmatpush2.bf16.msra.mxu0 0
      %278 = vmatprep.subr.bf16.mxu0 0
      %279 = vmatpush2.bf16.msra.mxu0 0
      %280 = vmatprep.subr.bf16.mxu0 0
      %281 = vmatpush2.bf16.msra.mxu0 0
      %282 = vmatprep.subr.bf16.mxu0 0
      %283 = vmatpush2.bf16.msra.mxu0 0
      %284 = vmatprep.subr.bf16.mxu0 0
      %285 = vmatpush2.bf16.msra.mxu0 0
      %286 = vmatprep.subr.bf16.mxu0 0
      %287 = vmatpush2.bf16.msra.mxu0 0
      %288 = vmatprep.subr.bf16.mxu0 0
      %289 = vmatpush2.bf16.msra.mxu0 0
      %290 = vmatprep.mubr.bf16.mxu0 0
      %291 = vmatmul.mubr.bf16.gmra.mxu0 %v256
      %v292 = vpop.f32.mrf.mxu0
      %v293 = vadd.f32 %v235, %v292
      %v294 = vpop.f32.mrf.mxu0
      %v295 = vpop.f32.mrf.mxu0
      %v296 = vadd.f32 %v235, %v295
      %v297 = vpop.f32.mrf.mxu0
      %298 = vdwg.mxu0
      %v299 = vld [vmem:[%s215] sm:$0xff]
      %v300 = vld [vmem:[%s215 + $0x8] sm:$0xff]
      %v301 = vadd.f32 %v299, %v293
      %v302 = vadd.f32 %v300, %v296
      %303 = vst.msk [vmem:[%s221] sm:$0xff] %vm254, %v301
      %304 = vst.msk [vmem:[%s221 + $0x8] sm:$0xff] %vm254, %v302
      %s305 = smul.u32 2, %s15
      %p306 = scmp.lt.s32.totalorder %s305, 3
      %s307 = scalar_select %p306, %s305, 3
      %s308 = smul.addr %s307, 8
      %s309 = scalar_lea.vmem %s4, %s308
      // Predicated region
      $region37: #{_lambda_.32} parent=35 // pred_check
        %p310 = pneg %p127
      $region38: #{_lambda_.32} parent=35 // pred_check_branch
        %312 = sbr.rel (%p310) target = $region40
      $region39: #{_lambda_.32} parent=35 // pred_region
        %s313 = smul.u32 2, %s15
      $region40: #{_lambda_.32} parent=35 // pred_fallthru
        _
    $region36: #{_lambda_.32} parent=5 // pred_fallthru
      _
    %p314 = scmp.le.s32.totalorder 2, %s10
    // Predicated region
    $region41: #{_lambda_.32} parent=5 // pred_check
      %p315 = pneg %p314
    $region42: #{_lambda_.32} parent=5 // pred_check_branch
      %317 = sbr.rel (%p315) target = $region44
    $region43: #{_lambda_.32} parent=5 // pred_region
      %s318 = ssub.s32 %s10, 2
      // Predicated region
      $region45: #{_lambda_.32} parent=43 // pred_check
        %p319 = pneg %p133
      $region46: #{_lambda_.32} parent=43 // pred_check_branch
        %321 = sbr.rel (%p319) target = $region48
      $region47: #{_lambda_.32} parent=43 // pred_region
        %s322 = smul.u32 2, %s16
        %p323 = scmp.lt.s32.totalorder %s322, 3
        %s324 = scalar_select %p323, %s322, 3
        %s325 = smul.addr %s324, 8
        %s326 = scalar_lea.vmem %s4, %s325
      $region48: #{_lambda_.32} parent=43 // pred_fallthru
        _
    $region44: #{_lambda_.32} parent=5 // pred_fallthru
      _
  $region6: #{_lambda_.32} parent=0 // loop_footer
    %s14 = sadd.s32 1, %s10
  $region7: #{_lambda_.32} parent=0 // loop_footer_branch
    %9 = sbr.rel target = $region3
  $region8: #{_lambda_.32} parent=0 // loop_exit
    _

// kernel: _lambda_.38
$region0: #{_lambda_.38}
  #allocation0 [shape = 'u32[]', space=smem, size = 0x4, offset = 0x4, fixed_abs, tag = 'smem constant byte address 0x4 - core index']
  #allocation1 [shape = 'u32[144,128]{1,0:T(1,128)}', space=vmem, size = 0x12000, scoped, tag = 'internal scratch']
  %s0 = inlined_call_operand.vmem [shape: f32[32,32], index: 0, kind: input, shape index: {}]
  %s1 = inlined_call_operand.vmem [shape: f32[1,32], index: 1, kind: input, shape index: {}]
  %s2 = inlined_call_operand.vmem [shape: f32[1,32], index: 2, kind: input, shape index: {}]
  %s3 = inlined_call_operand.vmem [shape: f32[32,32], index: 3, kind: output, shape index: {}]
  %s4 = sld [smem:[#allocation0]]
  $region45: #{_lambda_.38} parent=0
    _
  %s6 = ssub.s32 1, %s4
  %s7 = scalar_select 0, %s6, %s4
  loop: start=0, step=1, limit=4
  $region2: #{_lambda_.38} parent=0 // loop_pre_header
    _
  $region3: #{_lambda_.38} parent=0 // loop_header
    %s9 = sphi 0, %s13
    %p10 = scmp.ge.s32.totalorder %s9, 4
    %s19 = sphi 0, %s21
    %s22 = sphi 0, %s19
    %s23 = sphi 0, %s22
    %s39 = sphi 0, %s23
    %s43 = sphi 0, %s43
    %s45 = sphi 0, %s43
    %s46 = sphi 0, %s45
    %s60 = sphi 0, %s46
    %s64 = sphi 0, %s64
    %s66 = sphi 0, %s64
    %s67 = sphi 0, %s66
    %s81 = sphi 0, %s67
    %s87 = sphi 0, %s89
    %s90 = sphi 0, %s87
    %s91 = sphi 0, %s90
    %s107 = sphi 0, %s91
  $region4: #{_lambda_.38} parent=0 // loop_header_branch
    %12 = sbr.rel (%p10) target = $region8
  $region5: #{_lambda_.38} parent=0 // loop_body
    %s14 = ssub.s32 %s9, 1
    %s15 = ssub.s32 %s9, 2
    %s16 = sadd.s32 %s9, 1
    %s17 = ssub.s32 %s9, %s16
    %p18 = scmp.eq.s32.totalorder %s17, 0
    %s20 = sadd.s32 %s19, 1
    %s21 = scalar_select %p18, %s19, %s20
    %p24 = pneg %p18
    %p25 = scmp.eq.s32.totalorder %s9, 1
    %p26 = por %p24, %p25
    %p27 = scmp.ne.s32.totalorder %s19, %s22
    %p28 = scmp.eq.s32.totalorder %s9, 0
    %p29 = por %p27, %p28
    %p30 = scmp.ne.s32.totalorder %s19, %s22
    %p31 = scmp.eq.s32.totalorder %s14, 1
    %p32 = por %p30, %p31
    %p33 = scmp.ne.s32.totalorder %s22, %s23
    %p34 = scmp.eq.s32.totalorder %s14, 0
    %p35 = por %p33, %p34
    %p36 = scmp.ne.s32.totalorder %s22, %s23
    %p37 = scmp.eq.s32.totalorder %s15, 1
    %p38 = por %p36, %p37
    %p40 = scmp.ne.s32.totalorder %s23, %s39
    %p41 = scmp.eq.s32.totalorder %s15, 0
    %p42 = por %p40, %p41
    %s44 = sadd.s32 %s43, 1
    %p47 = scmp.eq.s32.totalorder %s9, 1
    %p48 = scmp.ne.s32.totalorder %s43, %s45
    %p49 = scmp.eq.s32.totalorder %s9, 0
    %p50 = por %p48, %p49
    %p51 = scmp.ne.s32.totalorder %s43, %s45
    %p52 = scmp.eq.s32.totalorder %s14, 1
    %p53 = por %p51, %p52
    %p54 = scmp.ne.s32.totalorder %s45, %s46
    %p55 = scmp.eq.s32.totalorder %s14, 0
    %p56 = por %p54, %p55
    %p57 = scmp.ne.s32.totalorder %s45, %s46
    %p58 = scmp.eq.s32.totalorder %s15, 1
    %p59 = por %p57, %p58
    %p61 = scmp.ne.s32.totalorder %s46, %s60
    %p62 = scmp.eq.s32.totalorder %s15, 0
    %p63 = por %p61, %p62
    %s65 = sadd.s32 %s64, 1
    %p68 = scmp.eq.s32.totalorder %s9, 1
    %p69 = scmp.ne.s32.totalorder %s64, %s66
    %p70 = scmp.eq.s32.totalorder %s9, 0
    %p71 = por %p69, %p70
    %p72 = scmp.ne.s32.totalorder %s64, %s66
    %p73 = scmp.eq.s32.totalorder %s14, 1
    %p74 = por %p72, %p73
    %p75 = scmp.ne.s32.totalorder %s66, %s67
    %p76 = scmp.eq.s32.totalorder %s14, 0
    %p77 = por %p75, %p76
    %p78 = scmp.ne.s32.totalorder %s66, %s67
    %p79 = scmp.eq.s32.totalorder %s15, 1
    %p80 = por %p78, %p79
    %p82 = scmp.ne.s32.totalorder %s67, %s81
    %p83 = scmp.eq.s32.totalorder %s15, 0
    %p84 = por %p82, %p83
    %s85 = ssub.s32 %s9, %s16
    %p86 = scmp.eq.s32.totalorder %s85, 0
    %s88 = sadd.s32 %s87, 1
    %s89 = scalar_select %p86, %s87, %s88
    %p92 = pneg %p86
    %p93 = scmp.eq.s32.totalorder %s9, 1
    %p94 = por %p92, %p93
    %p95 = scmp.ne.s32.totalorder %s87, %s90
    %p96 = scmp.eq.s32.totalorder %s9, 0
    %p97 = por %p95, %p96
    %p98 = scmp.ne.s32.totalorder %s87, %s90
    %p99 = scmp.eq.s32.totalorder %s14, 1
    %p100 = por %p98, %p99
    %p101 = scmp.ne.s32.totalorder %s90, %s91
    %p102 = scmp.eq.s32.totalorder %s14, 0
    %p103 = por %p101, %p102
    %p104 = scmp.ne.s32.totalorder %s90, %s91
    %p105 = scmp.eq.s32.totalorder %s15, 1
    %p106 = por %p104, %p105
    %p108 = scmp.ne.s32.totalorder %s91, %s107
    %p109 = scmp.eq.s32.totalorder %s15, 0
    %p110 = por %p108, %p109
    %p111 = scmp.le.s32.totalorder 1, %s9
    %p112 = scmp.lt.s32.totalorder %s9, 3
    %p113 = pnand %p111, %p112
    %p114 = pneg %p113
    // Predicated region
    $region9: #{_lambda_.38} parent=5 // pred_check
      _
    $region10: #{_lambda_.38} parent=5 // pred_check_branch
      %116 = sbr.rel (%p113) target = $region12
    $region11: #{_lambda_.38} parent=5 // pred_region
      %s117 = ssub.s32 %s9, 1
      // Predicated region
      $region13: #{_lambda_.38} parent=11 // pred_check
        %p118 = pneg %p56
      $region14: #{_lambda_.38} parent=11 // pred_check_branch
        %120 = sbr.rel (%p118) target = $region16
      $region15: #{_lambda_.38} parent=11 // pred_region
        _
      $region16: #{_lambda_.38} parent=11 // pred_fallthru
        _
      // Predicated region
      $region17: #{_lambda_.38} parent=11 // pred_check
        %p121 = pneg %p77
      $region18: #{_lambda_.38} parent=11 // pred_check_branch
        %123 = sbr.rel (%p121) target = $region20
      $region19: #{_lambda_.38} parent=11 // pred_region
        _
      $region20: #{_lambda_.38} parent=11 // pred_fallthru
        _
    $region12: #{_lambda_.38} parent=5 // pred_fallthru
      _
    %p124 = scmp.lt.s32.totalorder %s9, 2
    // Predicated region
    $region21: #{_lambda_.38} parent=5 // pred_check
      %p125 = pneg %p124
    $region22: #{_lambda_.38} parent=5 // pred_check_branch
      %127 = sbr.rel (%p125) target = $region24
    $region23: #{_lambda_.38} parent=5 // pred_region
      // Predicated region
      $region25: #{_lambda_.38} parent=23 // pred_check
        %p128 = pneg %p29
      $region26: #{_lambda_.38} parent=23 // pred_check_branch
        %130 = sbr.rel (%p128) target = $region28
      $region27: #{_lambda_.38} parent=23 // pred_region
        %s131 = smul.u32 2, %s9
        %p132 = scmp.lt.s32.totalorder %s131, 3
        %s133 = scalar_select %p132, %s131, 3
        %s134 = smul.addr %s133, 8
        %s135 = scalar_lea.vmem %s0, %s134
        %s136 = smul.u32 2, %s9
      $region28: #{_lambda_.38} parent=23 // pred_fallthru
        _
    $region24: #{_lambda_.38} parent=5 // pred_fallthru
      _
    %p137 = scmp.le.s32.totalorder 1, %s9
    %p138 = scmp.lt.s32.totalorder %s9, 3
    %p139 = pnand %p137, %p138
    %p140 = pneg %p139
    // Predicated region
    $region29: #{_lambda_.38} parent=5 // pred_check
      _
    $region30: #{_lambda_.38} parent=5 // pred_check_branch
      %142 = sbr.rel (%p139) target = $region32
    $region31: #{_lambda_.38} parent=5 // pred_region
      %s143 = ssub.s32 %s9, 1
      %s144 = smul.u32 2, %s14
      %p145 = scmp.lt.s32.totalorder %s144, 3
      %s146 = scalar_select %p145, %s144, 3
      %s147 = smul.addr %s146, 8
      %s148 = scalar_lea.vmem %s0, %s147
      %p149 = pneg %p35
      %p150 = pneg %p32
      %p151 = pneg %p56
      %p152 = pneg %p53
      %p153 = pneg %p77
      %p154 = pneg %p74
      %p155 = pneg %p103
      %p156 = pneg %p100
      %s157 = smul.u32 2, %s14
      %p158 = scmp.lt.s32.totalorder %s157, 3
      %s159 = scalar_select %p158, %s157, 3
      %s160 = smul.addr %s159, 8
      %s161 = scalar_lea.vmem %s3, %s160
      %s162 = smul.u32 2, %s14
      %p163 = scmp.lt.s32.totalorder %s162, 3
      %s164 = scalar_select %p163, %s162, 3
      %s165 = smul.addr %s164, 8
      %s166 = scalar_lea.vmem %s0, %s165
      %s167 = smul.u32 2, %s14
      %s168 = smul.u32 2, %s14
      %p169 = scmp.lt.s32.totalorder %s168, 3
      %s170 = scalar_select %p169, %s168, 3
      %s171 = smul.addr %s170, 8
      %s172 = scalar_lea.vmem %s3, %s171
      %s173 = smul.u32 2, %s14
      %v174 = vld [vmem:[%s166] sm:$0xff]
      %v175 = vld [vmem:[%s166 + $0x8] sm:$0xff]
      %v176 = vld [vmem:[%s1] sm:$0x1]
      %v177 = vld [vmem:[%s2] sm:$0x1]
      %vm178 = vcmask 261120
      %v179 = vsel %vm178, %v174, 0.0
      %180 = vadd.xlane.f32.xlu0 %v179
      %v181 = vpop.xlane.xlu0 %180
      %v182 = vsel %vm178, %v175, 0.0
      %183 = vadd.xlane.f32.xlu0 %v182
      %v184 = vpop.xlane.xlu0 %183
      %v185 = vrcp.pop 32.0
      %v186 = vmul.f32 %v181, %v185
      %v187 = vmul.f32 %v184, %v185
      %v188 = vsub.f32 %v174, %v186
      %v189 = vsub.f32 %v175, %v187
      %v190 = vmul.f32 %v188, %v188
      %v191 = vmul.f32 %v189, %v189
      %v192 = vsel %vm178, %v190, 0.0
      %193 = vadd.xlane.f32.xlu0 %v192
      %v194 = vpop.xlane.xlu0 %193
      %v195 = vsel %vm178, %v191, 0.0
      %196 = vadd.xlane.f32.xlu0 %v195
      %v197 = vpop.xlane.xlu0 %196
      %v198 = vmul.f32 %v194, %v185
      %v199 = vmul.f32 %v197, %v185
      %v200 = vadd.f32 %v198, 1e-05
      %v201 = vadd.f32 %v199, 1e-05
      %v202 = vrsqrt.pop %v200
      %v203 = vrsqrt.pop %v201
      %v204 = vmul.f32 %v188, %v202
      %v205 = vmul.f32 %v189, %v203
      %v207 = vlaneseq
      %v208 = vshrl.u32 %v207, 7
      %v209 = vsub.s32 0, %v208
      %v210 = vrot.slane %v176, %v209
      %v212 = vmul.f32 %v204, %v210
      %v213 = vmul.f32 %v205, %v210
      %v215 = vlaneseq
      %v216 = vshrl.u32 %v215, 7
      %v217 = vsub.s32 0, %v216
      %v218 = vrot.slane %v177, %v217
      %v220 = vadd.f32 %v212, %v218
      %v221 = vadd.f32 %v213, %v218
      %222 = vst.msk [vmem:[%s172] sm:$0xff] %vm178, %v220
      %223 = vst.msk [vmem:[%s172 + $0x8] sm:$0xff] %vm178, %v221
      %s224 = smul.u32 2, %s14
      %p225 = scmp.lt.s32.totalorder %s224, 3
      %s226 = scalar_select %p225, %s224, 3
      %s227 = smul.addr %s226, 8
      %s228 = scalar_lea.vmem %s3, %s227
      // Predicated region
      $region33: #{_lambda_.38} parent=31 // pred_check
        %p229 = pneg %p100
      $region34: #{_lambda_.38} parent=31 // pred_check_branch
        %231 = sbr.rel (%p229) target = $region36
      $region35: #{_lambda_.38} parent=31 // pred_region
        %s232 = smul.u32 2, %s14
      $region36: #{_lambda_.38} parent=31 // pred_fallthru
        _
    $region32: #{_lambda_.38} parent=5 // pred_fallthru
      _
    %p233 = scmp.le.s32.totalorder 2, %s9
    // Predicated region
    $region37: #{_lambda_.38} parent=5 // pred_check
      %p234 = pneg %p233
    $region38: #{_lambda_.38} parent=5 // pred_check_branch
      %236 = sbr.rel (%p234) target = $region40
    $region39: #{_lambda_.38} parent=5 // pred_region
      %s237 = ssub.s32 %s9, 2
      // Predicated region
      $region41: #{_lambda_.38} parent=39 // pred_check
        %p238 = pneg %p106
      $region42: #{_lambda_.38} parent=39 // pred_check_branch
        %240 = sbr.rel (%p238) target = $region44
      $region43: #{_lambda_.38} parent=39 // pred_region
        %s241 = smul.u32 2, %s15
        %p242 = scmp.lt.s32.totalorder %s241, 3
        %s243 = scalar_select %p242, %s241, 3
        %s244 = smul.addr %s243, 8
        %s245 = scalar_lea.vmem %s3, %s244
      $region44: #{_lambda_.38} parent=39 // pred_fallthru
        _
    $region40: #{_lambda_.38} parent=5 // pred_fallthru
      _
  $region6: #{_lambda_.38} parent=0 // loop_footer
    %s13 = sadd.s32 1, %s9
  $region7: #{_lambda_.38} parent=0 // loop_footer_branch
    %8 = sbr.rel target = $region3
  $region8: #{_lambda_.38} parent=0 // loop_exit
    _

// kernel: _lambda_.31
$region0: #{_lambda_.31}
  #allocation0 [shape = 'u32[]', space=smem, size = 0x4, offset = 0x4, fixed_abs, tag = 'smem constant byte address 0x4 - core index']
  #allocation1 [shape = 'u32[144,128]{1,0:T(1,128)}', space=vmem, size = 0x12000, scoped, tag = 'internal scratch']
  %s0 = inlined_call_operand.vmem [shape: bf16[2,4,16,8], index: 0, kind: input, shape index: {}]
  %s1 = inlined_call_operand.vmem [shape: bf16[2,4,16,8], index: 1, kind: input, shape index: {}]
  %s2 = inlined_call_operand.vmem [shape: bf16[2,4,16,8], index: 2, kind: input, shape index: {}]
  %s3 = inlined_call_operand.vmem [shape: f32[4,16,16], index: 3, kind: input, shape index: {}]
  %s4 = inlined_call_operand.vmem [shape: bf16[2,4,16,8], index: 4, kind: output, shape index: {}]
  %s5 = sld [smem:[#allocation0]]
  $region49: #{_lambda_.31} parent=0
    _
  %s7 = ssub.s32 1, %s5
  %s8 = scalar_select 0, %s7, %s5
  loop: start=0, step=1, limit=4
  $region2: #{_lambda_.31} parent=0 // loop_pre_header
    _
  $region3: #{_lambda_.31} parent=0 // loop_header
    %s10 = sphi 0, %s14
    %p11 = scmp.ge.s32.totalorder %s10, 4
    %s20 = sphi 0, %s22
    %s23 = sphi 0, %s20
    %s24 = sphi 0, %s23
    %s40 = sphi 0, %s24
    %s46 = sphi 0, %s48
    %s49 = sphi 0, %s46
    %s50 = sphi 0, %s49
    %s66 = sphi 0, %s50
    %s72 = sphi 0, %s74
    %s75 = sphi 0, %s72
    %s76 = sphi 0, %s75
    %s92 = sphi 0, %s76
    %s96 = sphi 0, %s96
    %s98 = sphi 0, %s96
    %s99 = sphi 0, %s98
    %s113 = sphi 0, %s99
    %s119 = sphi 0, %s121
    %s122 = sphi 0, %s119
    %s123 = sphi 0, %s122
    %s139 = sphi 0, %s123
  $region4: #{_lambda_.31} parent=0 // loop_header_branch
    %13 = sbr.rel (%p11) target = $region8
  $region5: #{_lambda_.31} parent=0 // loop_body
    %s15 = ssub.s32 %s10, 1
    %s16 = ssub.s32 %s10, 2
    %s17 = sadd.s32 %s10, 1
    %s18 = ssub.s32 %s10, %s17
    %p19 = scmp.eq.s32.totalorder %s18, 0
    %s21 = sadd.s32 %s20, 1
    %s22 = scalar_select %p19, %s20, %s21
    %p25 = pneg %p19
    %p26 = scmp.eq.s32.totalorder %s10, 1
    %p27 = por %p25, %p26
    %p28 = scmp.ne.s32.totalorder %s20, %s23
    %p29 = scmp.eq.s32.totalorder %s10, 0
    %p30 = por %p28, %p29
    %p31 = scmp.ne.s32.totalorder %s20, %s23
    %p32 = scmp.eq.s32.totalorder %s15, 1
    %p33 = por %p31, %p32
    %p34 = scmp.ne.s32.totalorder %s23, %s24
    %p35 = scmp.eq.s32.totalorder %s15, 0
    %p36 = por %p34, %p35
    %p37 = scmp.ne.s32.totalorder %s23, %s24
    %p38 = scmp.eq.s32.totalorder %s16, 1
    %p39 = por %p37, %p38
    %p41 = scmp.ne.s32.totalorder %s24, %s40
    %p42 = scmp.eq.s32.totalorder %s16, 0
    %p43 = por %p41, %p42
    %s44 = ssub.s32 %s10, %s17
    %p45 = scmp.eq.s32.totalorder %s44, 0
    %s47 = sadd.s32 %s46, 1
    %s48 = scalar_select %p45, %s46, %s47
    %p51 = pneg %p45
    %p52 = scmp.eq.s32.totalorder %s10, 1
    %p53 = por %p51, %p52
    %p54 = scmp.ne.s32.totalorder %s46, %s49
    %p55 = scmp.eq.s32.totalorder %s10, 0
    %p56 = por %p54, %p55
    %p57 = scmp.ne.s32.totalorder %s46, %s49
    %p58 = scmp.eq.s32.totalorder %s15, 1
    %p59 = por %p57, %p58
    %p60 = scmp.ne.s32.totalorder %s49, %s50
    %p61 = scmp.eq.s32.totalorder %s15, 0
    %p62 = por %p60, %p61
    %p63 = scmp.ne.s32.totalorder %s49, %s50
    %p64 = scmp.eq.s32.totalorder %s16, 1
    %p65 = por %p63, %p64
    %p67 = scmp.ne.s32.totalorder %s50, %s66
    %p68 = scmp.eq.s32.totalorder %s16, 0
    %p69 = por %p67, %p68
    %s70 = ssub.s32 %s10, %s17
    %p71 = scmp.eq.s32.totalorder %s70, 0
    %s73 = sadd.s32 %s72, 1
    %s74 = scalar_select %p71, %s72, %s73
    %p77 = pneg %p71
    %p78 = scmp.eq.s32.totalorder %s10, 1
    %p79 = por %p77, %p78
    %p80 = scmp.ne.s32.totalorder %s72, %s75
    %p81 = scmp.eq.s32.totalorder %s10, 0
    %p82 = por %p80, %p81
    %p83 = scmp.ne.s32.totalorder %s72, %s75
    %p84 = scmp.eq.s32.totalorder %s15, 1
    %p85 = por %p83, %p84
    %p86 = scmp.ne.s32.totalorder %s75, %s76
    %p87 = scmp.eq.s32.totalorder %s15, 0
    %p88 = por %p86, %p87
    %p89 = scmp.ne.s32.totalorder %s75, %s76
    %p90 = scmp.eq.s32.totalorder %s16, 1
    %p91 = por %p89, %p90
    %p93 = scmp.ne.s32.totalorder %s76, %s92
    %p94 = scmp.eq.s32.totalorder %s16, 0
    %p95 = por %p93, %p94
    %s97 = sadd.s32 %s96, 1
    %p100 = scmp.eq.s32.totalorder %s10, 1
    %p101 = scmp.ne.s32.totalorder %s96, %s98
    %p102 = scmp.eq.s32.totalorder %s10, 0
    %p103 = por %p101, %p102
    %p104 = scmp.ne.s32.totalorder %s96, %s98
    %p105 = scmp.eq.s32.totalorder %s15, 1
    %p106 = por %p104, %p105
    %p107 = scmp.ne.s32.totalorder %s98, %s99
    %p108 = scmp.eq.s32.totalorder %s15, 0
    %p109 = por %p107, %p108
    %p110 = scmp.ne.s32.totalorder %s98, %s99
    %p111 = scmp.eq.s32.totalorder %s16, 1
    %p112 = por %p110, %p111
    %p114 = scmp.ne.s32.totalorder %s99, %s113
    %p115 = scmp.eq.s32.totalorder %s16, 0
    %p116 = por %p114, %p115
    %s117 = ssub.s32 %s10, %s17
    %p118 = scmp.eq.s32.totalorder %s117, 0
    %s120 = sadd.s32 %s119, 1
    %s121 = scalar_select %p118, %s119, %s120
    %p124 = pneg %p118
    %p125 = scmp.eq.s32.totalorder %s10, 1
    %p126 = por %p124, %p125
    %p127 = scmp.ne.s32.totalorder %s119, %s122
    %p128 = scmp.eq.s32.totalorder %s10, 0
    %p129 = por %p127, %p128
    %p130 = scmp.ne.s32.totalorder %s119, %s122
    %p131 = scmp.eq.s32.totalorder %s15, 1
    %p132 = por %p130, %p131
    %p133 = scmp.ne.s32.totalorder %s122, %s123
    %p134 = scmp.eq.s32.totalorder %s15, 0
    %p135 = por %p133, %p134
    %p136 = scmp.ne.s32.totalorder %s122, %s123
    %p137 = scmp.eq.s32.totalorder %s16, 1
    %p138 = por %p136, %p137
    %p140 = scmp.ne.s32.totalorder %s123, %s139
    %p141 = scmp.eq.s32.totalorder %s16, 0
    %p142 = por %p140, %p141
    %p143 = scmp.le.s32.totalorder 1, %s10
    %p144 = scmp.lt.s32.totalorder %s10, 3
    %p145 = pnand %p143, %p144
    %p146 = pneg %p145
    // Predicated region
    $region9: #{_lambda_.31} parent=5 // pred_check
      _
    $region10: #{_lambda_.31} parent=5 // pred_check_branch
      %148 = sbr.rel (%p145) target = $region12
    $region11: #{_lambda_.31} parent=5 // pred_region
      %s149 = ssub.s32 %s10, 1
      // Predicated region
      $region13: #{_lambda_.31} parent=11 // pred_check
        %p150 = pneg %p109
      $region14: #{_lambda_.31} parent=11 // pred_check_branch
        %152 = sbr.rel (%p150) target = $region16
      $region15: #{_lambda_.31} parent=11 // pred_region
        _
      $region16: #{_lambda_.31} parent=11 // pred_fallthru
        _
    $region12: #{_lambda_.31} parent=5 // pred_fallthru
      _
    %p153 = scmp.lt.s32.totalorder %s10, 2
    // Predicated region
    $region17: #{_lambda_.31} parent=5 // pred_check
      %p154 = pneg %p153
    $region18: #{_lambda_.31} parent=5 // pred_check_branch
      %156 = sbr.rel (%p154) target = $region20
    $region19: #{_lambda_.31} parent=5 // pred_region
      // Predicated region
      $region21: #{_lambda_.31} parent=19 // pred_check
        %p157 = pneg %p30
      $region22: #{_lambda_.31} parent=19 // pred_check_branch
        %159 = sbr.rel (%p157) target = $region24
      $region23: #{_lambda_.31} parent=19 // pred_region
        %p160 = scmp.lt.s32.totalorder %s10, 1
        %s161 = scalar_select %p160, %s10, 1
        %s162 = smul.addr %s161, 8
        %s163 = smul.addr %s162, 4
        %s164 = scalar_lea.vmem %s0, %s163
      $region24: #{_lambda_.31} parent=19 // pred_fallthru
        _
      // Predicated region
      $region25: #{_lambda_.31} parent=19 // pred_check
        %p165 = pneg %p56
      $region26: #{_lambda_.31} parent=19 // pred_check_branch
        %167 = sbr.rel (%p165) target = $region28
      $region27: #{_lambda_.31} parent=19 // pred_region
        %p168 = scmp.lt.s32.totalorder %s10, 1
        %s169 = scalar_select %p168, %s10, 1
        %s170 = smul.addr %s169, 8
        %s171 = smul.addr %s170, 4
        %s172 = scalar_lea.vmem %s1, %s171
      $region28: #{_lambda_.31} parent=19 // pred_fallthru
        _
      // Predicated region
      $region29: #{_lambda_.31} parent=19 // pred_check
        %p173 = pneg %p82
      $region30: #{_lambda_.31} parent=19 // pred_check_branch
        %175 = sbr.rel (%p173) target = $region32
      $region31: #{_lambda_.31} parent=19 // pred_region
        %p176 = scmp.lt.s32.totalorder %s10, 1
        %s177 = scalar_select %p176, %s10, 1
        %s178 = smul.addr %s177, 8
        %s179 = smul.addr %s178, 4
        %s180 = scalar_lea.vmem %s2, %s179
      $region32: #{_lambda_.31} parent=19 // pred_fallthru
        _
    $region20: #{_lambda_.31} parent=5 // pred_fallthru
      _
    %p181 = scmp.le.s32.totalorder 1, %s10
    %p182 = scmp.lt.s32.totalorder %s10, 3
    %p183 = pnand %p181, %p182
    %p184 = pneg %p183
    // Predicated region
    $region33: #{_lambda_.31} parent=5 // pred_check
      _
    $region34: #{_lambda_.31} parent=5 // pred_check_branch
      %186 = sbr.rel (%p183) target = $region36
    $region35: #{_lambda_.31} parent=5 // pred_region
      %s187 = ssub.s32 %s10, 1
      %p188 = scmp.lt.s32.totalorder %s15, 1
      %s189 = scalar_select %p188, %s15, 1
      %s190 = smul.addr %s189, 8
      %s191 = smul.addr %s190, 4
      %s192 = scalar_lea.vmem %s0, %s191
      %p193 = pneg %p36
      %p194 = pneg %p33
      %p195 = scmp.lt.s32.totalorder %s15, 1
      %s196 = scalar_select %p195, %s15, 1
      %s197 = smul.addr %s196, 8
      %s198 = smul.addr %s197, 4
      %s199 = scalar_lea.vmem %s1, %s198
      %p200 = pneg %p62
      %p201 = pneg %p59
      %p202 = scmp.lt.s32.totalorder %s15, 1
      %s203 = scalar_select %p202, %s15, 1
      %s204 = smul.addr %s203, 8
      %s205 = smul.addr %s204, 4
      %s206 = scalar_lea.vmem %s2, %s205
      %p207 = pneg %p88
      %p208 = pneg %p85
      %p209 = pneg %p109
      %p210 = pneg %p106
      %p211 = pneg %p135
      %p212 = pneg %p132
      %p213 = scmp.lt.s32.totalorder %s15, 1
      %s214 = scalar_select %p213, %s15, 1
      %s215 = smul.addr %s214, 8
      %s216 = smul.addr %s215, 4
      %s217 = scalar_lea.vmem %s4, %s216
      %p218 = scmp.lt.s32.totalorder %s15, 1
      %s219 = scalar_select %p218, %s15, 1
      %s220 = smul.addr %s219, 8
      %s221 = smul.addr %s220, 4
      %s222 = scalar_lea.vmem %s0, %s221
      %p223 = scmp.lt.s32.totalorder %s15, 1
      %s224 = scalar_select %p223, %s15, 1
      %s225 = smul.addr %s224, 8
      %s226 = smul.addr %s225, 4
      %s227 = scalar_lea.vmem %s1, %s226
      %p228 = scmp.lt.s32.totalorder %s15, 1
      %s229 = scalar_select %p228, %s15, 1
      %s230 = smul.addr %s229, 8
      %s231 = smul.addr %s230, 4
      %s232 = scalar_lea.vmem %s2, %s231
      %p233 = scmp.lt.s32.totalorder %s15, 1
      %s234 = scalar_select %p233, %s15, 1
      %s235 = smul.addr %s234, 8
      %s236 = smul.addr %s235, 4
      %s237 = scalar_lea.vmem %s4, %s236
      %v239 = vld [vmem:[%s222] sm:$0xf]
      %v240 = vld [vmem:[%s222 + $0x4] sm:$0xf]
      %v241 = vld [vmem:[%s222 + $0x8] sm:$0xf]
      %v242 = vld [vmem:[%s222 + $0xc] sm:$0xf]
      %v243 = vld [vmem:[%s222 + $0x10] sm:$0xf]
      %v244 = vld [vmem:[%s222 + $0x14] sm:$0xf]
      %v245 = vld [vmem:[%s222 + $0x18] sm:$0xf]
      %v246 = vld [vmem:[%s222 + $0x1c] sm:$0xf]
      %v247 = vld [vmem:[%s227] sm:$0xf]
      %v248 = vld [vmem:[%s227 + $0x4] sm:$0xf]
      %v249 = vld [vmem:[%s227 + $0x8] sm:$0xf]
      %v250 = vld [vmem:[%s227 + $0xc] sm:$0xf]
      %v251 = vld [vmem:[%s227 + $0x10] sm:$0xf]
      %v252 = vld [vmem:[%s227 + $0x14] sm:$0xf]
      %v253 = vld [vmem:[%s227 + $0x18] sm:$0xf]
      %v254 = vld [vmem:[%s227 + $0x1c] sm:$0xf]
      %v255 = vld [vmem:[%s232] sm:$0xf]
      %v256 = vld [vmem:[%s232 + $0x4] sm:$0xf]
      %v257 = vld [vmem:[%s232 + $0x8] sm:$0xf]
      %v258 = vld [vmem:[%s232 + $0xc] sm:$0xf]
      %v259 = vld [vmem:[%s232 + $0x10] sm:$0xf]
      %v260 = vld [vmem:[%s232 + $0x14] sm:$0xf]
      %v261 = vld [vmem:[%s232 + $0x18] sm:$0xf]
      %v262 = vld [vmem:[%s232 + $0x1c] sm:$0xf]
      %v263 = vld [vmem:[%s3] sm:$0xff]
      %v264 = vld [vmem:[%s3 + $0x8] sm:$0xff]
      %v265 = vld [vmem:[%s3 + $0x10] sm:$0xff]
      %v266 = vld [vmem:[%s3 + $0x18] sm:$0xff]
      %v267 = vld [vmem:[%s3 + $0x20] sm:$0xff]
      %v268 = vld [vmem:[%s3 + $0x28] sm:$0xff]
      %v269 = vld [vmem:[%s3 + $0x30] sm:$0xff]
      %v270 = vld [vmem:[%s3 + $0x38] sm:$0xff]
      %v273 = vunpack.c.l.b16 %v239
      %v274 = vunpack.c.l.b16 %v240
      %v275 = vpack.c.b16 %v274, %v273
      %v278 = vunpack.c.l.b16 %v247
      %v279 = vunpack.c.l.b16 %v248
      %v280 = vpack.c.b16 %v279, %v278
      %vm281 = vcmask 64512
      %v283 = vsel %vm281, %v275, 0
      %v286 = vsel %vm281, %v280, 0
      %288 = vmatprep.subr.bf16.mxu0 0
      %289 = vmatpush1.bf16.xpose.msra.mxu0 0
      %290 = vmatprep.subr.bf16.mxu0 0
      %291 = vmatpush1.bf16.xpose.msra.mxu0 0
      %292 = vmatprep.subr.bf16.mxu0 0
      %293 = vmatpush1.bf16.xpose.msra.mxu0 0
      %294 = vmatprep.subr.bf16.mxu0 0
      %295 = vmatpush1.bf16.xpose.msra.mxu0 0
      %296 = vmatprep.subr.bf16.mxu0 0
      %297 = vmatpush1.bf16.xpose.msra.mxu0 0
      %298 = vmatprep.subr.bf16.mxu0 0
      %299 = vmatpush1.bf16.xpose.msra.mxu0 0
      %300 = vmatprep.subr.bf16.mxu0 0
      %301 = vmatpush1.bf16.xpose.msra.mxu0 0
      %302 = vmatprep.subr.bf16.mxu0 0
      %303 = vmatpush1.bf16.xpose.msra.mxu0 %v286
      %304 = vmatprep.subr.bf16.mxu0 0
      %305 = vmatpush2.bf16.xpose.msra.mxu0 0
      %306 = vmatprep.subr.bf16.mxu0 0
      %307 = vmatpush2.bf16.xpose.msra.mxu0 0
      %308 = vmatprep.subr.bf16.mxu0 0
      %309 = vmatpush2.bf16.xpose.msra.mxu0 0
      %310 = vmatprep.subr.bf16.mxu0 0
      %311 = vmatpush2.bf16.xpose.msra.mxu0 0
      %312 = vmatprep.subr.bf16.mxu0 0
      %313 = vmatpush2.bf16.xpose.msra.mxu0 0
      %314 = vmatprep.subr.bf16.mxu0 0
      %315 = vmatpush2.bf16.xpose.msra.mxu0 0
      %316 = vmatprep.subr.bf16.mxu0 0
      %317 = vmatpush2.bf16.xpose.msra.mxu0 0
      %318 = vmatprep.subr.bf16.mxu0 0
      %319 = vmatpush2.bf16.xpose.msra.mxu0 0
      %320 = vmatprep.mubr.bf16.mxu0 0
      %321 = vmatmul.mubr.bf16.gmra.mxu0 %v283
      %v322 = vpop.f32.mrf.mxu0
      %v323 = vadd.f32 %v263, %v322
      %v324 = vpop.f32.mrf.mxu0
      %v325 = vpop.f32.mrf.mxu0
      %v326 = vadd.f32 %v264, %v325
      %v327 = vpop.f32.mrf.mxu0
      %328 = vdwg.mxu0
      %v331 = vunpack.c.l.b16 %v241
      %v332 = vunpack.c.l.b16 %v242
      %v333 = vpack.c.b16 %v332, %v331
      %v336 = vunpack.c.l.b16 %v249
      %v337 = vunpack.c.l.b16 %v250
      %v338 = vpack.c.b16 %v337, %v336
      %v340 = vsel %vm281, %v333, 0
      %v343 = vsel %vm281, %v338, 0
      %345 = vmatprep.subr.bf16.mxu0 0
      %346 = vmatpush1.bf16.xpose.msra.mxu0 0
      %347 = vmatprep.subr.bf16.mxu0 0
      %348 = vmatpush1.bf16.xpose.msra.mxu0 0
      %349 = vmatprep.subr.bf16.mxu0 0
      %350 = vmatpush1.bf16.xpose.msra.mxu0 0
      %351 = vmatprep.subr.bf16.mxu0 0
      %352 = vmatpush1.bf16.xpose.msra.mxu0 0
      %353 = vmatprep.subr.bf16.mxu0 0
      %354 = vmatpush1.bf16.xpose.msra.mxu0 0
      %355 = vmatprep.subr.bf16.mxu0 0
      %356 = vmatpush1.bf16.xpose.msra.mxu0 0
      %357 = vmatprep.subr.bf16.mxu0 0
      %358 = vmatpush1.bf16.xpose.msra.mxu0 0
      %359 = vmatprep.subr.bf16.mxu0 0
      %360 = vmatpush1.bf16.xpose.msra.mxu0 %v343
      %361 = vmatprep.subr.bf16.mxu0 0
      %362 = vmatpush2.bf16.xpose.msra.mxu0 0
      %363 = vmatprep.subr.bf16.mxu0 0
      %364 = vmatpush2.bf16.xpose.msra.mxu0 0
      %365 = vmatprep.subr.bf16.mxu0 0
      %366 = vmatpush2.bf16.xpose.msra.mxu0 0
      %367 = vmatprep.subr.bf16.mxu0 0
      %368 = vmatpush2.bf16.xpose.msra.mxu0 0
      %369 = vmatprep.subr.bf16.mxu0 0
      %370 = vmatpush2.bf16.xpose.msra.mxu0 0
      %371 = vmatprep.subr.bf16.mxu0 0
      %372 = vmatpush2.bf16.xpose.msra.mxu0 0
      %373 = vmatprep.subr.bf16.mxu0 0
      %374 = vmatpush2.bf16.xpose.msra.mxu0 0
      %375 = vmatprep.subr.bf16.mxu0 0
      %376 = vmatpush2.bf16.xpose.msra.mxu0 0
      %377 = vmatprep.mubr.bf16.mxu0 0
      %378 = vmatmul.mubr.bf16.gmra.mxu0 %v340
      %v379 = vpop.f32.mrf.mxu0
      %v380 = vadd.f32 %v265, %v379
      %v381 = vpop.f32.mrf.mxu0
      %v382 = vpop.f32.mrf.mxu0
      %v383 = vadd.f32 %v266, %v382
      %v384 = vpop.f32.mrf.mxu0
      %385 = vdwg.mxu0
      %v388 = vunpack.c.l.b16 %v243
      %v389 = vunpack.c.l.b16 %v244
      %v390 = vpack.c.b16 %v389, %v388
      %v393 = vunpack.c.l.b16 %v251
      %v394 = vunpack.c.l.b16 %v252
      %v395 = vpack.c.b16 %v394, %v393
      %v397 = vsel %vm281, %v390, 0
      %v400 = vsel %vm281, %v395, 0
      %402 = vmatprep.subr.bf16.mxu0 0
      %403 = vmatpush1.bf16.xpose.msra.mxu0 0
      %404 = vmatprep.subr.bf16.mxu0 0
      %405 = vmatpush1.bf16.xpose.msra.mxu0 0
      %406 = vmatprep.subr.bf16.mxu0 0
      %407 = vmatpush1.bf16.xpose.msra.mxu0 0
      %408 = vmatprep.subr.bf16.mxu0 0
      %409 = vmatpush1.bf16.xpose.msra.mxu0 0
      %410 = vmatprep.subr.bf16.mxu0 0
      %411 = vmatpush1.bf16.xpose.msra.mxu0 0
      %412 = vmatprep.subr.bf16.mxu0 0
      %413 = vmatpush1.bf16.xpose.msra.mxu0 0
      %414 = vmatprep.subr.bf16.mxu0 0
      %415 = vmatpush1.bf16.xpose.msra.mxu0 0
      %416 = vmatprep.subr.bf16.mxu0 0
      %417 = vmatpush1.bf16.xpose.msra.mxu0 %v400
      %418 = vmatprep.subr.bf16.mxu0 0
      %419 = vmatpush2.bf16.xpose.msra.mxu0 0
      %420 = vmatprep.subr.bf16.mxu0 0
      %421 = vmatpush2.bf16.xpose.msra.mxu0 0
      %422 = vmatprep.subr.bf16.mxu0 0
      %423 = vmatpush2.bf16.xpose.msra.mxu0 0
      %424 = vmatprep.subr.bf16.mxu0 0
      %425 = vmatpush2.bf16.xpose.msra.mxu0 0
      %426 = vmatprep.subr.bf16.mxu0 0
      %427 = vmatpush2.bf16.xpose.msra.mxu0 0
      %428 = vmatprep.subr.bf16.mxu0 0
      %429 = vmatpush2.bf16.xpose.msra.mxu0 0
      %430 = vmatprep.subr.bf16.mxu0 0
      %431 = vmatpush2.bf16.xpose.msra.mxu0 0
      %432 = vmatprep.subr.bf16.mxu0 0
      %433 = vmatpush2.bf16.xpose.msra.mxu0 0
      %434 = vmatprep.mubr.bf16.mxu0 0
      %435 = vmatmul.mubr.bf16.gmra.mxu0 %v397
      %v436 = vpop.f32.mrf.mxu0
      %v437 = vadd.f32 %v267, %v436
      %v438 = vpop.f32.mrf.mxu0
      %v439 = vpop.f32.mrf.mxu0
      %v440 = vadd.f32 %v268, %v439
      %v441 = vpop.f32.mrf.mxu0
      %442 = vdwg.mxu0
      %v445 = vunpack.c.l.b16 %v245
      %v446 = vunpack.c.l.b16 %v246
      %v447 = vpack.c.b16 %v446, %v445
      %v450 = vunpack.c.l.b16 %v253
      %v451 = vunpack.c.l.b16 %v254
      %v452 = vpack.c.b16 %v451, %v450
      %v454 = vsel %vm281, %v447, 0
      %v457 = vsel %vm281, %v452, 0
      %459 = vmatprep.subr.bf16.mxu0 0
      %460 = vmatpush1.bf16.xpose.msra.mxu0 0
      %461 = vmatprep.subr.bf16.mxu0 0
      %462 = vmatpush1.bf16.xpose.msra.mxu0 0
      %463 = vmatprep.subr.bf16.mxu0 0
      %464 = vmatpush1.bf16.xpose.msra.mxu0 0
      %465 = vmatprep.subr.bf16.mxu0 0
      %466 = vmatpush1.bf16.xpose.msra.mxu0 0
      %467 = vmatprep.subr.bf16.mxu0 0
      %468 = vmatpush1.bf16.xpose.msra.mxu0 0
      %469 = vmatprep.subr.bf16.mxu0 0
      %470 = vmatpush1.bf16.xpose.msra.mxu0 0
      %471 = vmatprep.subr.bf16.mxu0 0
      %472 = vmatpush1.bf16.xpose.msra.mxu0 0
      %473 = vmatprep.subr.bf16.mxu0 0
      %474 = vmatpush1.bf16.xpose.msra.mxu0 %v457
      %475 = vmatprep.subr.bf16.mxu0 0
      %476 = vmatpush2.bf16.xpose.msra.mxu0 0
      %477 = vmatprep.subr.bf16.mxu0 0
      %478 = vmatpush2.bf16.xpose.msra.mxu0 0
      %479 = vmatprep.subr.bf16.mxu0 0
      %480 = vmatpush2.bf16.xpose.msra.mxu0 0
      %481 = vmatprep.subr.bf16.mxu0 0
      %482 = vmatpush2.bf16.xpose.msra.mxu0 0
      %483 = vmatprep.subr.bf16.mxu0 0
      %484 = vmatpush2.bf16.xpose.msra.mxu0 0
      %485 = vmatprep.subr.bf16.mxu0 0
      %486 = vmatpush2.bf16.xpose.msra.mxu0 0
      %487 = vmatprep.subr.bf16.mxu0 0
      %488 = vmatpush2.bf16.xpose.msra.mxu0 0
      %489 = vmatprep.subr.bf16.mxu0 0
      %490 = vmatpush2.bf16.xpose.msra.mxu0 0
      %491 = vmatprep.mubr.bf16.mxu0 0
      %492 = vmatmul.mubr.bf16.gmra.mxu0 %v454
      %v493 = vpop.f32.mrf.mxu0
      %v494 = vadd.f32 %v269, %v493
      %v495 = vpop.f32.mrf.mxu0
      %v496 = vpop.f32.mrf.mxu0
      %v497 = vadd.f32 %v270, %v496
      %v498 = vpop.f32.mrf.mxu0
      %499 = vdwg.mxu0
      %vm500 = vcmask 130048
      %v501 = vsel %vm500, %v323, -inf
      %502 = vmax.xlane.f32.xlu0 %v501
      %v503 = vpop.xlane.xlu0 %502
      %v504 = vsel %vm500, %v326, -inf
      %505 = vmax.xlane.f32.xlu0 %v504
      %v506 = vpop.xlane.xlu0 %505
      %v507 = vsel %vm500, %v380, -inf
      %508 = vmax.xlane.f32.xlu0 %v507
      %v509 = vpop.xlane.xlu0 %508
      %v510 = vsel %vm500, %v383, -inf
      %511 = vmax.xlane.f32.xlu0 %v510
      %v512 = vpop.xlane.xlu0 %511
      %v513 = vsel %vm500, %v437, -inf
      %514 = vmax.xlane.f32.xlu0 %v513
      %v515 = vpop.xlane.xlu0 %514
      %v516 = vsel %vm500, %v440, -inf
      %517 = vmax.xlane.f32.xlu0 %v516
      %v518 = vpop.xlane.xlu0 %517
      %v519 = vsel %vm500, %v494, -inf
      %520 = vmax.xlane.f32.xlu0 %v519
      %v521 = vpop.xlane.xlu0 %520
      %v522 = vsel %vm500, %v497, -inf
      %523 = vmax.xlane.f32.xlu0 %v522
      %v524 = vpop.xlane.xlu0 %523
      %v525 = vsub.f32 %v323, %v503
      %v526 = vsub.f32 %v326, %v506
      %v527 = vsub.f32 %v380, %v509
      %v528 = vsub.f32 %v383, %v512
      %v529 = vsub.f32 %v437, %v515
      %v530 = vsub.f32 %v440, %v518
      %v531 = vsub.f32 %v494, %v521
      %v532 = vsub.f32 %v497, %v524
      %v533 = vmul.f32 %v525, 1.442695
      %v534 = vpow.pop %v533
      %v535 = vmul.f32 %v526, 1.442695
      %v536 = vpow.pop %v535
      %v537 = vmul.f32 %v527, 1.442695
      %v538 = vpow.pop %v537
      %v539 = vmul.f32 %v528, 1.442695
      %v540 = vpow.pop %v539
      %v541 = vmul.f32 %v529, 1.442695
      %v542 = vpow.pop %v541
      %v543 = vmul.f32 %v530, 1.442695
      %v544 = vpow.pop %v543
      %v545 = vmul.f32 %v531, 1.442695
      %v546 = vpow.pop %v545
      %v547 = vmul.f32 %v532, 1.442695
      %v548 = vpow.pop %v547
      %v549 = vsel %vm500, %v534, 0.0
      %550 = vadd.xlane.f32.xlu0 %v549
      %v551 = vpop.xlane.xlu0 %550
      %v552 = vsel %vm500, %v536, 0.0
      %553 = vadd.xlane.f32.xlu0 %v552
      %v554 = vpop.xlane.xlu0 %553
      %v555 = vsel %vm500, %v538, 0.0
      %556 = vadd.xlane.f32.xlu0 %v555
      %v557 = vpop.xlane.xlu0 %556
      %v558 = vsel %vm500, %v540, 0.0
      %559 = vadd.xlane.f32.xlu0 %v558
      %v560 = vpop.xlane.xlu0 %559
      %v561 = vsel %vm500, %v542, 0.0
      %562 = vadd.xlane.f32.xlu0 %v561
      %v563 = vpop.xlane.xlu0 %562
      %v564 = vsel %vm500, %v544, 0.0
      %565 = vadd.xlane.f32.xlu0 %v564
      %v566 = vpop.xlane.xlu0 %565
      %v567 = vsel %vm500, %v546, 0.0
      %568 = vadd.xlane.f32.xlu0 %v567
      %v569 = vpop.xlane.xlu0 %568
      %v570 = vsel %vm500, %v548, 0.0
      %571 = vadd.xlane.f32.xlu0 %v570
      %v572 = vpop.xlane.xlu0 %571
      %v573 = vrcp.pop %v551
      %v574 = vrcp.pop %v554
      %v575 = vrcp.pop %v557
      %v576 = vrcp.pop %v560
      %v577 = vrcp.pop %v563
      %v578 = vrcp.pop %v566
      %v579 = vrcp.pop %v569
      %v580 = vrcp.pop %v572
      %v581 = vmul.f32 %v534, %v573
      %v582 = vmul.f32 %v536, %v574
      %v583 = vmul.f32 %v538, %v575
      %v584 = vmul.f32 %v540, %v576
      %v585 = vmul.f32 %v542, %v577
      %v586 = vmul.f32 %v544, %v578
      %v587 = vmul.f32 %v546, %v579
      %v588 = vmul.f32 %v548, %v580
      %v589 = vpack.c.bf16 %v582, %v581
      %v590 = vpack.c.bf16 %v584, %v583
      %v591 = vpack.c.bf16 %v586, %v585
      %v592 = vpack.c.bf16 %v588, %v587
      %v595 = vunpack.c.l.b16 %v255
      %v596 = vunpack.c.l.b16 %v256
      %v597 = vpack.c.b16 %v596, %v595
      %v600 = vsel %vm500, %v589, 0
      %602 = vmatprep.subr.bf16.mxu0 0
      %603 = vmatpush1.bf16.msra.mxu0 0
      %604 = vmatprep.subr.bf16.mxu0 0
      %605 = vmatpush1.bf16.msra.mxu0 0
      %606 = vmatprep.subr.bf16.mxu0 0
      %607 = vmatpush1.bf16.msra.mxu0 0
      %608 = vmatprep.subr.bf16.mxu0 0
      %609 = vmatpush1.bf16.msra.mxu0 0
      %610 = vmatprep.subr.bf16.mxu0 0
      %611 = vmatpush1.bf16.msra.mxu0 0
      %612 = vmatprep.subr.bf16.mxu0 0
      %613 = vmatpush1.bf16.msra.mxu0 0
      %614 = vmatprep.subr.bf16.mxu0 0
      %615 = vmatpush1.bf16.msra.mxu0 0
      %616 = vmatprep.subr.bf16.mxu0 0
      %617 = vmatpush1.bf16.msra.mxu0 %v597
      %618 = vmatprep.subr.bf16.mxu0 0
      %619 = vmatpush2.bf16.msra.mxu0 0
      %620 = vmatprep.subr.bf16.mxu0 0
      %621 = vmatpush2.bf16.msra.mxu0 0
      %622 = vmatprep.subr.bf16.mxu0 0
      %623 = vmatpush2.bf16.msra.mxu0 0
      %624 = vmatprep.subr.bf16.mxu0 0
      %625 = vmatpush2.bf16.msra.mxu0 0
      %626 = vmatprep.subr.bf16.mxu0 0
      %627 = vmatpush2.bf16.msra.mxu0 0
      %628 = vmatprep.subr.bf16.mxu0 0
      %629 = vmatpush2.bf16.msra.mxu0 0
      %630 = vmatprep.subr.bf16.mxu0 0
      %631 = vmatpush2.bf16.msra.mxu0 0
      %632 = vmatprep.subr.bf16.mxu0 0
      %633 = vmatpush2.bf16.msra.mxu0 0
      %634 = vmatprep.mubr.bf16.mxu0 0
      %635 = vmatmul.mubr.bf16.gmra.mxu0 %v600
      %v636 = vpop.f32.mrf.mxu0
      %v637 = vadd.f32 0.0, %v636
      %v638 = vpop.f32.mrf.mxu0
      %v639 = vpop.f32.mrf.mxu0
      %v640 = vadd.f32 0.0, %v639
      %v641 = vpop.f32.mrf.mxu0
      %642 = vdwg.mxu0
      %v645 = vunpack.c.l.b16 %v257
      %v646 = vunpack.c.l.b16 %v258
      %v647 = vpack.c.b16 %v646, %v645
      %v650 = vsel %vm500, %v590, 0
      %652 = vmatprep.subr.bf16.mxu0 0
      %653 = vmatpush1.bf16.msra.mxu0 0
      %654 = vmatprep.subr.bf16.mxu0 0
      %655 = vmatpush1.bf16.msra.mxu0 0
      %656 = vmatprep.subr.bf16.mxu0 0
      %657 = vmatpush1.bf16.msra.mxu0 0
      %658 = vmatprep.subr.bf16.mxu0 0
      %659 = vmatpush1.bf16.msra.mxu0 0
      %660 = vmatprep.subr.bf16.mxu0 0
      %661 = vmatpush1.bf16.msra.mxu0 0
      %662 = vmatprep.subr.bf16.mxu0 0
      %663 = vmatpush1.bf16.msra.mxu0 0
      %664 = vmatprep.subr.bf16.mxu0 0
      %665 = vmatpush1.bf16.msra.mxu0 0
      %666 = vmatprep.subr.bf16.mxu0 0
      %667 = vmatpush1.bf16.msra.mxu0 %v647
      %668 = vmatprep.subr.bf16.mxu0 0
      %669 = vmatpush2.bf16.msra.mxu0 0
      %670 = vmatprep.subr.bf16.mxu0 0
      %671 = vmatpush2.bf16.msra.mxu0 0
      %672 = vmatprep.subr.bf16.mxu0 0
      %673 = vmatpush2.bf16.msra.mxu0 0
      %674 = vmatprep.subr.bf16.mxu0 0
      %675 = vmatpush2.bf16.msra.mxu0 0
      %676 = vmatprep.subr.bf16.mxu0 0
      %677 = vmatpush2.bf16.msra.mxu0 0
      %678 = vmatprep.subr.bf16.mxu0 0
      %679 = vmatpush2.bf16.msra.mxu0 0
      %680 = vmatprep.subr.bf16.mxu0 0
      %681 = vmatpush2.bf16.msra.mxu0 0
      %682 = vmatprep.subr.bf16.mxu0 0
      %683 = vmatpush2.bf16.msra.mxu0 0
      %684 = vmatprep.mubr.bf16.mxu0 0
      %685 = vmatmul.mubr.bf16.gmra.mxu0 %v650
      %v686 = vpop.f32.mrf.mxu0
      %v687 = vadd.f32 0.0, %v686
      %v688 = vpop.f32.mrf.mxu0
      %v689 = vpop.f32.mrf.mxu0
      %v690 = vadd.f32 0.0, %v689
      %v691 = vpop.f32.mrf.mxu0
      %692 = vdwg.mxu0
      %v695 = vunpack.c.l.b16 %v259
      %v696 = vunpack.c.l.b16 %v260
      %v697 = vpack.c.b16 %v696, %v695
      %v700 = vsel %vm500, %v591, 0
      %702 = vmatprep.subr.bf16.mxu0 0
      %703 = vmatpush1.bf16.msra.mxu0 0
      %704 = vmatprep.subr.bf16.mxu0 0
      %705 = vmatpush1.bf16.msra.mxu0 0
      %706 = vmatprep.subr.bf16.mxu0 0
      %707 = vmatpush1.bf16.msra.mxu0 0
      %708 = vmatprep.subr.bf16.mxu0 0
      %709 = vmatpush1.bf16.msra.mxu0 0
      %710 = vmatprep.subr.bf16.mxu0 0
      %711 = vmatpush1.bf16.msra.mxu0 0
      %712 = vmatprep.subr.bf16.mxu0 0
      %713 = vmatpush1.bf16.msra.mxu0 0
      %714 = vmatprep.subr.bf16.mxu0 0
      %715 = vmatpush1.bf16.msra.mxu0 0
      %716 = vmatprep.subr.bf16.mxu0 0
      %717 = vmatpush1.bf16.msra.mxu0 %v697
      %718 = vmatprep.subr.bf16.mxu0 0
      %719 = vmatpush2.bf16.msra.mxu0 0
      %720 = vmatprep.subr.bf16.mxu0 0
      %721 = vmatpush2.bf16.msra.mxu0 0
      %722 = vmatprep.subr.bf16.mxu0 0
      %723 = vmatpush2.bf16.msra.mxu0 0
      %724 = vmatprep.subr.bf16.mxu0 0
      %725 = vmatpush2.bf16.msra.mxu0 0
      %726 = vmatprep.subr.bf16.mxu0 0
      %727 = vmatpush2.bf16.msra.mxu0 0
      %728 = vmatprep.subr.bf16.mxu0 0
      %729 = vmatpush2.bf16.msra.mxu0 0
      %730 = vmatprep.subr.bf16.mxu0 0
      %731 = vmatpush2.bf16.msra.mxu0 0
      %732 = vmatprep.subr.bf16.mxu0 0
      %733 = vmatpush2.bf16.msra.mxu0 0
      %734 = vmatprep.mubr.bf16.mxu0 0
      %735 = vmatmul.mubr.bf16.gmra.mxu0 %v700
      %v736 = vpop.f32.mrf.mxu0
      %v737 = vadd.f32 0.0, %v736
      %v738 = vpop.f32.mrf.mxu0
      %v739 = vpop.f32.mrf.mxu0
      %v740 = vadd.f32 0.0, %v739
      %v741 = vpop.f32.mrf.mxu0
      %742 = vdwg.mxu0
      %v745 = vunpack.c.l.b16 %v261
      %v746 = vunpack.c.l.b16 %v262
      %v747 = vpack.c.b16 %v746, %v745
      %v750 = vsel %vm500, %v592, 0
      %752 = vmatprep.subr.bf16.mxu0 0
      %753 = vmatpush1.bf16.msra.mxu0 0
      %754 = vmatprep.subr.bf16.mxu0 0
      %755 = vmatpush1.bf16.msra.mxu0 0
      %756 = vmatprep.subr.bf16.mxu0 0
      %757 = vmatpush1.bf16.msra.mxu0 0
      %758 = vmatprep.subr.bf16.mxu0 0
      %759 = vmatpush1.bf16.msra.mxu0 0
      %760 = vmatprep.subr.bf16.mxu0 0
      %761 = vmatpush1.bf16.msra.mxu0 0
      %762 = vmatprep.subr.bf16.mxu0 0
      %763 = vmatpush1.bf16.msra.mxu0 0
      %764 = vmatprep.subr.bf16.mxu0 0
      %765 = vmatpush1.bf16.msra.mxu0 0
      %766 = vmatprep.subr.bf16.mxu0 0
      %767 = vmatpush1.bf16.msra.mxu0 %v747
      %768 = vmatprep.subr.bf16.mxu0 0
      %769 = vmatpush2.bf16.msra.mxu0 0
      %770 = vmatprep.subr.bf16.mxu0 0
      %771 = vmatpush2.bf16.msra.mxu0 0
      %772 = vmatprep.subr.bf16.mxu0 0
      %773 = vmatpush2.bf16.msra.mxu0 0
      %774 = vmatprep.subr.bf16.mxu0 0
      %775 = vmatpush2.bf16.msra.mxu0 0
      %776 = vmatprep.subr.bf16.mxu0 0
      %777 = vmatpush2.bf16.msra.mxu0 0
      %778 = vmatprep.subr.bf16.mxu0 0
      %779 = vmatpush2.bf16.msra.mxu0 0
      %780 = vmatprep.subr.bf16.mxu0 0
      %781 = vmatpush2.bf16.msra.mxu0 0
      %782 = vmatprep.subr.bf16.mxu0 0
      %783 = vmatpush2.bf16.msra.mxu0 0
      %784 = vmatprep.mubr.bf16.mxu0 0
      %785 = vmatmul.mubr.bf16.gmra.mxu0 %v750
      %v786 = vpop.f32.mrf.mxu0
      %v787 = vadd.f32 0.0, %v786
      %v788 = vpop.f32.mrf.mxu0
      %v789 = vpop.f32.mrf.mxu0
      %v790 = vadd.f32 0.0, %v789
      %v791 = vpop.f32.mrf.mxu0
      %792 = vdwg.mxu0
      %v793 = vpack.c.bf16 %v640, %v637
      %v794 = vpack.c.bf16 %v690, %v687
      %v795 = vpack.c.bf16 %v740, %v737
      %v796 = vpack.c.bf16 %v790, %v787
      %v801 = vunpack.c.l.b16 %v793
      %v802 = vunpack.c.h.b16 %v793
      %v803 = vunpack.c.l.b16 %v794
      %v804 = vunpack.c.h.b16 %v794
      %v805 = vunpack.c.l.b16 %v795
      %v806 = vunpack.c.h.b16 %v795
      %v807 = vunpack.c.l.b16 %v796
      %v808 = vunpack.c.h.b16 %v796
      %v809 = vpack.c.b16 %v801, %v801
      %v810 = vpack.c.b16 %v802, %v802
      %v811 = vpack.c.b16 %v803, %v803
      %v812 = vpack.c.b16 %v804, %v804
      %v813 = vpack.c.b16 %v805, %v805
      %v814 = vpack.c.b16 %v806, %v806
      %v815 = vpack.c.b16 %v807, %v807
      %v816 = vpack.c.b16 %v808, %v808
      %vm825 = vcmask 60416
      %826 = vst.msk [vmem:[%s237] sm:$0xf] %vm825, %v809
      %827 = vst.msk [vmem:[%s237 + $0x4] sm:$0xf] %vm825, %v810
      %828 = vst.msk [vmem:[%s237 + $0x8] sm:$0xf] %vm825, %v811
      %829 = vst.msk [vmem:[%s237 + $0xc] sm:$0xf] %vm825, %v812
      %830 = vst.msk [vmem:[%s237 + $0x10] sm:$0xf] %vm825, %v813
      %831 = vst.msk [vmem:[%s237 + $0x14] sm:$0xf] %vm825, %v814
      %832 = vst.msk [vmem:[%s237 + $0x18] sm:$0xf] %vm825, %v815
      %833 = vst.msk [vmem:[%s237 + $0x1c] sm:$0xf] %vm825, %v816
      %p834 = scmp.lt.s32.totalorder %s15, 1
      %s835 = scalar_select %p834, %s15, 1
      %s836 = smul.addr %s835, 8
      %s837 = smul.addr %s836, 4
      %s838 = scalar_lea.vmem %s4, %s837
      // Predicated region
      $region37: #{_lambda_.31} parent=35 // pred_check
        %p839 = pneg %p132
      $region38: #{_lambda_.31} parent=35 // pred_check_branch
        %841 = sbr.rel (%p839) target = $region40
      $region39: #{_lambda_.31} parent=35 // pred_region
        _
      $region40: #{_lambda_.31} parent=35 // pred_fallthru
        _
    $region36: #{_lambda_.31} parent=5 // pred_fallthru
      _
    %p842 = scmp.le.s32.totalorder 2, %s10
    // Predicated region
    $region41: #{_lambda_.31} parent=5 // pred_check
      %p843 = pneg %p842
    $region42: #{_lambda_.31} parent=5 // pred_check_branch
      %845 = sbr.rel (%p843) target = $region44
    $region43: #{_lambda_.31} parent=5 // pred_region
      %s846 = ssub.s32 %s10, 2
      // Predicated region
      $region45: #{_lambda_.31} parent=43 // pred_check
        %p847 = pneg %p138
      $region46: #{_lambda_.31} parent=43 // pred_check_branch
        %849 = sbr.rel (%p847) target = $region48
      $region47: #{_lambda_.31} parent=43 // pred_region
        %p850 = scmp.lt.s32.totalorder %s16, 1
        %s851 = scalar_select %p850, %s16, 1
        %s852 = smul.addr %s851, 8
        %s853 = smul.addr %s852, 4
        %s854 = scalar_lea.vmem %s4, %s853
      $region48: #{_lambda_.31} parent=43 // pred_fallthru
        _
    $region44: #{_lambda_.31} parent=5 // pred_fallthru
      _
  $region6: #{_lambda_.31} parent=0 // loop_footer
    %s14 = sadd.s32 1, %s10
  $region7: #{_lambda_.31} parent=0 // loop_footer_branch
    %9 = sbr.rel target = $region3
  $region8: #{_lambda_.31} parent=0 // loop_exit
    _

// kernel: _lambda_.33
$region0: #{_lambda_.33}
  #allocation0 [shape = 'u32[]', space=smem, size = 0x4, offset = 0x4, fixed_abs, tag = 'smem constant byte address 0x4 - core index']
  #allocation1 [shape = 'u32[144,128]{1,0:T(1,128)}', space=vmem, size = 0x12000, scoped, tag = 'internal scratch']
  %s0 = inlined_call_operand.vmem [shape: f32[32,32], index: 0, kind: input, shape index: {}]
  %s1 = inlined_call_operand.vmem [shape: f32[1,32], index: 1, kind: input, shape index: {}]
  %s2 = inlined_call_operand.vmem [shape: f32[1,32], index: 2, kind: input, shape index: {}, may-alias: {2,6}]
  %s3 = inlined_call_operand.vmem [shape: bf16[32,128], index: 3, kind: input, shape index: {}]
  %s4 = inlined_call_operand.vmem [shape: f32[1,128], index: 4, kind: input, shape index: {}]
  %s5 = inlined_call_operand.vmem [shape: bf16[128,32], index: 5, kind: input, shape index: {}]
  %s6 = inlined_call_operand.vmem [shape: f32[1,32], index: 6, kind: input, shape index: {}, may-alias: {2,6}]
  %s7 = inlined_call_operand.vmem [shape: f32[32,32], index: 7, kind: output, shape index: {}]
  %s8 = sld [smem:[#allocation0]]
  $region61: #{_lambda_.33} parent=0
    _
  %s10 = ssub.s32 1, %s8
  %s11 = scalar_select 0, %s10, %s8
  loop: start=0, step=1, limit=4
  $region2: #{_lambda_.33} parent=0 // loop_pre_header
    _
  $region3: #{_lambda_.33} parent=0 // loop_header
    %s13 = sphi 0, %s17
    %p14 = scmp.ge.s32.totalorder %s13, 4
    %s23 = sphi 0, %s25
    %s26 = sphi 0, %s23
    %s27 = sphi 0, %s26
    %s43 = sphi 0, %s27
    %s47 = sphi 0, %s47
    %s49 = sphi 0, %s47
    %s50 = sphi 0, %s49
    %s64 = sphi 0, %s50
    %s68 = sphi 0, %s68
    %s70 = sphi 0, %s68
    %s71 = sphi 0, %s70
    %s85 = sphi 0, %s71
    %s89 = sphi 0, %s89
    %s91 = sphi 0, %s89
    %s92 = sphi 0, %s91
    %s106 = sphi 0, %s92
    %s110 = sphi 0, %s110
    %s112 = sphi 0, %s110
    %s113 = sphi 0, %s112
    %s127 = sphi 0, %s113
    %s131 = sphi 0, %s131
    %s133 = sphi 0, %s131
    %s134 = sphi 0, %s133
    %s148 = sphi 0, %s134
    %s152 = sphi 0, %s152
    %s154 = sphi 0, %s152
    %s155 = sphi 0, %s154
    %s169 = sphi 0, %s155
    %s175 = sphi 0, %s177
    %s178 = sphi 0, %s175
    %s179 = sphi 0, %s178
    %s195 = sphi 0, %s179
  $region4: #{_lambda_.33} parent=0 // loop_header_branch
    %16 = sbr.rel (%p14) target = $region8
  $region5: #{_lambda_.33} parent=0 // loop_body
    %s18 = ssub.s32 %s13, 1
    %s19 = ssub.s32 %s13, 2
    %s20 = sadd.s32 %s13, 1
    %s21 = ssub.s32 %s13, %s20
    %p22 = scmp.eq.s32.totalorder %s21, 0
    %s24 = sadd.s32 %s23, 1
    %s25 = scalar_select %p22, %s23, %s24
    %p28 = pneg %p22
    %p29 = scmp.eq.s32.totalorder %s13, 1
    %p30 = por %p28, %p29
    %p31 = scmp.ne.s32.totalorder %s23, %s26
    %p32 = scmp.eq.s32.totalorder %s13, 0
    %p33 = por %p31, %p32
    %p34 = scmp.ne.s32.totalorder %s23, %s26
    %p35 = scmp.eq.s32.totalorder %s18, 1
    %p36 = por %p34, %p35
    %p37 = scmp.ne.s32.totalorder %s26, %s27
    %p38 = scmp.eq.s32.totalorder %s18, 0
    %p39 = por %p37, %p38
    %p40 = scmp.ne.s32.totalorder %s26, %s27
    %p41 = scmp.eq.s32.totalorder %s19, 1
    %p42 = por %p40, %p41
    %p44 = scmp.ne.s32.totalorder %s27, %s43
    %p45 = scmp.eq.s32.totalorder %s19, 0
    %p46 = por %p44, %p45
    %s48 = sadd.s32 %s47, 1
    %p51 = scmp.eq.s32.totalorder %s13, 1
    %p52 = scmp.ne.s32.totalorder %s47, %s49
    %p53 = scmp.eq.s32.totalorder %s13, 0
    %p54 = por %p52, %p53
    %p55 = scmp.ne.s32.totalorder %s47, %s49
    %p56 = scmp.eq.s32.totalorder %s18, 1
    %p57 = por %p55, %p56
    %p58 = scmp.ne.s32.totalorder %s49, %s50
    %p59 = scmp.eq.s32.totalorder %s18, 0
    %p60 = por %p58, %p59
    %p61 = scmp.ne.s32.totalorder %s49, %s50
    %p62 = scmp.eq.s32.totalorder %s19, 1
    %p63 = por %p61, %p62
    %p65 = scmp.ne.s32.totalorder %s50, %s64
    %p66 = scmp.eq.s32.totalorder %s19, 0
    %p67 = por %p65, %p66
    %s69 = sadd.s32 %s68, 1
    %p72 = scmp.eq.s32.totalorder %s13, 1
    %p73 = scmp.ne.s32.totalorder %s68, %s70
    %p74 = scmp.eq.s32.totalorder %s13, 0
    %p75 = por %p73, %p74
    %p76 = scmp.ne.s32.totalorder %s68, %s70
    %p77 = scmp.eq.s32.totalorder %s18, 1
    %p78 = por %p76, %p77
    %p79 = scmp.ne.s32.totalorder %s70, %s71
    %p80 = scmp.eq.s32.totalorder %s18, 0
    %p81 = por %p79, %p80
    %p82 = scmp.ne.s32.totalorder %s70, %s71
    %p83 = scmp.eq.s32.totalorder %s19, 1
    %p84 = por %p82, %p83
    %p86 = scmp.ne.s32.totalorder %s71, %s85
    %p87 = scmp.eq.s32.totalorder %s19, 0
    %p88 = por %p86, %p87
    %s90 = sadd.s32 %s89, 1
    %p93 = scmp.eq.s32.totalorder %s13, 1
    %p94 = scmp.ne.s32.totalorder %s89, %s91
    %p95 = scmp.eq.s32.totalorder %s13, 0
    %p96 = por %p94, %p95
    %p97 = scmp.ne.s32.totalorder %s89, %s91
    %p98 = scmp.eq.s32.totalorder %s18, 1
    %p99 = por %p97, %p98
    %p100 = scmp.ne.s32.totalorder %s91, %s92
    %p101 = scmp.eq.s32.totalorder %s18, 0
    %p102 = por %p100, %p101
    %p103 = scmp.ne.s32.totalorder %s91, %s92
    %p104 = scmp.eq.s32.totalorder %s19, 1
    %p105 = por %p103, %p104
    %p107 = scmp.ne.s32.totalorder %s92, %s106
    %p108 = scmp.eq.s32.totalorder %s19, 0
    %p109 = por %p107, %p108
    %s111 = sadd.s32 %s110, 1
    %p114 = scmp.eq.s32.totalorder %s13, 1
    %p115 = scmp.ne.s32.totalorder %s110, %s112
    %p116 = scmp.eq.s32.totalorder %s13, 0
    %p117 = por %p115, %p116
    %p118 = scmp.ne.s32.totalorder %s110, %s112
    %p119 = scmp.eq.s32.totalorder %s18, 1
    %p120 = por %p118, %p119
    %p121 = scmp.ne.s32.totalorder %s112, %s113
    %p122 = scmp.eq.s32.totalorder %s18, 0
    %p123 = por %p121, %p122
    %p124 = scmp.ne.s32.totalorder %s112, %s113
    %p125 = scmp.eq.s32.totalorder %s19, 1
    %p126 = por %p124, %p125
    %p128 = scmp.ne.s32.totalorder %s113, %s127
    %p129 = scmp.eq.s32.totalorder %s19, 0
    %p130 = por %p128, %p129
    %s132 = sadd.s32 %s131, 1
    %p135 = scmp.eq.s32.totalorder %s13, 1
    %p136 = scmp.ne.s32.totalorder %s131, %s133
    %p137 = scmp.eq.s32.totalorder %s13, 0
    %p138 = por %p136, %p137
    %p139 = scmp.ne.s32.totalorder %s131, %s133
    %p140 = scmp.eq.s32.totalorder %s18, 1
    %p141 = por %p139, %p140
    %p142 = scmp.ne.s32.totalorder %s133, %s134
    %p143 = scmp.eq.s32.totalorder %s18, 0
    %p144 = por %p142, %p143
    %p145 = scmp.ne.s32.totalorder %s133, %s134
    %p146 = scmp.eq.s32.totalorder %s19, 1
    %p147 = por %p145, %p146
    %p149 = scmp.ne.s32.totalorder %s134, %s148
    %p150 = scmp.eq.s32.totalorder %s19, 0
    %p151 = por %p149, %p150
    %s153 = sadd.s32 %s152, 1
    %p156 = scmp.eq.s32.totalorder %s13, 1
    %p157 = scmp.ne.s32.totalorder %s152, %s154
    %p158 = scmp.eq.s32.totalorder %s13, 0
    %p159 = por %p157, %p158
    %p160 = scmp.ne.s32.totalorder %s152, %s154
    %p161 = scmp.eq.s32.totalorder %s18, 1
    %p162 = por %p160, %p161
    %p163 = scmp.ne.s32.totalorder %s154, %s155
    %p164 = scmp.eq.s32.totalorder %s18, 0
    %p165 = por %p163, %p164
    %p166 = scmp.ne.s32.totalorder %s154, %s155
    %p167 = scmp.eq.s32.totalorder %s19, 1
    %p168 = por %p166, %p167
    %p170 = scmp.ne.s32.totalorder %s155, %s169
    %p171 = scmp.eq.s32.totalorder %s19, 0
    %p172 = por %p170, %p171
    %s173 = ssub.s32 %s13, %s20
    %p174 = scmp.eq.s32.totalorder %s173, 0
    %s176 = sadd.s32 %s175, 1
    %s177 = scalar_select %p174, %s175, %s176
    %p180 = pneg %p174
    %p181 = scmp.eq.s32.totalorder %s13, 1
    %p182 = por %p180, %p181
    %p183 = scmp.ne.s32.totalorder %s175, %s178
    %p184 = scmp.eq.s32.totalorder %s13, 0
    %p185 = por %p183, %p184
    %p186 = scmp.ne.s32.totalorder %s175, %s178
    %p187 = scmp.eq.s32.totalorder %s18, 1
    %p188 = por %p186, %p187
    %p189 = scmp.ne.s32.totalorder %s178, %s179
    %p190 = scmp.eq.s32.totalorder %s18, 0
    %p191 = por %p189, %p190
    %p192 = scmp.ne.s32.totalorder %s178, %s179
    %p193 = scmp.eq.s32.totalorder %s19, 1
    %p194 = por %p192, %p193
    %p196 = scmp.ne.s32.totalorder %s179, %s195
    %p197 = scmp.eq.s32.totalorder %s19, 0
    %p198 = por %p196, %p197
    %p199 = scmp.le.s32.totalorder 1, %s13
    %p200 = scmp.lt.s32.totalorder %s13, 3
    %p201 = pnand %p199, %p200
    %p202 = pneg %p201
    // Predicated region
    $region9: #{_lambda_.33} parent=5 // pred_check
      _
    $region10: #{_lambda_.33} parent=5 // pred_check_branch
      %204 = sbr.rel (%p201) target = $region12
    $region11: #{_lambda_.33} parent=5 // pred_region
      %s205 = ssub.s32 %s13, 1
      // Predicated region
      $region13: #{_lambda_.33} parent=11 // pred_check
        %p206 = pneg %p60
      $region14: #{_lambda_.33} parent=11 // pred_check_branch
        %208 = sbr.rel (%p206) target = $region16
      $region15: #{_lambda_.33} parent=11 // pred_region
        _
      $region16: #{_lambda_.33} parent=11 // pred_fallthru
        _
      // Predicated region
      $region17: #{_lambda_.33} parent=11 // pred_check
        %p209 = pneg %p81
      $region18: #{_lambda_.33} parent=11 // pred_check_branch
        %211 = sbr.rel (%p209) target = $region20
      $region19: #{_lambda_.33} parent=11 // pred_region
        _
      $region20: #{_lambda_.33} parent=11 // pred_fallthru
        _
      // Predicated region
      $region21: #{_lambda_.33} parent=11 // pred_check
        %p212 = pneg %p102
      $region22: #{_lambda_.33} parent=11 // pred_check_branch
        %214 = sbr.rel (%p212) target = $region24
      $region23: #{_lambda_.33} parent=11 // pred_region
        _
      $region24: #{_lambda_.33} parent=11 // pred_fallthru
        _
      // Predicated region
      $region25: #{_lambda_.33} parent=11 // pred_check
        %p215 = pneg %p123
      $region26: #{_lambda_.33} parent=11 // pred_check_branch
        %217 = sbr.rel (%p215) target = $region28
      $region27: #{_lambda_.33} parent=11 // pred_region
        _
      $region28: #{_lambda_.33} parent=11 // pred_fallthru
        _
      // Predicated region
      $region29: #{_lambda_.33} parent=11 // pred_check
        %p218 = pneg %p144
      $region30: #{_lambda_.33} parent=11 // pred_check_branch
        %220 = sbr.rel (%p218) target = $region32
      $region31: #{_lambda_.33} parent=11 // pred_region
        _
      $region32: #{_lambda_.33} parent=11 // pred_fallthru
        _
      // Predicated region
      $region33: #{_lambda_.33} parent=11 // pred_check
        %p221 = pneg %p165
      $region34: #{_lambda_.33} parent=11 // pred_check_branch
        %223 = sbr.rel (%p221) target = $region36
      $region35: #{_lambda_.33} parent=11 // pred_region
        _
      $region36: #{_lambda_.33} parent=11 // pred_fallthru
        _
    $region12: #{_lambda_.33} parent=5 // pred_fallthru
      _
    %p224 = scmp.lt.s32.totalorder %s13, 2
    // Predicated region
    $region37: #{_lambda_.33} parent=5 // pred_check
      %p225 = pneg %p224
    $region38: #{_lambda_.33} parent=5 // pred_check_branch
      %227 = sbr.rel (%p225) target = $region40
    $region39: #{_lambda_.33} parent=5 // pred_region
      // Predicated region
      $region41: #{_lambda_.33} parent=39 // pred_check
        %p228 = pneg %p33
      $region42: #{_lambda_.33} parent=39 // pred_check_branch
        %230 = sbr.rel (%p228) target = $region44
      $region43: #{_lambda_.33} parent=39 // pred_region
        %s231 = smul.u32 2, %s13
        %p232 = scmp.lt.s32.totalorder %s231, 3
        %s233 = scalar_select %p232, %s231, 3
        %s234 = smul.addr %s233, 8
        %s235 = scalar_lea.vmem %s0, %s234
        %s236 = smul.u32 2, %s13
      $region44: #{_lambda_.33} parent=39 // pred_fallthru
        _
    $region40: #{_lambda_.33} parent=5 // pred_fallthru
      _
    %p237 = scmp.le.s32.totalorder 1, %s13
    %p238 = scmp.lt.s32.totalorder %s13, 3
    %p239 = pnand %p237, %p238
    %p240 = pneg %p239
    // Predicated region
    $region45: #{_lambda_.33} parent=5 // pred_check
      _
    $region46: #{_lambda_.33} parent=5 // pred_check_branch
      %242 = sbr.rel (%p239) target = $region48
    $region47: #{_lambda_.33} parent=5 // pred_region
      %s243 = ssub.s32 %s13, 1
      %s244 = smul.u32 2, %s18
      %p245 = scmp.lt.s32.totalorder %s244, 3
      %s246 = scalar_select %p245, %s244, 3
      %s247 = smul.addr %s246, 8
      %s248 = scalar_lea.vmem %s0, %s247
      %p249 = pneg %p39
      %p250 = pneg %p36
      %p251 = pneg %p60
      %p252 = pneg %p57
      %p253 = pneg %p81
      %p254 = pneg %p78
      %p255 = pneg %p102
      %p256 = pneg %p99
      %p257 = pneg %p123
      %p258 = pneg %p120
      %p259 = pneg %p144
      %p260 = pneg %p141
      %p261 = pneg %p165
      %p262 = pneg %p162
      %p263 = pneg %p191
      %p264 = pneg %p188
      %s265 = smul.u32 2, %s18
      %p266 = scmp.lt.s32.totalorder %s265, 3
      %s267 = scalar_select %p266, %s265, 3
      %s268 = smul.addr %s267, 8
      %s269 = scalar_lea.vmem %s7, %s268
      %s270 = smul.u32 2, %s18
      %p271 = scmp.lt.s32.totalorder %s270, 3
      %s272 = scalar_select %p271, %s270, 3
      %s273 = smul.addr %s272, 8
      %s274 = scalar_lea.vmem %s0, %s273
      %s275 = smul.u32 2, %s18
      %s276 = smul.u32 2, %s18
      %p277 = scmp.lt.s32.totalorder %s276, 3
      %s278 = scalar_select %p277, %s276, 3
      %s279 = smul.addr %s278, 8
      %s280 = scalar_lea.vmem %s7, %s279
      %s281 = smul.u32 2, %s18
      %v283 = vld [vmem:[%s274] sm:$0xff]
      %v284 = vld [vmem:[%s274 + $0x8] sm:$0xff]
      %v285 = vld [vmem:[%s1] sm:$0x1]
      %v286 = vld [vmem:[%s2] sm:$0x1]
      %vm287 = vcmask 261120
      %v288 = vsel %vm287, %v283, 0.0
      %289 = vadd.xlane.f32.xlu0 %v288
      %v290 = vpop.xlane.xlu0 %289
      %v291 = vsel %vm287, %v284, 0.0
      %292 = vadd.xlane.f32.xlu0 %v291
      %v293 = vpop.xlane.xlu0 %292
      %v294 = vrcp.pop 32.0
      %v295 = vmul.f32 %v290, %v294
      %v296 = vmul.f32 %v293, %v294
      %v297 = vsub.f32 %v283, %v295
      %v298 = vsub.f32 %v284, %v296
      %v299 = vmul.f32 %v297, %v297
      %v300 = vmul.f32 %v298, %v298
      %v301 = vsel %vm287, %v299, 0.0
      %302 = vadd.xlane.f32.xlu0 %v301
      %v303 = vpop.xlane.xlu0 %302
      %v304 = vsel %vm287, %v300, 0.0
      %305 = vadd.xlane.f32.xlu0 %v304
      %v306 = vpop.xlane.xlu0 %305
      %v307 = vmul.f32 %v303, %v294
      %v308 = vmul.f32 %v306, %v294
      %v309 = vadd.f32 %v307, 1e-05
      %v310 = vadd.f32 %v308, 1e-05
      %v311 = vrsqrt.pop %v309
      %v312 = vrsqrt.pop %v310
      %v313 = vmul.f32 %v297, %v311
      %v314 = vmul.f32 %v298, %v312
      %v316 = vlaneseq
      %v317 = vshrl.u32 %v316, 7
      %v318 = vsub.s32 0, %v317
      %v319 = vrot.slane %v285, %v318
      %v321 = vmul.f32 %v313, %v319
      %v322 = vmul.f32 %v314, %v319
      %v324 = vlaneseq
      %v325 = vshrl.u32 %v324, 7
      %v326 = vsub.s32 0, %v325
      %v327 = vrot.slane %v286, %v326
      %v329 = vadd.f32 %v321, %v327
      %v330 = vadd.f32 %v322, %v327
      %v331 = vpack.c.bf16 %v330, %v329
      %v332 = vld [vmem:[%s3] sm:$0xf]
      %v333 = vld [vmem:[%s3 + $0x4] sm:$0xf]
      %v334 = vld [vmem:[%s3 + $0x8] sm:$0xf]
      %v335 = vld [vmem:[%s3 + $0xc] sm:$0xf]
      %v336 = vld [vmem:[%s4] sm:$0x1]
      %v338 = vlaneseq
      %v339 = vshrl.u32 %v338, 7
      %v340 = vsub.s32 0, %v339
      %v341 = vrot.slane %v336, %v340
      %v347 = vunpack.c.l.b16 %v332
      %v348 = vunpack.c.l.b16 %v333
      %v349 = vunpack.c.l.b16 %v334
      %v350 = vunpack.c.l.b16 %v335
      %v351 = vpack.c.b16 %v348, %v347
      %v352 = vpack.c.b16 %v350, %v349
      %v356 = vsel %vm287, %v331, 0
      %358 = vmatprep.subr.bf16.mxu0 0
      %359 = vmatpush1.bf16.msra.mxu0 0
      %360 = vmatprep.subr.bf16.mxu0 0
      %361 = vmatpush1.bf16.msra.mxu0 0
      %362 = vmatprep.subr.bf16.mxu0 0
      %363 = vmatpush1.bf16.msra.mxu0 0
      %364 = vmatprep.subr.bf16.mxu0 0
      %365 = vmatpush1.bf16.msra.mxu0 0
      %366 = vmatprep.subr.bf16.mxu0 0
      %367 = vmatpush1.bf16.msra.mxu0 0
      %368 = vmatprep.subr.bf16.mxu0 0
      %369 = vmatpush1.bf16.msra.mxu0 0
      %370 = vmatprep.subr.bf16.mxu0 0
      %371 = vmatpush1.bf16.msra.mxu0 %v352
      %372 = vmatprep.subr.bf16.mxu0 0
      %373 = vmatpush1.bf16.msra.mxu0 %v351
      %374 = vmatprep.subr.bf16.mxu0 0
      %375 = vmatpush2.bf16.msra.mxu0 0
      %376 = vmatprep.subr.bf16.mxu0 0
      %377 = vmatpush2.bf16.msra.mxu0 0
      %378 = vmatprep.subr.bf16.mxu0 0
      %379 = vmatpush2.bf16.msra.mxu0 0
      %380 = vmatprep.subr.bf16.mxu0 0
      %381 = vmatpush2.bf16.msra.mxu0 0
      %382 = vmatprep.subr.bf16.mxu0 0
      %383 = vmatpush2.bf16.msra.mxu0 0
      %384 = vmatprep.subr.bf16.mxu0 0
      %385 = vmatpush2.bf16.msra.mxu0 0
      %386 = vmatprep.subr.bf16.mxu0 0
      %387 = vmatpush2.bf16.msra.mxu0 0
      %388 = vmatprep.subr.bf16.mxu0 0
      %389 = vmatpush2.bf16.msra.mxu0 0
      %390 = vmatprep.mubr.bf16.mxu0 0
      %391 = vmatmul.mubr.bf16.gmra.mxu0 %v356
      %v392 = vpop.f32.mrf.mxu0
      %v393 = vadd.f32 %v341, %v392
      %v394 = vpop.f32.mrf.mxu0
      %v395 = vpop.f32.mrf.mxu0
      %v396 = vadd.f32 %v341, %v395
      %v397 = vpop.f32.mrf.mxu0
      %398 = vdwg.mxu0
      %v399 = vmul.f32 %v393, 0.5
      %v400 = vmul.f32 %v396, 0.5
      %v401 = vmul.f32 %v393, 0.70710677
      %v402 = vmul.f32 %v396, 0.70710677
      %v403 = vand.u32 2147483647, %v401
      %v404 = vand.u32 2147483647, %v402
      %v405 = vmul.f32 %v403, 0.3275911
      %v406 = vmul.f32 %v404, 0.3275911
      %v407 = vadd.f32 %v405, 1.0
      %v408 = vadd.f32 %v406, 1.0
      %v409 = vrcp.pop %v407
      %v410 = vmul.f32 1.0, %v409
      %v411 = vrcp.pop %v408
      %v412 = vmul.f32 1.0, %v411
      %v413 = vmul.f32 %v410, 1.0614054
      %v414 = vmul.f32 %v412, 1.0614054
      %v415 = vadd.f32 %v413, -1.4531521
      %v416 = vadd.f32 %v414, -1.4531521
      %v417 = vmul.f32 %v415, %v410
      %v418 = vmul.f32 %v416, %v412
      %v419 = vadd.f32 %v417, 1.4214138
      %v420 = vadd.f32 %v418, 1.4214138
      %v421 = vmul.f32 %v419, %v410
      %v422 = vmul.f32 %v420, %v412
      %v423 = vadd.f32 %v421, -0.28449672
      %v424 = vadd.f32 %v422, -0.28449672
      %v425 = vmul.f32 %v423, %v410
      %v426 = vmul.f32 %v424, %v412
      %v427 = vadd.f32 %v425, 0.2548296
      %v428 = vadd.f32 %v426, 0.2548296
      %v429 = vmul.f32 %v427, %v410
      %v430 = vmul.f32 %v428, %v412
      %v431 = vsub.f32 0.0, %v403
      %v432 = vsub.f32 0.0, %v404
      %v433 = vmul.f32 %v431, %v403
      %v434 = vmul.f32 %v432, %v404
      %v435 = vmul.f32 %v433, 1.442695
      %v436 = vpow.pop %v435
      %v437 = vmul.f32 %v434, 1.442695
      %v438 = vpow.pop %v437
      %v439 = vmul.f32 %v429, %v436
      %v440 = vmul.f32 %v430, %v438
      %v441 = vsub.f32 1.0, %v439
      %v442 = vsub.f32 1.0, %v440
      %vm443 = vcmp.ge.f32.partialorder %v401, 0.0
      %vm444 = vcmp.ge.f32.partialorder %v402, 0.0
      %v445 = vsub.f32 0.0, %v441
      %v446 = vsub.f32 0.0, %v442
      %v447 = vsel %vm443, %v441, %v445
      %v448 = vsel %vm444, %v442, %v446
      %v449 = vadd.f32 %v447, 1.0
      %v450 = vadd.f32 %v448, 1.0
      %v451 = vmul.f32 %v399, %v449
      %v452 = vmul.f32 %v400, %v450
      %v453 = vpack.c.bf16 %v452, %v451
      %v454 = vld [vmem:[%s5] sm:$0xf]
      %v455 = vld [vmem:[%s5 + $0x4] sm:$0xf]
      %v456 = vld [vmem:[%s5 + $0x8] sm:$0xf]
      %v457 = vld [vmem:[%s5 + $0xc] sm:$0xf]
      %v458 = vld [vmem:[%s5 + $0x10] sm:$0xf]
      %v459 = vld [vmem:[%s5 + $0x14] sm:$0xf]
      %v460 = vld [vmem:[%s5 + $0x18] sm:$0xf]
      %v461 = vld [vmem:[%s5 + $0x1c] sm:$0xf]
      %v462 = vld [vmem:[%s5 + $0x20] sm:$0xf]
      %v463 = vld [vmem:[%s5 + $0x24] sm:$0xf]
      %v464 = vld [vmem:[%s5 + $0x28] sm:$0xf]
      %v465 = vld [vmem:[%s5 + $0x2c] sm:$0xf]
      %v466 = vld [vmem:[%s5 + $0x30] sm:$0xf]
      %v467 = vld [vmem:[%s5 + $0x34] sm:$0xf]
      %v468 = vld [vmem:[%s5 + $0x38] sm:$0xf]
      %v469 = vld [vmem:[%s5 + $0x3c] sm:$0xf]
      %v470 = vld [vmem:[%s6] sm:$0x1]
      %v472 = vlaneseq
      %v473 = vshrl.u32 %v472, 7
      %v474 = vsub.s32 0, %v473
      %v475 = vrot.slane %v470, %v474
      %v493 = vunpack.c.l.b16 %v454
      %v494 = vunpack.c.l.b16 %v455
      %v495 = vunpack.c.l.b16 %v456
      %v496 = vunpack.c.l.b16 %v457
      %v497 = vunpack.c.l.b16 %v458
      %v498 = vunpack.c.l.b16 %v459
      %v499 = vunpack.c.l.b16 %v460
      %v500 = vunpack.c.l.b16 %v461
      %v501 = vunpack.c.l.b16 %v462
      %v502 = vunpack.c.l.b16 %v463
      %v503 = vunpack.c.l.b16 %v464
      %v504 = vunpack.c.l.b16 %v465
      %v505 = vunpack.c.l.b16 %v466
      %v506 = vunpack.c.l.b16 %v467
      %v507 = vunpack.c.l.b16 %v468
      %v508 = vunpack.c.l.b16 %v469
      %v509 = vpack.c.b16 %v494, %v493
      %v510 = vpack.c.b16 %v496, %v495
      %v511 = vpack.c.b16 %v498, %v497
      %v512 = vpack.c.b16 %v500, %v499
      %v513 = vpack.c.b16 %v502, %v501
      %v514 = vpack.c.b16 %v504, %v503
      %v515 = vpack.c.b16 %v506, %v505
      %v516 = vpack.c.b16 %v508, %v507
      %525 = vmatprep.subr.bf16.mxu0 0
      %526 = vmatpush1.bf16.msra.mxu0 %v516
      %527 = vmatprep.subr.bf16.mxu0 0
      %528 = vmatpush1.bf16.msra.mxu0 %v515
      %529 = vmatprep.subr.bf16.mxu0 0
      %530 = vmatpush1.bf16.msra.mxu0 %v514
      %531 = vmatprep.subr.bf16.mxu0 0
      %532 = vmatpush1.bf16.msra.mxu0 %v513
      %533 = vmatprep.subr.bf16.mxu0 0
      %534 = vmatpush1.bf16.msra.mxu0 %v512
      %535 = vmatprep.subr.bf16.mxu0 0
      %536 = vmatpush1.bf16.msra.mxu0 %v511
      %537 = vmatprep.subr.bf16.mxu0 0
      %538 = vmatpush1.bf16.msra.mxu0 %v510
      %539 = vmatprep.subr.bf16.mxu0 0
      %540 = vmatpush1.bf16.msra.mxu0 %v509
      %541 = vmatprep.subr.bf16.mxu0 0
      %542 = vmatpush2.bf16.msra.mxu0 0
      %543 = vmatprep.subr.bf16.mxu0 0
      %544 = vmatpush2.bf16.msra.mxu0 0
      %545 = vmatprep.subr.bf16.mxu0 0
      %546 = vmatpush2.bf16.msra.mxu0 0
      %547 = vmatprep.subr.bf16.mxu0 0
      %548 = vmatpush2.bf16.msra.mxu0 0
      %549 = vmatprep.subr.bf16.mxu0 0
      %550 = vmatpush2.bf16.msra.mxu0 0
      %551 = vmatprep.subr.bf16.mxu0 0
      %552 = vmatpush2.bf16.msra.mxu0 0
      %553 = vmatprep.subr.bf16.mxu0 0
      %554 = vmatpush2.bf16.msra.mxu0 0
      %555 = vmatprep.subr.bf16.mxu0 0
      %556 = vmatpush2.bf16.msra.mxu0 0
      %557 = vmatprep.mubr.bf16.mxu0 0
      %558 = vmatmul.mubr.bf16.gmra.mxu0 %v453
      %v559 = vpop.f32.mrf.mxu0
      %v560 = vadd.f32 %v475, %v559
      %v561 = vpop.f32.mrf.mxu0
      %v562 = vpop.f32.mrf.mxu0
      %v563 = vadd.f32 %v475, %v562
      %v564 = vpop.f32.mrf.mxu0
      %565 = vdwg.mxu0
      %v566 = vadd.f32 %v283, %v560
      %v567 = vadd.f32 %v284, %v563
      %568 = vst.msk [vmem:[%s280] sm:$0xff] %vm287, %v566
      %569 = vst.msk [vmem:[%s280 + $0x8] sm:$0xff] %vm287, %v567
      %s570 = smul.u32 2, %s18
      %p571 = scmp.lt.s32.totalorder %s570, 3
      %s572 = scalar_select %p571, %s570, 3
      %s573 = smul.addr %s572, 8
      %s574 = scalar_lea.vmem %s7, %s573
      // Predicated region
      $region49: #{_lambda_.33} parent=47 // pred_check
        %p575 = pneg %p188
      $region50: #{_lambda_.33} parent=47 // pred_check_branch
        %577 = sbr.rel (%p575) target = $region52
      $region51: #{_lambda_.33} parent=47 // pred_region
        %s578 = smul.u32 2, %s18
      $region52: #{_lambda_.33} parent=47 // pred_fallthru
        _
    $region48: #{_lambda_.33} parent=5 // pred_fallthru
      _
    %p579 = scmp.le.s32.totalorder 2, %s13
    // Predicated region
    $region53: #{_lambda_.33} parent=5 // pred_check
      %p580 = pneg %p579
    $region54: #{_lambda_.33} parent=5 // pred_check_branch
      %582 = sbr.rel (%p580) target = $region56
    $region55: #{_lambda_.33} parent=5 // pred_region
      %s583 = ssub.s32 %s13, 2
      // Predicated region
      $region57: #{_lambda_.33} parent=55 // pred_check
        %p584 = pneg %p194
      $region58: #{_lambda_.33} parent=55 // pred_check_branch
        %586 = sbr.rel (%p584) target = $region60
      $region59: #{_lambda_.33} parent=55 // pred_region
        %s587 = smul.u32 2, %s19
        %p588 = scmp.lt.s32.totalorder %s587, 3
        %s589 = scalar_select %p588, %s587, 3
        %s590 = smul.addr %s589, 8
        %s591 = scalar_lea.vmem %s7, %s590
      $region60: #{_lambda_.33} parent=55 // pred_fallthru
        _
    $region56: #{_lambda_.33} parent=5 // pred_fallthru
      _
  $region6: #{_lambda_.33} parent=0 // loop_footer
    %s17 = sadd.s32 1, %s13
  $region7: #{_lambda_.33} parent=0 // loop_footer_branch
    %12 = sbr.rel target = $region3
  $region8: #{_lambda_.33} parent=0 // loop_exit
    _

// kernel: _lambda_.39
$region0: #{_lambda_.39}
  #allocation0 [shape = 'u32[]', space=smem, size = 0x4, offset = 0x4, fixed_abs, tag = 'smem constant byte address 0x4 - core index']
  #allocation1 [shape = 'u32[144,128]{1,0:T(1,128)}', space=vmem, size = 0x12000, scoped, tag = 'internal scratch']
  %s0 = inlined_call_operand.vmem [shape: f32[2,32], index: 0, kind: input, shape index: {}]
  %s1 = inlined_call_operand.vmem [shape: bf16[32,10], index: 1, kind: input, shape index: {}]
  %s2 = inlined_call_operand.vmem [shape: f32[1,10], index: 2, kind: input, shape index: {}]
  %s3 = inlined_call_operand.hbm [shape: f32[2,10], index: 3, kind: output, shape index: {}]
  %s4 = sld [smem:[#allocation0]]
  $region22: #{_lambda_.39} parent=0
    _
  %s6 = ssub.s32 1, %s4
  %s7 = scalar_select 0, %s6, %s4
  $region1: #{_lambda_.39} parent=0
    #allocation2 [shape = 'u8[1024]{0}', space=vmem, size = 0x400, scoped, tag = 'output window, operand 0, single buffered']
    #allocation3 [shape = 's32[1]{0}', space=sflag, size = 0x4, scoped, tag = 'scoped memory for _lambda_.39']
    %8 = vsyncpa [#allocation3], 0
    // Predicated region
    $region2: #{_lambda_.39} parent=1 // pred_check
      _
    $region3: #{_lambda_.39} parent=1 // pred_check_branch
      %10 = sbr.rel (0) target = $region5
    $region4: #{_lambda_.39} parent=1 // pred_region
      _
    $region5: #{_lambda_.39} parent=1 // pred_fallthru
      _
    // Predicated region
    $region6: #{_lambda_.39} parent=1 // pred_check
      _
    $region7: #{_lambda_.39} parent=1 // pred_check_branch
      %12 = sbr.rel (0) target = $region9
    $region8: #{_lambda_.39} parent=1 // pred_region
      _
    $region9: #{_lambda_.39} parent=1 // pred_fallthru
      _
    // Predicated region
    $region10: #{_lambda_.39} parent=1 // pred_check
      _
    $region11: #{_lambda_.39} parent=1 // pred_check_branch
      %14 = sbr.rel (0) target = $region13
    $region12: #{_lambda_.39} parent=1 // pred_region
      _
    $region13: #{_lambda_.39} parent=1 // pred_fallthru
      _
    %v16 = vld [vmem:[%s0] sm:$0x3]
    %v17 = vpack.c.bf16 %v16, %v16
    %v18 = vld [vmem:[%s1] sm:$0xf]
    %v19 = vld [vmem:[%s1 + $0x4] sm:$0xf]
    %v20 = vld [vmem:[%s1 + $0x8] sm:$0xf]
    %v21 = vld [vmem:[%s1 + $0xc] sm:$0xf]
    %v22 = vld [vmem:[%s2] sm:$0x1]
    %v24 = vlaneseq
    %v25 = vshrl.u32 %v24, 7
    %v26 = vsub.s32 0, %v25
    %v27 = vrot.slane %v22, %v26
    %v33 = vunpack.c.l.b16 %v18
    %v34 = vunpack.c.l.b16 %v19
    %v35 = vunpack.c.l.b16 %v20
    %v36 = vunpack.c.l.b16 %v21
    %v37 = vpack.c.b16 %v34, %v33
    %v38 = vpack.c.b16 %v36, %v35
    %vm41 = vcmask 261120
    %v43 = vsel %vm41, %v17, 0
    %45 = vmatprep.subr.bf16.mxu0 0
    %46 = vmatpush1.bf16.msra.mxu0 0
    %47 = vmatprep.subr.bf16.mxu0 0
    %48 = vmatpush1.bf16.msra.mxu0 0
    %49 = vmatprep.subr.bf16.mxu0 0
    %50 = vmatpush1.bf16.msra.mxu0 0
    %51 = vmatprep.subr.bf16.mxu0 0
    %52 = vmatpush1.bf16.msra.mxu0 0
    %53 = vmatprep.subr.bf16.mxu0 0
    %54 = vmatpush1.bf16.msra.mxu0 0
    %55 = vmatprep.subr.bf16.mxu0 0
    %56 = vmatpush1.bf16.msra.mxu0 0
    %57 = vmatprep.subr.bf16.mxu0 0
    %58 = vmatpush1.bf16.msra.mxu0 %v38
    %59 = vmatprep.subr.bf16.mxu0 0
    %60 = vmatpush1.bf16.msra.mxu0 %v37
    %61 = vmatprep.subr.bf16.mxu0 0
    %62 = vmatpush2.bf16.msra.mxu0 0
    %63 = vmatprep.subr.bf16.mxu0 0
    %64 = vmatpush2.bf16.msra.mxu0 0
    %65 = vmatprep.subr.bf16.mxu0 0
    %66 = vmatpush2.bf16.msra.mxu0 0
    %67 = vmatprep.subr.bf16.mxu0 0
    %68 = vmatpush2.bf16.msra.mxu0 0
    %69 = vmatprep.subr.bf16.mxu0 0
    %70 = vmatpush2.bf16.msra.mxu0 0
    %71 = vmatprep.subr.bf16.mxu0 0
    %72 = vmatpush2.bf16.msra.mxu0 0
    %73 = vmatprep.subr.bf16.mxu0 0
    %74 = vmatpush2.bf16.msra.mxu0 0
    %75 = vmatprep.subr.bf16.mxu0 0
    %76 = vmatpush2.bf16.msra.mxu0 0
    %77 = vmatprep.mubr.bf16.mxu0 0
    %78 = vmatmul.mubr.bf16.gmra.mxu0 %v43
    %v79 = vpop.f32.mrf.mxu0
    %v80 = vadd.f32 %v27, %v79
    %v81 = vpop.f32.mrf.mxu0
    %v82 = vpop.f32.mrf.mxu0
    %v83 = vpop.f32.mrf.mxu0
    %84 = vdwg.mxu0
    %vm85 = vcmask 74752
    %86 = vst.msk [vmem:[#allocation2] sm:$0x3] %vm85, %v80
    // Predicated region
    $region14: #{_lambda_.39} parent=1 // pred_check
      _
    $region15: #{_lambda_.39} parent=1 // pred_check_branch
      %88 = sbr.rel (0) target = $region17
    $region16: #{_lambda_.39} parent=1 // pred_region
      %s90 = ssub.s32 32, 32
      %91 = vsyncadd [#allocation3], %s90
      %s93 = sshll.u32 [#allocation2], 4
      %s94 = int_to_ptr.vmem [resolvable:$true] %s93
      %96 = dma.vmem_to_hbm [thread:$0]  %s94, 32, %s3, [#allocation3]
    $region17: #{_lambda_.39} parent=1 // pred_fallthru
      _
    // Predicated region
    $region18: #{_lambda_.39} parent=1 // pred_check
      _
    $region19: #{_lambda_.39} parent=1 // pred_check_branch
      %98 = sbr.rel (0) target = $region21
    $region20: #{_lambda_.39} parent=1 // pred_region
      %99 = dma.done [#allocation3], 32
    $region21: #{_lambda_.39} parent=1 // pred_fallthru
      _
    %100 = vsyncpa [#allocation3], 1

</llo_original>
